<compile_context>
chip_gen: v5e
topology: v5e:2x2
jax: 0.10.0
libtpu: 0.0.40
codegen_flags: <defaults>
</compile_context>

<pallas_src>
import functools

import jax
import jax.numpy as jnp
from jax import lax
from jax.experimental import pallas as pl
from jax.experimental.pallas import tpu as pltpu

F32 = jnp.float32


# ---------------------------------------------------------------------------
# elementwise helpers (exp/tanh/reciprocal hit the EUP; only Mosaic-safe primitives)
# ---------------------------------------------------------------------------
def _sigmoid(x):
    # EUP exp + EUP approx reciprocal (feedback: keep the divide off the VPU).
    return pl.reciprocal(1.0 + jnp.exp(-x), approx=True)


def _silu(x):
    return x * _sigmoid(x)


def _softplus(x):
    return jnp.maximum(x, 0.0) + jnp.log(1.0 + jnp.exp(-jnp.abs(x)))


def _gelu(x):
    # tanh-approx GELU (EUP tanh, one bundle slot) instead of an erf polynomial chain.
    # Deviates from nn.GELU()'s exact erf by ~1e-3 max abs — accepted per perf review.
    c = 0.7978845608028654  # sqrt(2/pi)
    return 0.5 * x * (1.0 + jnp.tanh(c * (x + 0.044715 * x * x * x)))


# ---------------------------------------------------------------------------
# fused forward kernel
# ---------------------------------------------------------------------------
# Per-Mamba-layer parameter order handed to the kernel (all pre-laid-out as (in, out)):
#   w_in_x, w_in_z, conv_w, conv_b, w_dtbc (fused dt|B|C), b_dt, A_t, D_vec, w_out,
#   ln_g, ln_b, ffn_w1, ffn_b1, ffn_w2, ffn_b2, ffn_ln_g, ffn_ln_b
_LAYER_FIELDS = 17
# Per-KAN-layer: base_w (in,out), spline_w_flat (coef*in,out), grid (G,in), grid_rinv (SO*G,in)
_KAN_FIELDS = 4


def _make_fused_kernel(cfg, batch):
    D = cfg["hidden"]; L = cfg["seq_len"]; Din = cfg["d_inner"]
    N = cfg["d_state"]; Kc = cfg["d_conv"]
    H = cfg["kan_hidden"]; NC = cfg["num_cluster"]
    GS = cfg["grid_size"]; SO = cfg["spline_order"]
    G = GS + 2 * SO + 1
    ITEM = cfg["item_size"]; NL = cfg["n_layers"]; NK = cfg["n_kan_layers"]
    Bn = batch
    BL = Bn * L
    EPS_LN = 1e-12                        # nn.LayerNorm(..., eps=1e-12) in the spec
    EPS_COS = 1e-8                        # torch.cosine_similarity default

    def mm(x, w_ref, b_ref=None):
        y = jnp.dot(x, w_ref[...], preferred_element_type=F32)
        if b_ref is not None:
            y = y + b_ref[...]
        return y

    def ln(x, g_ref, b_ref):
        mu = jnp.mean(x, axis=-1, keepdims=True)
        xc = x - mu
        var = jnp.mean(xc * xc, axis=-1, keepdims=True)
        return xc * lax.rsqrt(var + EPS_LN) * g_ref[...] + b_ref[...]

    def kernel(*refs):
        it = iter(refs)
        ids_ref = next(it)
        item_ref, pos_ref, eg_ref, eb_ref = (next(it) for _ in range(4))
        layer_refs = [tuple(next(it) for _ in range(_LAYER_FIELDS)) for _ in range(NL)]
        pw_ref, pb_ref = next(it), next(it)
        kan_refs = [tuple(next(it) for _ in range(_KAN_FIELDS)) for _ in range(NK)]
        prot_ref = next(it)
        kan_out_ref, assign_ref = next(it), next(it)
        assert next(it, None) is None     # trace-time sanity check on arg ordering

        # ---- embeddings: one-hot gather on the MXU + positional add + LayerNorm ----
        # (ITEM=50 -> one-hot is cheaper than a DMA gather; for realistic item_size keep
        #  the table in HBM (memory_space=pl.ANY) and gather via scalar-prefetched ids.)
        ids = ids_ref[...]                                                # (BL, 1) int32
        item_iota = lax.broadcasted_iota(jnp.int32, (BL, ITEM), 1)
        onehot = jnp.where(item_iota == ids, 1.0, 0.0)
        emb = jnp.dot(onehot, item_ref[...], preferred_element_type=F32)  # (BL, D)
        seq = emb.reshape(Bn, L, D) + pos_ref[...][None, :, :]
        h = ln(seq.reshape(BL, D), eg_ref, eb_ref)                        # (BL, D)
        # TODO(synk): nn.Dropout layers have no deterministic equivalent -> identity (eval).

        for (w_in_x, w_in_z, cw, cb, w_dtbc, b_dt, a_t, d_vec, w_out,
             lg, lb, w1, b1, w2, b2, fg, fb) in layer_refs:
            # ---- Mamba: in_proj, x / z branches (pre-split weights) ----
            x3 = mm(h, w_in_x).reshape(Bn, L, Din)                        # (Bn, L, Din)
            z3 = mm(h, w_in_z).reshape(Bn, L, Din)

            # ---- depthwise causal conv1d (+bias, SiLU); pad kept in vregs, no scratch ----
            xpad = jnp.concatenate(
                [jnp.zeros((Bn, Kc - 1, Din), F32), x3], axis=1)          # (Bn, Kc-1+L, Din)
            cwv = cw[...]                                                 # (Kc, Din)
            acc = jnp.zeros((Bn, L, Din), F32)
            for k in range(Kc):
                acc = acc + xpad[:, k:k + L, :] * cwv[k][None, None, :]
            u3 = _silu(acc + cb[...])                                     # (Bn, L, Din)
            u_flat = u3.reshape(BL, Din)

            # ---- fused (dt | B | C) projection: one lane-dense matmul, slice after ----
            dtbc = mm(u_flat, w_dtbc)                                     # (BL, Din+2N)
            dt3 = _softplus(dtbc[:, :Din] + b_dt[...]).reshape(Bn, L, Din)
            b_seq = dtbc[:, Din:Din + N].reshape(Bn, L, N)
            c_seq = dtbc[:, Din + N:].reshape(Bn, L, N)

            # ---- selective scan: exp / dBu hoisted out of the serial recurrence ----
            a_tv = a_t[...]                                               # (N, Din) = -exp(A_log).T
            dv = d_vec[...]                                               # (1, Din)
            dA_all = jnp.exp(dt3[:, :, None, :] * a_tv[None, None, :, :])   # (Bn, L, N, Din)
            dBu_all = (dt3 * u3)[:, :, None, :] * b_seq[:, :, :, None]       # (Bn, L, N, Din)
            gate = _silu(z3)                                              # (Bn, L, Din)
            hstate = jnp.zeros((Bn, N, Din), F32)
            ys = []
            for t in range(L):                                            # L=8: static unroll
                hstate = dA_all[:, t] * hstate + dBu_all[:, t]
                y_t = jnp.sum(hstate * c_seq[:, t, :][:, :, None], axis=1) + dv * u3[:, t, :]
                ys.append(y_t * gate[:, t, :])
            y_all = jnp.stack(ys, axis=1).reshape(BL, Din)                # stays in vregs
            m_out = mm(y_all, w_out)                                      # (BL, D), out_proj

            # ---- residual + LayerNorm + FFN(GELU) + LayerNorm ----
            hn = ln(m_out, lg, lb) if NL == 1 else ln(m_out + h, lg, lb)
            ff = mm(_gelu(mm(hn, w1, b1)), w2, b2)
            h = ln(ff + hn, fg, fb)

        # ---- head: last token -> projection -> KAN -> cosine similarity + argmax ----
        last = h.reshape(Bn, L, D)[:, L - 1, :]                           # (Bn, D)
        x = mm(last, pw_ref, pb_ref)                                      # (Bn, H)

        for (wb, ws, gr, rgr) in kan_refs:
            g = gr[...]                                                   # (G, IN)
            rg = rgr[...]                                                 # (SO*G, IN) reciprocals
            base = jnp.dot(_silu(x), wb[...], preferred_element_type=F32)
            # Cox-de Boor recursion; divides replaced by host-precomputed reciprocals.
            bases = [jnp.where((x >= g[j][None, :]) & (x < g[j + 1][None, :]), 1.0, 0.0)
                     for j in range(G - 1)]
            for k in range(1, SO + 1):
                nxt = []
                for j in range(len(bases) - 1):
                    left = (x - g[j][None, :]) * rg[(k - 1) * G + j][None, :] * bases[j]
                    right = ((g[j + k + 1][None, :] - x) *
                             rg[(k - 1) * G + j + 1][None, :] * bases[j + 1])
                    nxt.append(left + right)
                bases = nxt
            bflat = jnp.concatenate(bases, axis=-1)                       # (Bn, coef*IN) lane-dense
            x = base + jnp.dot(bflat, ws[...], preferred_element_type=F32)

        kan_out_ref[...] = x

        # torch.cosine_similarity: clamp the PRODUCT of the norms (eps=1e-8), fused argmax.
        p = prot_ref[...]                                                 # (H, NC)
        dots = jnp.dot(x, p, preferred_element_type=F32)                  # (Bn, NC)
        xn = jnp.sqrt(jnp.sum(x * x, axis=-1, keepdims=True))
        pn = jnp.sqrt(jnp.sum(p * p, axis=0, keepdims=True))
        denom = jnp.maximum(xn * pn, EPS_COS)
        sim = dots * pl.reciprocal(denom, approx=True)
        best = jnp.max(sim, axis=-1, keepdims=True)
        idxf = lax.broadcasted_iota(jnp.int32, (Bn, NC), 1).astype(F32)
        first_max = jnp.min(jnp.where(sim == best, idxf, float(NC)), axis=-1, keepdims=True)
        assign_ref[...] = first_max.astype(jnp.int32)

    return kernel


def combined_forward(prepared, input_ids, cfg):
    Bn, L = input_ids.shape
    H = cfg["kan_hidden"]
    ids2 = input_ids.reshape(Bn * L, 1).astype(jnp.int32)
    kernel = _make_fused_kernel(cfg, Bn)

    # Explicit scoped-VMEM limit sized from the real footprint (v5e default is only 16 MiB).
    footprint = sum(int(p.size) * p.dtype.itemsize for p in prepared) + int(ids2.size) * 4
    vmem_limit = int(max(2 * footprint + (8 << 20), 16 << 20))

    kan_out, assign = pl.pallas_call(
        kernel,
        out_shape=(jax.ShapeDtypeStruct((Bn, H), F32),
                   jax.ShapeDtypeStruct((Bn, 1), jnp.int32)),
        compiler_params=pltpu.CompilerParams(vmem_limit_bytes=vmem_limit),
    )(ids2, *prepared)
    # TODO(synk): torch returns int64 cluster ids; int32 here (JAX x64 disabled by default).
    return kan_out, assign[:, 0]


def build_forward(cfg):
    return jax.jit(functools.partial(combined_forward, cfg=cfg))


# ---------------------------------------------------------------------------
# deterministic synthetic parameters (PyTorch-native layouts) + one-time kernel re-layout
# ---------------------------------------------------------------------------
def init_torch_params(key, cfg):
    ks = iter(jax.random.split(key, 128))

    def nrm(shape, scale=0.02):
        return (scale * jax.random.normal(next(ks), shape)).astype(F32)

    D, L = cfg["hidden"], cfg["seq_len"]
    Din, N, R, Kc = cfg["d_inner"], cfg["d_state"], cfg["dt_rank"], cfg["d_conv"]
    H = cfg["kan_hidden"]
    Ksp = cfg["grid_size"] + cfg["spline_order"]

    params = {
        "item_emb": nrm((cfg["item_size"], D)),
        "pos_emb": nrm((L, D)),
        "emb_ln_g": jnp.ones((D,), F32), "emb_ln_b": jnp.zeros((D,), F32),
        "layers": [],
        "proj_w": nrm((H, D)), "proj_b": jnp.zeros((H,), F32),
        "kan_layers": [],
        "prototypes": jax.random.normal(next(ks), (cfg["num_cluster"], H)).astype(F32),
    }
    for _ in range(cfg["n_layers"]):
        params["layers"].append({
            "in_proj_w": nrm((2 * Din, D)),                 # Linear(D, 2*Din, bias=False)
            "conv_w": nrm((Din, Kc), 0.1),                  # depthwise Conv1d weight (Din,1,Kc) squeezed
            "conv_b": jnp.zeros((Din,), F32),
            "x_proj_w": nrm((R + 2 * N, Din)),              # Linear(Din, R+2N, bias=False)
            "dt_proj_w": nrm((Din, R), 0.1),
            "dt_proj_b": nrm((Din,), 0.1),
            "A_log": jnp.tile(jnp.log(jnp.arange(1, N + 1, dtype=F32))[None, :], (Din, 1)),
            "D": jnp.ones((Din,), F32),
            "out_proj_w": nrm((D, Din)),                    # Linear(Din, D, bias=False)
            "ln_g": jnp.ones((D,), F32), "ln_b": jnp.zeros((D,), F32),
            "ffn_w1": nrm((4 * D, D)), "ffn_b1": jnp.zeros((4 * D,), F32),
            "ffn_w2": nrm((D, 4 * D)), "ffn_b2": jnp.zeros((D,), F32),
            "ffn_ln_g": jnp.ones((D,), F32), "ffn_ln_b": jnp.zeros((D,), F32),
        })
    gvals = (jnp.arange(-cfg["spline_order"], cfg["grid_size"] + cfg["spline_order"] + 1,
                        dtype=F32) * (2.0 / cfg["grid_size"]) - 1.0)      # grid_range [-1, 1]
    kan_dims = [H, H, H]                                                  # KAN([128, 128, 128])
    for i in range(len(kan_dims) - 1):
        o, n = kan_dims[i + 1], kan_dims[i]
        params["kan_layers"].append({
            "base_w": nrm((o, n), 0.05),
            "spline_w": nrm((o, n, Ksp), 0.05),
            "spline_scaler": jnp.ones((o, n), F32) + nrm((o, n), 0.05),
            "grid": jnp.tile(gvals[None, :], (n, 1)),                     # (in, G), torch layout
        })
    return params


def prepare_params(params, cfg):
    """One-time re-layout of torch-layout params into kernel-ready (in, out) matrices."""
    Din, N, R = cfg["d_inner"], cfg["d_state"], cfg["dt_rank"]
    SO, GS = cfg["spline_order"], cfg["grid_size"]
    Ksp = GS + SO
    G = GS + 2 * SO + 1
    f = lambda a: jnp.asarray(a, F32)
    row = lambda a: f(a).reshape(1, -1)

    prep = [f(params["item_emb"]), f(params["pos_emb"]),
            row(params["emb_ln_g"]), row(params["emb_ln_b"])]
    for lp in params["layers"]:
        w_in = f(lp["in_proj_w"]).T                       # (D, 2*Din)
        w_x = f(lp["x_proj_w"]).T                         # (Din, R+2N)
        # Fuse the rank-R dt bottleneck into a single (Din, Din) matrix (no nonlinearity
        # between the two linears), then concatenate dt|B|C into one matmul weight.
        w_dt_fused = w_x[:, :R] @ f(lp["dt_proj_w"]).T    # (Din, Din)
        w_dtbc = jnp.concatenate(
            [w_dt_fused, w_x[:, R:R + N], w_x[:, R + N:]], axis=1)        # (Din, Din+2N)
        prep += [
            w_in[:, :Din], w_in[:, Din:],                 # in_proj -> x / z branches
            f(lp["conv_w"]).T,                            # (Kc, Din)
            row(lp["conv_b"]),
            w_dtbc,
            row(lp["dt_proj_b"]),
            (-jnp.exp(f(lp["A_log"]))).T,                 # A = -exp(A_log), stored as (N, Din)
            row(lp["D"]),
            f(lp["out_proj_w"]).T,                        # (Din, D)
            row(lp["ln_g"]), row(lp["ln_b"]),
            f(lp["ffn_w1"]).T, row(lp["ffn_b1"]),
            f(lp["ffn_w2"]).T, row(lp["ffn_b2"]),
            row(lp["ffn_ln_g"]), row(lp["ffn_ln_b"]),
        ]
    prep += [f(params["proj_w"]).T, row(params["proj_b"])]
    for kl in params["kan_layers"]:
        o, n = kl["base_w"].shape
        scaled = f(kl["spline_w"]) * f(kl["spline_scaler"])[:, :, None]   # (out, in, coef)
        ws_flat = jnp.transpose(scaled, (2, 1, 0)).reshape(Ksp * n, o)    # coef-major flatten
        grid_t = f(kl["grid"]).T                                          # (G, in)
        # Precompute 1/(g[j+k]-g[j]) for every order k and knot j (uniform grid -> exact);
        # rows are laid out as (k-1)*G + j so the kernel can index them with static ints.
        rows = []
        for k in range(1, SO + 1):
            for j in range(G):
                if j + k <= G - 1:
                    rows.append(1.0 / (grid_t[j + k] - grid_t[j]))
                else:
                    rows.append(jnp.zeros((n,), F32))                     # unused padding
        grid_rinv = jnp.stack(rows, axis=0)                               # (SO*G, in)
        prep += [f(kl["base_w"]).T, ws_flat, grid_t, grid_rinv]
    prep.append(f(params["prototypes"]).T)                # (H, num_cluster)
    return prep


if __name__ == "__main__":
    cfg = dict(item_size=50, seq_len=8, hidden=32, n_layers=1,
               d_state=16, d_conv=4, expand=2, d_inner=64, dt_rank=2,   # dt_rank = ceil(32/16)
               kan_hidden=128, num_cluster=4, grid_size=5, spline_order=3,
               n_kan_layers=2)                                          # KAN([128,128,128]) -> 2 layers
    key = jax.random.PRNGKey(0)
    pkey, dkey = jax.random.split(key)
    params = init_torch_params(pkey, cfg)
    prepared = prepare_params(params, cfg)
    input_ids = jax.random.randint(dkey, (2, cfg["seq_len"]), 1, cfg["item_size"],
                                   dtype=jnp.int32)

    fwd = build_forward(cfg)
    kan_embeddings, cluster_assignments = fwd(prepared, input_ids)
    kan_embeddings = jax.block_until_ready(kan_embeddings)
    cluster_assignments = jax.block_until_ready(cluster_assignments)

    assert kan_embeddings.shape == (2, cfg["kan_hidden"])
    assert cluster_assignments.shape == (2,)
    assert bool(jnp.all(jnp.isfinite(kan_embeddings)))
    assert bool(jnp.all((cluster_assignments >= 0) &
                        (cluster_assignments < cfg["num_cluster"])))
    print("KERNEL_OK")
</pallas_src>

<mosaic_0001>
module attributes {stable_mosaic.version = 11 : i64} {
  func.func @kernel(%arg0: memref<16x1xi32, #tpu.memory_space<vmem>>, %arg1: memref<50x32xf32, #tpu.memory_space<vmem>>, %arg2: memref<8x32xf32, #tpu.memory_space<vmem>>, %arg3: memref<1x32xf32, #tpu.memory_space<vmem>>, %arg4: memref<1x32xf32, #tpu.memory_space<vmem>>, %arg5: memref<32x64xf32, #tpu.memory_space<vmem>>, %arg6: memref<32x64xf32, #tpu.memory_space<vmem>>, %arg7: memref<4x64xf32, #tpu.memory_space<vmem>>, %arg8: memref<1x64xf32, #tpu.memory_space<vmem>>, %arg9: memref<64x96xf32, #tpu.memory_space<vmem>>, %arg10: memref<1x64xf32, #tpu.memory_space<vmem>>, %arg11: memref<16x64xf32, #tpu.memory_space<vmem>>, %arg12: memref<1x64xf32, #tpu.memory_space<vmem>>, %arg13: memref<64x32xf32, #tpu.memory_space<vmem>>, %arg14: memref<1x32xf32, #tpu.memory_space<vmem>>, %arg15: memref<1x32xf32, #tpu.memory_space<vmem>>, %arg16: memref<32x128xf32, #tpu.memory_space<vmem>>, %arg17: memref<1x128xf32, #tpu.memory_space<vmem>>, %arg18: memref<128x32xf32, #tpu.memory_space<vmem>>, %arg19: memref<1x32xf32, #tpu.memory_space<vmem>>, %arg20: memref<1x32xf32, #tpu.memory_space<vmem>>, %arg21: memref<1x32xf32, #tpu.memory_space<vmem>>, %arg22: memref<32x128xf32, #tpu.memory_space<vmem>>, %arg23: memref<1x128xf32, #tpu.memory_space<vmem>>, %arg24: memref<128x128xf32, #tpu.memory_space<vmem>>, %arg25: memref<1024x128xf32, #tpu.memory_space<vmem>>, %arg26: memref<12x128xf32, #tpu.memory_space<vmem>>, %arg27: memref<36x128xf32, #tpu.memory_space<vmem>>, %arg28: memref<128x128xf32, #tpu.memory_space<vmem>>, %arg29: memref<1024x128xf32, #tpu.memory_space<vmem>>, %arg30: memref<12x128xf32, #tpu.memory_space<vmem>>, %arg31: memref<36x128xf32, #tpu.memory_space<vmem>>, %arg32: memref<128x4xf32, #tpu.memory_space<vmem>>, %arg33: memref<2x128xf32, #tpu.memory_space<vmem>>, %arg34: memref<2x1xi32, #tpu.memory_space<vmem>>) attributes {dimension_semantics = [], scalar_prefetch = 0 : i64, scratch_operands = 0 : i64, tpu.core_type = #tpu.core_type<tc>} {
    %c0 = arith.constant 0 : index
    %c0_0 = arith.constant 0 : index
    %0 = vector.load %arg0[%c0, %c0_0] : memref<16x1xi32, #tpu.memory_space<vmem>>, vector<16x1xi32>
    %1 = tpu.iota {dimensions = array<i32: 1>} : vector<16x50xi32>
    %2 = vector.broadcast %0 : vector<16x1xi32> to vector<16x50xi32>
    %3 = arith.cmpi eq, %1, %2 : vector<16x50xi32>
    %cst = arith.constant 1.000000e+00 : f32
    %cst_1 = arith.constant 0.000000e+00 : f32
    %4 = vector.broadcast %cst : f32 to vector<16x50xf32>
    %5 = vector.broadcast %cst_1 : f32 to vector<16x50xf32>
    %6 = arith.select %3, %4, %5 : vector<16x50xi1>, vector<16x50xf32>
    %c0_2 = arith.constant 0 : index
    %c0_3 = arith.constant 0 : index
    %7 = vector.load %arg1[%c0_2, %c0_3] : memref<50x32xf32, #tpu.memory_space<vmem>>, vector<50x32xf32>
    %cst_4 = arith.constant dense<0.000000e+00> : vector<16x32xf32>
    %8 = tpu.matmul %6, %7, %cst_4 {dimension_numbers = #tpu.dot_dimension_numbers<[1], [0], [0], [1], [0, 0, 1, 1], [], []>} : vector<16x50xf32>, vector<50x32xf32>, vector<16x32xf32> -> vector<16x32xf32>
    %9 = vector.shape_cast %8 : vector<16x32xf32> to vector<2x8x32xf32>
    %c0_5 = arith.constant 0 : index
    %c0_6 = arith.constant 0 : index
    %10 = vector.load %arg2[%c0_5, %c0_6] : memref<8x32xf32, #tpu.memory_space<vmem>>, vector<8x32xf32>
    %11 = vector.shape_cast %10 : vector<8x32xf32> to vector<1x8x32xf32>
    %12 = vector.broadcast %11 : vector<1x8x32xf32> to vector<2x8x32xf32>
    %13 = arith.addf %9, %12 : vector<2x8x32xf32>
    %14 = vector.shape_cast %13 : vector<2x8x32xf32> to vector<16x32xf32>
    %cst_7 = arith.constant dense<0.000000e+00> : vector<16xf32>
    %15 = vector.multi_reduction <add>, %14, %cst_7 [1] : vector<16x32xf32> to vector<16xf32>
    %16 = vector.shape_cast %15 : vector<16xf32> to vector<16x1xf32>
    %cst_8 = arith.constant 3.200000e+01 : f32
    %17 = vector.broadcast %cst_8 : f32 to vector<16x1xf32>
    %18 = arith.divf %16, %17 : vector<16x1xf32>
    %19 = vector.broadcast %18 : vector<16x1xf32> to vector<16x32xf32>
    %20 = arith.subf %14, %19 : vector<16x32xf32>
    %21 = arith.mulf %20, %20 : vector<16x32xf32>
    %cst_9 = arith.constant dense<0.000000e+00> : vector<16xf32>
    %22 = vector.multi_reduction <add>, %21, %cst_9 [1] : vector<16x32xf32> to vector<16xf32>
    %23 = vector.shape_cast %22 : vector<16xf32> to vector<16x1xf32>
    %cst_10 = arith.constant 3.200000e+01 : f32
    %24 = vector.broadcast %cst_10 : f32 to vector<16x1xf32>
    %25 = arith.divf %23, %24 : vector<16x1xf32>
    %cst_11 = arith.constant 9.99999996E-13 : f32
    %26 = vector.broadcast %cst_11 : f32 to vector<16x1xf32>
    %27 = arith.addf %25, %26 : vector<16x1xf32>
    %28 = math.rsqrt %27 : vector<16x1xf32>
    %29 = vector.broadcast %28 : vector<16x1xf32> to vector<16x32xf32>
    %30 = arith.mulf %20, %29 : vector<16x32xf32>
    %c0_12 = arith.constant 0 : index
    %c0_13 = arith.constant 0 : index
    %31 = vector.load %arg3[%c0_12, %c0_13] : memref<1x32xf32, #tpu.memory_space<vmem>>, vector<1x32xf32>
    %32 = vector.broadcast %31 : vector<1x32xf32> to vector<16x32xf32>
    %33 = arith.mulf %30, %32 : vector<16x32xf32>
    %c0_14 = arith.constant 0 : index
    %c0_15 = arith.constant 0 : index
    %34 = vector.load %arg4[%c0_14, %c0_15] : memref<1x32xf32, #tpu.memory_space<vmem>>, vector<1x32xf32>
    %35 = vector.broadcast %34 : vector<1x32xf32> to vector<16x32xf32>
    %36 = arith.addf %33, %35 : vector<16x32xf32>
    %c0_16 = arith.constant 0 : index
    %c0_17 = arith.constant 0 : index
    %37 = vector.load %arg5[%c0_16, %c0_17] : memref<32x64xf32, #tpu.memory_space<vmem>>, vector<32x64xf32>
    %cst_18 = arith.constant dense<0.000000e+00> : vector<16x64xf32>
    %38 = tpu.matmul %36, %37, %cst_18 {dimension_numbers = #tpu.dot_dimension_numbers<[1], [0], [0], [1], [0, 0, 1, 1], [], []>} : vector<16x32xf32>, vector<32x64xf32>, vector<16x64xf32> -> vector<16x64xf32>
    %39 = vector.shape_cast %38 : vector<16x64xf32> to vector<2x8x64xf32>
    %c0_19 = arith.constant 0 : index
    %c0_20 = arith.constant 0 : index
    %40 = vector.load %arg6[%c0_19, %c0_20] : memref<32x64xf32, #tpu.memory_space<vmem>>, vector<32x64xf32>
    %cst_21 = arith.constant dense<0.000000e+00> : vector<16x64xf32>
    %41 = tpu.matmul %36, %40, %cst_21 {dimension_numbers = #tpu.dot_dimension_numbers<[1], [0], [0], [1], [0, 0, 1, 1], [], []>} : vector<16x32xf32>, vector<32x64xf32>, vector<16x64xf32> -> vector<16x64xf32>
    %42 = vector.shape_cast %41 : vector<16x64xf32> to vector<2x8x64xf32>
    %cst_22 = arith.constant 0.000000e+00 : f32
    %43 = vector.broadcast %cst_22 : f32 to vector<2x3x64xf32>
    %44 = tpu.concatenate %43, %39 in 1 : vector<2x3x64xf32>, vector<2x8x64xf32> -> vector<2x11x64xf32>
    %c0_23 = arith.constant 0 : index
    %c0_24 = arith.constant 0 : index
    %45 = vector.load %arg7[%c0_23, %c0_24] : memref<4x64xf32, #tpu.memory_space<vmem>>, vector<4x64xf32>
    %cst_25 = arith.constant 0.000000e+00 : f32
    %46 = vector.broadcast %cst_25 : f32 to vector<2x8x64xf32>
    %47 = vector.extract_strided_slice %44 {offsets = [0, 0, 0], sizes = [2, 8, 64], strides = [1, 1, 1]} : vector<2x11x64xf32> to vector<2x8x64xf32>
    %48 = vector.extract_strided_slice %45 {offsets = [0, 0], sizes = [1, 64], strides = [1, 1]} : vector<4x64xf32> to vector<1x64xf32>
    %49 = vector.shape_cast %48 : vector<1x64xf32> to vector<64xf32>
    %50 = vector.shape_cast %49 : vector<64xf32> to vector<1x1x64xf32>
    %51 = vector.broadcast %50 : vector<1x1x64xf32> to vector<2x8x64xf32>
    %52 = arith.mulf %47, %51 : vector<2x8x64xf32>
    %53 = arith.addf %46, %52 : vector<2x8x64xf32>
    %54 = vector.extract_strided_slice %44 {offsets = [0, 1, 0], sizes = [2, 8, 64], strides = [1, 1, 1]} : vector<2x11x64xf32> to vector<2x8x64xf32>
    %55 = vector.extract_strided_slice %45 {offsets = [1, 0], sizes = [1, 64], strides = [1, 1]} : vector<4x64xf32> to vector<1x64xf32>
    %56 = vector.shape_cast %55 : vector<1x64xf32> to vector<64xf32>
    %57 = vector.shape_cast %56 : vector<64xf32> to vector<1x1x64xf32>
    %58 = vector.broadcast %57 : vector<1x1x64xf32> to vector<2x8x64xf32>
    %59 = arith.mulf %54, %58 : vector<2x8x64xf32>
    %60 = arith.addf %53, %59 : vector<2x8x64xf32>
    %61 = vector.extract_strided_slice %44 {offsets = [0, 2, 0], sizes = [2, 8, 64], strides = [1, 1, 1]} : vector<2x11x64xf32> to vector<2x8x64xf32>
    %62 = vector.extract_strided_slice %45 {offsets = [2, 0], sizes = [1, 64], strides = [1, 1]} : vector<4x64xf32> to vector<1x64xf32>
    %63 = vector.shape_cast %62 : vector<1x64xf32> to vector<64xf32>
    %64 = vector.shape_cast %63 : vector<64xf32> to vector<1x1x64xf32>
    %65 = vector.broadcast %64 : vector<1x1x64xf32> to vector<2x8x64xf32>
    %66 = arith.mulf %61, %65 : vector<2x8x64xf32>
    %67 = arith.addf %60, %66 : vector<2x8x64xf32>
    %68 = vector.extract_strided_slice %44 {offsets = [0, 3, 0], sizes = [2, 8, 64], strides = [1, 1, 1]} : vector<2x11x64xf32> to vector<2x8x64xf32>
    %69 = vector.extract_strided_slice %45 {offsets = [3, 0], sizes = [1, 64], strides = [1, 1]} : vector<4x64xf32> to vector<1x64xf32>
    %70 = vector.shape_cast %69 : vector<1x64xf32> to vector<64xf32>
    %71 = vector.shape_cast %70 : vector<64xf32> to vector<1x1x64xf32>
    %72 = vector.broadcast %71 : vector<1x1x64xf32> to vector<2x8x64xf32>
    %73 = arith.mulf %68, %72 : vector<2x8x64xf32>
    %74 = arith.addf %67, %73 : vector<2x8x64xf32>
    %c0_26 = arith.constant 0 : index
    %c0_27 = arith.constant 0 : index
    %75 = vector.load %arg8[%c0_26, %c0_27] : memref<1x64xf32, #tpu.memory_space<vmem>>, vector<1x64xf32>
    %76 = vector.shape_cast %75 : vector<1x64xf32> to vector<1x1x64xf32>
    %77 = vector.broadcast %76 : vector<1x1x64xf32> to vector<2x8x64xf32>
    %78 = arith.addf %74, %77 : vector<2x8x64xf32>
    %cst_28 = arith.constant 0.000000e+00 : f32
    %79 = vector.broadcast %cst_28 : f32 to vector<2x8x64xf32>
    %80 = arith.subf %79, %78 : vector<2x8x64xf32>
    %81 = math.exp %80 : vector<2x8x64xf32>
    %cst_29 = arith.constant 1.000000e+00 : f32
    %82 = vector.broadcast %cst_29 : f32 to vector<2x8x64xf32>
    %83 = arith.addf %82, %81 : vector<2x8x64xf32>
    %84 = tpu.reciprocal %83 {approx = true} : vector<2x8x64xf32> -> vector<2x8x64xf32>
    %85 = arith.mulf %78, %84 : vector<2x8x64xf32>
    %86 = vector.shape_cast %85 : vector<2x8x64xf32> to vector<16x64xf32>
    %c0_30 = arith.constant 0 : index
    %c0_31 = arith.constant 0 : index
    %87 = vector.load %arg9[%c0_30, %c0_31] : memref<64x96xf32, #tpu.memory_space<vmem>>, vector<64x96xf32>
    %cst_32 = arith.constant dense<0.000000e+00> : vector<16x96xf32>
    %88 = tpu.matmul %86, %87, %cst_32 {dimension_numbers = #tpu.dot_dimension_numbers<[1], [0], [0], [1], [0, 0, 1, 1], [], []>} : vector<16x64xf32>, vector<64x96xf32>, vector<16x96xf32> -> vector<16x96xf32>
    %89 = vector.extract_strided_slice %88 {offsets = [0, 0], sizes = [16, 64], strides = [1, 1]} : vector<16x96xf32> to vector<16x64xf32>
    %c0_33 = arith.constant 0 : index
    %c0_34 = arith.constant 0 : index
    %90 = vector.load %arg10[%c0_33, %c0_34] : memref<1x64xf32, #tpu.memory_space<vmem>>, vector<1x64xf32>
    %91 = vector.broadcast %90 : vector<1x64xf32> to vector<16x64xf32>
    %92 = arith.addf %89, %91 : vector<16x64xf32>
    %cst_35 = arith.constant 0.000000e+00 : f32
    %93 = vector.broadcast %cst_35 : f32 to vector<16x64xf32>
    %94 = arith.maximumf %92, %93 : vector<16x64xf32>
    %95 = math.absf %92 : vector<16x64xf32>
    %cst_36 = arith.constant 0.000000e+00 : f32
    %96 = vector.broadcast %cst_36 : f32 to vector<16x64xf32>
    %97 = arith.subf %96, %95 : vector<16x64xf32>
    %98 = math.exp %97 : vector<16x64xf32>
    %cst_37 = arith.constant 1.000000e+00 : f32
    %99 = vector.broadcast %cst_37 : f32 to vector<16x64xf32>
    %100 = arith.addf %99, %98 : vector<16x64xf32>
    %101 = math.log %100 : vector<16x64xf32>
    %102 = arith.addf %94, %101 : vector<16x64xf32>
    %103 = vector.shape_cast %102 : vector<16x64xf32> to vector<2x8x64xf32>
    %104 = vector.extract_strided_slice %88 {offsets = [0, 64], sizes = [16, 16], strides = [1, 1]} : vector<16x96xf32> to vector<16x16xf32>
    %105 = vector.shape_cast %104 : vector<16x16xf32> to vector<2x8x16xf32>
    %106 = vector.extract_strided_slice %88 {offsets = [0, 80], sizes = [16, 16], strides = [1, 1]} : vector<16x96xf32> to vector<16x16xf32>
    %107 = vector.shape_cast %106 : vector<16x16xf32> to vector<2x8x16xf32>
    %c0_38 = arith.constant 0 : index
    %c0_39 = arith.constant 0 : index
    %108 = vector.load %arg11[%c0_38, %c0_39] : memref<16x64xf32, #tpu.memory_space<vmem>>, vector<16x64xf32>
    %c0_40 = arith.constant 0 : index
    %c0_41 = arith.constant 0 : index
    %109 = vector.load %arg12[%c0_40, %c0_41] : memref<1x64xf32, #tpu.memory_space<vmem>>, vector<1x64xf32>
    %110 = vector.shape_cast %103 : vector<2x8x64xf32> to vector<2x8x1x64xf32>
    %111 = vector.shape_cast %108 : vector<16x64xf32> to vector<1x1x16x64xf32>
    %112 = vector.broadcast %110 : vector<2x8x1x64xf32> to vector<2x8x16x64xf32>
    %113 = vector.broadcast %111 : vector<1x1x16x64xf32> to vector<2x8x16x64xf32>
    %114 = arith.mulf %112, %113 : vector<2x8x16x64xf32>
    %115 = math.exp %114 : vector<2x8x16x64xf32>
    %116 = arith.mulf %103, %85 : vector<2x8x64xf32>
    %117 = vector.shape_cast %116 : vector<2x8x64xf32> to vector<2x8x1x64xf32>
    %118 = vector.shape_cast %105 : vector<2x8x16xf32> to vector<2x8x16x1xf32>
    %119 = vector.broadcast %117 : vector<2x8x1x64xf32> to vector<2x8x16x64xf32>
    %120 = vector.broadcast %118 : vector<2x8x16x1xf32> to vector<2x8x16x64xf32>
    %121 = arith.mulf %119, %120 : vector<2x8x16x64xf32>
    %cst_42 = arith.constant 0.000000e+00 : f32
    %122 = vector.broadcast %cst_42 : f32 to vector<2x8x64xf32>
    %123 = arith.subf %122, %42 : vector<2x8x64xf32>
    %124 = math.exp %123 : vector<2x8x64xf32>
    %cst_43 = arith.constant 1.000000e+00 : f32
    %125 = vector.broadcast %cst_43 : f32 to vector<2x8x64xf32>
    %126 = arith.addf %125, %124 : vector<2x8x64xf32>
    %127 = tpu.reciprocal %126 {approx = true} : vector<2x8x64xf32> -> vector<2x8x64xf32>
    %128 = arith.mulf %42, %127 : vector<2x8x64xf32>
    %cst_44 = arith.constant 0.000000e+00 : f32
    %129 = vector.broadcast %cst_44 : f32 to vector<2x16x64xf32>
    %130 = vector.extract_strided_slice %115 {offsets = [0, 0, 0, 0], sizes = [2, 1, 16, 64], strides = [1, 1, 1, 1]} : vector<2x8x16x64xf32> to vector<2x1x16x64xf32>
    %131 = vector.shape_cast %130 : vector<2x1x16x64xf32> to vector<2x16x64xf32>
    %132 = arith.mulf %131, %129 : vector<2x16x64xf32>
    %133 = vector.extract_strided_slice %121 {offsets = [0, 0, 0, 0], sizes = [2, 1, 16, 64], strides = [1, 1, 1, 1]} : vector<2x8x16x64xf32> to vector<2x1x16x64xf32>
    %134 = vector.shape_cast %133 : vector<2x1x16x64xf32> to vector<2x16x64xf32>
    %135 = arith.addf %132, %134 : vector<2x16x64xf32>
    %136 = vector.extract_strided_slice %107 {offsets = [0, 0, 0], sizes = [2, 1, 16], strides = [1, 1, 1]} : vector<2x8x16xf32> to vector<2x1x16xf32>
    %137 = vector.shape_cast %136 : vector<2x1x16xf32> to vector<2x16xf32>
    %138 = vector.shape_cast %137 : vector<2x16xf32> to vector<2x16x1xf32>
    %139 = vector.broadcast %138 : vector<2x16x1xf32> to vector<2x16x64xf32>
    %140 = arith.mulf %135, %139 : vector<2x16x64xf32>
    %cst_45 = arith.constant dense<0.000000e+00> : vector<2x64xf32>
    %141 = vector.multi_reduction <add>, %140, %cst_45 [1] : vector<2x16x64xf32> to vector<2x64xf32>
    %142 = vector.extract_strided_slice %85 {offsets = [0, 0, 0], sizes = [2, 1, 64], strides = [1, 1, 1]} : vector<2x8x64xf32> to vector<2x1x64xf32>
    %143 = vector.shape_cast %142 : vector<2x1x64xf32> to vector<2x64xf32>
    %144 = vector.broadcast %109 : vector<1x64xf32> to vector<2x64xf32>
    %145 = arith.mulf %144, %143 : vector<2x64xf32>
    %146 = arith.addf %141, %145 : vector<2x64xf32>
    %147 = vector.extract_strided_slice %128 {offsets = [0, 0, 0], sizes = [2, 1, 64], strides = [1, 1, 1]} : vector<2x8x64xf32> to vector<2x1x64xf32>
    %148 = vector.shape_cast %147 : vector<2x1x64xf32> to vector<2x64xf32>
    %149 = arith.mulf %146, %148 : vector<2x64xf32>
    %150 = vector.extract_strided_slice %115 {offsets = [0, 1, 0, 0], sizes = [2, 1, 16, 64], strides = [1, 1, 1, 1]} : vector<2x8x16x64xf32> to vector<2x1x16x64xf32>
    %151 = vector.shape_cast %150 : vector<2x1x16x64xf32> to vector<2x16x64xf32>
    %152 = arith.mulf %151, %135 : vector<2x16x64xf32>
    %153 = vector.extract_strided_slice %121 {offsets = [0, 1, 0, 0], sizes = [2, 1, 16, 64], strides = [1, 1, 1, 1]} : vector<2x8x16x64xf32> to vector<2x1x16x64xf32>
    %154 = vector.shape_cast %153 : vector<2x1x16x64xf32> to vector<2x16x64xf32>
    %155 = arith.addf %152, %154 : vector<2x16x64xf32>
    %156 = vector.extract_strided_slice %107 {offsets = [0, 1, 0], sizes = [2, 1, 16], strides = [1, 1, 1]} : vector<2x8x16xf32> to vector<2x1x16xf32>
    %157 = vector.shape_cast %156 : vector<2x1x16xf32> to vector<2x16xf32>
    %158 = vector.shape_cast %157 : vector<2x16xf32> to vector<2x16x1xf32>
    %159 = vector.broadcast %158 : vector<2x16x1xf32> to vector<2x16x64xf32>
    %160 = arith.mulf %155, %159 : vector<2x16x64xf32>
    %cst_46 = arith.constant dense<0.000000e+00> : vector<2x64xf32>
    %161 = vector.multi_reduction <add>, %160, %cst_46 [1] : vector<2x16x64xf32> to vector<2x64xf32>
    %162 = vector.extract_strided_slice %85 {offsets = [0, 1, 0], sizes = [2, 1, 64], strides = [1, 1, 1]} : vector<2x8x64xf32> to vector<2x1x64xf32>
    %163 = vector.shape_cast %162 : vector<2x1x64xf32> to vector<2x64xf32>
    %164 = vector.broadcast %109 : vector<1x64xf32> to vector<2x64xf32>
    %165 = arith.mulf %164, %163 : vector<2x64xf32>
    %166 = arith.addf %161, %165 : vector<2x64xf32>
    %167 = vector.extract_strided_slice %128 {offsets = [0, 1, 0], sizes = [2, 1, 64], strides = [1, 1, 1]} : vector<2x8x64xf32> to vector<2x1x64xf32>
    %168 = vector.shape_cast %167 : vector<2x1x64xf32> to vector<2x64xf32>
    %169 = arith.mulf %166, %168 : vector<2x64xf32>
    %170 = vector.extract_strided_slice %115 {offsets = [0, 2, 0, 0], sizes = [2, 1, 16, 64], strides = [1, 1, 1, 1]} : vector<2x8x16x64xf32> to vector<2x1x16x64xf32>
    %171 = vector.shape_cast %170 : vector<2x1x16x64xf32> to vector<2x16x64xf32>
    %172 = arith.mulf %171, %155 : vector<2x16x64xf32>
    %173 = vector.extract_strided_slice %121 {offsets = [0, 2, 0, 0], sizes = [2, 1, 16, 64], strides = [1, 1, 1, 1]} : vector<2x8x16x64xf32> to vector<2x1x16x64xf32>
    %174 = vector.shape_cast %173 : vector<2x1x16x64xf32> to vector<2x16x64xf32>
    %175 = arith.addf %172, %174 : vector<2x16x64xf32>
    %176 = vector.extract_strided_slice %107 {offsets = [0, 2, 0], sizes = [2, 1, 16], strides = [1, 1, 1]} : vector<2x8x16xf32> to vector<2x1x16xf32>
    %177 = vector.shape_cast %176 : vector<2x1x16xf32> to vector<2x16xf32>
    %178 = vector.shape_cast %177 : vector<2x16xf32> to vector<2x16x1xf32>
    %179 = vector.broadcast %178 : vector<2x16x1xf32> to vector<2x16x64xf32>
    %180 = arith.mulf %175, %179 : vector<2x16x64xf32>
    %cst_47 = arith.constant dense<0.000000e+00> : vector<2x64xf32>
    %181 = vector.multi_reduction <add>, %180, %cst_47 [1] : vector<2x16x64xf32> to vector<2x64xf32>
    %182 = vector.extract_strided_slice %85 {offsets = [0, 2, 0], sizes = [2, 1, 64], strides = [1, 1, 1]} : vector<2x8x64xf32> to vector<2x1x64xf32>
    %183 = vector.shape_cast %182 : vector<2x1x64xf32> to vector<2x64xf32>
    %184 = vector.broadcast %109 : vector<1x64xf32> to vector<2x64xf32>
    %185 = arith.mulf %184, %183 : vector<2x64xf32>
    %186 = arith.addf %181, %185 : vector<2x64xf32>
    %187 = vector.extract_strided_slice %128 {offsets = [0, 2, 0], sizes = [2, 1, 64], strides = [1, 1, 1]} : vector<2x8x64xf32> to vector<2x1x64xf32>
    %188 = vector.shape_cast %187 : vector<2x1x64xf32> to vector<2x64xf32>
    %189 = arith.mulf %186, %188 : vector<2x64xf32>
    %190 = vector.extract_strided_slice %115 {offsets = [0, 3, 0, 0], sizes = [2, 1, 16, 64], strides = [1, 1, 1, 1]} : vector<2x8x16x64xf32> to vector<2x1x16x64xf32>
    %191 = vector.shape_cast %190 : vector<2x1x16x64xf32> to vector<2x16x64xf32>
    %192 = arith.mulf %191, %175 : vector<2x16x64xf32>
    %193 = vector.extract_strided_slice %121 {offsets = [0, 3, 0, 0], sizes = [2, 1, 16, 64], strides = [1, 1, 1, 1]} : vector<2x8x16x64xf32> to vector<2x1x16x64xf32>
    %194 = vector.shape_cast %193 : vector<2x1x16x64xf32> to vector<2x16x64xf32>
    %195 = arith.addf %192, %194 : vector<2x16x64xf32>
    %196 = vector.extract_strided_slice %107 {offsets = [0, 3, 0], sizes = [2, 1, 16], strides = [1, 1, 1]} : vector<2x8x16xf32> to vector<2x1x16xf32>
    %197 = vector.shape_cast %196 : vector<2x1x16xf32> to vector<2x16xf32>
    %198 = vector.shape_cast %197 : vector<2x16xf32> to vector<2x16x1xf32>
    %199 = vector.broadcast %198 : vector<2x16x1xf32> to vector<2x16x64xf32>
    %200 = arith.mulf %195, %199 : vector<2x16x64xf32>
    %cst_48 = arith.constant dense<0.000000e+00> : vector<2x64xf32>
    %201 = vector.multi_reduction <add>, %200, %cst_48 [1] : vector<2x16x64xf32> to vector<2x64xf32>
    %202 = vector.extract_strided_slice %85 {offsets = [0, 3, 0], sizes = [2, 1, 64], strides = [1, 1, 1]} : vector<2x8x64xf32> to vector<2x1x64xf32>
    %203 = vector.shape_cast %202 : vector<2x1x64xf32> to vector<2x64xf32>
    %204 = vector.broadcast %109 : vector<1x64xf32> to vector<2x64xf32>
    %205 = arith.mulf %204, %203 : vector<2x64xf32>
    %206 = arith.addf %201, %205 : vector<2x64xf32>
    %207 = vector.extract_strided_slice %128 {offsets = [0, 3, 0], sizes = [2, 1, 64], strides = [1, 1, 1]} : vector<2x8x64xf32> to vector<2x1x64xf32>
    %208 = vector.shape_cast %207 : vector<2x1x64xf32> to vector<2x64xf32>
    %209 = arith.mulf %206, %208 : vector<2x64xf32>
    %210 = vector.extract_strided_slice %115 {offsets = [0, 4, 0, 0], sizes = [2, 1, 16, 64], strides = [1, 1, 1, 1]} : vector<2x8x16x64xf32> to vector<2x1x16x64xf32>
    %211 = vector.shape_cast %210 : vector<2x1x16x64xf32> to vector<2x16x64xf32>
    %212 = arith.mulf %211, %195 : vector<2x16x64xf32>
    %213 = vector.extract_strided_slice %121 {offsets = [0, 4, 0, 0], sizes = [2, 1, 16, 64], strides = [1, 1, 1, 1]} : vector<2x8x16x64xf32> to vector<2x1x16x64xf32>
    %214 = vector.shape_cast %213 : vector<2x1x16x64xf32> to vector<2x16x64xf32>
    %215 = arith.addf %212, %214 : vector<2x16x64xf32>
    %216 = vector.extract_strided_slice %107 {offsets = [0, 4, 0], sizes = [2, 1, 16], strides = [1, 1, 1]} : vector<2x8x16xf32> to vector<2x1x16xf32>
    %217 = vector.shape_cast %216 : vector<2x1x16xf32> to vector<2x16xf32>
    %218 = vector.shape_cast %217 : vector<2x16xf32> to vector<2x16x1xf32>
    %219 = vector.broadcast %218 : vector<2x16x1xf32> to vector<2x16x64xf32>
    %220 = arith.mulf %215, %219 : vector<2x16x64xf32>
    %cst_49 = arith.constant dense<0.000000e+00> : vector<2x64xf32>
    %221 = vector.multi_reduction <add>, %220, %cst_49 [1] : vector<2x16x64xf32> to vector<2x64xf32>
    %222 = vector.extract_strided_slice %85 {offsets = [0, 4, 0], sizes = [2, 1, 64], strides = [1, 1, 1]} : vector<2x8x64xf32> to vector<2x1x64xf32>
    %223 = vector.shape_cast %222 : vector<2x1x64xf32> to vector<2x64xf32>
    %224 = vector.broadcast %109 : vector<1x64xf32> to vector<2x64xf32>
    %225 = arith.mulf %224, %223 : vector<2x64xf32>
    %226 = arith.addf %221, %225 : vector<2x64xf32>
    %227 = vector.extract_strided_slice %128 {offsets = [0, 4, 0], sizes = [2, 1, 64], strides = [1, 1, 1]} : vector<2x8x64xf32> to vector<2x1x64xf32>
    %228 = vector.shape_cast %227 : vector<2x1x64xf32> to vector<2x64xf32>
    %229 = arith.mulf %226, %228 : vector<2x64xf32>
    %230 = vector.extract_strided_slice %115 {offsets = [0, 5, 0, 0], sizes = [2, 1, 16, 64], strides = [1, 1, 1, 1]} : vector<2x8x16x64xf32> to vector<2x1x16x64xf32>
    %231 = vector.shape_cast %230 : vector<2x1x16x64xf32> to vector<2x16x64xf32>
    %232 = arith.mulf %231, %215 : vector<2x16x64xf32>
    %233 = vector.extract_strided_slice %121 {offsets = [0, 5, 0, 0], sizes = [2, 1, 16, 64], strides = [1, 1, 1, 1]} : vector<2x8x16x64xf32> to vector<2x1x16x64xf32>
    %234 = vector.shape_cast %233 : vector<2x1x16x64xf32> to vector<2x16x64xf32>
    %235 = arith.addf %232, %234 : vector<2x16x64xf32>
    %236 = vector.extract_strided_slice %107 {offsets = [0, 5, 0], sizes = [2, 1, 16], strides = [1, 1, 1]} : vector<2x8x16xf32> to vector<2x1x16xf32>
    %237 = vector.shape_cast %236 : vector<2x1x16xf32> to vector<2x16xf32>
    %238 = vector.shape_cast %237 : vector<2x16xf32> to vector<2x16x1xf32>
    %239 = vector.broadcast %238 : vector<2x16x1xf32> to vector<2x16x64xf32>
    %240 = arith.mulf %235, %239 : vector<2x16x64xf32>
    %cst_50 = arith.constant dense<0.000000e+00> : vector<2x64xf32>
    %241 = vector.multi_reduction <add>, %240, %cst_50 [1] : vector<2x16x64xf32> to vector<2x64xf32>
    %242 = vector.extract_strided_slice %85 {offsets = [0, 5, 0], sizes = [2, 1, 64], strides = [1, 1, 1]} : vector<2x8x64xf32> to vector<2x1x64xf32>
    %243 = vector.shape_cast %242 : vector<2x1x64xf32> to vector<2x64xf32>
    %244 = vector.broadcast %109 : vector<1x64xf32> to vector<2x64xf32>
    %245 = arith.mulf %244, %243 : vector<2x64xf32>
    %246 = arith.addf %241, %245 : vector<2x64xf32>
    %247 = vector.extract_strided_slice %128 {offsets = [0, 5, 0], sizes = [2, 1, 64], strides = [1, 1, 1]} : vector<2x8x64xf32> to vector<2x1x64xf32>
    %248 = vector.shape_cast %247 : vector<2x1x64xf32> to vector<2x64xf32>
    %249 = arith.mulf %246, %248 : vector<2x64xf32>
    %250 = vector.extract_strided_slice %115 {offsets = [0, 6, 0, 0], sizes = [2, 1, 16, 64], strides = [1, 1, 1, 1]} : vector<2x8x16x64xf32> to vector<2x1x16x64xf32>
    %251 = vector.shape_cast %250 : vector<2x1x16x64xf32> to vector<2x16x64xf32>
    %252 = arith.mulf %251, %235 : vector<2x16x64xf32>
    %253 = vector.extract_strided_slice %121 {offsets = [0, 6, 0, 0], sizes = [2, 1, 16, 64], strides = [1, 1, 1, 1]} : vector<2x8x16x64xf32> to vector<2x1x16x64xf32>
    %254 = vector.shape_cast %253 : vector<2x1x16x64xf32> to vector<2x16x64xf32>
    %255 = arith.addf %252, %254 : vector<2x16x64xf32>
    %256 = vector.extract_strided_slice %107 {offsets = [0, 6, 0], sizes = [2, 1, 16], strides = [1, 1, 1]} : vector<2x8x16xf32> to vector<2x1x16xf32>
    %257 = vector.shape_cast %256 : vector<2x1x16xf32> to vector<2x16xf32>
    %258 = vector.shape_cast %257 : vector<2x16xf32> to vector<2x16x1xf32>
    %259 = vector.broadcast %258 : vector<2x16x1xf32> to vector<2x16x64xf32>
    %260 = arith.mulf %255, %259 : vector<2x16x64xf32>
    %cst_51 = arith.constant dense<0.000000e+00> : vector<2x64xf32>
    %261 = vector.multi_reduction <add>, %260, %cst_51 [1] : vector<2x16x64xf32> to vector<2x64xf32>
    %262 = vector.extract_strided_slice %85 {offsets = [0, 6, 0], sizes = [2, 1, 64], strides = [1, 1, 1]} : vector<2x8x64xf32> to vector<2x1x64xf32>
    %263 = vector.shape_cast %262 : vector<2x1x64xf32> to vector<2x64xf32>
    %264 = vector.broadcast %109 : vector<1x64xf32> to vector<2x64xf32>
    %265 = arith.mulf %264, %263 : vector<2x64xf32>
    %266 = arith.addf %261, %265 : vector<2x64xf32>
    %267 = vector.extract_strided_slice %128 {offsets = [0, 6, 0], sizes = [2, 1, 64], strides = [1, 1, 1]} : vector<2x8x64xf32> to vector<2x1x64xf32>
    %268 = vector.shape_cast %267 : vector<2x1x64xf32> to vector<2x64xf32>
    %269 = arith.mulf %266, %268 : vector<2x64xf32>
    %270 = vector.extract_strided_slice %115 {offsets = [0, 7, 0, 0], sizes = [2, 1, 16, 64], strides = [1, 1, 1, 1]} : vector<2x8x16x64xf32> to vector<2x1x16x64xf32>
    %271 = vector.shape_cast %270 : vector<2x1x16x64xf32> to vector<2x16x64xf32>
    %272 = arith.mulf %271, %255 : vector<2x16x64xf32>
    %273 = vector.extract_strided_slice %121 {offsets = [0, 7, 0, 0], sizes = [2, 1, 16, 64], strides = [1, 1, 1, 1]} : vector<2x8x16x64xf32> to vector<2x1x16x64xf32>
    %274 = vector.shape_cast %273 : vector<2x1x16x64xf32> to vector<2x16x64xf32>
    %275 = arith.addf %272, %274 : vector<2x16x64xf32>
    %276 = vector.extract_strided_slice %107 {offsets = [0, 7, 0], sizes = [2, 1, 16], strides = [1, 1, 1]} : vector<2x8x16xf32> to vector<2x1x16xf32>
    %277 = vector.shape_cast %276 : vector<2x1x16xf32> to vector<2x16xf32>
    %278 = vector.shape_cast %277 : vector<2x16xf32> to vector<2x16x1xf32>
    %279 = vector.broadcast %278 : vector<2x16x1xf32> to vector<2x16x64xf32>
    %280 = arith.mulf %275, %279 : vector<2x16x64xf32>
    %cst_52 = arith.constant dense<0.000000e+00> : vector<2x64xf32>
    %281 = vector.multi_reduction <add>, %280, %cst_52 [1] : vector<2x16x64xf32> to vector<2x64xf32>
    %282 = vector.extract_strided_slice %85 {offsets = [0, 7, 0], sizes = [2, 1, 64], strides = [1, 1, 1]} : vector<2x8x64xf32> to vector<2x1x64xf32>
    %283 = vector.shape_cast %282 : vector<2x1x64xf32> to vector<2x64xf32>
    %284 = vector.broadcast %109 : vector<1x64xf32> to vector<2x64xf32>
    %285 = arith.mulf %284, %283 : vector<2x64xf32>
    %286 = arith.addf %281, %285 : vector<2x64xf32>
    %287 = vector.extract_strided_slice %128 {offsets = [0, 7, 0], sizes = [2, 1, 64], strides = [1, 1, 1]} : vector<2x8x64xf32> to vector<2x1x64xf32>
    %288 = vector.shape_cast %287 : vector<2x1x64xf32> to vector<2x64xf32>
    %289 = arith.mulf %286, %288 : vector<2x64xf32>
    %290 = vector.shape_cast %149 : vector<2x64xf32> to vector<2x1x64xf32>
    %291 = vector.shape_cast %169 : vector<2x64xf32> to vector<2x1x64xf32>
    %292 = vector.shape_cast %189 : vector<2x64xf32> to vector<2x1x64xf32>
    %293 = vector.shape_cast %209 : vector<2x64xf32> to vector<2x1x64xf32>
    %294 = vector.shape_cast %229 : vector<2x64xf32> to vector<2x1x64xf32>
    %295 = vector.shape_cast %249 : vector<2x64xf32> to vector<2x1x64xf32>
    %296 = vector.shape_cast %269 : vector<2x64xf32> to vector<2x1x64xf32>
    %297 = vector.shape_cast %289 : vector<2x64xf32> to vector<2x1x64xf32>
    %298 = tpu.concatenate %290, %291, %292, %293, %294, %295, %296, %297 in 1 : vector<2x1x64xf32>, vector<2x1x64xf32>, vector<2x1x64xf32>, vector<2x1x64xf32>, vector<2x1x64xf32>, vector<2x1x64xf32>, vector<2x1x64xf32>, vector<2x1x64xf32> -> vector<2x8x64xf32>
    %299 = vector.shape_cast %298 : vector<2x8x64xf32> to vector<16x64xf32>
    %c0_53 = arith.constant 0 : index
    %c0_54 = arith.constant 0 : index
    %300 = vector.load %arg13[%c0_53, %c0_54] : memref<64x32xf32, #tpu.memory_space<vmem>>, vector<64x32xf32>
    %cst_55 = arith.constant dense<0.000000e+00> : vector<16x32xf32>
    %301 = tpu.matmul %299, %300, %cst_55 {dimension_numbers = #tpu.dot_dimension_numbers<[1], [0], [0], [1], [0, 0, 1, 1], [], []>} : vector<16x64xf32>, vector<64x32xf32>, vector<16x32xf32> -> vector<16x32xf32>
    %cst_56 = arith.constant dense<0.000000e+00> : vector<16xf32>
    %302 = vector.multi_reduction <add>, %301, %cst_56 [1] : vector<16x32xf32> to vector<16xf32>
    %303 = vector.shape_cast %302 : vector<16xf32> to vector<16x1xf32>
    %cst_57 = arith.constant 3.200000e+01 : f32
    %304 = vector.broadcast %cst_57 : f32 to vector<16x1xf32>
    %305 = arith.divf %303, %304 : vector<16x1xf32>
    %306 = vector.broadcast %305 : vector<16x1xf32> to vector<16x32xf32>
    %307 = arith.subf %301, %306 : vector<16x32xf32>
    %308 = arith.mulf %307, %307 : vector<16x32xf32>
    %cst_58 = arith.constant dense<0.000000e+00> : vector<16xf32>
    %309 = vector.multi_reduction <add>, %308, %cst_58 [1] : vector<16x32xf32> to vector<16xf32>
    %310 = vector.shape_cast %309 : vector<16xf32> to vector<16x1xf32>
    %cst_59 = arith.constant 3.200000e+01 : f32
    %311 = vector.broadcast %cst_59 : f32 to vector<16x1xf32>
    %312 = arith.divf %310, %311 : vector<16x1xf32>
    %cst_60 = arith.constant 9.99999996E-13 : f32
    %313 = vector.broadcast %cst_60 : f32 to vector<16x1xf32>
    %314 = arith.addf %312, %313 : vector<16x1xf32>
    %315 = math.rsqrt %314 : vector<16x1xf32>
    %316 = vector.broadcast %315 : vector<16x1xf32> to vector<16x32xf32>
    %317 = arith.mulf %307, %316 : vector<16x32xf32>
    %c0_61 = arith.constant 0 : index
    %c0_62 = arith.constant 0 : index
    %318 = vector.load %arg14[%c0_61, %c0_62] : memref<1x32xf32, #tpu.memory_space<vmem>>, vector<1x32xf32>
    %319 = vector.broadcast %318 : vector<1x32xf32> to vector<16x32xf32>
    %320 = arith.mulf %317, %319 : vector<16x32xf32>
    %c0_63 = arith.constant 0 : index
    %c0_64 = arith.constant 0 : index
    %321 = vector.load %arg15[%c0_63, %c0_64] : memref<1x32xf32, #tpu.memory_space<vmem>>, vector<1x32xf32>
    %322 = vector.broadcast %321 : vector<1x32xf32> to vector<16x32xf32>
    %323 = arith.addf %320, %322 : vector<16x32xf32>
    %c0_65 = arith.constant 0 : index
    %c0_66 = arith.constant 0 : index
    %324 = vector.load %arg16[%c0_65, %c0_66] : memref<32x128xf32, #tpu.memory_space<vmem>>, vector<32x128xf32>
    %cst_67 = arith.constant dense<0.000000e+00> : vector<16x128xf32>
    %325 = tpu.matmul %323, %324, %cst_67 {dimension_numbers = #tpu.dot_dimension_numbers<[1], [0], [0], [1], [0, 0, 1, 1], [], []>} : vector<16x32xf32>, vector<32x128xf32>, vector<16x128xf32> -> vector<16x128xf32>
    %c0_68 = arith.constant 0 : index
    %c0_69 = arith.constant 0 : index
    %326 = vector.load %arg17[%c0_68, %c0_69] : memref<1x128xf32, #tpu.memory_space<vmem>>, vector<1x128xf32>
    %327 = vector.broadcast %326 : vector<1x128xf32> to vector<16x128xf32>
    %328 = arith.addf %325, %327 : vector<16x128xf32>
    %cst_70 = arith.constant 5.000000e-01 : f32
    %329 = vector.broadcast %cst_70 : f32 to vector<16x128xf32>
    %330 = arith.mulf %329, %328 : vector<16x128xf32>
    %cst_71 = arith.constant 4.471500e-02 : f32
    %331 = vector.broadcast %cst_71 : f32 to vector<16x128xf32>
    %332 = arith.mulf %331, %328 : vector<16x128xf32>
    %333 = arith.mulf %332, %328 : vector<16x128xf32>
    %334 = arith.mulf %333, %328 : vector<16x128xf32>
    %335 = arith.addf %328, %334 : vector<16x128xf32>
    %cst_72 = arith.constant 0.797884583 : f32
    %336 = vector.broadcast %cst_72 : f32 to vector<16x128xf32>
    %337 = arith.mulf %336, %335 : vector<16x128xf32>
    %338 = math.tanh %337 : vector<16x128xf32>
    %cst_73 = arith.constant 1.000000e+00 : f32
    %339 = vector.broadcast %cst_73 : f32 to vector<16x128xf32>
    %340 = arith.addf %339, %338 : vector<16x128xf32>
    %341 = arith.mulf %330, %340 : vector<16x128xf32>
    %c0_74 = arith.constant 0 : index
    %c0_75 = arith.constant 0 : index
    %342 = vector.load %arg18[%c0_74, %c0_75] : memref<128x32xf32, #tpu.memory_space<vmem>>, vector<128x32xf32>
    %cst_76 = arith.constant dense<0.000000e+00> : vector<16x32xf32>
    %343 = tpu.matmul %341, %342, %cst_76 {dimension_numbers = #tpu.dot_dimension_numbers<[1], [0], [0], [1], [0, 0, 1, 1], [], []>} : vector<16x128xf32>, vector<128x32xf32>, vector<16x32xf32> -> vector<16x32xf32>
    %c0_77 = arith.constant 0 : index
    %c0_78 = arith.constant 0 : index
    %344 = vector.load %arg19[%c0_77, %c0_78] : memref<1x32xf32, #tpu.memory_space<vmem>>, vector<1x32xf32>
    %345 = vector.broadcast %344 : vector<1x32xf32> to vector<16x32xf32>
    %346 = arith.addf %343, %345 : vector<16x32xf32>
    %347 = arith.addf %346, %323 : vector<16x32xf32>
    %cst_79 = arith.constant dense<0.000000e+00> : vector<16xf32>
    %348 = vector.multi_reduction <add>, %347, %cst_79 [1] : vector<16x32xf32> to vector<16xf32>
    %349 = vector.shape_cast %348 : vector<16xf32> to vector<16x1xf32>
    %cst_80 = arith.constant 3.200000e+01 : f32
    %350 = vector.broadcast %cst_80 : f32 to vector<16x1xf32>
    %351 = arith.divf %349, %350 : vector<16x1xf32>
    %352 = vector.broadcast %351 : vector<16x1xf32> to vector<16x32xf32>
    %353 = arith.subf %347, %352 : vector<16x32xf32>
    %354 = arith.mulf %353, %353 : vector<16x32xf32>
    %cst_81 = arith.constant dense<0.000000e+00> : vector<16xf32>
    %355 = vector.multi_reduction <add>, %354, %cst_81 [1] : vector<16x32xf32> to vector<16xf32>
    %356 = vector.shape_cast %355 : vector<16xf32> to vector<16x1xf32>
    %cst_82 = arith.constant 3.200000e+01 : f32
    %357 = vector.broadcast %cst_82 : f32 to vector<16x1xf32>
    %358 = arith.divf %356, %357 : vector<16x1xf32>
    %cst_83 = arith.constant 9.99999996E-13 : f32
    %359 = vector.broadcast %cst_83 : f32 to vector<16x1xf32>
    %360 = arith.addf %358, %359 : vector<16x1xf32>
    %361 = math.rsqrt %360 : vector<16x1xf32>
    %362 = vector.broadcast %361 : vector<16x1xf32> to vector<16x32xf32>
    %363 = arith.mulf %353, %362 : vector<16x32xf32>
    %c0_84 = arith.constant 0 : index
    %c0_85 = arith.constant 0 : index
    %364 = vector.load %arg20[%c0_84, %c0_85] : memref<1x32xf32, #tpu.memory_space<vmem>>, vector<1x32xf32>
    %365 = vector.broadcast %364 : vector<1x32xf32> to vector<16x32xf32>
    %366 = arith.mulf %363, %365 : vector<16x32xf32>
    %c0_86 = arith.constant 0 : index
    %c0_87 = arith.constant 0 : index
    %367 = vector.load %arg21[%c0_86, %c0_87] : memref<1x32xf32, #tpu.memory_space<vmem>>, vector<1x32xf32>
    %368 = vector.broadcast %367 : vector<1x32xf32> to vector<16x32xf32>
    %369 = arith.addf %366, %368 : vector<16x32xf32>
    %370 = vector.shape_cast %369 : vector<16x32xf32> to vector<2x8x32xf32>
    %371 = vector.extract_strided_slice %370 {offsets = [0, 7, 0], sizes = [2, 1, 32], strides = [1, 1, 1]} : vector<2x8x32xf32> to vector<2x1x32xf32>
    %372 = vector.shape_cast %371 : vector<2x1x32xf32> to vector<2x32xf32>
    %c0_88 = arith.constant 0 : index
    %c0_89 = arith.constant 0 : index
    %373 = vector.load %arg22[%c0_88, %c0_89] : memref<32x128xf32, #tpu.memory_space<vmem>>, vector<32x128xf32>
    %cst_90 = arith.constant dense<0.000000e+00> : vector<2x128xf32>
    %374 = tpu.matmul %372, %373, %cst_90 {dimension_numbers = #tpu.dot_dimension_numbers<[1], [0], [0], [1], [0, 0, 1, 1], [], []>} : vector<2x32xf32>, vector<32x128xf32>, vector<2x128xf32> -> vector<2x128xf32>
    %c0_91 = arith.constant 0 : index
    %c0_92 = arith.constant 0 : index
    %375 = vector.load %arg23[%c0_91, %c0_92] : memref<1x128xf32, #tpu.memory_space<vmem>>, vector<1x128xf32>
    %376 = vector.broadcast %375 : vector<1x128xf32> to vector<2x128xf32>
    %377 = arith.addf %374, %376 : vector<2x128xf32>
    %c0_93 = arith.constant 0 : index
    %c0_94 = arith.constant 0 : index
    %378 = vector.load %arg26[%c0_93, %c0_94] : memref<12x128xf32, #tpu.memory_space<vmem>>, vector<12x128xf32>
    %c0_95 = arith.constant 0 : index
    %c0_96 = arith.constant 0 : index
    %379 = vector.load %arg27[%c0_95, %c0_96] : memref<36x128xf32, #tpu.memory_space<vmem>>, vector<36x128xf32>
    %cst_97 = arith.constant 0.000000e+00 : f32
    %380 = vector.broadcast %cst_97 : f32 to vector<2x128xf32>
    %381 = arith.subf %380, %377 : vector<2x128xf32>
    %382 = math.exp %381 : vector<2x128xf32>
    %cst_98 = arith.constant 1.000000e+00 : f32
    %383 = vector.broadcast %cst_98 : f32 to vector<2x128xf32>
    %384 = arith.addf %383, %382 : vector<2x128xf32>
    %385 = tpu.reciprocal %384 {approx = true} : vector<2x128xf32> -> vector<2x128xf32>
    %386 = arith.mulf %377, %385 : vector<2x128xf32>
    %c0_99 = arith.constant 0 : index
    %c0_100 = arith.constant 0 : index
    %387 = vector.load %arg24[%c0_99, %c0_100] : memref<128x128xf32, #tpu.memory_space<vmem>>, vector<128x128xf32>
    %cst_101 = arith.constant dense<0.000000e+00> : vector<2x128xf32>
    %388 = tpu.matmul %386, %387, %cst_101 {dimension_numbers = #tpu.dot_dimension_numbers<[1], [0], [0], [1], [0, 0, 1, 1], [], []>} : vector<2x128xf32>, vector<128x128xf32>, vector<2x128xf32> -> vector<2x128xf32>
    %389 = vector.extract_strided_slice %378 {offsets = [0, 0], sizes = [1, 128], strides = [1, 1]} : vector<12x128xf32> to vector<1x128xf32>
    %390 = vector.shape_cast %389 : vector<1x128xf32> to vector<128xf32>
    %391 = vector.shape_cast %390 : vector<128xf32> to vector<1x128xf32>
    %392 = vector.broadcast %391 : vector<1x128xf32> to vector<2x128xf32>
    %393 = arith.cmpf oge, %377, %392 : vector<2x128xf32>
    %394 = vector.extract_strided_slice %378 {offsets = [1, 0], sizes = [1, 128], strides = [1, 1]} : vector<12x128xf32> to vector<1x128xf32>
    %395 = vector.shape_cast %394 : vector<1x128xf32> to vector<128xf32>
    %396 = vector.shape_cast %395 : vector<128xf32> to vector<1x128xf32>
    %397 = vector.broadcast %396 : vector<1x128xf32> to vector<2x128xf32>
    %398 = arith.cmpf olt, %377, %397 : vector<2x128xf32>
    %399 = arith.andi %393, %398 : vector<2x128xi1>
    %cst_102 = arith.constant 1.000000e+00 : f32
    %cst_103 = arith.constant 0.000000e+00 : f32
    %400 = vector.broadcast %cst_102 : f32 to vector<2x128xf32>
    %401 = vector.broadcast %cst_103 : f32 to vector<2x128xf32>
    %402 = arith.select %399, %400, %401 : vector<2x128xi1>, vector<2x128xf32>
    %403 = vector.extract_strided_slice %378 {offsets = [1, 0], sizes = [1, 128], strides = [1, 1]} : vector<12x128xf32> to vector<1x128xf32>
    %404 = vector.shape_cast %403 : vector<1x128xf32> to vector<128xf32>
    %405 = vector.shape_cast %404 : vector<128xf32> to vector<1x128xf32>
    %406 = vector.broadcast %405 : vector<1x128xf32> to vector<2x128xf32>
    %407 = arith.cmpf oge, %377, %406 : vector<2x128xf32>
    %408 = vector.extract_strided_slice %378 {offsets = [2, 0], sizes = [1, 128], strides = [1, 1]} : vector<12x128xf32> to vector<1x128xf32>
    %409 = vector.shape_cast %408 : vector<1x128xf32> to vector<128xf32>
    %410 = vector.shape_cast %409 : vector<128xf32> to vector<1x128xf32>
    %411 = vector.broadcast %410 : vector<1x128xf32> to vector<2x128xf32>
    %412 = arith.cmpf olt, %377, %411 : vector<2x128xf32>
    %413 = arith.andi %407, %412 : vector<2x128xi1>
    %cst_104 = arith.constant 1.000000e+00 : f32
    %cst_105 = arith.constant 0.000000e+00 : f32
    %414 = vector.broadcast %cst_104 : f32 to vector<2x128xf32>
    %415 = vector.broadcast %cst_105 : f32 to vector<2x128xf32>
    %416 = arith.select %413, %414, %415 : vector<2x128xi1>, vector<2x128xf32>
    %417 = vector.extract_strided_slice %378 {offsets = [2, 0], sizes = [1, 128], strides = [1, 1]} : vector<12x128xf32> to vector<1x128xf32>
    %418 = vector.shape_cast %417 : vector<1x128xf32> to vector<128xf32>
    %419 = vector.shape_cast %418 : vector<128xf32> to vector<1x128xf32>
    %420 = vector.broadcast %419 : vector<1x128xf32> to vector<2x128xf32>
    %421 = arith.cmpf oge, %377, %420 : vector<2x128xf32>
    %422 = vector.extract_strided_slice %378 {offsets = [3, 0], sizes = [1, 128], strides = [1, 1]} : vector<12x128xf32> to vector<1x128xf32>
    %423 = vector.shape_cast %422 : vector<1x128xf32> to vector<128xf32>
    %424 = vector.shape_cast %423 : vector<128xf32> to vector<1x128xf32>
    %425 = vector.broadcast %424 : vector<1x128xf32> to vector<2x128xf32>
    %426 = arith.cmpf olt, %377, %425 : vector<2x128xf32>
    %427 = arith.andi %421, %426 : vector<2x128xi1>
    %cst_106 = arith.constant 1.000000e+00 : f32
    %cst_107 = arith.constant 0.000000e+00 : f32
    %428 = vector.broadcast %cst_106 : f32 to vector<2x128xf32>
    %429 = vector.broadcast %cst_107 : f32 to vector<2x128xf32>
    %430 = arith.select %427, %428, %429 : vector<2x128xi1>, vector<2x128xf32>
    %431 = vector.extract_strided_slice %378 {offsets = [3, 0], sizes = [1, 128], strides = [1, 1]} : vector<12x128xf32> to vector<1x128xf32>
    %432 = vector.shape_cast %431 : vector<1x128xf32> to vector<128xf32>
    %433 = vector.shape_cast %432 : vector<128xf32> to vector<1x128xf32>
    %434 = vector.broadcast %433 : vector<1x128xf32> to vector<2x128xf32>
    %435 = arith.cmpf oge, %377, %434 : vector<2x128xf32>
    %436 = vector.extract_strided_slice %378 {offsets = [4, 0], sizes = [1, 128], strides = [1, 1]} : vector<12x128xf32> to vector<1x128xf32>
    %437 = vector.shape_cast %436 : vector<1x128xf32> to vector<128xf32>
    %438 = vector.shape_cast %437 : vector<128xf32> to vector<1x128xf32>
    %439 = vector.broadcast %438 : vector<1x128xf32> to vector<2x128xf32>
    %440 = arith.cmpf olt, %377, %439 : vector<2x128xf32>
    %441 = arith.andi %435, %440 : vector<2x128xi1>
    %cst_108 = arith.constant 1.000000e+00 : f32
    %cst_109 = arith.constant 0.000000e+00 : f32
    %442 = vector.broadcast %cst_108 : f32 to vector<2x128xf32>
    %443 = vector.broadcast %cst_109 : f32 to vector<2x128xf32>
    %444 = arith.select %441, %442, %443 : vector<2x128xi1>, vector<2x128xf32>
    %445 = vector.extract_strided_slice %378 {offsets = [4, 0], sizes = [1, 128], strides = [1, 1]} : vector<12x128xf32> to vector<1x128xf32>
    %446 = vector.shape_cast %445 : vector<1x128xf32> to vector<128xf32>
    %447 = vector.shape_cast %446 : vector<128xf32> to vector<1x128xf32>
    %448 = vector.broadcast %447 : vector<1x128xf32> to vector<2x128xf32>
    %449 = arith.cmpf oge, %377, %448 : vector<2x128xf32>
    %450 = vector.extract_strided_slice %378 {offsets = [5, 0], sizes = [1, 128], strides = [1, 1]} : vector<12x128xf32> to vector<1x128xf32>
    %451 = vector.shape_cast %450 : vector<1x128xf32> to vector<128xf32>
    %452 = vector.shape_cast %451 : vector<128xf32> to vector<1x128xf32>
    %453 = vector.broadcast %452 : vector<1x128xf32> to vector<2x128xf32>
    %454 = arith.cmpf olt, %377, %453 : vector<2x128xf32>
    %455 = arith.andi %449, %454 : vector<2x128xi1>
    %cst_110 = arith.constant 1.000000e+00 : f32
    %cst_111 = arith.constant 0.000000e+00 : f32
    %456 = vector.broadcast %cst_110 : f32 to vector<2x128xf32>
    %457 = vector.broadcast %cst_111 : f32 to vector<2x128xf32>
    %458 = arith.select %455, %456, %457 : vector<2x128xi1>, vector<2x128xf32>
    %459 = vector.extract_strided_slice %378 {offsets = [5, 0], sizes = [1, 128], strides = [1, 1]} : vector<12x128xf32> to vector<1x128xf32>
    %460 = vector.shape_cast %459 : vector<1x128xf32> to vector<128xf32>
    %461 = vector.shape_cast %460 : vector<128xf32> to vector<1x128xf32>
    %462 = vector.broadcast %461 : vector<1x128xf32> to vector<2x128xf32>
    %463 = arith.cmpf oge, %377, %462 : vector<2x128xf32>
    %464 = vector.extract_strided_slice %378 {offsets = [6, 0], sizes = [1, 128], strides = [1, 1]} : vector<12x128xf32> to vector<1x128xf32>
    %465 = vector.shape_cast %464 : vector<1x128xf32> to vector<128xf32>
    %466 = vector.shape_cast %465 : vector<128xf32> to vector<1x128xf32>
    %467 = vector.broadcast %466 : vector<1x128xf32> to vector<2x128xf32>
    %468 = arith.cmpf olt, %377, %467 : vector<2x128xf32>
    %469 = arith.andi %463, %468 : vector<2x128xi1>
    %cst_112 = arith.constant 1.000000e+00 : f32
    %cst_113 = arith.constant 0.000000e+00 : f32
    %470 = vector.broadcast %cst_112 : f32 to vector<2x128xf32>
    %471 = vector.broadcast %cst_113 : f32 to vector<2x128xf32>
    %472 = arith.select %469, %470, %471 : vector<2x128xi1>, vector<2x128xf32>
    %473 = vector.extract_strided_slice %378 {offsets = [6, 0], sizes = [1, 128], strides = [1, 1]} : vector<12x128xf32> to vector<1x128xf32>
    %474 = vector.shape_cast %473 : vector<1x128xf32> to vector<128xf32>
    %475 = vector.shape_cast %474 : vector<128xf32> to vector<1x128xf32>
    %476 = vector.broadcast %475 : vector<1x128xf32> to vector<2x128xf32>
    %477 = arith.cmpf oge, %377, %476 : vector<2x128xf32>
    %478 = vector.extract_strided_slice %378 {offsets = [7, 0], sizes = [1, 128], strides = [1, 1]} : vector<12x128xf32> to vector<1x128xf32>
    %479 = vector.shape_cast %478 : vector<1x128xf32> to vector<128xf32>
    %480 = vector.shape_cast %479 : vector<128xf32> to vector<1x128xf32>
    %481 = vector.broadcast %480 : vector<1x128xf32> to vector<2x128xf32>
    %482 = arith.cmpf olt, %377, %481 : vector<2x128xf32>
    %483 = arith.andi %477, %482 : vector<2x128xi1>
    %cst_114 = arith.constant 1.000000e+00 : f32
    %cst_115 = arith.constant 0.000000e+00 : f32
    %484 = vector.broadcast %cst_114 : f32 to vector<2x128xf32>
    %485 = vector.broadcast %cst_115 : f32 to vector<2x128xf32>
    %486 = arith.select %483, %484, %485 : vector<2x128xi1>, vector<2x128xf32>
    %487 = vector.extract_strided_slice %378 {offsets = [7, 0], sizes = [1, 128], strides = [1, 1]} : vector<12x128xf32> to vector<1x128xf32>
    %488 = vector.shape_cast %487 : vector<1x128xf32> to vector<128xf32>
    %489 = vector.shape_cast %488 : vector<128xf32> to vector<1x128xf32>
    %490 = vector.broadcast %489 : vector<1x128xf32> to vector<2x128xf32>
    %491 = arith.cmpf oge, %377, %490 : vector<2x128xf32>
    %492 = vector.extract_strided_slice %378 {offsets = [8, 0], sizes = [1, 128], strides = [1, 1]} : vector<12x128xf32> to vector<1x128xf32>
    %493 = vector.shape_cast %492 : vector<1x128xf32> to vector<128xf32>
    %494 = vector.shape_cast %493 : vector<128xf32> to vector<1x128xf32>
    %495 = vector.broadcast %494 : vector<1x128xf32> to vector<2x128xf32>
    %496 = arith.cmpf olt, %377, %495 : vector<2x128xf32>
    %497 = arith.andi %491, %496 : vector<2x128xi1>
    %cst_116 = arith.constant 1.000000e+00 : f32
    %cst_117 = arith.constant 0.000000e+00 : f32
    %498 = vector.broadcast %cst_116 : f32 to vector<2x128xf32>
    %499 = vector.broadcast %cst_117 : f32 to vector<2x128xf32>
    %500 = arith.select %497, %498, %499 : vector<2x128xi1>, vector<2x128xf32>
    %501 = vector.extract_strided_slice %378 {offsets = [8, 0], sizes = [1, 128], strides = [1, 1]} : vector<12x128xf32> to vector<1x128xf32>
    %502 = vector.shape_cast %501 : vector<1x128xf32> to vector<128xf32>
    %503 = vector.shape_cast %502 : vector<128xf32> to vector<1x128xf32>
    %504 = vector.broadcast %503 : vector<1x128xf32> to vector<2x128xf32>
    %505 = arith.cmpf oge, %377, %504 : vector<2x128xf32>
    %506 = vector.extract_strided_slice %378 {offsets = [9, 0], sizes = [1, 128], strides = [1, 1]} : vector<12x128xf32> to vector<1x128xf32>
    %507 = vector.shape_cast %506 : vector<1x128xf32> to vector<128xf32>
    %508 = vector.shape_cast %507 : vector<128xf32> to vector<1x128xf32>
    %509 = vector.broadcast %508 : vector<1x128xf32> to vector<2x128xf32>
    %510 = arith.cmpf olt, %377, %509 : vector<2x128xf32>
    %511 = arith.andi %505, %510 : vector<2x128xi1>
    %cst_118 = arith.constant 1.000000e+00 : f32
    %cst_119 = arith.constant 0.000000e+00 : f32
    %512 = vector.broadcast %cst_118 : f32 to vector<2x128xf32>
    %513 = vector.broadcast %cst_119 : f32 to vector<2x128xf32>
    %514 = arith.select %511, %512, %513 : vector<2x128xi1>, vector<2x128xf32>
    %515 = vector.extract_strided_slice %378 {offsets = [9, 0], sizes = [1, 128], strides = [1, 1]} : vector<12x128xf32> to vector<1x128xf32>
    %516 = vector.shape_cast %515 : vector<1x128xf32> to vector<128xf32>
    %517 = vector.shape_cast %516 : vector<128xf32> to vector<1x128xf32>
    %518 = vector.broadcast %517 : vector<1x128xf32> to vector<2x128xf32>
    %519 = arith.cmpf oge, %377, %518 : vector<2x128xf32>
    %520 = vector.extract_strided_slice %378 {offsets = [10, 0], sizes = [1, 128], strides = [1, 1]} : vector<12x128xf32> to vector<1x128xf32>
    %521 = vector.shape_cast %520 : vector<1x128xf32> to vector<128xf32>
    %522 = vector.shape_cast %521 : vector<128xf32> to vector<1x128xf32>
    %523 = vector.broadcast %522 : vector<1x128xf32> to vector<2x128xf32>
    %524 = arith.cmpf olt, %377, %523 : vector<2x128xf32>
    %525 = arith.andi %519, %524 : vector<2x128xi1>
    %cst_120 = arith.constant 1.000000e+00 : f32
    %cst_121 = arith.constant 0.000000e+00 : f32
    %526 = vector.broadcast %cst_120 : f32 to vector<2x128xf32>
    %527 = vector.broadcast %cst_121 : f32 to vector<2x128xf32>
    %528 = arith.select %525, %526, %527 : vector<2x128xi1>, vector<2x128xf32>
    %529 = vector.extract_strided_slice %378 {offsets = [10, 0], sizes = [1, 128], strides = [1, 1]} : vector<12x128xf32> to vector<1x128xf32>
    %530 = vector.shape_cast %529 : vector<1x128xf32> to vector<128xf32>
    %531 = vector.shape_cast %530 : vector<128xf32> to vector<1x128xf32>
    %532 = vector.broadcast %531 : vector<1x128xf32> to vector<2x128xf32>
    %533 = arith.cmpf oge, %377, %532 : vector<2x128xf32>
    %534 = vector.extract_strided_slice %378 {offsets = [11, 0], sizes = [1, 128], strides = [1, 1]} : vector<12x128xf32> to vector<1x128xf32>
    %535 = vector.shape_cast %534 : vector<1x128xf32> to vector<128xf32>
    %536 = vector.shape_cast %535 : vector<128xf32> to vector<1x128xf32>
    %537 = vector.broadcast %536 : vector<1x128xf32> to vector<2x128xf32>
    %538 = arith.cmpf olt, %377, %537 : vector<2x128xf32>
    %539 = arith.andi %533, %538 : vector<2x128xi1>
    %cst_122 = arith.constant 1.000000e+00 : f32
    %cst_123 = arith.constant 0.000000e+00 : f32
    %540 = vector.broadcast %cst_122 : f32 to vector<2x128xf32>
    %541 = vector.broadcast %cst_123 : f32 to vector<2x128xf32>
    %542 = arith.select %539, %540, %541 : vector<2x128xi1>, vector<2x128xf32>
    %543 = vector.extract_strided_slice %378 {offsets = [0, 0], sizes = [1, 128], strides = [1, 1]} : vector<12x128xf32> to vector<1x128xf32>
    %544 = vector.shape_cast %543 : vector<1x128xf32> to vector<128xf32>
    %545 = vector.shape_cast %544 : vector<128xf32> to vector<1x128xf32>
    %546 = vector.broadcast %545 : vector<1x128xf32> to vector<2x128xf32>
    %547 = arith.subf %377, %546 : vector<2x128xf32>
    %548 = vector.extract_strided_slice %379 {offsets = [0, 0], sizes = [1, 128], strides = [1, 1]} : vector<36x128xf32> to vector<1x128xf32>
    %549 = vector.shape_cast %548 : vector<1x128xf32> to vector<128xf32>
    %550 = vector.shape_cast %549 : vector<128xf32> to vector<1x128xf32>
    %551 = vector.broadcast %550 : vector<1x128xf32> to vector<2x128xf32>
    %552 = arith.mulf %547, %551 : vector<2x128xf32>
    %553 = arith.mulf %552, %402 : vector<2x128xf32>
    %554 = vector.extract_strided_slice %378 {offsets = [2, 0], sizes = [1, 128], strides = [1, 1]} : vector<12x128xf32> to vector<1x128xf32>
    %555 = vector.shape_cast %554 : vector<1x128xf32> to vector<128xf32>
    %556 = vector.shape_cast %555 : vector<128xf32> to vector<1x128xf32>
    %557 = vector.broadcast %556 : vector<1x128xf32> to vector<2x128xf32>
    %558 = arith.subf %557, %377 : vector<2x128xf32>
    %559 = vector.extract_strided_slice %379 {offsets = [1, 0], sizes = [1, 128], strides = [1, 1]} : vector<36x128xf32> to vector<1x128xf32>
    %560 = vector.shape_cast %559 : vector<1x128xf32> to vector<128xf32>
    %561 = vector.shape_cast %560 : vector<128xf32> to vector<1x128xf32>
    %562 = vector.broadcast %561 : vector<1x128xf32> to vector<2x128xf32>
    %563 = arith.mulf %558, %562 : vector<2x128xf32>
    %564 = arith.mulf %563, %416 : vector<2x128xf32>
    %565 = arith.addf %553, %564 : vector<2x128xf32>
    %566 = vector.extract_strided_slice %378 {offsets = [1, 0], sizes = [1, 128], strides = [1, 1]} : vector<12x128xf32> to vector<1x128xf32>
    %567 = vector.shape_cast %566 : vector<1x128xf32> to vector<128xf32>
    %568 = vector.shape_cast %567 : vector<128xf32> to vector<1x128xf32>
    %569 = vector.broadcast %568 : vector<1x128xf32> to vector<2x128xf32>
    %570 = arith.subf %377, %569 : vector<2x128xf32>
    %571 = vector.extract_strided_slice %379 {offsets = [1, 0], sizes = [1, 128], strides = [1, 1]} : vector<36x128xf32> to vector<1x128xf32>
    %572 = vector.shape_cast %571 : vector<1x128xf32> to vector<128xf32>
    %573 = vector.shape_cast %572 : vector<128xf32> to vector<1x128xf32>
    %574 = vector.broadcast %573 : vector<1x128xf32> to vector<2x128xf32>
    %575 = arith.mulf %570, %574 : vector<2x128xf32>
    %576 = arith.mulf %575, %416 : vector<2x128xf32>
    %577 = vector.extract_strided_slice %378 {offsets = [3, 0], sizes = [1, 128], strides = [1, 1]} : vector<12x128xf32> to vector<1x128xf32>
    %578 = vector.shape_cast %577 : vector<1x128xf32> to vector<128xf32>
    %579 = vector.shape_cast %578 : vector<128xf32> to vector<1x128xf32>
    %580 = vector.broadcast %579 : vector<1x128xf32> to vector<2x128xf32>
    %581 = arith.subf %580, %377 : vector<2x128xf32>
    %582 = vector.extract_strided_slice %379 {offsets = [2, 0], sizes = [1, 128], strides = [1, 1]} : vector<36x128xf32> to vector<1x128xf32>
    %583 = vector.shape_cast %582 : vector<1x128xf32> to vector<128xf32>
    %584 = vector.shape_cast %583 : vector<128xf32> to vector<1x128xf32>
    %585 = vector.broadcast %584 : vector<1x128xf32> to vector<2x128xf32>
    %586 = arith.mulf %581, %585 : vector<2x128xf32>
    %587 = arith.mulf %586, %430 : vector<2x128xf32>
    %588 = arith.addf %576, %587 : vector<2x128xf32>
    %589 = vector.extract_strided_slice %378 {offsets = [2, 0], sizes = [1, 128], strides = [1, 1]} : vector<12x128xf32> to vector<1x128xf32>
    %590 = vector.shape_cast %589 : vector<1x128xf32> to vector<128xf32>
    %591 = vector.shape_cast %590 : vector<128xf32> to vector<1x128xf32>
    %592 = vector.broadcast %591 : vector<1x128xf32> to vector<2x128xf32>
    %593 = arith.subf %377, %592 : vector<2x128xf32>
    %594 = vector.extract_strided_slice %379 {offsets = [2, 0], sizes = [1, 128], strides = [1, 1]} : vector<36x128xf32> to vector<1x128xf32>
    %595 = vector.shape_cast %594 : vector<1x128xf32> to vector<128xf32>
    %596 = vector.shape_cast %595 : vector<128xf32> to vector<1x128xf32>
    %597 = vector.broadcast %596 : vector<1x128xf32> to vector<2x128xf32>
    %598 = arith.mulf %593, %597 : vector<2x128xf32>
    %599 = arith.mulf %598, %430 : vector<2x128xf32>
    %600 = vector.extract_strided_slice %378 {offsets = [4, 0], sizes = [1, 128], strides = [1, 1]} : vector<12x128xf32> to vector<1x128xf32>
    %601 = vector.shape_cast %600 : vector<1x128xf32> to vector<128xf32>
    %602 = vector.shape_cast %601 : vector<128xf32> to vector<1x128xf32>
    %603 = vector.broadcast %602 : vector<1x128xf32> to vector<2x128xf32>
    %604 = arith.subf %603, %377 : vector<2x128xf32>
    %605 = vector.extract_strided_slice %379 {offsets = [3, 0], sizes = [1, 128], strides = [1, 1]} : vector<36x128xf32> to vector<1x128xf32>
    %606 = vector.shape_cast %605 : vector<1x128xf32> to vector<128xf32>
    %607 = vector.shape_cast %606 : vector<128xf32> to vector<1x128xf32>
    %608 = vector.broadcast %607 : vector<1x128xf32> to vector<2x128xf32>
    %609 = arith.mulf %604, %608 : vector<2x128xf32>
    %610 = arith.mulf %609, %444 : vector<2x128xf32>
    %611 = arith.addf %599, %610 : vector<2x128xf32>
    %612 = vector.extract_strided_slice %378 {offsets = [3, 0], sizes = [1, 128], strides = [1, 1]} : vector<12x128xf32> to vector<1x128xf32>
    %613 = vector.shape_cast %612 : vector<1x128xf32> to vector<128xf32>
    %614 = vector.shape_cast %613 : vector<128xf32> to vector<1x128xf32>
    %615 = vector.broadcast %614 : vector<1x128xf32> to vector<2x128xf32>
    %616 = arith.subf %377, %615 : vector<2x128xf32>
    %617 = vector.extract_strided_slice %379 {offsets = [3, 0], sizes = [1, 128], strides = [1, 1]} : vector<36x128xf32> to vector<1x128xf32>
    %618 = vector.shape_cast %617 : vector<1x128xf32> to vector<128xf32>
    %619 = vector.shape_cast %618 : vector<128xf32> to vector<1x128xf32>
    %620 = vector.broadcast %619 : vector<1x128xf32> to vector<2x128xf32>
    %621 = arith.mulf %616, %620 : vector<2x128xf32>
    %622 = arith.mulf %621, %444 : vector<2x128xf32>
    %623 = vector.extract_strided_slice %378 {offsets = [5, 0], sizes = [1, 128], strides = [1, 1]} : vector<12x128xf32> to vector<1x128xf32>
    %624 = vector.shape_cast %623 : vector<1x128xf32> to vector<128xf32>
    %625 = vector.shape_cast %624 : vector<128xf32> to vector<1x128xf32>
    %626 = vector.broadcast %625 : vector<1x128xf32> to vector<2x128xf32>
    %627 = arith.subf %626, %377 : vector<2x128xf32>
    %628 = vector.extract_strided_slice %379 {offsets = [4, 0], sizes = [1, 128], strides = [1, 1]} : vector<36x128xf32> to vector<1x128xf32>
    %629 = vector.shape_cast %628 : vector<1x128xf32> to vector<128xf32>
    %630 = vector.shape_cast %629 : vector<128xf32> to vector<1x128xf32>
    %631 = vector.broadcast %630 : vector<1x128xf32> to vector<2x128xf32>
    %632 = arith.mulf %627, %631 : vector<2x128xf32>
    %633 = arith.mulf %632, %458 : vector<2x128xf32>
    %634 = arith.addf %622, %633 : vector<2x128xf32>
    %635 = vector.extract_strided_slice %378 {offsets = [4, 0], sizes = [1, 128], strides = [1, 1]} : vector<12x128xf32> to vector<1x128xf32>
    %636 = vector.shape_cast %635 : vector<1x128xf32> to vector<128xf32>
    %637 = vector.shape_cast %636 : vector<128xf32> to vector<1x128xf32>
    %638 = vector.broadcast %637 : vector<1x128xf32> to vector<2x128xf32>
    %639 = arith.subf %377, %638 : vector<2x128xf32>
    %640 = vector.extract_strided_slice %379 {offsets = [4, 0], sizes = [1, 128], strides = [1, 1]} : vector<36x128xf32> to vector<1x128xf32>
    %641 = vector.shape_cast %640 : vector<1x128xf32> to vector<128xf32>
    %642 = vector.shape_cast %641 : vector<128xf32> to vector<1x128xf32>
    %643 = vector.broadcast %642 : vector<1x128xf32> to vector<2x128xf32>
    %644 = arith.mulf %639, %643 : vector<2x128xf32>
    %645 = arith.mulf %644, %458 : vector<2x128xf32>
    %646 = vector.extract_strided_slice %378 {offsets = [6, 0], sizes = [1, 128], strides = [1, 1]} : vector<12x128xf32> to vector<1x128xf32>
    %647 = vector.shape_cast %646 : vector<1x128xf32> to vector<128xf32>
    %648 = vector.shape_cast %647 : vector<128xf32> to vector<1x128xf32>
    %649 = vector.broadcast %648 : vector<1x128xf32> to vector<2x128xf32>
    %650 = arith.subf %649, %377 : vector<2x128xf32>
    %651 = vector.extract_strided_slice %379 {offsets = [5, 0], sizes = [1, 128], strides = [1, 1]} : vector<36x128xf32> to vector<1x128xf32>
    %652 = vector.shape_cast %651 : vector<1x128xf32> to vector<128xf32>
    %653 = vector.shape_cast %652 : vector<128xf32> to vector<1x128xf32>
    %654 = vector.broadcast %653 : vector<1x128xf32> to vector<2x128xf32>
    %655 = arith.mulf %650, %654 : vector<2x128xf32>
    %656 = arith.mulf %655, %472 : vector<2x128xf32>
    %657 = arith.addf %645, %656 : vector<2x128xf32>
    %658 = vector.extract_strided_slice %378 {offsets = [5, 0], sizes = [1, 128], strides = [1, 1]} : vector<12x128xf32> to vector<1x128xf32>
    %659 = vector.shape_cast %658 : vector<1x128xf32> to vector<128xf32>
    %660 = vector.shape_cast %659 : vector<128xf32> to vector<1x128xf32>
    %661 = vector.broadcast %660 : vector<1x128xf32> to vector<2x128xf32>
    %662 = arith.subf %377, %661 : vector<2x128xf32>
    %663 = vector.extract_strided_slice %379 {offsets = [5, 0], sizes = [1, 128], strides = [1, 1]} : vector<36x128xf32> to vector<1x128xf32>
    %664 = vector.shape_cast %663 : vector<1x128xf32> to vector<128xf32>
    %665 = vector.shape_cast %664 : vector<128xf32> to vector<1x128xf32>
    %666 = vector.broadcast %665 : vector<1x128xf32> to vector<2x128xf32>
    %667 = arith.mulf %662, %666 : vector<2x128xf32>
    %668 = arith.mulf %667, %472 : vector<2x128xf32>
    %669 = vector.extract_strided_slice %378 {offsets = [7, 0], sizes = [1, 128], strides = [1, 1]} : vector<12x128xf32> to vector<1x128xf32>
    %670 = vector.shape_cast %669 : vector<1x128xf32> to vector<128xf32>
    %671 = vector.shape_cast %670 : vector<128xf32> to vector<1x128xf32>
    %672 = vector.broadcast %671 : vector<1x128xf32> to vector<2x128xf32>
    %673 = arith.subf %672, %377 : vector<2x128xf32>
    %674 = vector.extract_strided_slice %379 {offsets = [6, 0], sizes = [1, 128], strides = [1, 1]} : vector<36x128xf32> to vector<1x128xf32>
    %675 = vector.shape_cast %674 : vector<1x128xf32> to vector<128xf32>
    %676 = vector.shape_cast %675 : vector<128xf32> to vector<1x128xf32>
    %677 = vector.broadcast %676 : vector<1x128xf32> to vector<2x128xf32>
    %678 = arith.mulf %673, %677 : vector<2x128xf32>
    %679 = arith.mulf %678, %486 : vector<2x128xf32>
    %680 = arith.addf %668, %679 : vector<2x128xf32>
    %681 = vector.extract_strided_slice %378 {offsets = [6, 0], sizes = [1, 128], strides = [1, 1]} : vector<12x128xf32> to vector<1x128xf32>
    %682 = vector.shape_cast %681 : vector<1x128xf32> to vector<128xf32>
    %683 = vector.shape_cast %682 : vector<128xf32> to vector<1x128xf32>
    %684 = vector.broadcast %683 : vector<1x128xf32> to vector<2x128xf32>
    %685 = arith.subf %377, %684 : vector<2x128xf32>
    %686 = vector.extract_strided_slice %379 {offsets = [6, 0], sizes = [1, 128], strides = [1, 1]} : vector<36x128xf32> to vector<1x128xf32>
    %687 = vector.shape_cast %686 : vector<1x128xf32> to vector<128xf32>
    %688 = vector.shape_cast %687 : vector<128xf32> to vector<1x128xf32>
    %689 = vector.broadcast %688 : vector<1x128xf32> to vector<2x128xf32>
    %690 = arith.mulf %685, %689 : vector<2x128xf32>
    %691 = arith.mulf %690, %486 : vector<2x128xf32>
    %692 = vector.extract_strided_slice %378 {offsets = [8, 0], sizes = [1, 128], strides = [1, 1]} : vector<12x128xf32> to vector<1x128xf32>
    %693 = vector.shape_cast %692 : vector<1x128xf32> to vector<128xf32>
    %694 = vector.shape_cast %693 : vector<128xf32> to vector<1x128xf32>
    %695 = vector.broadcast %694 : vector<1x128xf32> to vector<2x128xf32>
    %696 = arith.subf %695, %377 : vector<2x128xf32>
    %697 = vector.extract_strided_slice %379 {offsets = [7, 0], sizes = [1, 128], strides = [1, 1]} : vector<36x128xf32> to vector<1x128xf32>
    %698 = vector.shape_cast %697 : vector<1x128xf32> to vector<128xf32>
    %699 = vector.shape_cast %698 : vector<128xf32> to vector<1x128xf32>
    %700 = vector.broadcast %699 : vector<1x128xf32> to vector<2x128xf32>
    %701 = arith.mulf %696, %700 : vector<2x128xf32>
    %702 = arith.mulf %701, %500 : vector<2x128xf32>
    %703 = arith.addf %691, %702 : vector<2x128xf32>
    %704 = vector.extract_strided_slice %378 {offsets = [7, 0], sizes = [1, 128], strides = [1, 1]} : vector<12x128xf32> to vector<1x128xf32>
    %705 = vector.shape_cast %704 : vector<1x128xf32> to vector<128xf32>
    %706 = vector.shape_cast %705 : vector<128xf32> to vector<1x128xf32>
    %707 = vector.broadcast %706 : vector<1x128xf32> to vector<2x128xf32>
    %708 = arith.subf %377, %707 : vector<2x128xf32>
    %709 = vector.extract_strided_slice %379 {offsets = [7, 0], sizes = [1, 128], strides = [1, 1]} : vector<36x128xf32> to vector<1x128xf32>
    %710 = vector.shape_cast %709 : vector<1x128xf32> to vector<128xf32>
    %711 = vector.shape_cast %710 : vector<128xf32> to vector<1x128xf32>
    %712 = vector.broadcast %711 : vector<1x128xf32> to vector<2x128xf32>
    %713 = arith.mulf %708, %712 : vector<2x128xf32>
    %714 = arith.mulf %713, %500 : vector<2x128xf32>
    %715 = vector.extract_strided_slice %378 {offsets = [9, 0], sizes = [1, 128], strides = [1, 1]} : vector<12x128xf32> to vector<1x128xf32>
    %716 = vector.shape_cast %715 : vector<1x128xf32> to vector<128xf32>
    %717 = vector.shape_cast %716 : vector<128xf32> to vector<1x128xf32>
    %718 = vector.broadcast %717 : vector<1x128xf32> to vector<2x128xf32>
    %719 = arith.subf %718, %377 : vector<2x128xf32>
    %720 = vector.extract_strided_slice %379 {offsets = [8, 0], sizes = [1, 128], strides = [1, 1]} : vector<36x128xf32> to vector<1x128xf32>
    %721 = vector.shape_cast %720 : vector<1x128xf32> to vector<128xf32>
    %722 = vector.shape_cast %721 : vector<128xf32> to vector<1x128xf32>
    %723 = vector.broadcast %722 : vector<1x128xf32> to vector<2x128xf32>
    %724 = arith.mulf %719, %723 : vector<2x128xf32>
    %725 = arith.mulf %724, %514 : vector<2x128xf32>
    %726 = arith.addf %714, %725 : vector<2x128xf32>
    %727 = vector.extract_strided_slice %378 {offsets = [8, 0], sizes = [1, 128], strides = [1, 1]} : vector<12x128xf32> to vector<1x128xf32>
    %728 = vector.shape_cast %727 : vector<1x128xf32> to vector<128xf32>
    %729 = vector.shape_cast %728 : vector<128xf32> to vector<1x128xf32>
    %730 = vector.broadcast %729 : vector<1x128xf32> to vector<2x128xf32>
    %731 = arith.subf %377, %730 : vector<2x128xf32>
    %732 = vector.extract_strided_slice %379 {offsets = [8, 0], sizes = [1, 128], strides = [1, 1]} : vector<36x128xf32> to vector<1x128xf32>
    %733 = vector.shape_cast %732 : vector<1x128xf32> to vector<128xf32>
    %734 = vector.shape_cast %733 : vector<128xf32> to vector<1x128xf32>
    %735 = vector.broadcast %734 : vector<1x128xf32> to vector<2x128xf32>
    %736 = arith.mulf %731, %735 : vector<2x128xf32>
    %737 = arith.mulf %736, %514 : vector<2x128xf32>
    %738 = vector.extract_strided_slice %378 {offsets = [10, 0], sizes = [1, 128], strides = [1, 1]} : vector<12x128xf32> to vector<1x128xf32>
    %739 = vector.shape_cast %738 : vector<1x128xf32> to vector<128xf32>
    %740 = vector.shape_cast %739 : vector<128xf32> to vector<1x128xf32>
    %741 = vector.broadcast %740 : vector<1x128xf32> to vector<2x128xf32>
    %742 = arith.subf %741, %377 : vector<2x128xf32>
    %743 = vector.extract_strided_slice %379 {offsets = [9, 0], sizes = [1, 128], strides = [1, 1]} : vector<36x128xf32> to vector<1x128xf32>
    %744 = vector.shape_cast %743 : vector<1x128xf32> to vector<128xf32>
    %745 = vector.shape_cast %744 : vector<128xf32> to vector<1x128xf32>
    %746 = vector.broadcast %745 : vector<1x128xf32> to vector<2x128xf32>
    %747 = arith.mulf %742, %746 : vector<2x128xf32>
    %748 = arith.mulf %747, %528 : vector<2x128xf32>
    %749 = arith.addf %737, %748 : vector<2x128xf32>
    %750 = vector.extract_strided_slice %378 {offsets = [9, 0], sizes = [1, 128], strides = [1, 1]} : vector<12x128xf32> to vector<1x128xf32>
    %751 = vector.shape_cast %750 : vector<1x128xf32> to vector<128xf32>
    %752 = vector.shape_cast %751 : vector<128xf32> to vector<1x128xf32>
    %753 = vector.broadcast %752 : vector<1x128xf32> to vector<2x128xf32>
    %754 = arith.subf %377, %753 : vector<2x128xf32>
    %755 = vector.extract_strided_slice %379 {offsets = [9, 0], sizes = [1, 128], strides = [1, 1]} : vector<36x128xf32> to vector<1x128xf32>
    %756 = vector.shape_cast %755 : vector<1x128xf32> to vector<128xf32>
    %757 = vector.shape_cast %756 : vector<128xf32> to vector<1x128xf32>
    %758 = vector.broadcast %757 : vector<1x128xf32> to vector<2x128xf32>
    %759 = arith.mulf %754, %758 : vector<2x128xf32>
    %760 = arith.mulf %759, %528 : vector<2x128xf32>
    %761 = vector.extract_strided_slice %378 {offsets = [11, 0], sizes = [1, 128], strides = [1, 1]} : vector<12x128xf32> to vector<1x128xf32>
    %762 = vector.shape_cast %761 : vector<1x128xf32> to vector<128xf32>
    %763 = vector.shape_cast %762 : vector<128xf32> to vector<1x128xf32>
    %764 = vector.broadcast %763 : vector<1x128xf32> to vector<2x128xf32>
    %765 = arith.subf %764, %377 : vector<2x128xf32>
    %766 = vector.extract_strided_slice %379 {offsets = [10, 0], sizes = [1, 128], strides = [1, 1]} : vector<36x128xf32> to vector<1x128xf32>
    %767 = vector.shape_cast %766 : vector<1x128xf32> to vector<128xf32>
    %768 = vector.shape_cast %767 : vector<128xf32> to vector<1x128xf32>
    %769 = vector.broadcast %768 : vector<1x128xf32> to vector<2x128xf32>
    %770 = arith.mulf %765, %769 : vector<2x128xf32>
    %771 = arith.mulf %770, %542 : vector<2x128xf32>
    %772 = arith.addf %760, %771 : vector<2x128xf32>
    %773 = vector.extract_strided_slice %378 {offsets = [0, 0], sizes = [1, 128], strides = [1, 1]} : vector<12x128xf32> to vector<1x128xf32>
    %774 = vector.shape_cast %773 : vector<1x128xf32> to vector<128xf32>
    %775 = vector.shape_cast %774 : vector<128xf32> to vector<1x128xf32>
    %776 = vector.broadcast %775 : vector<1x128xf32> to vector<2x128xf32>
    %777 = arith.subf %377, %776 : vector<2x128xf32>
    %778 = vector.extract_strided_slice %379 {offsets = [12, 0], sizes = [1, 128], strides = [1, 1]} : vector<36x128xf32> to vector<1x128xf32>
    %779 = vector.shape_cast %778 : vector<1x128xf32> to vector<128xf32>
    %780 = vector.shape_cast %779 : vector<128xf32> to vector<1x128xf32>
    %781 = vector.broadcast %780 : vector<1x128xf32> to vector<2x128xf32>
    %782 = arith.mulf %777, %781 : vector<2x128xf32>
    %783 = arith.mulf %782, %565 : vector<2x128xf32>
    %784 = vector.extract_strided_slice %378 {offsets = [3, 0], sizes = [1, 128], strides = [1, 1]} : vector<12x128xf32> to vector<1x128xf32>
    %785 = vector.shape_cast %784 : vector<1x128xf32> to vector<128xf32>
    %786 = vector.shape_cast %785 : vector<128xf32> to vector<1x128xf32>
    %787 = vector.broadcast %786 : vector<1x128xf32> to vector<2x128xf32>
    %788 = arith.subf %787, %377 : vector<2x128xf32>
    %789 = vector.extract_strided_slice %379 {offsets = [13, 0], sizes = [1, 128], strides = [1, 1]} : vector<36x128xf32> to vector<1x128xf32>
    %790 = vector.shape_cast %789 : vector<1x128xf32> to vector<128xf32>
    %791 = vector.shape_cast %790 : vector<128xf32> to vector<1x128xf32>
    %792 = vector.broadcast %791 : vector<1x128xf32> to vector<2x128xf32>
    %793 = arith.mulf %788, %792 : vector<2x128xf32>
    %794 = arith.mulf %793, %588 : vector<2x128xf32>
    %795 = arith.addf %783, %794 : vector<2x128xf32>
    %796 = vector.extract_strided_slice %378 {offsets = [1, 0], sizes = [1, 128], strides = [1, 1]} : vector<12x128xf32> to vector<1x128xf32>
    %797 = vector.shape_cast %796 : vector<1x128xf32> to vector<128xf32>
    %798 = vector.shape_cast %797 : vector<128xf32> to vector<1x128xf32>
    %799 = vector.broadcast %798 : vector<1x128xf32> to vector<2x128xf32>
    %800 = arith.subf %377, %799 : vector<2x128xf32>
    %801 = vector.extract_strided_slice %379 {offsets = [13, 0], sizes = [1, 128], strides = [1, 1]} : vector<36x128xf32> to vector<1x128xf32>
    %802 = vector.shape_cast %801 : vector<1x128xf32> to vector<128xf32>
    %803 = vector.shape_cast %802 : vector<128xf32> to vector<1x128xf32>
    %804 = vector.broadcast %803 : vector<1x128xf32> to vector<2x128xf32>
    %805 = arith.mulf %800, %804 : vector<2x128xf32>
    %806 = arith.mulf %805, %588 : vector<2x128xf32>
    %807 = vector.extract_strided_slice %378 {offsets = [4, 0], sizes = [1, 128], strides = [1, 1]} : vector<12x128xf32> to vector<1x128xf32>
    %808 = vector.shape_cast %807 : vector<1x128xf32> to vector<128xf32>
    %809 = vector.shape_cast %808 : vector<128xf32> to vector<1x128xf32>
    %810 = vector.broadcast %809 : vector<1x128xf32> to vector<2x128xf32>
    %811 = arith.subf %810, %377 : vector<2x128xf32>
    %812 = vector.extract_strided_slice %379 {offsets = [14, 0], sizes = [1, 128], strides = [1, 1]} : vector<36x128xf32> to vector<1x128xf32>
    %813 = vector.shape_cast %812 : vector<1x128xf32> to vector<128xf32>
    %814 = vector.shape_cast %813 : vector<128xf32> to vector<1x128xf32>
    %815 = vector.broadcast %814 : vector<1x128xf32> to vector<2x128xf32>
    %816 = arith.mulf %811, %815 : vector<2x128xf32>
    %817 = arith.mulf %816, %611 : vector<2x128xf32>
    %818 = arith.addf %806, %817 : vector<2x128xf32>
    %819 = vector.extract_strided_slice %378 {offsets = [2, 0], sizes = [1, 128], strides = [1, 1]} : vector<12x128xf32> to vector<1x128xf32>
    %820 = vector.shape_cast %819 : vector<1x128xf32> to vector<128xf32>
    %821 = vector.shape_cast %820 : vector<128xf32> to vector<1x128xf32>
    %822 = vector.broadcast %821 : vector<1x128xf32> to vector<2x128xf32>
    %823 = arith.subf %377, %822 : vector<2x128xf32>
    %824 = vector.extract_strided_slice %379 {offsets = [14, 0], sizes = [1, 128], strides = [1, 1]} : vector<36x128xf32> to vector<1x128xf32>
    %825 = vector.shape_cast %824 : vector<1x128xf32> to vector<128xf32>
    %826 = vector.shape_cast %825 : vector<128xf32> to vector<1x128xf32>
    %827 = vector.broadcast %826 : vector<1x128xf32> to vector<2x128xf32>
    %828 = arith.mulf %823, %827 : vector<2x128xf32>
    %829 = arith.mulf %828, %611 : vector<2x128xf32>
    %830 = vector.extract_strided_slice %378 {offsets = [5, 0], sizes = [1, 128], strides = [1, 1]} : vector<12x128xf32> to vector<1x128xf32>
    %831 = vector.shape_cast %830 : vector<1x128xf32> to vector<128xf32>
    %832 = vector.shape_cast %831 : vector<128xf32> to vector<1x128xf32>
    %833 = vector.broadcast %832 : vector<1x128xf32> to vector<2x128xf32>
    %834 = arith.subf %833, %377 : vector<2x128xf32>
    %835 = vector.extract_strided_slice %379 {offsets = [15, 0], sizes = [1, 128], strides = [1, 1]} : vector<36x128xf32> to vector<1x128xf32>
    %836 = vector.shape_cast %835 : vector<1x128xf32> to vector<128xf32>
    %837 = vector.shape_cast %836 : vector<128xf32> to vector<1x128xf32>
    %838 = vector.broadcast %837 : vector<1x128xf32> to vector<2x128xf32>
    %839 = arith.mulf %834, %838 : vector<2x128xf32>
    %840 = arith.mulf %839, %634 : vector<2x128xf32>
    %841 = arith.addf %829, %840 : vector<2x128xf32>
    %842 = vector.extract_strided_slice %378 {offsets = [3, 0], sizes = [1, 128], strides = [1, 1]} : vector<12x128xf32> to vector<1x128xf32>
    %843 = vector.shape_cast %842 : vector<1x128xf32> to vector<128xf32>
    %844 = vector.shape_cast %843 : vector<128xf32> to vector<1x128xf32>
    %845 = vector.broadcast %844 : vector<1x128xf32> to vector<2x128xf32>
    %846 = arith.subf %377, %845 : vector<2x128xf32>
    %847 = vector.extract_strided_slice %379 {offsets = [15, 0], sizes = [1, 128], strides = [1, 1]} : vector<36x128xf32> to vector<1x128xf32>
    %848 = vector.shape_cast %847 : vector<1x128xf32> to vector<128xf32>
    %849 = vector.shape_cast %848 : vector<128xf32> to vector<1x128xf32>
    %850 = vector.broadcast %849 : vector<1x128xf32> to vector<2x128xf32>
    %851 = arith.mulf %846, %850 : vector<2x128xf32>
    %852 = arith.mulf %851, %634 : vector<2x128xf32>
    %853 = vector.extract_strided_slice %378 {offsets = [6, 0], sizes = [1, 128], strides = [1, 1]} : vector<12x128xf32> to vector<1x128xf32>
    %854 = vector.shape_cast %853 : vector<1x128xf32> to vector<128xf32>
    %855 = vector.shape_cast %854 : vector<128xf32> to vector<1x128xf32>
    %856 = vector.broadcast %855 : vector<1x128xf32> to vector<2x128xf32>
    %857 = arith.subf %856, %377 : vector<2x128xf32>
    %858 = vector.extract_strided_slice %379 {offsets = [16, 0], sizes = [1, 128], strides = [1, 1]} : vector<36x128xf32> to vector<1x128xf32>
    %859 = vector.shape_cast %858 : vector<1x128xf32> to vector<128xf32>
    %860 = vector.shape_cast %859 : vector<128xf32> to vector<1x128xf32>
    %861 = vector.broadcast %860 : vector<1x128xf32> to vector<2x128xf32>
    %862 = arith.mulf %857, %861 : vector<2x128xf32>
    %863 = arith.mulf %862, %657 : vector<2x128xf32>
    %864 = arith.addf %852, %863 : vector<2x128xf32>
    %865 = vector.extract_strided_slice %378 {offsets = [4, 0], sizes = [1, 128], strides = [1, 1]} : vector<12x128xf32> to vector<1x128xf32>
    %866 = vector.shape_cast %865 : vector<1x128xf32> to vector<128xf32>
    %867 = vector.shape_cast %866 : vector<128xf32> to vector<1x128xf32>
    %868 = vector.broadcast %867 : vector<1x128xf32> to vector<2x128xf32>
    %869 = arith.subf %377, %868 : vector<2x128xf32>
    %870 = vector.extract_strided_slice %379 {offsets = [16, 0], sizes = [1, 128], strides = [1, 1]} : vector<36x128xf32> to vector<1x128xf32>
    %871 = vector.shape_cast %870 : vector<1x128xf32> to vector<128xf32>
    %872 = vector.shape_cast %871 : vector<128xf32> to vector<1x128xf32>
    %873 = vector.broadcast %872 : vector<1x128xf32> to vector<2x128xf32>
    %874 = arith.mulf %869, %873 : vector<2x128xf32>
    %875 = arith.mulf %874, %657 : vector<2x128xf32>
    %876 = vector.extract_strided_slice %378 {offsets = [7, 0], sizes = [1, 128], strides = [1, 1]} : vector<12x128xf32> to vector<1x128xf32>
    %877 = vector.shape_cast %876 : vector<1x128xf32> to vector<128xf32>
    %878 = vector.shape_cast %877 : vector<128xf32> to vector<1x128xf32>
    %879 = vector.broadcast %878 : vector<1x128xf32> to vector<2x128xf32>
    %880 = arith.subf %879, %377 : vector<2x128xf32>
    %881 = vector.extract_strided_slice %379 {offsets = [17, 0], sizes = [1, 128], strides = [1, 1]} : vector<36x128xf32> to vector<1x128xf32>
    %882 = vector.shape_cast %881 : vector<1x128xf32> to vector<128xf32>
    %883 = vector.shape_cast %882 : vector<128xf32> to vector<1x128xf32>
    %884 = vector.broadcast %883 : vector<1x128xf32> to vector<2x128xf32>
    %885 = arith.mulf %880, %884 : vector<2x128xf32>
    %886 = arith.mulf %885, %680 : vector<2x128xf32>
    %887 = arith.addf %875, %886 : vector<2x128xf32>
    %888 = vector.extract_strided_slice %378 {offsets = [5, 0], sizes = [1, 128], strides = [1, 1]} : vector<12x128xf32> to vector<1x128xf32>
    %889 = vector.shape_cast %888 : vector<1x128xf32> to vector<128xf32>
    %890 = vector.shape_cast %889 : vector<128xf32> to vector<1x128xf32>
    %891 = vector.broadcast %890 : vector<1x128xf32> to vector<2x128xf32>
    %892 = arith.subf %377, %891 : vector<2x128xf32>
    %893 = vector.extract_strided_slice %379 {offsets = [17, 0], sizes = [1, 128], strides = [1, 1]} : vector<36x128xf32> to vector<1x128xf32>
    %894 = vector.shape_cast %893 : vector<1x128xf32> to vector<128xf32>
    %895 = vector.shape_cast %894 : vector<128xf32> to vector<1x128xf32>
    %896 = vector.broadcast %895 : vector<1x128xf32> to vector<2x128xf32>
    %897 = arith.mulf %892, %896 : vector<2x128xf32>
    %898 = arith.mulf %897, %680 : vector<2x128xf32>
    %899 = vector.extract_strided_slice %378 {offsets = [8, 0], sizes = [1, 128], strides = [1, 1]} : vector<12x128xf32> to vector<1x128xf32>
    %900 = vector.shape_cast %899 : vector<1x128xf32> to vector<128xf32>
    %901 = vector.shape_cast %900 : vector<128xf32> to vector<1x128xf32>
    %902 = vector.broadcast %901 : vector<1x128xf32> to vector<2x128xf32>
    %903 = arith.subf %902, %377 : vector<2x128xf32>
    %904 = vector.extract_strided_slice %379 {offsets = [18, 0], sizes = [1, 128], strides = [1, 1]} : vector<36x128xf32> to vector<1x128xf32>
    %905 = vector.shape_cast %904 : vector<1x128xf32> to vector<128xf32>
    %906 = vector.shape_cast %905 : vector<128xf32> to vector<1x128xf32>
    %907 = vector.broadcast %906 : vector<1x128xf32> to vector<2x128xf32>
    %908 = arith.mulf %903, %907 : vector<2x128xf32>
    %909 = arith.mulf %908, %703 : vector<2x128xf32>
    %910 = arith.addf %898, %909 : vector<2x128xf32>
    %911 = vector.extract_strided_slice %378 {offsets = [6, 0], sizes = [1, 128], strides = [1, 1]} : vector<12x128xf32> to vector<1x128xf32>
    %912 = vector.shape_cast %911 : vector<1x128xf32> to vector<128xf32>
    %913 = vector.shape_cast %912 : vector<128xf32> to vector<1x128xf32>
    %914 = vector.broadcast %913 : vector<1x128xf32> to vector<2x128xf32>
    %915 = arith.subf %377, %914 : vector<2x128xf32>
    %916 = vector.extract_strided_slice %379 {offsets = [18, 0], sizes = [1, 128], strides = [1, 1]} : vector<36x128xf32> to vector<1x128xf32>
    %917 = vector.shape_cast %916 : vector<1x128xf32> to vector<128xf32>
    %918 = vector.shape_cast %917 : vector<128xf32> to vector<1x128xf32>
    %919 = vector.broadcast %918 : vector<1x128xf32> to vector<2x128xf32>
    %920 = arith.mulf %915, %919 : vector<2x128xf32>
    %921 = arith.mulf %920, %703 : vector<2x128xf32>
    %922 = vector.extract_strided_slice %378 {offsets = [9, 0], sizes = [1, 128], strides = [1, 1]} : vector<12x128xf32> to vector<1x128xf32>
    %923 = vector.shape_cast %922 : vector<1x128xf32> to vector<128xf32>
    %924 = vector.shape_cast %923 : vector<128xf32> to vector<1x128xf32>
    %925 = vector.broadcast %924 : vector<1x128xf32> to vector<2x128xf32>
    %926 = arith.subf %925, %377 : vector<2x128xf32>
    %927 = vector.extract_strided_slice %379 {offsets = [19, 0], sizes = [1, 128], strides = [1, 1]} : vector<36x128xf32> to vector<1x128xf32>
    %928 = vector.shape_cast %927 : vector<1x128xf32> to vector<128xf32>
    %929 = vector.shape_cast %928 : vector<128xf32> to vector<1x128xf32>
    %930 = vector.broadcast %929 : vector<1x128xf32> to vector<2x128xf32>
    %931 = arith.mulf %926, %930 : vector<2x128xf32>
    %932 = arith.mulf %931, %726 : vector<2x128xf32>
    %933 = arith.addf %921, %932 : vector<2x128xf32>
    %934 = vector.extract_strided_slice %378 {offsets = [7, 0], sizes = [1, 128], strides = [1, 1]} : vector<12x128xf32> to vector<1x128xf32>
    %935 = vector.shape_cast %934 : vector<1x128xf32> to vector<128xf32>
    %936 = vector.shape_cast %935 : vector<128xf32> to vector<1x128xf32>
    %937 = vector.broadcast %936 : vector<1x128xf32> to vector<2x128xf32>
    %938 = arith.subf %377, %937 : vector<2x128xf32>
    %939 = vector.extract_strided_slice %379 {offsets = [19, 0], sizes = [1, 128], strides = [1, 1]} : vector<36x128xf32> to vector<1x128xf32>
    %940 = vector.shape_cast %939 : vector<1x128xf32> to vector<128xf32>
    %941 = vector.shape_cast %940 : vector<128xf32> to vector<1x128xf32>
    %942 = vector.broadcast %941 : vector<1x128xf32> to vector<2x128xf32>
    %943 = arith.mulf %938, %942 : vector<2x128xf32>
    %944 = arith.mulf %943, %726 : vector<2x128xf32>
    %945 = vector.extract_strided_slice %378 {offsets = [10, 0], sizes = [1, 128], strides = [1, 1]} : vector<12x128xf32> to vector<1x128xf32>
    %946 = vector.shape_cast %945 : vector<1x128xf32> to vector<128xf32>
    %947 = vector.shape_cast %946 : vector<128xf32> to vector<1x128xf32>
    %948 = vector.broadcast %947 : vector<1x128xf32> to vector<2x128xf32>
    %949 = arith.subf %948, %377 : vector<2x128xf32>
    %950 = vector.extract_strided_slice %379 {offsets = [20, 0], sizes = [1, 128], strides = [1, 1]} : vector<36x128xf32> to vector<1x128xf32>
    %951 = vector.shape_cast %950 : vector<1x128xf32> to vector<128xf32>
    %952 = vector.shape_cast %951 : vector<128xf32> to vector<1x128xf32>
    %953 = vector.broadcast %952 : vector<1x128xf32> to vector<2x128xf32>
    %954 = arith.mulf %949, %953 : vector<2x128xf32>
    %955 = arith.mulf %954, %749 : vector<2x128xf32>
    %956 = arith.addf %944, %955 : vector<2x128xf32>
    %957 = vector.extract_strided_slice %378 {offsets = [8, 0], sizes = [1, 128], strides = [1, 1]} : vector<12x128xf32> to vector<1x128xf32>
    %958 = vector.shape_cast %957 : vector<1x128xf32> to vector<128xf32>
    %959 = vector.shape_cast %958 : vector<128xf32> to vector<1x128xf32>
    %960 = vector.broadcast %959 : vector<1x128xf32> to vector<2x128xf32>
    %961 = arith.subf %377, %960 : vector<2x128xf32>
    %962 = vector.extract_strided_slice %379 {offsets = [20, 0], sizes = [1, 128], strides = [1, 1]} : vector<36x128xf32> to vector<1x128xf32>
    %963 = vector.shape_cast %962 : vector<1x128xf32> to vector<128xf32>
    %964 = vector.shape_cast %963 : vector<128xf32> to vector<1x128xf32>
    %965 = vector.broadcast %964 : vector<1x128xf32> to vector<2x128xf32>
    %966 = arith.mulf %961, %965 : vector<2x128xf32>
    %967 = arith.mulf %966, %749 : vector<2x128xf32>
    %968 = vector.extract_strided_slice %378 {offsets = [11, 0], sizes = [1, 128], strides = [1, 1]} : vector<12x128xf32> to vector<1x128xf32>
    %969 = vector.shape_cast %968 : vector<1x128xf32> to vector<128xf32>
    %970 = vector.shape_cast %969 : vector<128xf32> to vector<1x128xf32>
    %971 = vector.broadcast %970 : vector<1x128xf32> to vector<2x128xf32>
    %972 = arith.subf %971, %377 : vector<2x128xf32>
    %973 = vector.extract_strided_slice %379 {offsets = [21, 0], sizes = [1, 128], strides = [1, 1]} : vector<36x128xf32> to vector<1x128xf32>
    %974 = vector.shape_cast %973 : vector<1x128xf32> to vector<128xf32>
    %975 = vector.shape_cast %974 : vector<128xf32> to vector<1x128xf32>
    %976 = vector.broadcast %975 : vector<1x128xf32> to vector<2x128xf32>
    %977 = arith.mulf %972, %976 : vector<2x128xf32>
    %978 = arith.mulf %977, %772 : vector<2x128xf32>
    %979 = arith.addf %967, %978 : vector<2x128xf32>
    %980 = vector.extract_strided_slice %378 {offsets = [0, 0], sizes = [1, 128], strides = [1, 1]} : vector<12x128xf32> to vector<1x128xf32>
    %981 = vector.shape_cast %980 : vector<1x128xf32> to vector<128xf32>
    %982 = vector.shape_cast %981 : vector<128xf32> to vector<1x128xf32>
    %983 = vector.broadcast %982 : vector<1x128xf32> to vector<2x128xf32>
    %984 = arith.subf %377, %983 : vector<2x128xf32>
    %985 = vector.extract_strided_slice %379 {offsets = [24, 0], sizes = [1, 128], strides = [1, 1]} : vector<36x128xf32> to vector<1x128xf32>
    %986 = vector.shape_cast %985 : vector<1x128xf32> to vector<128xf32>
    %987 = vector.shape_cast %986 : vector<128xf32> to vector<1x128xf32>
    %988 = vector.broadcast %987 : vector<1x128xf32> to vector<2x128xf32>
    %989 = arith.mulf %984, %988 : vector<2x128xf32>
    %990 = arith.mulf %989, %795 : vector<2x128xf32>
    %991 = vector.extract_strided_slice %378 {offsets = [4, 0], sizes = [1, 128], strides = [1, 1]} : vector<12x128xf32> to vector<1x128xf32>
    %992 = vector.shape_cast %991 : vector<1x128xf32> to vector<128xf32>
    %993 = vector.shape_cast %992 : vector<128xf32> to vector<1x128xf32>
    %994 = vector.broadcast %993 : vector<1x128xf32> to vector<2x128xf32>
    %995 = arith.subf %994, %377 : vector<2x128xf32>
    %996 = vector.extract_strided_slice %379 {offsets = [25, 0], sizes = [1, 128], strides = [1, 1]} : vector<36x128xf32> to vector<1x128xf32>
    %997 = vector.shape_cast %996 : vector<1x128xf32> to vector<128xf32>
    %998 = vector.shape_cast %997 : vector<128xf32> to vector<1x128xf32>
    %999 = vector.broadcast %998 : vector<1x128xf32> to vector<2x128xf32>
    %1000 = arith.mulf %995, %999 : vector<2x128xf32>
    %1001 = arith.mulf %1000, %818 : vector<2x128xf32>
    %1002 = arith.addf %990, %1001 : vector<2x128xf32>
    %1003 = vector.extract_strided_slice %378 {offsets = [1, 0], sizes = [1, 128], strides = [1, 1]} : vector<12x128xf32> to vector<1x128xf32>
    %1004 = vector.shape_cast %1003 : vector<1x128xf32> to vector<128xf32>
    %1005 = vector.shape_cast %1004 : vector<128xf32> to vector<1x128xf32>
    %1006 = vector.broadcast %1005 : vector<1x128xf32> to vector<2x128xf32>
    %1007 = arith.subf %377, %1006 : vector<2x128xf32>
    %1008 = vector.extract_strided_slice %379 {offsets = [25, 0], sizes = [1, 128], strides = [1, 1]} : vector<36x128xf32> to vector<1x128xf32>
    %1009 = vector.shape_cast %1008 : vector<1x128xf32> to vector<128xf32>
    %1010 = vector.shape_cast %1009 : vector<128xf32> to vector<1x128xf32>
    %1011 = vector.broadcast %1010 : vector<1x128xf32> to vector<2x128xf32>
    %1012 = arith.mulf %1007, %1011 : vector<2x128xf32>
    %1013 = arith.mulf %1012, %818 : vector<2x128xf32>
    %1014 = vector.extract_strided_slice %378 {offsets = [5, 0], sizes = [1, 128], strides = [1, 1]} : vector<12x128xf32> to vector<1x128xf32>
    %1015 = vector.shape_cast %1014 : vector<1x128xf32> to vector<128xf32>
    %1016 = vector.shape_cast %1015 : vector<128xf32> to vector<1x128xf32>
    %1017 = vector.broadcast %1016 : vector<1x128xf32> to vector<2x128xf32>
    %1018 = arith.subf %1017, %377 : vector<2x128xf32>
    %1019 = vector.extract_strided_slice %379 {offsets = [26, 0], sizes = [1, 128], strides = [1, 1]} : vector<36x128xf32> to vector<1x128xf32>
    %1020 = vector.shape_cast %1019 : vector<1x128xf32> to vector<128xf32>
    %1021 = vector.shape_cast %1020 : vector<128xf32> to vector<1x128xf32>
    %1022 = vector.broadcast %1021 : vector<1x128xf32> to vector<2x128xf32>
    %1023 = arith.mulf %1018, %1022 : vector<2x128xf32>
    %1024 = arith.mulf %1023, %841 : vector<2x128xf32>
    %1025 = arith.addf %1013, %1024 : vector<2x128xf32>
    %1026 = vector.extract_strided_slice %378 {offsets = [2, 0], sizes = [1, 128], strides = [1, 1]} : vector<12x128xf32> to vector<1x128xf32>
    %1027 = vector.shape_cast %1026 : vector<1x128xf32> to vector<128xf32>
    %1028 = vector.shape_cast %1027 : vector<128xf32> to vector<1x128xf32>
    %1029 = vector.broadcast %1028 : vector<1x128xf32> to vector<2x128xf32>
    %1030 = arith.subf %377, %1029 : vector<2x128xf32>
    %1031 = vector.extract_strided_slice %379 {offsets = [26, 0], sizes = [1, 128], strides = [1, 1]} : vector<36x128xf32> to vector<1x128xf32>
    %1032 = vector.shape_cast %1031 : vector<1x128xf32> to vector<128xf32>
    %1033 = vector.shape_cast %1032 : vector<128xf32> to vector<1x128xf32>
    %1034 = vector.broadcast %1033 : vector<1x128xf32> to vector<2x128xf32>
    %1035 = arith.mulf %1030, %1034 : vector<2x128xf32>
    %1036 = arith.mulf %1035, %841 : vector<2x128xf32>
    %1037 = vector.extract_strided_slice %378 {offsets = [6, 0], sizes = [1, 128], strides = [1, 1]} : vector<12x128xf32> to vector<1x128xf32>
    %1038 = vector.shape_cast %1037 : vector<1x128xf32> to vector<128xf32>
    %1039 = vector.shape_cast %1038 : vector<128xf32> to vector<1x128xf32>
    %1040 = vector.broadcast %1039 : vector<1x128xf32> to vector<2x128xf32>
    %1041 = arith.subf %1040, %377 : vector<2x128xf32>
    %1042 = vector.extract_strided_slice %379 {offsets = [27, 0], sizes = [1, 128], strides = [1, 1]} : vector<36x128xf32> to vector<1x128xf32>
    %1043 = vector.shape_cast %1042 : vector<1x128xf32> to vector<128xf32>
    %1044 = vector.shape_cast %1043 : vector<128xf32> to vector<1x128xf32>
    %1045 = vector.broadcast %1044 : vector<1x128xf32> to vector<2x128xf32>
    %1046 = arith.mulf %1041, %1045 : vector<2x128xf32>
    %1047 = arith.mulf %1046, %864 : vector<2x128xf32>
    %1048 = arith.addf %1036, %1047 : vector<2x128xf32>
    %1049 = vector.extract_strided_slice %378 {offsets = [3, 0], sizes = [1, 128], strides = [1, 1]} : vector<12x128xf32> to vector<1x128xf32>
    %1050 = vector.shape_cast %1049 : vector<1x128xf32> to vector<128xf32>
    %1051 = vector.shape_cast %1050 : vector<128xf32> to vector<1x128xf32>
    %1052 = vector.broadcast %1051 : vector<1x128xf32> to vector<2x128xf32>
    %1053 = arith.subf %377, %1052 : vector<2x128xf32>
    %1054 = vector.extract_strided_slice %379 {offsets = [27, 0], sizes = [1, 128], strides = [1, 1]} : vector<36x128xf32> to vector<1x128xf32>
    %1055 = vector.shape_cast %1054 : vector<1x128xf32> to vector<128xf32>
    %1056 = vector.shape_cast %1055 : vector<128xf32> to vector<1x128xf32>
    %1057 = vector.broadcast %1056 : vector<1x128xf32> to vector<2x128xf32>
    %1058 = arith.mulf %1053, %1057 : vector<2x128xf32>
    %1059 = arith.mulf %1058, %864 : vector<2x128xf32>
    %1060 = vector.extract_strided_slice %378 {offsets = [7, 0], sizes = [1, 128], strides = [1, 1]} : vector<12x128xf32> to vector<1x128xf32>
    %1061 = vector.shape_cast %1060 : vector<1x128xf32> to vector<128xf32>
    %1062 = vector.shape_cast %1061 : vector<128xf32> to vector<1x128xf32>
    %1063 = vector.broadcast %1062 : vector<1x128xf32> to vector<2x128xf32>
    %1064 = arith.subf %1063, %377 : vector<2x128xf32>
    %1065 = vector.extract_strided_slice %379 {offsets = [28, 0], sizes = [1, 128], strides = [1, 1]} : vector<36x128xf32> to vector<1x128xf32>
    %1066 = vector.shape_cast %1065 : vector<1x128xf32> to vector<128xf32>
    %1067 = vector.shape_cast %1066 : vector<128xf32> to vector<1x128xf32>
    %1068 = vector.broadcast %1067 : vector<1x128xf32> to vector<2x128xf32>
    %1069 = arith.mulf %1064, %1068 : vector<2x128xf32>
    %1070 = arith.mulf %1069, %887 : vector<2x128xf32>
    %1071 = arith.addf %1059, %1070 : vector<2x128xf32>
    %1072 = vector.extract_strided_slice %378 {offsets = [4, 0], sizes = [1, 128], strides = [1, 1]} : vector<12x128xf32> to vector<1x128xf32>
    %1073 = vector.shape_cast %1072 : vector<1x128xf32> to vector<128xf32>
    %1074 = vector.shape_cast %1073 : vector<128xf32> to vector<1x128xf32>
    %1075 = vector.broadcast %1074 : vector<1x128xf32> to vector<2x128xf32>
    %1076 = arith.subf %377, %1075 : vector<2x128xf32>
    %1077 = vector.extract_strided_slice %379 {offsets = [28, 0], sizes = [1, 128], strides = [1, 1]} : vector<36x128xf32> to vector<1x128xf32>
    %1078 = vector.shape_cast %1077 : vector<1x128xf32> to vector<128xf32>
    %1079 = vector.shape_cast %1078 : vector<128xf32> to vector<1x128xf32>
    %1080 = vector.broadcast %1079 : vector<1x128xf32> to vector<2x128xf32>
    %1081 = arith.mulf %1076, %1080 : vector<2x128xf32>
    %1082 = arith.mulf %1081, %887 : vector<2x128xf32>
    %1083 = vector.extract_strided_slice %378 {offsets = [8, 0], sizes = [1, 128], strides = [1, 1]} : vector<12x128xf32> to vector<1x128xf32>
    %1084 = vector.shape_cast %1083 : vector<1x128xf32> to vector<128xf32>
    %1085 = vector.shape_cast %1084 : vector<128xf32> to vector<1x128xf32>
    %1086 = vector.broadcast %1085 : vector<1x128xf32> to vector<2x128xf32>
    %1087 = arith.subf %1086, %377 : vector<2x128xf32>
    %1088 = vector.extract_strided_slice %379 {offsets = [29, 0], sizes = [1, 128], strides = [1, 1]} : vector<36x128xf32> to vector<1x128xf32>
    %1089 = vector.shape_cast %1088 : vector<1x128xf32> to vector<128xf32>
    %1090 = vector.shape_cast %1089 : vector<128xf32> to vector<1x128xf32>
    %1091 = vector.broadcast %1090 : vector<1x128xf32> to vector<2x128xf32>
    %1092 = arith.mulf %1087, %1091 : vector<2x128xf32>
    %1093 = arith.mulf %1092, %910 : vector<2x128xf32>
    %1094 = arith.addf %1082, %1093 : vector<2x128xf32>
    %1095 = vector.extract_strided_slice %378 {offsets = [5, 0], sizes = [1, 128], strides = [1, 1]} : vector<12x128xf32> to vector<1x128xf32>
    %1096 = vector.shape_cast %1095 : vector<1x128xf32> to vector<128xf32>
    %1097 = vector.shape_cast %1096 : vector<128xf32> to vector<1x128xf32>
    %1098 = vector.broadcast %1097 : vector<1x128xf32> to vector<2x128xf32>
    %1099 = arith.subf %377, %1098 : vector<2x128xf32>
    %1100 = vector.extract_strided_slice %379 {offsets = [29, 0], sizes = [1, 128], strides = [1, 1]} : vector<36x128xf32> to vector<1x128xf32>
    %1101 = vector.shape_cast %1100 : vector<1x128xf32> to vector<128xf32>
    %1102 = vector.shape_cast %1101 : vector<128xf32> to vector<1x128xf32>
    %1103 = vector.broadcast %1102 : vector<1x128xf32> to vector<2x128xf32>
    %1104 = arith.mulf %1099, %1103 : vector<2x128xf32>
    %1105 = arith.mulf %1104, %910 : vector<2x128xf32>
    %1106 = vector.extract_strided_slice %378 {offsets = [9, 0], sizes = [1, 128], strides = [1, 1]} : vector<12x128xf32> to vector<1x128xf32>
    %1107 = vector.shape_cast %1106 : vector<1x128xf32> to vector<128xf32>
    %1108 = vector.shape_cast %1107 : vector<128xf32> to vector<1x128xf32>
    %1109 = vector.broadcast %1108 : vector<1x128xf32> to vector<2x128xf32>
    %1110 = arith.subf %1109, %377 : vector<2x128xf32>
    %1111 = vector.extract_strided_slice %379 {offsets = [30, 0], sizes = [1, 128], strides = [1, 1]} : vector<36x128xf32> to vector<1x128xf32>
    %1112 = vector.shape_cast %1111 : vector<1x128xf32> to vector<128xf32>
    %1113 = vector.shape_cast %1112 : vector<128xf32> to vector<1x128xf32>
    %1114 = vector.broadcast %1113 : vector<1x128xf32> to vector<2x128xf32>
    %1115 = arith.mulf %1110, %1114 : vector<2x128xf32>
    %1116 = arith.mulf %1115, %933 : vector<2x128xf32>
    %1117 = arith.addf %1105, %1116 : vector<2x128xf32>
    %1118 = vector.extract_strided_slice %378 {offsets = [6, 0], sizes = [1, 128], strides = [1, 1]} : vector<12x128xf32> to vector<1x128xf32>
    %1119 = vector.shape_cast %1118 : vector<1x128xf32> to vector<128xf32>
    %1120 = vector.shape_cast %1119 : vector<128xf32> to vector<1x128xf32>
    %1121 = vector.broadcast %1120 : vector<1x128xf32> to vector<2x128xf32>
    %1122 = arith.subf %377, %1121 : vector<2x128xf32>
    %1123 = vector.extract_strided_slice %379 {offsets = [30, 0], sizes = [1, 128], strides = [1, 1]} : vector<36x128xf32> to vector<1x128xf32>
    %1124 = vector.shape_cast %1123 : vector<1x128xf32> to vector<128xf32>
    %1125 = vector.shape_cast %1124 : vector<128xf32> to vector<1x128xf32>
    %1126 = vector.broadcast %1125 : vector<1x128xf32> to vector<2x128xf32>
    %1127 = arith.mulf %1122, %1126 : vector<2x128xf32>
    %1128 = arith.mulf %1127, %933 : vector<2x128xf32>
    %1129 = vector.extract_strided_slice %378 {offsets = [10, 0], sizes = [1, 128], strides = [1, 1]} : vector<12x128xf32> to vector<1x128xf32>
    %1130 = vector.shape_cast %1129 : vector<1x128xf32> to vector<128xf32>
    %1131 = vector.shape_cast %1130 : vector<128xf32> to vector<1x128xf32>
    %1132 = vector.broadcast %1131 : vector<1x128xf32> to vector<2x128xf32>
    %1133 = arith.subf %1132, %377 : vector<2x128xf32>
    %1134 = vector.extract_strided_slice %379 {offsets = [31, 0], sizes = [1, 128], strides = [1, 1]} : vector<36x128xf32> to vector<1x128xf32>
    %1135 = vector.shape_cast %1134 : vector<1x128xf32> to vector<128xf32>
    %1136 = vector.shape_cast %1135 : vector<128xf32> to vector<1x128xf32>
    %1137 = vector.broadcast %1136 : vector<1x128xf32> to vector<2x128xf32>
    %1138 = arith.mulf %1133, %1137 : vector<2x128xf32>
    %1139 = arith.mulf %1138, %956 : vector<2x128xf32>
    %1140 = arith.addf %1128, %1139 : vector<2x128xf32>
    %1141 = vector.extract_strided_slice %378 {offsets = [7, 0], sizes = [1, 128], strides = [1, 1]} : vector<12x128xf32> to vector<1x128xf32>
    %1142 = vector.shape_cast %1141 : vector<1x128xf32> to vector<128xf32>
    %1143 = vector.shape_cast %1142 : vector<128xf32> to vector<1x128xf32>
    %1144 = vector.broadcast %1143 : vector<1x128xf32> to vector<2x128xf32>
    %1145 = arith.subf %377, %1144 : vector<2x128xf32>
    %1146 = vector.extract_strided_slice %379 {offsets = [31, 0], sizes = [1, 128], strides = [1, 1]} : vector<36x128xf32> to vector<1x128xf32>
    %1147 = vector.shape_cast %1146 : vector<1x128xf32> to vector<128xf32>
    %1148 = vector.shape_cast %1147 : vector<128xf32> to vector<1x128xf32>
    %1149 = vector.broadcast %1148 : vector<1x128xf32> to vector<2x128xf32>
    %1150 = arith.mulf %1145, %1149 : vector<2x128xf32>
    %1151 = arith.mulf %1150, %956 : vector<2x128xf32>
    %1152 = vector.extract_strided_slice %378 {offsets = [11, 0], sizes = [1, 128], strides = [1, 1]} : vector<12x128xf32> to vector<1x128xf32>
    %1153 = vector.shape_cast %1152 : vector<1x128xf32> to vector<128xf32>
    %1154 = vector.shape_cast %1153 : vector<128xf32> to vector<1x128xf32>
    %1155 = vector.broadcast %1154 : vector<1x128xf32> to vector<2x128xf32>
    %1156 = arith.subf %1155, %377 : vector<2x128xf32>
    %1157 = vector.extract_strided_slice %379 {offsets = [32, 0], sizes = [1, 128], strides = [1, 1]} : vector<36x128xf32> to vector<1x128xf32>
    %1158 = vector.shape_cast %1157 : vector<1x128xf32> to vector<128xf32>
    %1159 = vector.shape_cast %1158 : vector<128xf32> to vector<1x128xf32>
    %1160 = vector.broadcast %1159 : vector<1x128xf32> to vector<2x128xf32>
    %1161 = arith.mulf %1156, %1160 : vector<2x128xf32>
    %1162 = arith.mulf %1161, %979 : vector<2x128xf32>
    %1163 = arith.addf %1151, %1162 : vector<2x128xf32>
    %1164 = tpu.concatenate %1002, %1025, %1048, %1071, %1094, %1117, %1140, %1163 in 1 : vector<2x128xf32>, vector<2x128xf32>, vector<2x128xf32>, vector<2x128xf32>, vector<2x128xf32>, vector<2x128xf32>, vector<2x128xf32>, vector<2x128xf32> -> vector<2x1024xf32>
    %c0_124 = arith.constant 0 : index
    %c0_125 = arith.constant 0 : index
    %1165 = vector.load %arg25[%c0_124, %c0_125] : memref<1024x128xf32, #tpu.memory_space<vmem>>, vector<1024x128xf32>
    %cst_126 = arith.constant dense<0.000000e+00> : vector<2x128xf32>
    %1166 = tpu.matmul %1164, %1165, %cst_126 {dimension_numbers = #tpu.dot_dimension_numbers<[1], [0], [0], [1], [0, 0, 1, 1], [], []>} : vector<2x1024xf32>, vector<1024x128xf32>, vector<2x128xf32> -> vector<2x128xf32>
    %1167 = arith.addf %388, %1166 : vector<2x128xf32>
    %c0_127 = arith.constant 0 : index
    %c0_128 = arith.constant 0 : index
    %1168 = vector.load %arg30[%c0_127, %c0_128] : memref<12x128xf32, #tpu.memory_space<vmem>>, vector<12x128xf32>
    %c0_129 = arith.constant 0 : index
    %c0_130 = arith.constant 0 : index
    %1169 = vector.load %arg31[%c0_129, %c0_130] : memref<36x128xf32, #tpu.memory_space<vmem>>, vector<36x128xf32>
    %cst_131 = arith.constant 0.000000e+00 : f32
    %1170 = vector.broadcast %cst_131 : f32 to vector<2x128xf32>
    %1171 = arith.subf %1170, %1167 : vector<2x128xf32>
    %1172 = math.exp %1171 : vector<2x128xf32>
    %cst_132 = arith.constant 1.000000e+00 : f32
    %1173 = vector.broadcast %cst_132 : f32 to vector<2x128xf32>
    %1174 = arith.addf %1173, %1172 : vector<2x128xf32>
    %1175 = tpu.reciprocal %1174 {approx = true} : vector<2x128xf32> -> vector<2x128xf32>
    %1176 = arith.mulf %1167, %1175 : vector<2x128xf32>
    %c0_133 = arith.constant 0 : index
    %c0_134 = arith.constant 0 : index
    %1177 = vector.load %arg28[%c0_133, %c0_134] : memref<128x128xf32, #tpu.memory_space<vmem>>, vector<128x128xf32>
    %cst_135 = arith.constant dense<0.000000e+00> : vector<2x128xf32>
    %1178 = tpu.matmul %1176, %1177, %cst_135 {dimension_numbers = #tpu.dot_dimension_numbers<[1], [0], [0], [1], [0, 0, 1, 1], [], []>} : vector<2x128xf32>, vector<128x128xf32>, vector<2x128xf32> -> vector<2x128xf32>
    %1179 = vector.extract_strided_slice %1168 {offsets = [0, 0], sizes = [1, 128], strides = [1, 1]} : vector<12x128xf32> to vector<1x128xf32>
    %1180 = vector.shape_cast %1179 : vector<1x128xf32> to vector<128xf32>
    %1181 = vector.shape_cast %1180 : vector<128xf32> to vector<1x128xf32>
    %1182 = vector.broadcast %1181 : vector<1x128xf32> to vector<2x128xf32>
    %1183 = arith.cmpf oge, %1167, %1182 : vector<2x128xf32>
    %1184 = vector.extract_strided_slice %1168 {offsets = [1, 0], sizes = [1, 128], strides = [1, 1]} : vector<12x128xf32> to vector<1x128xf32>
    %1185 = vector.shape_cast %1184 : vector<1x128xf32> to vector<128xf32>
    %1186 = vector.shape_cast %1185 : vector<128xf32> to vector<1x128xf32>
    %1187 = vector.broadcast %1186 : vector<1x128xf32> to vector<2x128xf32>
    %1188 = arith.cmpf olt, %1167, %1187 : vector<2x128xf32>
    %1189 = arith.andi %1183, %1188 : vector<2x128xi1>
    %cst_136 = arith.constant 1.000000e+00 : f32
    %cst_137 = arith.constant 0.000000e+00 : f32
    %1190 = vector.broadcast %cst_136 : f32 to vector<2x128xf32>
    %1191 = vector.broadcast %cst_137 : f32 to vector<2x128xf32>
    %1192 = arith.select %1189, %1190, %1191 : vector<2x128xi1>, vector<2x128xf32>
    %1193 = vector.extract_strided_slice %1168 {offsets = [1, 0], sizes = [1, 128], strides = [1, 1]} : vector<12x128xf32> to vector<1x128xf32>
    %1194 = vector.shape_cast %1193 : vector<1x128xf32> to vector<128xf32>
    %1195 = vector.shape_cast %1194 : vector<128xf32> to vector<1x128xf32>
    %1196 = vector.broadcast %1195 : vector<1x128xf32> to vector<2x128xf32>
    %1197 = arith.cmpf oge, %1167, %1196 : vector<2x128xf32>
    %1198 = vector.extract_strided_slice %1168 {offsets = [2, 0], sizes = [1, 128], strides = [1, 1]} : vector<12x128xf32> to vector<1x128xf32>
    %1199 = vector.shape_cast %1198 : vector<1x128xf32> to vector<128xf32>
    %1200 = vector.shape_cast %1199 : vector<128xf32> to vector<1x128xf32>
    %1201 = vector.broadcast %1200 : vector<1x128xf32> to vector<2x128xf32>
    %1202 = arith.cmpf olt, %1167, %1201 : vector<2x128xf32>
    %1203 = arith.andi %1197, %1202 : vector<2x128xi1>
    %cst_138 = arith.constant 1.000000e+00 : f32
    %cst_139 = arith.constant 0.000000e+00 : f32
    %1204 = vector.broadcast %cst_138 : f32 to vector<2x128xf32>
    %1205 = vector.broadcast %cst_139 : f32 to vector<2x128xf32>
    %1206 = arith.select %1203, %1204, %1205 : vector<2x128xi1>, vector<2x128xf32>
    %1207 = vector.extract_strided_slice %1168 {offsets = [2, 0], sizes = [1, 128], strides = [1, 1]} : vector<12x128xf32> to vector<1x128xf32>
    %1208 = vector.shape_cast %1207 : vector<1x128xf32> to vector<128xf32>
    %1209 = vector.shape_cast %1208 : vector<128xf32> to vector<1x128xf32>
    %1210 = vector.broadcast %1209 : vector<1x128xf32> to vector<2x128xf32>
    %1211 = arith.cmpf oge, %1167, %1210 : vector<2x128xf32>
    %1212 = vector.extract_strided_slice %1168 {offsets = [3, 0], sizes = [1, 128], strides = [1, 1]} : vector<12x128xf32> to vector<1x128xf32>
    %1213 = vector.shape_cast %1212 : vector<1x128xf32> to vector<128xf32>
    %1214 = vector.shape_cast %1213 : vector<128xf32> to vector<1x128xf32>
    %1215 = vector.broadcast %1214 : vector<1x128xf32> to vector<2x128xf32>
    %1216 = arith.cmpf olt, %1167, %1215 : vector<2x128xf32>
    %1217 = arith.andi %1211, %1216 : vector<2x128xi1>
    %cst_140 = arith.constant 1.000000e+00 : f32
    %cst_141 = arith.constant 0.000000e+00 : f32
    %1218 = vector.broadcast %cst_140 : f32 to vector<2x128xf32>
    %1219 = vector.broadcast %cst_141 : f32 to vector<2x128xf32>
    %1220 = arith.select %1217, %1218, %1219 : vector<2x128xi1>, vector<2x128xf32>
    %1221 = vector.extract_strided_slice %1168 {offsets = [3, 0], sizes = [1, 128], strides = [1, 1]} : vector<12x128xf32> to vector<1x128xf32>
    %1222 = vector.shape_cast %1221 : vector<1x128xf32> to vector<128xf32>
    %1223 = vector.shape_cast %1222 : vector<128xf32> to vector<1x128xf32>
    %1224 = vector.broadcast %1223 : vector<1x128xf32> to vector<2x128xf32>
    %1225 = arith.cmpf oge, %1167, %1224 : vector<2x128xf32>
    %1226 = vector.extract_strided_slice %1168 {offsets = [4, 0], sizes = [1, 128], strides = [1, 1]} : vector<12x128xf32> to vector<1x128xf32>
    %1227 = vector.shape_cast %1226 : vector<1x128xf32> to vector<128xf32>
    %1228 = vector.shape_cast %1227 : vector<128xf32> to vector<1x128xf32>
    %1229 = vector.broadcast %1228 : vector<1x128xf32> to vector<2x128xf32>
    %1230 = arith.cmpf olt, %1167, %1229 : vector<2x128xf32>
    %1231 = arith.andi %1225, %1230 : vector<2x128xi1>
    %cst_142 = arith.constant 1.000000e+00 : f32
    %cst_143 = arith.constant 0.000000e+00 : f32
    %1232 = vector.broadcast %cst_142 : f32 to vector<2x128xf32>
    %1233 = vector.broadcast %cst_143 : f32 to vector<2x128xf32>
    %1234 = arith.select %1231, %1232, %1233 : vector<2x128xi1>, vector<2x128xf32>
    %1235 = vector.extract_strided_slice %1168 {offsets = [4, 0], sizes = [1, 128], strides = [1, 1]} : vector<12x128xf32> to vector<1x128xf32>
    %1236 = vector.shape_cast %1235 : vector<1x128xf32> to vector<128xf32>
    %1237 = vector.shape_cast %1236 : vector<128xf32> to vector<1x128xf32>
    %1238 = vector.broadcast %1237 : vector<1x128xf32> to vector<2x128xf32>
    %1239 = arith.cmpf oge, %1167, %1238 : vector<2x128xf32>
    %1240 = vector.extract_strided_slice %1168 {offsets = [5, 0], sizes = [1, 128], strides = [1, 1]} : vector<12x128xf32> to vector<1x128xf32>
    %1241 = vector.shape_cast %1240 : vector<1x128xf32> to vector<128xf32>
    %1242 = vector.shape_cast %1241 : vector<128xf32> to vector<1x128xf32>
    %1243 = vector.broadcast %1242 : vector<1x128xf32> to vector<2x128xf32>
    %1244 = arith.cmpf olt, %1167, %1243 : vector<2x128xf32>
    %1245 = arith.andi %1239, %1244 : vector<2x128xi1>
    %cst_144 = arith.constant 1.000000e+00 : f32
    %cst_145 = arith.constant 0.000000e+00 : f32
    %1246 = vector.broadcast %cst_144 : f32 to vector<2x128xf32>
    %1247 = vector.broadcast %cst_145 : f32 to vector<2x128xf32>
    %1248 = arith.select %1245, %1246, %1247 : vector<2x128xi1>, vector<2x128xf32>
    %1249 = vector.extract_strided_slice %1168 {offsets = [5, 0], sizes = [1, 128], strides = [1, 1]} : vector<12x128xf32> to vector<1x128xf32>
    %1250 = vector.shape_cast %1249 : vector<1x128xf32> to vector<128xf32>
    %1251 = vector.shape_cast %1250 : vector<128xf32> to vector<1x128xf32>
    %1252 = vector.broadcast %1251 : vector<1x128xf32> to vector<2x128xf32>
    %1253 = arith.cmpf oge, %1167, %1252 : vector<2x128xf32>
    %1254 = vector.extract_strided_slice %1168 {offsets = [6, 0], sizes = [1, 128], strides = [1, 1]} : vector<12x128xf32> to vector<1x128xf32>
    %1255 = vector.shape_cast %1254 : vector<1x128xf32> to vector<128xf32>
    %1256 = vector.shape_cast %1255 : vector<128xf32> to vector<1x128xf32>
    %1257 = vector.broadcast %1256 : vector<1x128xf32> to vector<2x128xf32>
    %1258 = arith.cmpf olt, %1167, %1257 : vector<2x128xf32>
    %1259 = arith.andi %1253, %1258 : vector<2x128xi1>
    %cst_146 = arith.constant 1.000000e+00 : f32
    %cst_147 = arith.constant 0.000000e+00 : f32
    %1260 = vector.broadcast %cst_146 : f32 to vector<2x128xf32>
    %1261 = vector.broadcast %cst_147 : f32 to vector<2x128xf32>
    %1262 = arith.select %1259, %1260, %1261 : vector<2x128xi1>, vector<2x128xf32>
    %1263 = vector.extract_strided_slice %1168 {offsets = [6, 0], sizes = [1, 128], strides = [1, 1]} : vector<12x128xf32> to vector<1x128xf32>
    %1264 = vector.shape_cast %1263 : vector<1x128xf32> to vector<128xf32>
    %1265 = vector.shape_cast %1264 : vector<128xf32> to vector<1x128xf32>
    %1266 = vector.broadcast %1265 : vector<1x128xf32> to vector<2x128xf32>
    %1267 = arith.cmpf oge, %1167, %1266 : vector<2x128xf32>
    %1268 = vector.extract_strided_slice %1168 {offsets = [7, 0], sizes = [1, 128], strides = [1, 1]} : vector<12x128xf32> to vector<1x128xf32>
    %1269 = vector.shape_cast %1268 : vector<1x128xf32> to vector<128xf32>
    %1270 = vector.shape_cast %1269 : vector<128xf32> to vector<1x128xf32>
    %1271 = vector.broadcast %1270 : vector<1x128xf32> to vector<2x128xf32>
    %1272 = arith.cmpf olt, %1167, %1271 : vector<2x128xf32>
    %1273 = arith.andi %1267, %1272 : vector<2x128xi1>
    %cst_148 = arith.constant 1.000000e+00 : f32
    %cst_149 = arith.constant 0.000000e+00 : f32
    %1274 = vector.broadcast %cst_148 : f32 to vector<2x128xf32>
    %1275 = vector.broadcast %cst_149 : f32 to vector<2x128xf32>
    %1276 = arith.select %1273, %1274, %1275 : vector<2x128xi1>, vector<2x128xf32>
    %1277 = vector.extract_strided_slice %1168 {offsets = [7, 0], sizes = [1, 128], strides = [1, 1]} : vector<12x128xf32> to vector<1x128xf32>
    %1278 = vector.shape_cast %1277 : vector<1x128xf32> to vector<128xf32>
    %1279 = vector.shape_cast %1278 : vector<128xf32> to vector<1x128xf32>
    %1280 = vector.broadcast %1279 : vector<1x128xf32> to vector<2x128xf32>
    %1281 = arith.cmpf oge, %1167, %1280 : vector<2x128xf32>
    %1282 = vector.extract_strided_slice %1168 {offsets = [8, 0], sizes = [1, 128], strides = [1, 1]} : vector<12x128xf32> to vector<1x128xf32>
    %1283 = vector.shape_cast %1282 : vector<1x128xf32> to vector<128xf32>
    %1284 = vector.shape_cast %1283 : vector<128xf32> to vector<1x128xf32>
    %1285 = vector.broadcast %1284 : vector<1x128xf32> to vector<2x128xf32>
    %1286 = arith.cmpf olt, %1167, %1285 : vector<2x128xf32>
    %1287 = arith.andi %1281, %1286 : vector<2x128xi1>
    %cst_150 = arith.constant 1.000000e+00 : f32
    %cst_151 = arith.constant 0.000000e+00 : f32
    %1288 = vector.broadcast %cst_150 : f32 to vector<2x128xf32>
    %1289 = vector.broadcast %cst_151 : f32 to vector<2x128xf32>
    %1290 = arith.select %1287, %1288, %1289 : vector<2x128xi1>, vector<2x128xf32>
    %1291 = vector.extract_strided_slice %1168 {offsets = [8, 0], sizes = [1, 128], strides = [1, 1]} : vector<12x128xf32> to vector<1x128xf32>
    %1292 = vector.shape_cast %1291 : vector<1x128xf32> to vector<128xf32>
    %1293 = vector.shape_cast %1292 : vector<128xf32> to vector<1x128xf32>
    %1294 = vector.broadcast %1293 : vector<1x128xf32> to vector<2x128xf32>
    %1295 = arith.cmpf oge, %1167, %1294 : vector<2x128xf32>
    %1296 = vector.extract_strided_slice %1168 {offsets = [9, 0], sizes = [1, 128], strides = [1, 1]} : vector<12x128xf32> to vector<1x128xf32>
    %1297 = vector.shape_cast %1296 : vector<1x128xf32> to vector<128xf32>
    %1298 = vector.shape_cast %1297 : vector<128xf32> to vector<1x128xf32>
    %1299 = vector.broadcast %1298 : vector<1x128xf32> to vector<2x128xf32>
    %1300 = arith.cmpf olt, %1167, %1299 : vector<2x128xf32>
    %1301 = arith.andi %1295, %1300 : vector<2x128xi1>
    %cst_152 = arith.constant 1.000000e+00 : f32
    %cst_153 = arith.constant 0.000000e+00 : f32
    %1302 = vector.broadcast %cst_152 : f32 to vector<2x128xf32>
    %1303 = vector.broadcast %cst_153 : f32 to vector<2x128xf32>
    %1304 = arith.select %1301, %1302, %1303 : vector<2x128xi1>, vector<2x128xf32>
    %1305 = vector.extract_strided_slice %1168 {offsets = [9, 0], sizes = [1, 128], strides = [1, 1]} : vector<12x128xf32> to vector<1x128xf32>
    %1306 = vector.shape_cast %1305 : vector<1x128xf32> to vector<128xf32>
    %1307 = vector.shape_cast %1306 : vector<128xf32> to vector<1x128xf32>
    %1308 = vector.broadcast %1307 : vector<1x128xf32> to vector<2x128xf32>
    %1309 = arith.cmpf oge, %1167, %1308 : vector<2x128xf32>
    %1310 = vector.extract_strided_slice %1168 {offsets = [10, 0], sizes = [1, 128], strides = [1, 1]} : vector<12x128xf32> to vector<1x128xf32>
    %1311 = vector.shape_cast %1310 : vector<1x128xf32> to vector<128xf32>
    %1312 = vector.shape_cast %1311 : vector<128xf32> to vector<1x128xf32>
    %1313 = vector.broadcast %1312 : vector<1x128xf32> to vector<2x128xf32>
    %1314 = arith.cmpf olt, %1167, %1313 : vector<2x128xf32>
    %1315 = arith.andi %1309, %1314 : vector<2x128xi1>
    %cst_154 = arith.constant 1.000000e+00 : f32
    %cst_155 = arith.constant 0.000000e+00 : f32
    %1316 = vector.broadcast %cst_154 : f32 to vector<2x128xf32>
    %1317 = vector.broadcast %cst_155 : f32 to vector<2x128xf32>
    %1318 = arith.select %1315, %1316, %1317 : vector<2x128xi1>, vector<2x128xf32>
    %1319 = vector.extract_strided_slice %1168 {offsets = [10, 0], sizes = [1, 128], strides = [1, 1]} : vector<12x128xf32> to vector<1x128xf32>
    %1320 = vector.shape_cast %1319 : vector<1x128xf32> to vector<128xf32>
    %1321 = vector.shape_cast %1320 : vector<128xf32> to vector<1x128xf32>
    %1322 = vector.broadcast %1321 : vector<1x128xf32> to vector<2x128xf32>
    %1323 = arith.cmpf oge, %1167, %1322 : vector<2x128xf32>
    %1324 = vector.extract_strided_slice %1168 {offsets = [11, 0], sizes = [1, 128], strides = [1, 1]} : vector<12x128xf32> to vector<1x128xf32>
    %1325 = vector.shape_cast %1324 : vector<1x128xf32> to vector<128xf32>
    %1326 = vector.shape_cast %1325 : vector<128xf32> to vector<1x128xf32>
    %1327 = vector.broadcast %1326 : vector<1x128xf32> to vector<2x128xf32>
    %1328 = arith.cmpf olt, %1167, %1327 : vector<2x128xf32>
    %1329 = arith.andi %1323, %1328 : vector<2x128xi1>
    %cst_156 = arith.constant 1.000000e+00 : f32
    %cst_157 = arith.constant 0.000000e+00 : f32
    %1330 = vector.broadcast %cst_156 : f32 to vector<2x128xf32>
    %1331 = vector.broadcast %cst_157 : f32 to vector<2x128xf32>
    %1332 = arith.select %1329, %1330, %1331 : vector<2x128xi1>, vector<2x128xf32>
    %1333 = vector.extract_strided_slice %1168 {offsets = [0, 0], sizes = [1, 128], strides = [1, 1]} : vector<12x128xf32> to vector<1x128xf32>
    %1334 = vector.shape_cast %1333 : vector<1x128xf32> to vector<128xf32>
    %1335 = vector.shape_cast %1334 : vector<128xf32> to vector<1x128xf32>
    %1336 = vector.broadcast %1335 : vector<1x128xf32> to vector<2x128xf32>
    %1337 = arith.subf %1167, %1336 : vector<2x128xf32>
    %1338 = vector.extract_strided_slice %1169 {offsets = [0, 0], sizes = [1, 128], strides = [1, 1]} : vector<36x128xf32> to vector<1x128xf32>
    %1339 = vector.shape_cast %1338 : vector<1x128xf32> to vector<128xf32>
    %1340 = vector.shape_cast %1339 : vector<128xf32> to vector<1x128xf32>
    %1341 = vector.broadcast %1340 : vector<1x128xf32> to vector<2x128xf32>
    %1342 = arith.mulf %1337, %1341 : vector<2x128xf32>
    %1343 = arith.mulf %1342, %1192 : vector<2x128xf32>
    %1344 = vector.extract_strided_slice %1168 {offsets = [2, 0], sizes = [1, 128], strides = [1, 1]} : vector<12x128xf32> to vector<1x128xf32>
    %1345 = vector.shape_cast %1344 : vector<1x128xf32> to vector<128xf32>
    %1346 = vector.shape_cast %1345 : vector<128xf32> to vector<1x128xf32>
    %1347 = vector.broadcast %1346 : vector<1x128xf32> to vector<2x128xf32>
    %1348 = arith.subf %1347, %1167 : vector<2x128xf32>
    %1349 = vector.extract_strided_slice %1169 {offsets = [1, 0], sizes = [1, 128], strides = [1, 1]} : vector<36x128xf32> to vector<1x128xf32>
    %1350 = vector.shape_cast %1349 : vector<1x128xf32> to vector<128xf32>
    %1351 = vector.shape_cast %1350 : vector<128xf32> to vector<1x128xf32>
    %1352 = vector.broadcast %1351 : vector<1x128xf32> to vector<2x128xf32>
    %1353 = arith.mulf %1348, %1352 : vector<2x128xf32>
    %1354 = arith.mulf %1353, %1206 : vector<2x128xf32>
    %1355 = arith.addf %1343, %1354 : vector<2x128xf32>
    %1356 = vector.extract_strided_slice %1168 {offsets = [1, 0], sizes = [1, 128], strides = [1, 1]} : vector<12x128xf32> to vector<1x128xf32>
    %1357 = vector.shape_cast %1356 : vector<1x128xf32> to vector<128xf32>
    %1358 = vector.shape_cast %1357 : vector<128xf32> to vector<1x128xf32>
    %1359 = vector.broadcast %1358 : vector<1x128xf32> to vector<2x128xf32>
    %1360 = arith.subf %1167, %1359 : vector<2x128xf32>
    %1361 = vector.extract_strided_slice %1169 {offsets = [1, 0], sizes = [1, 128], strides = [1, 1]} : vector<36x128xf32> to vector<1x128xf32>
    %1362 = vector.shape_cast %1361 : vector<1x128xf32> to vector<128xf32>
    %1363 = vector.shape_cast %1362 : vector<128xf32> to vector<1x128xf32>
    %1364 = vector.broadcast %1363 : vector<1x128xf32> to vector<2x128xf32>
    %1365 = arith.mulf %1360, %1364 : vector<2x128xf32>
    %1366 = arith.mulf %1365, %1206 : vector<2x128xf32>
    %1367 = vector.extract_strided_slice %1168 {offsets = [3, 0], sizes = [1, 128], strides = [1, 1]} : vector<12x128xf32> to vector<1x128xf32>
    %1368 = vector.shape_cast %1367 : vector<1x128xf32> to vector<128xf32>
    %1369 = vector.shape_cast %1368 : vector<128xf32> to vector<1x128xf32>
    %1370 = vector.broadcast %1369 : vector<1x128xf32> to vector<2x128xf32>
    %1371 = arith.subf %1370, %1167 : vector<2x128xf32>
    %1372 = vector.extract_strided_slice %1169 {offsets = [2, 0], sizes = [1, 128], strides = [1, 1]} : vector<36x128xf32> to vector<1x128xf32>
    %1373 = vector.shape_cast %1372 : vector<1x128xf32> to vector<128xf32>
    %1374 = vector.shape_cast %1373 : vector<128xf32> to vector<1x128xf32>
    %1375 = vector.broadcast %1374 : vector<1x128xf32> to vector<2x128xf32>
    %1376 = arith.mulf %1371, %1375 : vector<2x128xf32>
    %1377 = arith.mulf %1376, %1220 : vector<2x128xf32>
    %1378 = arith.addf %1366, %1377 : vector<2x128xf32>
    %1379 = vector.extract_strided_slice %1168 {offsets = [2, 0], sizes = [1, 128], strides = [1, 1]} : vector<12x128xf32> to vector<1x128xf32>
    %1380 = vector.shape_cast %1379 : vector<1x128xf32> to vector<128xf32>
    %1381 = vector.shape_cast %1380 : vector<128xf32> to vector<1x128xf32>
    %1382 = vector.broadcast %1381 : vector<1x128xf32> to vector<2x128xf32>
    %1383 = arith.subf %1167, %1382 : vector<2x128xf32>
    %1384 = vector.extract_strided_slice %1169 {offsets = [2, 0], sizes = [1, 128], strides = [1, 1]} : vector<36x128xf32> to vector<1x128xf32>
    %1385 = vector.shape_cast %1384 : vector<1x128xf32> to vector<128xf32>
    %1386 = vector.shape_cast %1385 : vector<128xf32> to vector<1x128xf32>
    %1387 = vector.broadcast %1386 : vector<1x128xf32> to vector<2x128xf32>
    %1388 = arith.mulf %1383, %1387 : vector<2x128xf32>
    %1389 = arith.mulf %1388, %1220 : vector<2x128xf32>
    %1390 = vector.extract_strided_slice %1168 {offsets = [4, 0], sizes = [1, 128], strides = [1, 1]} : vector<12x128xf32> to vector<1x128xf32>
    %1391 = vector.shape_cast %1390 : vector<1x128xf32> to vector<128xf32>
    %1392 = vector.shape_cast %1391 : vector<128xf32> to vector<1x128xf32>
    %1393 = vector.broadcast %1392 : vector<1x128xf32> to vector<2x128xf32>
    %1394 = arith.subf %1393, %1167 : vector<2x128xf32>
    %1395 = vector.extract_strided_slice %1169 {offsets = [3, 0], sizes = [1, 128], strides = [1, 1]} : vector<36x128xf32> to vector<1x128xf32>
    %1396 = vector.shape_cast %1395 : vector<1x128xf32> to vector<128xf32>
    %1397 = vector.shape_cast %1396 : vector<128xf32> to vector<1x128xf32>
    %1398 = vector.broadcast %1397 : vector<1x128xf32> to vector<2x128xf32>
    %1399 = arith.mulf %1394, %1398 : vector<2x128xf32>
    %1400 = arith.mulf %1399, %1234 : vector<2x128xf32>
    %1401 = arith.addf %1389, %1400 : vector<2x128xf32>
    %1402 = vector.extract_strided_slice %1168 {offsets = [3, 0], sizes = [1, 128], strides = [1, 1]} : vector<12x128xf32> to vector<1x128xf32>
    %1403 = vector.shape_cast %1402 : vector<1x128xf32> to vector<128xf32>
    %1404 = vector.shape_cast %1403 : vector<128xf32> to vector<1x128xf32>
    %1405 = vector.broadcast %1404 : vector<1x128xf32> to vector<2x128xf32>
    %1406 = arith.subf %1167, %1405 : vector<2x128xf32>
    %1407 = vector.extract_strided_slice %1169 {offsets = [3, 0], sizes = [1, 128], strides = [1, 1]} : vector<36x128xf32> to vector<1x128xf32>
    %1408 = vector.shape_cast %1407 : vector<1x128xf32> to vector<128xf32>
    %1409 = vector.shape_cast %1408 : vector<128xf32> to vector<1x128xf32>
    %1410 = vector.broadcast %1409 : vector<1x128xf32> to vector<2x128xf32>
    %1411 = arith.mulf %1406, %1410 : vector<2x128xf32>
    %1412 = arith.mulf %1411, %1234 : vector<2x128xf32>
    %1413 = vector.extract_strided_slice %1168 {offsets = [5, 0], sizes = [1, 128], strides = [1, 1]} : vector<12x128xf32> to vector<1x128xf32>
    %1414 = vector.shape_cast %1413 : vector<1x128xf32> to vector<128xf32>
    %1415 = vector.shape_cast %1414 : vector<128xf32> to vector<1x128xf32>
    %1416 = vector.broadcast %1415 : vector<1x128xf32> to vector<2x128xf32>
    %1417 = arith.subf %1416, %1167 : vector<2x128xf32>
    %1418 = vector.extract_strided_slice %1169 {offsets = [4, 0], sizes = [1, 128], strides = [1, 1]} : vector<36x128xf32> to vector<1x128xf32>
    %1419 = vector.shape_cast %1418 : vector<1x128xf32> to vector<128xf32>
    %1420 = vector.shape_cast %1419 : vector<128xf32> to vector<1x128xf32>
    %1421 = vector.broadcast %1420 : vector<1x128xf32> to vector<2x128xf32>
    %1422 = arith.mulf %1417, %1421 : vector<2x128xf32>
    %1423 = arith.mulf %1422, %1248 : vector<2x128xf32>
    %1424 = arith.addf %1412, %1423 : vector<2x128xf32>
    %1425 = vector.extract_strided_slice %1168 {offsets = [4, 0], sizes = [1, 128], strides = [1, 1]} : vector<12x128xf32> to vector<1x128xf32>
    %1426 = vector.shape_cast %1425 : vector<1x128xf32> to vector<128xf32>
    %1427 = vector.shape_cast %1426 : vector<128xf32> to vector<1x128xf32>
    %1428 = vector.broadcast %1427 : vector<1x128xf32> to vector<2x128xf32>
    %1429 = arith.subf %1167, %1428 : vector<2x128xf32>
    %1430 = vector.extract_strided_slice %1169 {offsets = [4, 0], sizes = [1, 128], strides = [1, 1]} : vector<36x128xf32> to vector<1x128xf32>
    %1431 = vector.shape_cast %1430 : vector<1x128xf32> to vector<128xf32>
    %1432 = vector.shape_cast %1431 : vector<128xf32> to vector<1x128xf32>
    %1433 = vector.broadcast %1432 : vector<1x128xf32> to vector<2x128xf32>
    %1434 = arith.mulf %1429, %1433 : vector<2x128xf32>
    %1435 = arith.mulf %1434, %1248 : vector<2x128xf32>
    %1436 = vector.extract_strided_slice %1168 {offsets = [6, 0], sizes = [1, 128], strides = [1, 1]} : vector<12x128xf32> to vector<1x128xf32>
    %1437 = vector.shape_cast %1436 : vector<1x128xf32> to vector<128xf32>
    %1438 = vector.shape_cast %1437 : vector<128xf32> to vector<1x128xf32>
    %1439 = vector.broadcast %1438 : vector<1x128xf32> to vector<2x128xf32>
    %1440 = arith.subf %1439, %1167 : vector<2x128xf32>
    %1441 = vector.extract_strided_slice %1169 {offsets = [5, 0], sizes = [1, 128], strides = [1, 1]} : vector<36x128xf32> to vector<1x128xf32>
    %1442 = vector.shape_cast %1441 : vector<1x128xf32> to vector<128xf32>
    %1443 = vector.shape_cast %1442 : vector<128xf32> to vector<1x128xf32>
    %1444 = vector.broadcast %1443 : vector<1x128xf32> to vector<2x128xf32>
    %1445 = arith.mulf %1440, %1444 : vector<2x128xf32>
    %1446 = arith.mulf %1445, %1262 : vector<2x128xf32>
    %1447 = arith.addf %1435, %1446 : vector<2x128xf32>
    %1448 = vector.extract_strided_slice %1168 {offsets = [5, 0], sizes = [1, 128], strides = [1, 1]} : vector<12x128xf32> to vector<1x128xf32>
    %1449 = vector.shape_cast %1448 : vector<1x128xf32> to vector<128xf32>
    %1450 = vector.shape_cast %1449 : vector<128xf32> to vector<1x128xf32>
    %1451 = vector.broadcast %1450 : vector<1x128xf32> to vector<2x128xf32>
    %1452 = arith.subf %1167, %1451 : vector<2x128xf32>
    %1453 = vector.extract_strided_slice %1169 {offsets = [5, 0], sizes = [1, 128], strides = [1, 1]} : vector<36x128xf32> to vector<1x128xf32>
    %1454 = vector.shape_cast %1453 : vector<1x128xf32> to vector<128xf32>
    %1455 = vector.shape_cast %1454 : vector<128xf32> to vector<1x128xf32>
    %1456 = vector.broadcast %1455 : vector<1x128xf32> to vector<2x128xf32>
    %1457 = arith.mulf %1452, %1456 : vector<2x128xf32>
    %1458 = arith.mulf %1457, %1262 : vector<2x128xf32>
    %1459 = vector.extract_strided_slice %1168 {offsets = [7, 0], sizes = [1, 128], strides = [1, 1]} : vector<12x128xf32> to vector<1x128xf32>
    %1460 = vector.shape_cast %1459 : vector<1x128xf32> to vector<128xf32>
    %1461 = vector.shape_cast %1460 : vector<128xf32> to vector<1x128xf32>
    %1462 = vector.broadcast %1461 : vector<1x128xf32> to vector<2x128xf32>
    %1463 = arith.subf %1462, %1167 : vector<2x128xf32>
    %1464 = vector.extract_strided_slice %1169 {offsets = [6, 0], sizes = [1, 128], strides = [1, 1]} : vector<36x128xf32> to vector<1x128xf32>
    %1465 = vector.shape_cast %1464 : vector<1x128xf32> to vector<128xf32>
    %1466 = vector.shape_cast %1465 : vector<128xf32> to vector<1x128xf32>
    %1467 = vector.broadcast %1466 : vector<1x128xf32> to vector<2x128xf32>
    %1468 = arith.mulf %1463, %1467 : vector<2x128xf32>
    %1469 = arith.mulf %1468, %1276 : vector<2x128xf32>
    %1470 = arith.addf %1458, %1469 : vector<2x128xf32>
    %1471 = vector.extract_strided_slice %1168 {offsets = [6, 0], sizes = [1, 128], strides = [1, 1]} : vector<12x128xf32> to vector<1x128xf32>
    %1472 = vector.shape_cast %1471 : vector<1x128xf32> to vector<128xf32>
    %1473 = vector.shape_cast %1472 : vector<128xf32> to vector<1x128xf32>
    %1474 = vector.broadcast %1473 : vector<1x128xf32> to vector<2x128xf32>
    %1475 = arith.subf %1167, %1474 : vector<2x128xf32>
    %1476 = vector.extract_strided_slice %1169 {offsets = [6, 0], sizes = [1, 128], strides = [1, 1]} : vector<36x128xf32> to vector<1x128xf32>
    %1477 = vector.shape_cast %1476 : vector<1x128xf32> to vector<128xf32>
    %1478 = vector.shape_cast %1477 : vector<128xf32> to vector<1x128xf32>
    %1479 = vector.broadcast %1478 : vector<1x128xf32> to vector<2x128xf32>
    %1480 = arith.mulf %1475, %1479 : vector<2x128xf32>
    %1481 = arith.mulf %1480, %1276 : vector<2x128xf32>
    %1482 = vector.extract_strided_slice %1168 {offsets = [8, 0], sizes = [1, 128], strides = [1, 1]} : vector<12x128xf32> to vector<1x128xf32>
    %1483 = vector.shape_cast %1482 : vector<1x128xf32> to vector<128xf32>
    %1484 = vector.shape_cast %1483 : vector<128xf32> to vector<1x128xf32>
    %1485 = vector.broadcast %1484 : vector<1x128xf32> to vector<2x128xf32>
    %1486 = arith.subf %1485, %1167 : vector<2x128xf32>
    %1487 = vector.extract_strided_slice %1169 {offsets = [7, 0], sizes = [1, 128], strides = [1, 1]} : vector<36x128xf32> to vector<1x128xf32>
    %1488 = vector.shape_cast %1487 : vector<1x128xf32> to vector<128xf32>
    %1489 = vector.shape_cast %1488 : vector<128xf32> to vector<1x128xf32>
    %1490 = vector.broadcast %1489 : vector<1x128xf32> to vector<2x128xf32>
    %1491 = arith.mulf %1486, %1490 : vector<2x128xf32>
    %1492 = arith.mulf %1491, %1290 : vector<2x128xf32>
    %1493 = arith.addf %1481, %1492 : vector<2x128xf32>
    %1494 = vector.extract_strided_slice %1168 {offsets = [7, 0], sizes = [1, 128], strides = [1, 1]} : vector<12x128xf32> to vector<1x128xf32>
    %1495 = vector.shape_cast %1494 : vector<1x128xf32> to vector<128xf32>
    %1496 = vector.shape_cast %1495 : vector<128xf32> to vector<1x128xf32>
    %1497 = vector.broadcast %1496 : vector<1x128xf32> to vector<2x128xf32>
    %1498 = arith.subf %1167, %1497 : vector<2x128xf32>
    %1499 = vector.extract_strided_slice %1169 {offsets = [7, 0], sizes = [1, 128], strides = [1, 1]} : vector<36x128xf32> to vector<1x128xf32>
    %1500 = vector.shape_cast %1499 : vector<1x128xf32> to vector<128xf32>
    %1501 = vector.shape_cast %1500 : vector<128xf32> to vector<1x128xf32>
    %1502 = vector.broadcast %1501 : vector<1x128xf32> to vector<2x128xf32>
    %1503 = arith.mulf %1498, %1502 : vector<2x128xf32>
    %1504 = arith.mulf %1503, %1290 : vector<2x128xf32>
    %1505 = vector.extract_strided_slice %1168 {offsets = [9, 0], sizes = [1, 128], strides = [1, 1]} : vector<12x128xf32> to vector<1x128xf32>
    %1506 = vector.shape_cast %1505 : vector<1x128xf32> to vector<128xf32>
    %1507 = vector.shape_cast %1506 : vector<128xf32> to vector<1x128xf32>
    %1508 = vector.broadcast %1507 : vector<1x128xf32> to vector<2x128xf32>
    %1509 = arith.subf %1508, %1167 : vector<2x128xf32>
    %1510 = vector.extract_strided_slice %1169 {offsets = [8, 0], sizes = [1, 128], strides = [1, 1]} : vector<36x128xf32> to vector<1x128xf32>
    %1511 = vector.shape_cast %1510 : vector<1x128xf32> to vector<128xf32>
    %1512 = vector.shape_cast %1511 : vector<128xf32> to vector<1x128xf32>
    %1513 = vector.broadcast %1512 : vector<1x128xf32> to vector<2x128xf32>
    %1514 = arith.mulf %1509, %1513 : vector<2x128xf32>
    %1515 = arith.mulf %1514, %1304 : vector<2x128xf32>
    %1516 = arith.addf %1504, %1515 : vector<2x128xf32>
    %1517 = vector.extract_strided_slice %1168 {offsets = [8, 0], sizes = [1, 128], strides = [1, 1]} : vector<12x128xf32> to vector<1x128xf32>
    %1518 = vector.shape_cast %1517 : vector<1x128xf32> to vector<128xf32>
    %1519 = vector.shape_cast %1518 : vector<128xf32> to vector<1x128xf32>
    %1520 = vector.broadcast %1519 : vector<1x128xf32> to vector<2x128xf32>
    %1521 = arith.subf %1167, %1520 : vector<2x128xf32>
    %1522 = vector.extract_strided_slice %1169 {offsets = [8, 0], sizes = [1, 128], strides = [1, 1]} : vector<36x128xf32> to vector<1x128xf32>
    %1523 = vector.shape_cast %1522 : vector<1x128xf32> to vector<128xf32>
    %1524 = vector.shape_cast %1523 : vector<128xf32> to vector<1x128xf32>
    %1525 = vector.broadcast %1524 : vector<1x128xf32> to vector<2x128xf32>
    %1526 = arith.mulf %1521, %1525 : vector<2x128xf32>
    %1527 = arith.mulf %1526, %1304 : vector<2x128xf32>
    %1528 = vector.extract_strided_slice %1168 {offsets = [10, 0], sizes = [1, 128], strides = [1, 1]} : vector<12x128xf32> to vector<1x128xf32>
    %1529 = vector.shape_cast %1528 : vector<1x128xf32> to vector<128xf32>
    %1530 = vector.shape_cast %1529 : vector<128xf32> to vector<1x128xf32>
    %1531 = vector.broadcast %1530 : vector<1x128xf32> to vector<2x128xf32>
    %1532 = arith.subf %1531, %1167 : vector<2x128xf32>
    %1533 = vector.extract_strided_slice %1169 {offsets = [9, 0], sizes = [1, 128], strides = [1, 1]} : vector<36x128xf32> to vector<1x128xf32>
    %1534 = vector.shape_cast %1533 : vector<1x128xf32> to vector<128xf32>
    %1535 = vector.shape_cast %1534 : vector<128xf32> to vector<1x128xf32>
    %1536 = vector.broadcast %1535 : vector<1x128xf32> to vector<2x128xf32>
    %1537 = arith.mulf %1532, %1536 : vector<2x128xf32>
    %1538 = arith.mulf %1537, %1318 : vector<2x128xf32>
    %1539 = arith.addf %1527, %1538 : vector<2x128xf32>
    %1540 = vector.extract_strided_slice %1168 {offsets = [9, 0], sizes = [1, 128], strides = [1, 1]} : vector<12x128xf32> to vector<1x128xf32>
    %1541 = vector.shape_cast %1540 : vector<1x128xf32> to vector<128xf32>
    %1542 = vector.shape_cast %1541 : vector<128xf32> to vector<1x128xf32>
    %1543 = vector.broadcast %1542 : vector<1x128xf32> to vector<2x128xf32>
    %1544 = arith.subf %1167, %1543 : vector<2x128xf32>
    %1545 = vector.extract_strided_slice %1169 {offsets = [9, 0], sizes = [1, 128], strides = [1, 1]} : vector<36x128xf32> to vector<1x128xf32>
    %1546 = vector.shape_cast %1545 : vector<1x128xf32> to vector<128xf32>
    %1547 = vector.shape_cast %1546 : vector<128xf32> to vector<1x128xf32>
    %1548 = vector.broadcast %1547 : vector<1x128xf32> to vector<2x128xf32>
    %1549 = arith.mulf %1544, %1548 : vector<2x128xf32>
    %1550 = arith.mulf %1549, %1318 : vector<2x128xf32>
    %1551 = vector.extract_strided_slice %1168 {offsets = [11, 0], sizes = [1, 128], strides = [1, 1]} : vector<12x128xf32> to vector<1x128xf32>
    %1552 = vector.shape_cast %1551 : vector<1x128xf32> to vector<128xf32>
    %1553 = vector.shape_cast %1552 : vector<128xf32> to vector<1x128xf32>
    %1554 = vector.broadcast %1553 : vector<1x128xf32> to vector<2x128xf32>
    %1555 = arith.subf %1554, %1167 : vector<2x128xf32>
    %1556 = vector.extract_strided_slice %1169 {offsets = [10, 0], sizes = [1, 128], strides = [1, 1]} : vector<36x128xf32> to vector<1x128xf32>
    %1557 = vector.shape_cast %1556 : vector<1x128xf32> to vector<128xf32>
    %1558 = vector.shape_cast %1557 : vector<128xf32> to vector<1x128xf32>
    %1559 = vector.broadcast %1558 : vector<1x128xf32> to vector<2x128xf32>
    %1560 = arith.mulf %1555, %1559 : vector<2x128xf32>
    %1561 = arith.mulf %1560, %1332 : vector<2x128xf32>
    %1562 = arith.addf %1550, %1561 : vector<2x128xf32>
    %1563 = vector.extract_strided_slice %1168 {offsets = [0, 0], sizes = [1, 128], strides = [1, 1]} : vector<12x128xf32> to vector<1x128xf32>
    %1564 = vector.shape_cast %1563 : vector<1x128xf32> to vector<128xf32>
    %1565 = vector.shape_cast %1564 : vector<128xf32> to vector<1x128xf32>
    %1566 = vector.broadcast %1565 : vector<1x128xf32> to vector<2x128xf32>
    %1567 = arith.subf %1167, %1566 : vector<2x128xf32>
    %1568 = vector.extract_strided_slice %1169 {offsets = [12, 0], sizes = [1, 128], strides = [1, 1]} : vector<36x128xf32> to vector<1x128xf32>
    %1569 = vector.shape_cast %1568 : vector<1x128xf32> to vector<128xf32>
    %1570 = vector.shape_cast %1569 : vector<128xf32> to vector<1x128xf32>
    %1571 = vector.broadcast %1570 : vector<1x128xf32> to vector<2x128xf32>
    %1572 = arith.mulf %1567, %1571 : vector<2x128xf32>
    %1573 = arith.mulf %1572, %1355 : vector<2x128xf32>
    %1574 = vector.extract_strided_slice %1168 {offsets = [3, 0], sizes = [1, 128], strides = [1, 1]} : vector<12x128xf32> to vector<1x128xf32>
    %1575 = vector.shape_cast %1574 : vector<1x128xf32> to vector<128xf32>
    %1576 = vector.shape_cast %1575 : vector<128xf32> to vector<1x128xf32>
    %1577 = vector.broadcast %1576 : vector<1x128xf32> to vector<2x128xf32>
    %1578 = arith.subf %1577, %1167 : vector<2x128xf32>
    %1579 = vector.extract_strided_slice %1169 {offsets = [13, 0], sizes = [1, 128], strides = [1, 1]} : vector<36x128xf32> to vector<1x128xf32>
    %1580 = vector.shape_cast %1579 : vector<1x128xf32> to vector<128xf32>
    %1581 = vector.shape_cast %1580 : vector<128xf32> to vector<1x128xf32>
    %1582 = vector.broadcast %1581 : vector<1x128xf32> to vector<2x128xf32>
    %1583 = arith.mulf %1578, %1582 : vector<2x128xf32>
    %1584 = arith.mulf %1583, %1378 : vector<2x128xf32>
    %1585 = arith.addf %1573, %1584 : vector<2x128xf32>
    %1586 = vector.extract_strided_slice %1168 {offsets = [1, 0], sizes = [1, 128], strides = [1, 1]} : vector<12x128xf32> to vector<1x128xf32>
    %1587 = vector.shape_cast %1586 : vector<1x128xf32> to vector<128xf32>
    %1588 = vector.shape_cast %1587 : vector<128xf32> to vector<1x128xf32>
    %1589 = vector.broadcast %1588 : vector<1x128xf32> to vector<2x128xf32>
    %1590 = arith.subf %1167, %1589 : vector<2x128xf32>
    %1591 = vector.extract_strided_slice %1169 {offsets = [13, 0], sizes = [1, 128], strides = [1, 1]} : vector<36x128xf32> to vector<1x128xf32>
    %1592 = vector.shape_cast %1591 : vector<1x128xf32> to vector<128xf32>
    %1593 = vector.shape_cast %1592 : vector<128xf32> to vector<1x128xf32>
    %1594 = vector.broadcast %1593 : vector<1x128xf32> to vector<2x128xf32>
    %1595 = arith.mulf %1590, %1594 : vector<2x128xf32>
    %1596 = arith.mulf %1595, %1378 : vector<2x128xf32>
    %1597 = vector.extract_strided_slice %1168 {offsets = [4, 0], sizes = [1, 128], strides = [1, 1]} : vector<12x128xf32> to vector<1x128xf32>
    %1598 = vector.shape_cast %1597 : vector<1x128xf32> to vector<128xf32>
    %1599 = vector.shape_cast %1598 : vector<128xf32> to vector<1x128xf32>
    %1600 = vector.broadcast %1599 : vector<1x128xf32> to vector<2x128xf32>
    %1601 = arith.subf %1600, %1167 : vector<2x128xf32>
    %1602 = vector.extract_strided_slice %1169 {offsets = [14, 0], sizes = [1, 128], strides = [1, 1]} : vector<36x128xf32> to vector<1x128xf32>
    %1603 = vector.shape_cast %1602 : vector<1x128xf32> to vector<128xf32>
    %1604 = vector.shape_cast %1603 : vector<128xf32> to vector<1x128xf32>
    %1605 = vector.broadcast %1604 : vector<1x128xf32> to vector<2x128xf32>
    %1606 = arith.mulf %1601, %1605 : vector<2x128xf32>
    %1607 = arith.mulf %1606, %1401 : vector<2x128xf32>
    %1608 = arith.addf %1596, %1607 : vector<2x128xf32>
    %1609 = vector.extract_strided_slice %1168 {offsets = [2, 0], sizes = [1, 128], strides = [1, 1]} : vector<12x128xf32> to vector<1x128xf32>
    %1610 = vector.shape_cast %1609 : vector<1x128xf32> to vector<128xf32>
    %1611 = vector.shape_cast %1610 : vector<128xf32> to vector<1x128xf32>
    %1612 = vector.broadcast %1611 : vector<1x128xf32> to vector<2x128xf32>
    %1613 = arith.subf %1167, %1612 : vector<2x128xf32>
    %1614 = vector.extract_strided_slice %1169 {offsets = [14, 0], sizes = [1, 128], strides = [1, 1]} : vector<36x128xf32> to vector<1x128xf32>
    %1615 = vector.shape_cast %1614 : vector<1x128xf32> to vector<128xf32>
    %1616 = vector.shape_cast %1615 : vector<128xf32> to vector<1x128xf32>
    %1617 = vector.broadcast %1616 : vector<1x128xf32> to vector<2x128xf32>
    %1618 = arith.mulf %1613, %1617 : vector<2x128xf32>
    %1619 = arith.mulf %1618, %1401 : vector<2x128xf32>
    %1620 = vector.extract_strided_slice %1168 {offsets = [5, 0], sizes = [1, 128], strides = [1, 1]} : vector<12x128xf32> to vector<1x128xf32>
    %1621 = vector.shape_cast %1620 : vector<1x128xf32> to vector<128xf32>
    %1622 = vector.shape_cast %1621 : vector<128xf32> to vector<1x128xf32>
    %1623 = vector.broadcast %1622 : vector<1x128xf32> to vector<2x128xf32>
    %1624 = arith.subf %1623, %1167 : vector<2x128xf32>
    %1625 = vector.extract_strided_slice %1169 {offsets = [15, 0], sizes = [1, 128], strides = [1, 1]} : vector<36x128xf32> to vector<1x128xf32>
    %1626 = vector.shape_cast %1625 : vector<1x128xf32> to vector<128xf32>
    %1627 = vector.shape_cast %1626 : vector<128xf32> to vector<1x128xf32>
    %1628 = vector.broadcast %1627 : vector<1x128xf32> to vector<2x128xf32>
    %1629 = arith.mulf %1624, %1628 : vector<2x128xf32>
    %1630 = arith.mulf %1629, %1424 : vector<2x128xf32>
    %1631 = arith.addf %1619, %1630 : vector<2x128xf32>
    %1632 = vector.extract_strided_slice %1168 {offsets = [3, 0], sizes = [1, 128], strides = [1, 1]} : vector<12x128xf32> to vector<1x128xf32>
    %1633 = vector.shape_cast %1632 : vector<1x128xf32> to vector<128xf32>
    %1634 = vector.shape_cast %1633 : vector<128xf32> to vector<1x128xf32>
    %1635 = vector.broadcast %1634 : vector<1x128xf32> to vector<2x128xf32>
    %1636 = arith.subf %1167, %1635 : vector<2x128xf32>
    %1637 = vector.extract_strided_slice %1169 {offsets = [15, 0], sizes = [1, 128], strides = [1, 1]} : vector<36x128xf32> to vector<1x128xf32>
    %1638 = vector.shape_cast %1637 : vector<1x128xf32> to vector<128xf32>
    %1639 = vector.shape_cast %1638 : vector<128xf32> to vector<1x128xf32>
    %1640 = vector.broadcast %1639 : vector<1x128xf32> to vector<2x128xf32>
    %1641 = arith.mulf %1636, %1640 : vector<2x128xf32>
    %1642 = arith.mulf %1641, %1424 : vector<2x128xf32>
    %1643 = vector.extract_strided_slice %1168 {offsets = [6, 0], sizes = [1, 128], strides = [1, 1]} : vector<12x128xf32> to vector<1x128xf32>
    %1644 = vector.shape_cast %1643 : vector<1x128xf32> to vector<128xf32>
    %1645 = vector.shape_cast %1644 : vector<128xf32> to vector<1x128xf32>
    %1646 = vector.broadcast %1645 : vector<1x128xf32> to vector<2x128xf32>
    %1647 = arith.subf %1646, %1167 : vector<2x128xf32>
    %1648 = vector.extract_strided_slice %1169 {offsets = [16, 0], sizes = [1, 128], strides = [1, 1]} : vector<36x128xf32> to vector<1x128xf32>
    %1649 = vector.shape_cast %1648 : vector<1x128xf32> to vector<128xf32>
    %1650 = vector.shape_cast %1649 : vector<128xf32> to vector<1x128xf32>
    %1651 = vector.broadcast %1650 : vector<1x128xf32> to vector<2x128xf32>
    %1652 = arith.mulf %1647, %1651 : vector<2x128xf32>
    %1653 = arith.mulf %1652, %1447 : vector<2x128xf32>
    %1654 = arith.addf %1642, %1653 : vector<2x128xf32>
    %1655 = vector.extract_strided_slice %1168 {offsets = [4, 0], sizes = [1, 128], strides = [1, 1]} : vector<12x128xf32> to vector<1x128xf32>
    %1656 = vector.shape_cast %1655 : vector<1x128xf32> to vector<128xf32>
    %1657 = vector.shape_cast %1656 : vector<128xf32> to vector<1x128xf32>
    %1658 = vector.broadcast %1657 : vector<1x128xf32> to vector<2x128xf32>
    %1659 = arith.subf %1167, %1658 : vector<2x128xf32>
    %1660 = vector.extract_strided_slice %1169 {offsets = [16, 0], sizes = [1, 128], strides = [1, 1]} : vector<36x128xf32> to vector<1x128xf32>
    %1661 = vector.shape_cast %1660 : vector<1x128xf32> to vector<128xf32>
    %1662 = vector.shape_cast %1661 : vector<128xf32> to vector<1x128xf32>
    %1663 = vector.broadcast %1662 : vector<1x128xf32> to vector<2x128xf32>
    %1664 = arith.mulf %1659, %1663 : vector<2x128xf32>
    %1665 = arith.mulf %1664, %1447 : vector<2x128xf32>
    %1666 = vector.extract_strided_slice %1168 {offsets = [7, 0], sizes = [1, 128], strides = [1, 1]} : vector<12x128xf32> to vector<1x128xf32>
    %1667 = vector.shape_cast %1666 : vector<1x128xf32> to vector<128xf32>
    %1668 = vector.shape_cast %1667 : vector<128xf32> to vector<1x128xf32>
    %1669 = vector.broadcast %1668 : vector<1x128xf32> to vector<2x128xf32>
    %1670 = arith.subf %1669, %1167 : vector<2x128xf32>
    %1671 = vector.extract_strided_slice %1169 {offsets = [17, 0], sizes = [1, 128], strides = [1, 1]} : vector<36x128xf32> to vector<1x128xf32>
    %1672 = vector.shape_cast %1671 : vector<1x128xf32> to vector<128xf32>
    %1673 = vector.shape_cast %1672 : vector<128xf32> to vector<1x128xf32>
    %1674 = vector.broadcast %1673 : vector<1x128xf32> to vector<2x128xf32>
    %1675 = arith.mulf %1670, %1674 : vector<2x128xf32>
    %1676 = arith.mulf %1675, %1470 : vector<2x128xf32>
    %1677 = arith.addf %1665, %1676 : vector<2x128xf32>
    %1678 = vector.extract_strided_slice %1168 {offsets = [5, 0], sizes = [1, 128], strides = [1, 1]} : vector<12x128xf32> to vector<1x128xf32>
    %1679 = vector.shape_cast %1678 : vector<1x128xf32> to vector<128xf32>
    %1680 = vector.shape_cast %1679 : vector<128xf32> to vector<1x128xf32>
    %1681 = vector.broadcast %1680 : vector<1x128xf32> to vector<2x128xf32>
    %1682 = arith.subf %1167, %1681 : vector<2x128xf32>
    %1683 = vector.extract_strided_slice %1169 {offsets = [17, 0], sizes = [1, 128], strides = [1, 1]} : vector<36x128xf32> to vector<1x128xf32>
    %1684 = vector.shape_cast %1683 : vector<1x128xf32> to vector<128xf32>
    %1685 = vector.shape_cast %1684 : vector<128xf32> to vector<1x128xf32>
    %1686 = vector.broadcast %1685 : vector<1x128xf32> to vector<2x128xf32>
    %1687 = arith.mulf %1682, %1686 : vector<2x128xf32>
    %1688 = arith.mulf %1687, %1470 : vector<2x128xf32>
    %1689 = vector.extract_strided_slice %1168 {offsets = [8, 0], sizes = [1, 128], strides = [1, 1]} : vector<12x128xf32> to vector<1x128xf32>
    %1690 = vector.shape_cast %1689 : vector<1x128xf32> to vector<128xf32>
    %1691 = vector.shape_cast %1690 : vector<128xf32> to vector<1x128xf32>
    %1692 = vector.broadcast %1691 : vector<1x128xf32> to vector<2x128xf32>
    %1693 = arith.subf %1692, %1167 : vector<2x128xf32>
    %1694 = vector.extract_strided_slice %1169 {offsets = [18, 0], sizes = [1, 128], strides = [1, 1]} : vector<36x128xf32> to vector<1x128xf32>
    %1695 = vector.shape_cast %1694 : vector<1x128xf32> to vector<128xf32>
    %1696 = vector.shape_cast %1695 : vector<128xf32> to vector<1x128xf32>
    %1697 = vector.broadcast %1696 : vector<1x128xf32> to vector<2x128xf32>
    %1698 = arith.mulf %1693, %1697 : vector<2x128xf32>
    %1699 = arith.mulf %1698, %1493 : vector<2x128xf32>
    %1700 = arith.addf %1688, %1699 : vector<2x128xf32>
    %1701 = vector.extract_strided_slice %1168 {offsets = [6, 0], sizes = [1, 128], strides = [1, 1]} : vector<12x128xf32> to vector<1x128xf32>
    %1702 = vector.shape_cast %1701 : vector<1x128xf32> to vector<128xf32>
    %1703 = vector.shape_cast %1702 : vector<128xf32> to vector<1x128xf32>
    %1704 = vector.broadcast %1703 : vector<1x128xf32> to vector<2x128xf32>
    %1705 = arith.subf %1167, %1704 : vector<2x128xf32>
    %1706 = vector.extract_strided_slice %1169 {offsets = [18, 0], sizes = [1, 128], strides = [1, 1]} : vector<36x128xf32> to vector<1x128xf32>
    %1707 = vector.shape_cast %1706 : vector<1x128xf32> to vector<128xf32>
    %1708 = vector.shape_cast %1707 : vector<128xf32> to vector<1x128xf32>
    %1709 = vector.broadcast %1708 : vector<1x128xf32> to vector<2x128xf32>
    %1710 = arith.mulf %1705, %1709 : vector<2x128xf32>
    %1711 = arith.mulf %1710, %1493 : vector<2x128xf32>
    %1712 = vector.extract_strided_slice %1168 {offsets = [9, 0], sizes = [1, 128], strides = [1, 1]} : vector<12x128xf32> to vector<1x128xf32>
    %1713 = vector.shape_cast %1712 : vector<1x128xf32> to vector<128xf32>
    %1714 = vector.shape_cast %1713 : vector<128xf32> to vector<1x128xf32>
    %1715 = vector.broadcast %1714 : vector<1x128xf32> to vector<2x128xf32>
    %1716 = arith.subf %1715, %1167 : vector<2x128xf32>
    %1717 = vector.extract_strided_slice %1169 {offsets = [19, 0], sizes = [1, 128], strides = [1, 1]} : vector<36x128xf32> to vector<1x128xf32>
    %1718 = vector.shape_cast %1717 : vector<1x128xf32> to vector<128xf32>
    %1719 = vector.shape_cast %1718 : vector<128xf32> to vector<1x128xf32>
    %1720 = vector.broadcast %1719 : vector<1x128xf32> to vector<2x128xf32>
    %1721 = arith.mulf %1716, %1720 : vector<2x128xf32>
    %1722 = arith.mulf %1721, %1516 : vector<2x128xf32>
    %1723 = arith.addf %1711, %1722 : vector<2x128xf32>
    %1724 = vector.extract_strided_slice %1168 {offsets = [7, 0], sizes = [1, 128], strides = [1, 1]} : vector<12x128xf32> to vector<1x128xf32>
    %1725 = vector.shape_cast %1724 : vector<1x128xf32> to vector<128xf32>
    %1726 = vector.shape_cast %1725 : vector<128xf32> to vector<1x128xf32>
    %1727 = vector.broadcast %1726 : vector<1x128xf32> to vector<2x128xf32>
    %1728 = arith.subf %1167, %1727 : vector<2x128xf32>
    %1729 = vector.extract_strided_slice %1169 {offsets = [19, 0], sizes = [1, 128], strides = [1, 1]} : vector<36x128xf32> to vector<1x128xf32>
    %1730 = vector.shape_cast %1729 : vector<1x128xf32> to vector<128xf32>
    %1731 = vector.shape_cast %1730 : vector<128xf32> to vector<1x128xf32>
    %1732 = vector.broadcast %1731 : vector<1x128xf32> to vector<2x128xf32>
    %1733 = arith.mulf %1728, %1732 : vector<2x128xf32>
    %1734 = arith.mulf %1733, %1516 : vector<2x128xf32>
    %1735 = vector.extract_strided_slice %1168 {offsets = [10, 0], sizes = [1, 128], strides = [1, 1]} : vector<12x128xf32> to vector<1x128xf32>
    %1736 = vector.shape_cast %1735 : vector<1x128xf32> to vector<128xf32>
    %1737 = vector.shape_cast %1736 : vector<128xf32> to vector<1x128xf32>
    %1738 = vector.broadcast %1737 : vector<1x128xf32> to vector<2x128xf32>
    %1739 = arith.subf %1738, %1167 : vector<2x128xf32>
    %1740 = vector.extract_strided_slice %1169 {offsets = [20, 0], sizes = [1, 128], strides = [1, 1]} : vector<36x128xf32> to vector<1x128xf32>
    %1741 = vector.shape_cast %1740 : vector<1x128xf32> to vector<128xf32>
    %1742 = vector.shape_cast %1741 : vector<128xf32> to vector<1x128xf32>
    %1743 = vector.broadcast %1742 : vector<1x128xf32> to vector<2x128xf32>
    %1744 = arith.mulf %1739, %1743 : vector<2x128xf32>
    %1745 = arith.mulf %1744, %1539 : vector<2x128xf32>
    %1746 = arith.addf %1734, %1745 : vector<2x128xf32>
    %1747 = vector.extract_strided_slice %1168 {offsets = [8, 0], sizes = [1, 128], strides = [1, 1]} : vector<12x128xf32> to vector<1x128xf32>
    %1748 = vector.shape_cast %1747 : vector<1x128xf32> to vector<128xf32>
    %1749 = vector.shape_cast %1748 : vector<128xf32> to vector<1x128xf32>
    %1750 = vector.broadcast %1749 : vector<1x128xf32> to vector<2x128xf32>
    %1751 = arith.subf %1167, %1750 : vector<2x128xf32>
    %1752 = vector.extract_strided_slice %1169 {offsets = [20, 0], sizes = [1, 128], strides = [1, 1]} : vector<36x128xf32> to vector<1x128xf32>
    %1753 = vector.shape_cast %1752 : vector<1x128xf32> to vector<128xf32>
    %1754 = vector.shape_cast %1753 : vector<128xf32> to vector<1x128xf32>
    %1755 = vector.broadcast %1754 : vector<1x128xf32> to vector<2x128xf32>
    %1756 = arith.mulf %1751, %1755 : vector<2x128xf32>
    %1757 = arith.mulf %1756, %1539 : vector<2x128xf32>
    %1758 = vector.extract_strided_slice %1168 {offsets = [11, 0], sizes = [1, 128], strides = [1, 1]} : vector<12x128xf32> to vector<1x128xf32>
    %1759 = vector.shape_cast %1758 : vector<1x128xf32> to vector<128xf32>
    %1760 = vector.shape_cast %1759 : vector<128xf32> to vector<1x128xf32>
    %1761 = vector.broadcast %1760 : vector<1x128xf32> to vector<2x128xf32>
    %1762 = arith.subf %1761, %1167 : vector<2x128xf32>
    %1763 = vector.extract_strided_slice %1169 {offsets = [21, 0], sizes = [1, 128], strides = [1, 1]} : vector<36x128xf32> to vector<1x128xf32>
    %1764 = vector.shape_cast %1763 : vector<1x128xf32> to vector<128xf32>
    %1765 = vector.shape_cast %1764 : vector<128xf32> to vector<1x128xf32>
    %1766 = vector.broadcast %1765 : vector<1x128xf32> to vector<2x128xf32>
    %1767 = arith.mulf %1762, %1766 : vector<2x128xf32>
    %1768 = arith.mulf %1767, %1562 : vector<2x128xf32>
    %1769 = arith.addf %1757, %1768 : vector<2x128xf32>
    %1770 = vector.extract_strided_slice %1168 {offsets = [0, 0], sizes = [1, 128], strides = [1, 1]} : vector<12x128xf32> to vector<1x128xf32>
    %1771 = vector.shape_cast %1770 : vector<1x128xf32> to vector<128xf32>
    %1772 = vector.shape_cast %1771 : vector<128xf32> to vector<1x128xf32>
    %1773 = vector.broadcast %1772 : vector<1x128xf32> to vector<2x128xf32>
    %1774 = arith.subf %1167, %1773 : vector<2x128xf32>
    %1775 = vector.extract_strided_slice %1169 {offsets = [24, 0], sizes = [1, 128], strides = [1, 1]} : vector<36x128xf32> to vector<1x128xf32>
    %1776 = vector.shape_cast %1775 : vector<1x128xf32> to vector<128xf32>
    %1777 = vector.shape_cast %1776 : vector<128xf32> to vector<1x128xf32>
    %1778 = vector.broadcast %1777 : vector<1x128xf32> to vector<2x128xf32>
    %1779 = arith.mulf %1774, %1778 : vector<2x128xf32>
    %1780 = arith.mulf %1779, %1585 : vector<2x128xf32>
    %1781 = vector.extract_strided_slice %1168 {offsets = [4, 0], sizes = [1, 128], strides = [1, 1]} : vector<12x128xf32> to vector<1x128xf32>
    %1782 = vector.shape_cast %1781 : vector<1x128xf32> to vector<128xf32>
    %1783 = vector.shape_cast %1782 : vector<128xf32> to vector<1x128xf32>
    %1784 = vector.broadcast %1783 : vector<1x128xf32> to vector<2x128xf32>
    %1785 = arith.subf %1784, %1167 : vector<2x128xf32>
    %1786 = vector.extract_strided_slice %1169 {offsets = [25, 0], sizes = [1, 128], strides = [1, 1]} : vector<36x128xf32> to vector<1x128xf32>
    %1787 = vector.shape_cast %1786 : vector<1x128xf32> to vector<128xf32>
    %1788 = vector.shape_cast %1787 : vector<128xf32> to vector<1x128xf32>
    %1789 = vector.broadcast %1788 : vector<1x128xf32> to vector<2x128xf32>
    %1790 = arith.mulf %1785, %1789 : vector<2x128xf32>
    %1791 = arith.mulf %1790, %1608 : vector<2x128xf32>
    %1792 = arith.addf %1780, %1791 : vector<2x128xf32>
    %1793 = vector.extract_strided_slice %1168 {offsets = [1, 0], sizes = [1, 128], strides = [1, 1]} : vector<12x128xf32> to vector<1x128xf32>
    %1794 = vector.shape_cast %1793 : vector<1x128xf32> to vector<128xf32>
    %1795 = vector.shape_cast %1794 : vector<128xf32> to vector<1x128xf32>
    %1796 = vector.broadcast %1795 : vector<1x128xf32> to vector<2x128xf32>
    %1797 = arith.subf %1167, %1796 : vector<2x128xf32>
    %1798 = vector.extract_strided_slice %1169 {offsets = [25, 0], sizes = [1, 128], strides = [1, 1]} : vector<36x128xf32> to vector<1x128xf32>
    %1799 = vector.shape_cast %1798 : vector<1x128xf32> to vector<128xf32>
    %1800 = vector.shape_cast %1799 : vector<128xf32> to vector<1x128xf32>
    %1801 = vector.broadcast %1800 : vector<1x128xf32> to vector<2x128xf32>
    %1802 = arith.mulf %1797, %1801 : vector<2x128xf32>
    %1803 = arith.mulf %1802, %1608 : vector<2x128xf32>
    %1804 = vector.extract_strided_slice %1168 {offsets = [5, 0], sizes = [1, 128], strides = [1, 1]} : vector<12x128xf32> to vector<1x128xf32>
    %1805 = vector.shape_cast %1804 : vector<1x128xf32> to vector<128xf32>
    %1806 = vector.shape_cast %1805 : vector<128xf32> to vector<1x128xf32>
    %1807 = vector.broadcast %1806 : vector<1x128xf32> to vector<2x128xf32>
    %1808 = arith.subf %1807, %1167 : vector<2x128xf32>
    %1809 = vector.extract_strided_slice %1169 {offsets = [26, 0], sizes = [1, 128], strides = [1, 1]} : vector<36x128xf32> to vector<1x128xf32>
    %1810 = vector.shape_cast %1809 : vector<1x128xf32> to vector<128xf32>
    %1811 = vector.shape_cast %1810 : vector<128xf32> to vector<1x128xf32>
    %1812 = vector.broadcast %1811 : vector<1x128xf32> to vector<2x128xf32>
    %1813 = arith.mulf %1808, %1812 : vector<2x128xf32>
    %1814 = arith.mulf %1813, %1631 : vector<2x128xf32>
    %1815 = arith.addf %1803, %1814 : vector<2x128xf32>
    %1816 = vector.extract_strided_slice %1168 {offsets = [2, 0], sizes = [1, 128], strides = [1, 1]} : vector<12x128xf32> to vector<1x128xf32>
    %1817 = vector.shape_cast %1816 : vector<1x128xf32> to vector<128xf32>
    %1818 = vector.shape_cast %1817 : vector<128xf32> to vector<1x128xf32>
    %1819 = vector.broadcast %1818 : vector<1x128xf32> to vector<2x128xf32>
    %1820 = arith.subf %1167, %1819 : vector<2x128xf32>
    %1821 = vector.extract_strided_slice %1169 {offsets = [26, 0], sizes = [1, 128], strides = [1, 1]} : vector<36x128xf32> to vector<1x128xf32>
    %1822 = vector.shape_cast %1821 : vector<1x128xf32> to vector<128xf32>
    %1823 = vector.shape_cast %1822 : vector<128xf32> to vector<1x128xf32>
    %1824 = vector.broadcast %1823 : vector<1x128xf32> to vector<2x128xf32>
    %1825 = arith.mulf %1820, %1824 : vector<2x128xf32>
    %1826 = arith.mulf %1825, %1631 : vector<2x128xf32>
    %1827 = vector.extract_strided_slice %1168 {offsets = [6, 0], sizes = [1, 128], strides = [1, 1]} : vector<12x128xf32> to vector<1x128xf32>
    %1828 = vector.shape_cast %1827 : vector<1x128xf32> to vector<128xf32>
    %1829 = vector.shape_cast %1828 : vector<128xf32> to vector<1x128xf32>
    %1830 = vector.broadcast %1829 : vector<1x128xf32> to vector<2x128xf32>
    %1831 = arith.subf %1830, %1167 : vector<2x128xf32>
    %1832 = vector.extract_strided_slice %1169 {offsets = [27, 0], sizes = [1, 128], strides = [1, 1]} : vector<36x128xf32> to vector<1x128xf32>
    %1833 = vector.shape_cast %1832 : vector<1x128xf32> to vector<128xf32>
    %1834 = vector.shape_cast %1833 : vector<128xf32> to vector<1x128xf32>
    %1835 = vector.broadcast %1834 : vector<1x128xf32> to vector<2x128xf32>
    %1836 = arith.mulf %1831, %1835 : vector<2x128xf32>
    %1837 = arith.mulf %1836, %1654 : vector<2x128xf32>
    %1838 = arith.addf %1826, %1837 : vector<2x128xf32>
    %1839 = vector.extract_strided_slice %1168 {offsets = [3, 0], sizes = [1, 128], strides = [1, 1]} : vector<12x128xf32> to vector<1x128xf32>
    %1840 = vector.shape_cast %1839 : vector<1x128xf32> to vector<128xf32>
    %1841 = vector.shape_cast %1840 : vector<128xf32> to vector<1x128xf32>
    %1842 = vector.broadcast %1841 : vector<1x128xf32> to vector<2x128xf32>
    %1843 = arith.subf %1167, %1842 : vector<2x128xf32>
    %1844 = vector.extract_strided_slice %1169 {offsets = [27, 0], sizes = [1, 128], strides = [1, 1]} : vector<36x128xf32> to vector<1x128xf32>
    %1845 = vector.shape_cast %1844 : vector<1x128xf32> to vector<128xf32>
    %1846 = vector.shape_cast %1845 : vector<128xf32> to vector<1x128xf32>
    %1847 = vector.broadcast %1846 : vector<1x128xf32> to vector<2x128xf32>
    %1848 = arith.mulf %1843, %1847 : vector<2x128xf32>
    %1849 = arith.mulf %1848, %1654 : vector<2x128xf32>
    %1850 = vector.extract_strided_slice %1168 {offsets = [7, 0], sizes = [1, 128], strides = [1, 1]} : vector<12x128xf32> to vector<1x128xf32>
    %1851 = vector.shape_cast %1850 : vector<1x128xf32> to vector<128xf32>
    %1852 = vector.shape_cast %1851 : vector<128xf32> to vector<1x128xf32>
    %1853 = vector.broadcast %1852 : vector<1x128xf32> to vector<2x128xf32>
    %1854 = arith.subf %1853, %1167 : vector<2x128xf32>
    %1855 = vector.extract_strided_slice %1169 {offsets = [28, 0], sizes = [1, 128], strides = [1, 1]} : vector<36x128xf32> to vector<1x128xf32>
    %1856 = vector.shape_cast %1855 : vector<1x128xf32> to vector<128xf32>
    %1857 = vector.shape_cast %1856 : vector<128xf32> to vector<1x128xf32>
    %1858 = vector.broadcast %1857 : vector<1x128xf32> to vector<2x128xf32>
    %1859 = arith.mulf %1854, %1858 : vector<2x128xf32>
    %1860 = arith.mulf %1859, %1677 : vector<2x128xf32>
    %1861 = arith.addf %1849, %1860 : vector<2x128xf32>
    %1862 = vector.extract_strided_slice %1168 {offsets = [4, 0], sizes = [1, 128], strides = [1, 1]} : vector<12x128xf32> to vector<1x128xf32>
    %1863 = vector.shape_cast %1862 : vector<1x128xf32> to vector<128xf32>
    %1864 = vector.shape_cast %1863 : vector<128xf32> to vector<1x128xf32>
    %1865 = vector.broadcast %1864 : vector<1x128xf32> to vector<2x128xf32>
    %1866 = arith.subf %1167, %1865 : vector<2x128xf32>
    %1867 = vector.extract_strided_slice %1169 {offsets = [28, 0], sizes = [1, 128], strides = [1, 1]} : vector<36x128xf32> to vector<1x128xf32>
    %1868 = vector.shape_cast %1867 : vector<1x128xf32> to vector<128xf32>
    %1869 = vector.shape_cast %1868 : vector<128xf32> to vector<1x128xf32>
    %1870 = vector.broadcast %1869 : vector<1x128xf32> to vector<2x128xf32>
    %1871 = arith.mulf %1866, %1870 : vector<2x128xf32>
    %1872 = arith.mulf %1871, %1677 : vector<2x128xf32>
    %1873 = vector.extract_strided_slice %1168 {offsets = [8, 0], sizes = [1, 128], strides = [1, 1]} : vector<12x128xf32> to vector<1x128xf32>
    %1874 = vector.shape_cast %1873 : vector<1x128xf32> to vector<128xf32>
    %1875 = vector.shape_cast %1874 : vector<128xf32> to vector<1x128xf32>
    %1876 = vector.broadcast %1875 : vector<1x128xf32> to vector<2x128xf32>
    %1877 = arith.subf %1876, %1167 : vector<2x128xf32>
    %1878 = vector.extract_strided_slice %1169 {offsets = [29, 0], sizes = [1, 128], strides = [1, 1]} : vector<36x128xf32> to vector<1x128xf32>
    %1879 = vector.shape_cast %1878 : vector<1x128xf32> to vector<128xf32>
    %1880 = vector.shape_cast %1879 : vector<128xf32> to vector<1x128xf32>
    %1881 = vector.broadcast %1880 : vector<1x128xf32> to vector<2x128xf32>
    %1882 = arith.mulf %1877, %1881 : vector<2x128xf32>
    %1883 = arith.mulf %1882, %1700 : vector<2x128xf32>
    %1884 = arith.addf %1872, %1883 : vector<2x128xf32>
    %1885 = vector.extract_strided_slice %1168 {offsets = [5, 0], sizes = [1, 128], strides = [1, 1]} : vector<12x128xf32> to vector<1x128xf32>
    %1886 = vector.shape_cast %1885 : vector<1x128xf32> to vector<128xf32>
    %1887 = vector.shape_cast %1886 : vector<128xf32> to vector<1x128xf32>
    %1888 = vector.broadcast %1887 : vector<1x128xf32> to vector<2x128xf32>
    %1889 = arith.subf %1167, %1888 : vector<2x128xf32>
    %1890 = vector.extract_strided_slice %1169 {offsets = [29, 0], sizes = [1, 128], strides = [1, 1]} : vector<36x128xf32> to vector<1x128xf32>
    %1891 = vector.shape_cast %1890 : vector<1x128xf32> to vector<128xf32>
    %1892 = vector.shape_cast %1891 : vector<128xf32> to vector<1x128xf32>
    %1893 = vector.broadcast %1892 : vector<1x128xf32> to vector<2x128xf32>
    %1894 = arith.mulf %1889, %1893 : vector<2x128xf32>
    %1895 = arith.mulf %1894, %1700 : vector<2x128xf32>
    %1896 = vector.extract_strided_slice %1168 {offsets = [9, 0], sizes = [1, 128], strides = [1, 1]} : vector<12x128xf32> to vector<1x128xf32>
    %1897 = vector.shape_cast %1896 : vector<1x128xf32> to vector<128xf32>
    %1898 = vector.shape_cast %1897 : vector<128xf32> to vector<1x128xf32>
    %1899 = vector.broadcast %1898 : vector<1x128xf32> to vector<2x128xf32>
    %1900 = arith.subf %1899, %1167 : vector<2x128xf32>
    %1901 = vector.extract_strided_slice %1169 {offsets = [30, 0], sizes = [1, 128], strides = [1, 1]} : vector<36x128xf32> to vector<1x128xf32>
    %1902 = vector.shape_cast %1901 : vector<1x128xf32> to vector<128xf32>
    %1903 = vector.shape_cast %1902 : vector<128xf32> to vector<1x128xf32>
    %1904 = vector.broadcast %1903 : vector<1x128xf32> to vector<2x128xf32>
    %1905 = arith.mulf %1900, %1904 : vector<2x128xf32>
    %1906 = arith.mulf %1905, %1723 : vector<2x128xf32>
    %1907 = arith.addf %1895, %1906 : vector<2x128xf32>
    %1908 = vector.extract_strided_slice %1168 {offsets = [6, 0], sizes = [1, 128], strides = [1, 1]} : vector<12x128xf32> to vector<1x128xf32>
    %1909 = vector.shape_cast %1908 : vector<1x128xf32> to vector<128xf32>
    %1910 = vector.shape_cast %1909 : vector<128xf32> to vector<1x128xf32>
    %1911 = vector.broadcast %1910 : vector<1x128xf32> to vector<2x128xf32>
    %1912 = arith.subf %1167, %1911 : vector<2x128xf32>
    %1913 = vector.extract_strided_slice %1169 {offsets = [30, 0], sizes = [1, 128], strides = [1, 1]} : vector<36x128xf32> to vector<1x128xf32>
    %1914 = vector.shape_cast %1913 : vector<1x128xf32> to vector<128xf32>
    %1915 = vector.shape_cast %1914 : vector<128xf32> to vector<1x128xf32>
    %1916 = vector.broadcast %1915 : vector<1x128xf32> to vector<2x128xf32>
    %1917 = arith.mulf %1912, %1916 : vector<2x128xf32>
    %1918 = arith.mulf %1917, %1723 : vector<2x128xf32>
    %1919 = vector.extract_strided_slice %1168 {offsets = [10, 0], sizes = [1, 128], strides = [1, 1]} : vector<12x128xf32> to vector<1x128xf32>
    %1920 = vector.shape_cast %1919 : vector<1x128xf32> to vector<128xf32>
    %1921 = vector.shape_cast %1920 : vector<128xf32> to vector<1x128xf32>
    %1922 = vector.broadcast %1921 : vector<1x128xf32> to vector<2x128xf32>
    %1923 = arith.subf %1922, %1167 : vector<2x128xf32>
    %1924 = vector.extract_strided_slice %1169 {offsets = [31, 0], sizes = [1, 128], strides = [1, 1]} : vector<36x128xf32> to vector<1x128xf32>
    %1925 = vector.shape_cast %1924 : vector<1x128xf32> to vector<128xf32>
    %1926 = vector.shape_cast %1925 : vector<128xf32> to vector<1x128xf32>
    %1927 = vector.broadcast %1926 : vector<1x128xf32> to vector<2x128xf32>
    %1928 = arith.mulf %1923, %1927 : vector<2x128xf32>
    %1929 = arith.mulf %1928, %1746 : vector<2x128xf32>
    %1930 = arith.addf %1918, %1929 : vector<2x128xf32>
    %1931 = vector.extract_strided_slice %1168 {offsets = [7, 0], sizes = [1, 128], strides = [1, 1]} : vector<12x128xf32> to vector<1x128xf32>
    %1932 = vector.shape_cast %1931 : vector<1x128xf32> to vector<128xf32>
    %1933 = vector.shape_cast %1932 : vector<128xf32> to vector<1x128xf32>
    %1934 = vector.broadcast %1933 : vector<1x128xf32> to vector<2x128xf32>
    %1935 = arith.subf %1167, %1934 : vector<2x128xf32>
    %1936 = vector.extract_strided_slice %1169 {offsets = [31, 0], sizes = [1, 128], strides = [1, 1]} : vector<36x128xf32> to vector<1x128xf32>
    %1937 = vector.shape_cast %1936 : vector<1x128xf32> to vector<128xf32>
    %1938 = vector.shape_cast %1937 : vector<128xf32> to vector<1x128xf32>
    %1939 = vector.broadcast %1938 : vector<1x128xf32> to vector<2x128xf32>
    %1940 = arith.mulf %1935, %1939 : vector<2x128xf32>
    %1941 = arith.mulf %1940, %1746 : vector<2x128xf32>
    %1942 = vector.extract_strided_slice %1168 {offsets = [11, 0], sizes = [1, 128], strides = [1, 1]} : vector<12x128xf32> to vector<1x128xf32>
    %1943 = vector.shape_cast %1942 : vector<1x128xf32> to vector<128xf32>
    %1944 = vector.shape_cast %1943 : vector<128xf32> to vector<1x128xf32>
    %1945 = vector.broadcast %1944 : vector<1x128xf32> to vector<2x128xf32>
    %1946 = arith.subf %1945, %1167 : vector<2x128xf32>
    %1947 = vector.extract_strided_slice %1169 {offsets = [32, 0], sizes = [1, 128], strides = [1, 1]} : vector<36x128xf32> to vector<1x128xf32>
    %1948 = vector.shape_cast %1947 : vector<1x128xf32> to vector<128xf32>
    %1949 = vector.shape_cast %1948 : vector<128xf32> to vector<1x128xf32>
    %1950 = vector.broadcast %1949 : vector<1x128xf32> to vector<2x128xf32>
    %1951 = arith.mulf %1946, %1950 : vector<2x128xf32>
    %1952 = arith.mulf %1951, %1769 : vector<2x128xf32>
    %1953 = arith.addf %1941, %1952 : vector<2x128xf32>
    %1954 = tpu.concatenate %1792, %1815, %1838, %1861, %1884, %1907, %1930, %1953 in 1 : vector<2x128xf32>, vector<2x128xf32>, vector<2x128xf32>, vector<2x128xf32>, vector<2x128xf32>, vector<2x128xf32>, vector<2x128xf32>, vector<2x128xf32> -> vector<2x1024xf32>
    %c0_158 = arith.constant 0 : index
    %c0_159 = arith.constant 0 : index
    %1955 = vector.load %arg29[%c0_158, %c0_159] : memref<1024x128xf32, #tpu.memory_space<vmem>>, vector<1024x128xf32>
    %cst_160 = arith.constant dense<0.000000e+00> : vector<2x128xf32>
    %1956 = tpu.matmul %1954, %1955, %cst_160 {dimension_numbers = #tpu.dot_dimension_numbers<[1], [0], [0], [1], [0, 0, 1, 1], [], []>} : vector<2x1024xf32>, vector<1024x128xf32>, vector<2x128xf32> -> vector<2x128xf32>
    %1957 = arith.addf %1178, %1956 : vector<2x128xf32>
    %c0_161 = arith.constant 0 : index
    %c0_162 = arith.constant 0 : index
    %1958 = vector.load %arg33[%c0_161, %c0_162] : memref<2x128xf32, #tpu.memory_space<vmem>>, vector<2x128xf32>
    tpu.vector_store %arg33[%c0_161, %c0_162], %1957 {strides = array<i32>} : memref<2x128xf32, #tpu.memory_space<vmem>>, vector<2x128xf32>,
    %c0_163 = arith.constant 0 : index
    %c0_164 = arith.constant 0 : index
    %1959 = vector.load %arg32[%c0_163, %c0_164] : memref<128x4xf32, #tpu.memory_space<vmem>>, vector<128x4xf32>
    %cst_165 = arith.constant dense<0.000000e+00> : vector<2x4xf32>
    %1960 = tpu.matmul %1957, %1959, %cst_165 {dimension_numbers = #tpu.dot_dimension_numbers<[1], [0], [0], [1], [0, 0, 1, 1], [], []>} : vector<2x128xf32>, vector<128x4xf32>, vector<2x4xf32> -> vector<2x4xf32>
    %1961 = arith.mulf %1957, %1957 : vector<2x128xf32>
    %cst_166 = arith.constant dense<0.000000e+00> : vector<2xf32>
    %1962 = vector.multi_reduction <add>, %1961, %cst_166 [1] : vector<2x128xf32> to vector<2xf32>
    %1963 = vector.shape_cast %1962 : vector<2xf32> to vector<2x1xf32>
    %1964 = math.sqrt %1963 : vector<2x1xf32>
    %1965 = arith.mulf %1959, %1959 : vector<128x4xf32>
    %cst_167 = arith.constant dense<0.000000e+00> : vector<4xf32>
    %1966 = vector.multi_reduction <add>, %1965, %cst_167 [0] : vector<128x4xf32> to vector<4xf32>
    %1967 = vector.shape_cast %1966 : vector<4xf32> to vector<1x4xf32>
    %1968 = math.sqrt %1967 : vector<1x4xf32>
    %1969 = vector.broadcast %1964 : vector<2x1xf32> to vector<2x4xf32>
    %1970 = vector.broadcast %1968 : vector<1x4xf32> to vector<2x4xf32>
    %1971 = arith.mulf %1969, %1970 : vector<2x4xf32>
    %cst_168 = arith.constant 9.99999993E-9 : f32
    %1972 = vector.broadcast %cst_168 : f32 to vector<2x4xf32>
    %1973 = arith.maximumf %1971, %1972 : vector<2x4xf32>
    %1974 = tpu.reciprocal %1973 {approx = true} : vector<2x4xf32> -> vector<2x4xf32>
    %1975 = arith.mulf %1960, %1974 : vector<2x4xf32>
    %cst_169 = arith.constant dense<0xFF800000> : vector<2xf32>
    %1976 = vector.multi_reduction <maximumf>, %1975, %cst_169 [1] : vector<2x4xf32> to vector<2xf32>
    %1977 = vector.shape_cast %1976 : vector<2xf32> to vector<2x1xf32>
    %1978 = tpu.iota {dimensions = array<i32: 1>} : vector<2x4xi32>
    %1979 = arith.sitofp %1978 : vector<2x4xi32> to vector<2x4xf32>
    %1980 = vector.broadcast %1977 : vector<2x1xf32> to vector<2x4xf32>
    %1981 = arith.cmpf oeq, %1975, %1980 : vector<2x4xf32>
    %cst_170 = arith.constant 4.000000e+00 : f32
    %1982 = vector.broadcast %cst_170 : f32 to vector<2x4xf32>
    %1983 = arith.select %1981, %1979, %1982 : vector<2x4xi1>, vector<2x4xf32>
    %cst_171 = arith.constant dense<0x7F800000> : vector<2xf32>
    %1984 = vector.multi_reduction <minimumf>, %1983, %cst_171 [1] : vector<2x4xf32> to vector<2xf32>
    %1985 = vector.shape_cast %1984 : vector<2xf32> to vector<2x1xf32>
    %1986 = arith.fptosi %1985 : vector<2x1xf32> to vector<2x1xi32>
    %c0_172 = arith.constant 0 : index
    %c0_173 = arith.constant 0 : index
    %1987 = vector.load %arg34[%c0_172, %c0_173] : memref<2x1xi32, #tpu.memory_space<vmem>>, vector<2x1xi32>
    tpu.vector_store %arg34[%c0_172, %c0_173], %1986 {strides = array<i32>} : memref<2x1xi32, #tpu.memory_space<vmem>>, vector<2x1xi32>,
    return
  }
}

</mosaic_0001>

<llo_original>
// kernel: combined_forward.1
$region0: #{combined_forward.1}
  #allocation0 [shape = 'u32[]', space=smem, size = 0x4, offset = 0x4, fixed_abs, tag = 'smem constant byte address 0x4 - core index']
  #allocation1 [shape = 'u32[72,128]{1,0:T(1,128)}', space=vmem, size = 0x9000, scoped, tag = 'internal scratch']
  %s0 = inlined_call_operand.smem [shape: u32[35], index: -1, kind: input, shape index: {}]
  %s1 = sld [smem:[%s0]]
  %s2 = scalar_lea.smem %s0, 1
  %s3 = sld [smem:[%s2]]
  %s4 = scalar_lea.smem %s0, 2
  %s5 = sld [smem:[%s4]]
  %s6 = scalar_lea.smem %s0, 3
  %s7 = sld [smem:[%s6]]
  %s8 = scalar_lea.smem %s0, 4
  %s9 = sld [smem:[%s8]]
  %s10 = scalar_lea.smem %s0, 5
  %s11 = sld [smem:[%s10]]
  %s12 = scalar_lea.smem %s0, 6
  %s13 = sld [smem:[%s12]]
  %s14 = scalar_lea.smem %s0, 7
  %s15 = sld [smem:[%s14]]
  %s16 = scalar_lea.smem %s0, 8
  %s17 = sld [smem:[%s16]]
  %s18 = scalar_lea.smem %s0, 9
  %s19 = sld [smem:[%s18]]
  %s20 = scalar_lea.smem %s0, 10
  %s21 = sld [smem:[%s20]]
  %s22 = scalar_lea.smem %s0, 11
  %s23 = sld [smem:[%s22]]
  %s24 = scalar_lea.smem %s0, 12
  %s25 = sld [smem:[%s24]]
  %s26 = scalar_lea.smem %s0, 13
  %s27 = sld [smem:[%s26]]
  %s28 = scalar_lea.smem %s0, 14
  %s29 = sld [smem:[%s28]]
  %s30 = scalar_lea.smem %s0, 15
  %s31 = sld [smem:[%s30]]
  %s32 = scalar_lea.smem %s0, 16
  %s33 = sld [smem:[%s32]]
  %s34 = scalar_lea.smem %s0, 17
  %s35 = sld [smem:[%s34]]
  %s36 = scalar_lea.smem %s0, 18
  %s37 = sld [smem:[%s36]]
  %s38 = scalar_lea.smem %s0, 19
  %s39 = sld [smem:[%s38]]
  %s40 = scalar_lea.smem %s0, 20
  %s41 = sld [smem:[%s40]]
  %s42 = scalar_lea.smem %s0, 21
  %s43 = sld [smem:[%s42]]
  %s44 = scalar_lea.smem %s0, 22
  %s45 = sld [smem:[%s44]]
  %s46 = scalar_lea.smem %s0, 23
  %s47 = sld [smem:[%s46]]
  %s48 = scalar_lea.smem %s0, 24
  %s49 = sld [smem:[%s48]]
  %s50 = scalar_lea.smem %s0, 25
  %s51 = sld [smem:[%s50]]
  %s52 = scalar_lea.smem %s0, 26
  %s53 = sld [smem:[%s52]]
  %s54 = scalar_lea.smem %s0, 27
  %s55 = sld [smem:[%s54]]
  %s56 = scalar_lea.smem %s0, 28
  %s57 = sld [smem:[%s56]]
  %s58 = scalar_lea.smem %s0, 29
  %s59 = sld [smem:[%s58]]
  %s60 = scalar_lea.smem %s0, 30
  %s61 = sld [smem:[%s60]]
  %s62 = scalar_lea.smem %s0, 31
  %s63 = sld [smem:[%s62]]
  %s64 = scalar_lea.smem %s0, 32
  %s65 = sld [smem:[%s64]]
  %s66 = scalar_lea.smem %s0, 33
  %s67 = sld [smem:[%s66]]
  %s68 = scalar_lea.smem %s0, 34
  %s69 = sld [smem:[%s68]]
  %70 = xla_tuple %s67, %s69
  %s71 = sld [smem:[#allocation0]]
  $region202: #{combined_forward.1} parent=0
    _
  %s73 = ssub.s32 1, %s71
  %s74 = scalar_select 0, %s73, %s71
  $region1: #{combined_forward.1} parent=0
    #allocation2 [shape = 'u8[16384]{0}', space=vmem, size = 0x4000, scoped, tag = 'input window, operand 5, single buffered']
    #allocation3 [shape = 's32[1]{0}', space=sflag, size = 0x4, scoped, tag = 'scoped memory for combined_forward.1']
    #allocation4 [shape = 's32[1]{0}', space=sflag, size = 0x4, scoped, tag = 'scoped memory for combined_forward.1']
    #allocation5 [shape = 'u8[16384]{0}', space=vmem, size = 0x4000, scoped, tag = 'input window, operand 6, single buffered']
    #allocation6 [shape = 's32[1]{0}', space=sflag, size = 0x4, scoped, tag = 'scoped memory for combined_forward.1']
    #allocation7 [shape = 'u8[2048]{0}', space=vmem, size = 0x800, scoped, tag = 'input window, operand 7, single buffered']
    #allocation8 [shape = 'u8[16384]{0}', space=vmem, size = 0x4000, scoped, tag = 'input window, operand 16, single buffered']
    #allocation9 [shape = 's32[1]{0}', space=sflag, size = 0x4, scoped, tag = 'scoped memory for combined_forward.1']
    #allocation10 [shape = 'u8[512]{0}', space=vmem, size = 0x400, scoped, tag = 'input window, operand 17, single buffered']
    #allocation11 [shape = 'u8[512]{0}', space=vmem, size = 0x400, scoped, tag = 'input window, operand 19, single buffered']
    #allocation12 [shape = 's32[1]{0}', space=sflag, size = 0x4, scoped, tag = 'scoped memory for combined_forward.1']
    #allocation13 [shape = 'u8[512]{0}', space=vmem, size = 0x400, scoped, tag = 'input window, operand 20, single buffered']
    #allocation14 [shape = 'u8[512]{0}', space=vmem, size = 0x400, scoped, tag = 'input window, operand 21, single buffered']
    #allocation15 [shape = 's32[1]{0}', space=sflag, size = 0x4, scoped, tag = 'scoped memory for combined_forward.1']
    #allocation16 [shape = 'u8[16384]{0}', space=vmem, size = 0x4000, scoped, tag = 'input window, operand 22, single buffered']
    #allocation17 [shape = 'u8[512]{0}', space=vmem, size = 0x400, scoped, tag = 'input window, operand 23, single buffered']
    #allocation18 [shape = 's32[1]{0}', space=sflag, size = 0x4, scoped, tag = 'scoped memory for combined_forward.1']
    #allocation19 [shape = 'u8[524288]{0}', space=vmem, size = 0x80000, scoped, tag = 'input window, operand 25, single buffered']
    #allocation20 [shape = 'u8[524288]{0}', space=vmem, size = 0x80000, scoped, tag = 'input window, operand 29, single buffered']
    #allocation21 [shape = 's32[1]{0}', space=sflag, size = 0x4, scoped, tag = 'scoped memory for combined_forward.1']
    #allocation22 [shape = 'u8[8192]{0}', space=vmem, size = 0x2000, scoped, tag = 'input window, operand 30, single buffered']
    #allocation23 [shape = 'u8[1024]{0}', space=vmem, size = 0x400, scoped, tag = 'output window, operand 0, single buffered']
    %75 = vsyncpa [#allocation3], 0
    %76 = vsyncpa [#allocation6], 0
    %77 = vsyncpa [#allocation9], 0
    %78 = vsyncpa [#allocation12], 0
    %79 = vsyncpa [#allocation15], 0
    %80 = vsyncpa [#allocation18], 0
    %81 = vsyncpa [#allocation21], 0
    %82 = vsyncpa [#allocation4], 0
    // Predicated region
    $region2: #{combined_forward.1} parent=1 // pred_check
      _
    $region3: #{combined_forward.1} parent=1 // pred_check_branch
      %84 = sbr.rel (0) target = $region5
    $region4: #{combined_forward.1} parent=1 // pred_region
      _
    $region5: #{combined_forward.1} parent=1 // pred_fallthru
      _
    // Predicated region
    $region6: #{combined_forward.1} parent=1 // pred_check
      _
    $region7: #{combined_forward.1} parent=1 // pred_check_branch
      %86 = sbr.rel (0) target = $region9
    $region8: #{combined_forward.1} parent=1 // pred_region
      _
    $region9: #{combined_forward.1} parent=1 // pred_fallthru
      _
    // Predicated region
    $region10: #{combined_forward.1} parent=1 // pred_check
      _
    $region11: #{combined_forward.1} parent=1 // pred_check_branch
      %88 = sbr.rel (0) target = $region13
    $region12: #{combined_forward.1} parent=1 // pred_region
      _
    $region13: #{combined_forward.1} parent=1 // pred_fallthru
      _
    // Predicated region
    $region14: #{combined_forward.1} parent=1 // pred_check
      _
    $region15: #{combined_forward.1} parent=1 // pred_check_branch
      %90 = sbr.rel (0) target = $region17
    $region16: #{combined_forward.1} parent=1 // pred_region
      _
    $region17: #{combined_forward.1} parent=1 // pred_fallthru
      _
    // Predicated region
    $region18: #{combined_forward.1} parent=1 // pred_check
      _
    $region19: #{combined_forward.1} parent=1 // pred_check_branch
      %92 = sbr.rel (0) target = $region21
    $region20: #{combined_forward.1} parent=1 // pred_region
      _
    $region21: #{combined_forward.1} parent=1 // pred_fallthru
      _
    // Predicated region
    $region22: #{combined_forward.1} parent=1 // pred_check
      _
    $region23: #{combined_forward.1} parent=1 // pred_check_branch
      %94 = sbr.rel (0) target = $region25
    $region24: #{combined_forward.1} parent=1 // pred_region
      %96 = vsyncadd [#allocation3], 0
      %s97 = sshll.u32 %s11, 4
      %s98 = int_to_ptr.hbm [resolvable:$true] %s97
      %s99 = sshll.u32 [#allocation2], 4
      %s100 = int_to_ptr.vmem [resolvable:$true] %s99
      %105 = dma.hbm_to_vmem [thread:$0]  %s98, 512, %s100, [#allocation3], 128, 128, 8
    $region25: #{combined_forward.1} parent=1 // pred_fallthru
      _
    // Predicated region
    $region26: #{combined_forward.1} parent=1 // pred_check
      _
    $region27: #{combined_forward.1} parent=1 // pred_check_branch
      %107 = sbr.rel (0) target = $region29
    $region28: #{combined_forward.1} parent=1 // pred_region
      %109 = vsyncadd [#allocation6], 0
      %s110 = sshll.u32 %s13, 4
      %s111 = int_to_ptr.hbm [resolvable:$true] %s110
      %s112 = sshll.u32 [#allocation5], 4
      %s113 = int_to_ptr.vmem [resolvable:$true] %s112
      %118 = dma.hbm_to_vmem [thread:$0]  %s111, 512, %s113, [#allocation6], 128, 128, 8
    $region29: #{combined_forward.1} parent=1 // pred_fallthru
      _
    // Predicated region
    $region30: #{combined_forward.1} parent=1 // pred_check
      _
    $region31: #{combined_forward.1} parent=1 // pred_check_branch
      %120 = sbr.rel (0) target = $region33
    $region32: #{combined_forward.1} parent=1 // pred_region
      %122 = vsyncadd [#allocation6], 0
      %s124 = sshll.u32 %s15, 4
      %s125 = int_to_ptr.hbm [resolvable:$true] %s124
      %s126 = sshll.u32 [#allocation7], 4
      %s127 = int_to_ptr.vmem [resolvable:$true] %s126
      %129 = dma.hbm_to_vmem [thread:$0]  %s125, 64, %s127, [#allocation6]
    $region33: #{combined_forward.1} parent=1 // pred_fallthru
      _
    // Predicated region
    $region34: #{combined_forward.1} parent=1 // pred_check
      _
    $region35: #{combined_forward.1} parent=1 // pred_check_branch
      %131 = sbr.rel (0) target = $region37
    $region36: #{combined_forward.1} parent=1 // pred_region
      _
    $region37: #{combined_forward.1} parent=1 // pred_fallthru
      _
    // Predicated region
    $region38: #{combined_forward.1} parent=1 // pred_check
      _
    $region39: #{combined_forward.1} parent=1 // pred_check_branch
      %133 = sbr.rel (0) target = $region41
    $region40: #{combined_forward.1} parent=1 // pred_region
      _
    $region41: #{combined_forward.1} parent=1 // pred_fallthru
      _
    // Predicated region
    $region42: #{combined_forward.1} parent=1 // pred_check
      _
    $region43: #{combined_forward.1} parent=1 // pred_check_branch
      %135 = sbr.rel (0) target = $region45
    $region44: #{combined_forward.1} parent=1 // pred_region
      _
    $region45: #{combined_forward.1} parent=1 // pred_fallthru
      _
    // Predicated region
    $region46: #{combined_forward.1} parent=1 // pred_check
      _
    $region47: #{combined_forward.1} parent=1 // pred_check_branch
      %137 = sbr.rel (0) target = $region49
    $region48: #{combined_forward.1} parent=1 // pred_region
      _
    $region49: #{combined_forward.1} parent=1 // pred_fallthru
      _
    // Predicated region
    $region50: #{combined_forward.1} parent=1 // pred_check
      _
    $region51: #{combined_forward.1} parent=1 // pred_check_branch
      %139 = sbr.rel (0) target = $region53
    $region52: #{combined_forward.1} parent=1 // pred_region
      _
    $region53: #{combined_forward.1} parent=1 // pred_fallthru
      _
    // Predicated region
    $region54: #{combined_forward.1} parent=1 // pred_check
      _
    $region55: #{combined_forward.1} parent=1 // pred_check_branch
      %141 = sbr.rel (0) target = $region57
    $region56: #{combined_forward.1} parent=1 // pred_region
      _
    $region57: #{combined_forward.1} parent=1 // pred_fallthru
      _
    // Predicated region
    $region58: #{combined_forward.1} parent=1 // pred_check
      _
    $region59: #{combined_forward.1} parent=1 // pred_check_branch
      %143 = sbr.rel (0) target = $region61
    $region60: #{combined_forward.1} parent=1 // pred_region
      _
    $region61: #{combined_forward.1} parent=1 // pred_fallthru
      _
    // Predicated region
    $region62: #{combined_forward.1} parent=1 // pred_check
      _
    $region63: #{combined_forward.1} parent=1 // pred_check_branch
      %145 = sbr.rel (0) target = $region65
    $region64: #{combined_forward.1} parent=1 // pred_region
      _
    $region65: #{combined_forward.1} parent=1 // pred_fallthru
      _
    // Predicated region
    $region66: #{combined_forward.1} parent=1 // pred_check
      _
    $region67: #{combined_forward.1} parent=1 // pred_check_branch
      %147 = sbr.rel (0) target = $region69
    $region68: #{combined_forward.1} parent=1 // pred_region
      %149 = vsyncadd [#allocation9], 0
      %s150 = sshll.u32 %s33, 4
      %s151 = int_to_ptr.hbm [resolvable:$true] %s150
      %s152 = sshll.u32 [#allocation8], 4
      %s153 = int_to_ptr.vmem [resolvable:$true] %s152
      %158 = dma.hbm_to_vmem [thread:$0]  %s151, 512, %s153, [#allocation9], 128, 128, 8
    $region69: #{combined_forward.1} parent=1 // pred_fallthru
      _
    // Predicated region
    $region70: #{combined_forward.1} parent=1 // pred_check
      _
    $region71: #{combined_forward.1} parent=1 // pred_check_branch
      %160 = sbr.rel (0) target = $region73
    $region72: #{combined_forward.1} parent=1 // pred_region
      %162 = vsyncadd [#allocation9], 0
      %s164 = sshll.u32 %s35, 4
      %s165 = int_to_ptr.hbm [resolvable:$true] %s164
      %s166 = sshll.u32 [#allocation10], 4
      %s167 = int_to_ptr.vmem [resolvable:$true] %s166
      %169 = dma.hbm_to_vmem [thread:$0]  %s165, 16, %s167, [#allocation9]
    $region73: #{combined_forward.1} parent=1 // pred_fallthru
      _
    // Predicated region
    $region74: #{combined_forward.1} parent=1 // pred_check
      _
    $region75: #{combined_forward.1} parent=1 // pred_check_branch
      %171 = sbr.rel (0) target = $region77
    $region76: #{combined_forward.1} parent=1 // pred_region
      _
    $region77: #{combined_forward.1} parent=1 // pred_fallthru
      _
    // Predicated region
    $region78: #{combined_forward.1} parent=1 // pred_check
      _
    $region79: #{combined_forward.1} parent=1 // pred_check_branch
      %173 = sbr.rel (0) target = $region81
    $region80: #{combined_forward.1} parent=1 // pred_region
      %175 = vsyncadd [#allocation12], 0
      %s177 = sshll.u32 %s39, 4
      %s178 = int_to_ptr.hbm [resolvable:$true] %s177
      %s179 = sshll.u32 [#allocation11], 4
      %s180 = int_to_ptr.vmem [resolvable:$true] %s179
      %182 = dma.hbm_to_vmem [thread:$0]  %s178, 16, %s180, [#allocation12]
    $region81: #{combined_forward.1} parent=1 // pred_fallthru
      _
    // Predicated region
    $region82: #{combined_forward.1} parent=1 // pred_check
      _
    $region83: #{combined_forward.1} parent=1 // pred_check_branch
      %184 = sbr.rel (0) target = $region85
    $region84: #{combined_forward.1} parent=1 // pred_region
      %186 = vsyncadd [#allocation12], 0
      %s188 = sshll.u32 %s41, 4
      %s189 = int_to_ptr.hbm [resolvable:$true] %s188
      %s190 = sshll.u32 [#allocation13], 4
      %s191 = int_to_ptr.vmem [resolvable:$true] %s190
      %193 = dma.hbm_to_vmem [thread:$0]  %s189, 16, %s191, [#allocation12]
    $region85: #{combined_forward.1} parent=1 // pred_fallthru
      _
    // Predicated region
    $region86: #{combined_forward.1} parent=1 // pred_check
      _
    $region87: #{combined_forward.1} parent=1 // pred_check_branch
      %195 = sbr.rel (0) target = $region89
    $region88: #{combined_forward.1} parent=1 // pred_region
      %197 = vsyncadd [#allocation15], 0
      %s199 = sshll.u32 %s43, 4
      %s200 = int_to_ptr.hbm [resolvable:$true] %s199
      %s201 = sshll.u32 [#allocation14], 4
      %s202 = int_to_ptr.vmem [resolvable:$true] %s201
      %204 = dma.hbm_to_vmem [thread:$0]  %s200, 16, %s202, [#allocation15]
    $region89: #{combined_forward.1} parent=1 // pred_fallthru
      _
    // Predicated region
    $region90: #{combined_forward.1} parent=1 // pred_check
      _
    $region91: #{combined_forward.1} parent=1 // pred_check_branch
      %206 = sbr.rel (0) target = $region93
    $region92: #{combined_forward.1} parent=1 // pred_region
      %208 = vsyncadd [#allocation15], 0
      %s209 = sshll.u32 %s45, 4
      %s210 = int_to_ptr.hbm [resolvable:$true] %s209
      %s211 = sshll.u32 [#allocation16], 4
      %s212 = int_to_ptr.vmem [resolvable:$true] %s211
      %217 = dma.hbm_to_vmem [thread:$0]  %s210, 512, %s212, [#allocation15], 128, 128, 8
    $region93: #{combined_forward.1} parent=1 // pred_fallthru
      _
    // Predicated region
    $region94: #{combined_forward.1} parent=1 // pred_check
      _
    $region95: #{combined_forward.1} parent=1 // pred_check_branch
      %219 = sbr.rel (0) target = $region97
    $region96: #{combined_forward.1} parent=1 // pred_region
      %221 = vsyncadd [#allocation18], 0
      %s223 = sshll.u32 %s47, 4
      %s224 = int_to_ptr.hbm [resolvable:$true] %s223
      %s225 = sshll.u32 [#allocation17], 4
      %s226 = int_to_ptr.vmem [resolvable:$true] %s225
      %228 = dma.hbm_to_vmem [thread:$0]  %s224, 16, %s226, [#allocation18]
    $region97: #{combined_forward.1} parent=1 // pred_fallthru
      _
    // Predicated region
    $region98: #{combined_forward.1} parent=1 // pred_check
      _
    $region99: #{combined_forward.1} parent=1 // pred_check_branch
      %230 = sbr.rel (0) target = $region101
    $region100: #{combined_forward.1} parent=1 // pred_region
      _
    $region101: #{combined_forward.1} parent=1 // pred_fallthru
      _
    // Predicated region
    $region102: #{combined_forward.1} parent=1 // pred_check
      _
    $region103: #{combined_forward.1} parent=1 // pred_check_branch
      %232 = sbr.rel (0) target = $region105
    $region104: #{combined_forward.1} parent=1 // pred_region
      %234 = vsyncadd [#allocation18], 0
      %s235 = sshll.u32 %s51, 4
      %s236 = int_to_ptr.hbm [resolvable:$true] %s235
      %s237 = sshll.u32 [#allocation19], 4
      %s238 = int_to_ptr.vmem [resolvable:$true] %s237
      %243 = dma.hbm_to_vmem [thread:$0]  %s236, 16384, %s238, [#allocation18], 128, 128, 8
    $region105: #{combined_forward.1} parent=1 // pred_fallthru
      _
    // Predicated region
    $region106: #{combined_forward.1} parent=1 // pred_check
      _
    $region107: #{combined_forward.1} parent=1 // pred_check_branch
      %245 = sbr.rel (0) target = $region109
    $region108: #{combined_forward.1} parent=1 // pred_region
      _
    $region109: #{combined_forward.1} parent=1 // pred_fallthru
      _
    // Predicated region
    $region110: #{combined_forward.1} parent=1 // pred_check
      _
    $region111: #{combined_forward.1} parent=1 // pred_check_branch
      %247 = sbr.rel (0) target = $region113
    $region112: #{combined_forward.1} parent=1 // pred_region
      _
    $region113: #{combined_forward.1} parent=1 // pred_fallthru
      _
    // Predicated region
    $region114: #{combined_forward.1} parent=1 // pred_check
      _
    $region115: #{combined_forward.1} parent=1 // pred_check_branch
      %249 = sbr.rel (0) target = $region117
    $region116: #{combined_forward.1} parent=1 // pred_region
      _
    $region117: #{combined_forward.1} parent=1 // pred_fallthru
      _
    // Predicated region
    $region118: #{combined_forward.1} parent=1 // pred_check
      _
    $region119: #{combined_forward.1} parent=1 // pred_check_branch
      %251 = sbr.rel (0) target = $region121
    $region120: #{combined_forward.1} parent=1 // pred_region
      %253 = vsyncadd [#allocation21], 0
      %s254 = sshll.u32 %s59, 4
      %s255 = int_to_ptr.hbm [resolvable:$true] %s254
      %s256 = sshll.u32 [#allocation20], 4
      %s257 = int_to_ptr.vmem [resolvable:$true] %s256
      %262 = dma.hbm_to_vmem [thread:$0]  %s255, 16384, %s257, [#allocation21], 128, 128, 8
    $region121: #{combined_forward.1} parent=1 // pred_fallthru
      _
    // Predicated region
    $region122: #{combined_forward.1} parent=1 // pred_check
      _
    $region123: #{combined_forward.1} parent=1 // pred_check_branch
      %264 = sbr.rel (0) target = $region125
    $region124: #{combined_forward.1} parent=1 // pred_region
      %266 = vsyncadd [#allocation21], 0
      %s267 = sshll.u32 %s61, 4
      %s268 = int_to_ptr.hbm [resolvable:$true] %s267
      %s269 = sshll.u32 [#allocation22], 4
      %s270 = int_to_ptr.vmem [resolvable:$true] %s269
      %275 = dma.hbm_to_vmem [thread:$0]  %s268, 256, %s270, [#allocation21], 128, 128, 8
    $region125: #{combined_forward.1} parent=1 // pred_fallthru
      _
    // Predicated region
    $region126: #{combined_forward.1} parent=1 // pred_check
      _
    $region127: #{combined_forward.1} parent=1 // pred_check_branch
      %277 = sbr.rel (0) target = $region129
    $region128: #{combined_forward.1} parent=1 // pred_region
      _
    $region129: #{combined_forward.1} parent=1 // pred_fallthru
      _
    // Predicated region
    $region130: #{combined_forward.1} parent=1 // pred_check
      _
    $region131: #{combined_forward.1} parent=1 // pred_check_branch
      %279 = sbr.rel (0) target = $region133
    $region132: #{combined_forward.1} parent=1 // pred_region
      _
    $region133: #{combined_forward.1} parent=1 // pred_fallthru
      _
    // Predicated region
    $region134: #{combined_forward.1} parent=1 // pred_check
      _
    $region135: #{combined_forward.1} parent=1 // pred_check_branch
      %281 = sbr.rel (0) target = $region137
    $region136: #{combined_forward.1} parent=1 // pred_region
      %283 = dma.done [#allocation3], 512
    $region137: #{combined_forward.1} parent=1 // pred_fallthru
      _
    // Predicated region
    $region138: #{combined_forward.1} parent=1 // pred_check
      _
    $region139: #{combined_forward.1} parent=1 // pred_check_branch
      %285 = sbr.rel (0) target = $region141
    $region140: #{combined_forward.1} parent=1 // pred_region
      %287 = dma.done [#allocation6], 512
    $region141: #{combined_forward.1} parent=1 // pred_fallthru
      _
    // Predicated region
    $region142: #{combined_forward.1} parent=1 // pred_check
      _
    $region143: #{combined_forward.1} parent=1 // pred_check_branch
      %289 = sbr.rel (0) target = $region145
    $region144: #{combined_forward.1} parent=1 // pred_region
      %291 = dma.done [#allocation6], 64
    $region145: #{combined_forward.1} parent=1 // pred_fallthru
      _
    // Predicated region
    $region146: #{combined_forward.1} parent=1 // pred_check
      _
    $region147: #{combined_forward.1} parent=1 // pred_check_branch
      %293 = sbr.rel (0) target = $region149
    $region148: #{combined_forward.1} parent=1 // pred_region
      %295 = dma.done [#allocation9], 512
    $region149: #{combined_forward.1} parent=1 // pred_fallthru
      _
    // Predicated region
    $region150: #{combined_forward.1} parent=1 // pred_check
      _
    $region151: #{combined_forward.1} parent=1 // pred_check_branch
      %297 = sbr.rel (0) target = $region153
    $region152: #{combined_forward.1} parent=1 // pred_region
      %299 = dma.done [#allocation9], 16
    $region153: #{combined_forward.1} parent=1 // pred_fallthru
      _
    // Predicated region
    $region154: #{combined_forward.1} parent=1 // pred_check
      _
    $region155: #{combined_forward.1} parent=1 // pred_check_branch
      %301 = sbr.rel (0) target = $region157
    $region156: #{combined_forward.1} parent=1 // pred_region
      %303 = dma.done [#allocation12], 16
    $region157: #{combined_forward.1} parent=1 // pred_fallthru
      _
    // Predicated region
    $region158: #{combined_forward.1} parent=1 // pred_check
      _
    $region159: #{combined_forward.1} parent=1 // pred_check_branch
      %305 = sbr.rel (0) target = $region161
    $region160: #{combined_forward.1} parent=1 // pred_region
      %307 = dma.done [#allocation12], 16
    $region161: #{combined_forward.1} parent=1 // pred_fallthru
      _
    // Predicated region
    $region162: #{combined_forward.1} parent=1 // pred_check
      _
    $region163: #{combined_forward.1} parent=1 // pred_check_branch
      %309 = sbr.rel (0) target = $region165
    $region164: #{combined_forward.1} parent=1 // pred_region
      %311 = dma.done [#allocation15], 16
    $region165: #{combined_forward.1} parent=1 // pred_fallthru
      _
    // Predicated region
    $region166: #{combined_forward.1} parent=1 // pred_check
      _
    $region167: #{combined_forward.1} parent=1 // pred_check_branch
      %313 = sbr.rel (0) target = $region169
    $region168: #{combined_forward.1} parent=1 // pred_region
      %315 = dma.done [#allocation15], 512
    $region169: #{combined_forward.1} parent=1 // pred_fallthru
      _
    // Predicated region
    $region170: #{combined_forward.1} parent=1 // pred_check
      _
    $region171: #{combined_forward.1} parent=1 // pred_check_branch
      %317 = sbr.rel (0) target = $region173
    $region172: #{combined_forward.1} parent=1 // pred_region
      %319 = dma.done [#allocation18], 16
    $region173: #{combined_forward.1} parent=1 // pred_fallthru
      _
    // Predicated region
    $region174: #{combined_forward.1} parent=1 // pred_check
      _
    $region175: #{combined_forward.1} parent=1 // pred_check_branch
      %321 = sbr.rel (0) target = $region177
    $region176: #{combined_forward.1} parent=1 // pred_region
      %323 = dma.done [#allocation18], 16384
    $region177: #{combined_forward.1} parent=1 // pred_fallthru
      _
    // Predicated region
    $region178: #{combined_forward.1} parent=1 // pred_check
      _
    $region179: #{combined_forward.1} parent=1 // pred_check_branch
      %325 = sbr.rel (0) target = $region181
    $region180: #{combined_forward.1} parent=1 // pred_region
      %327 = dma.done [#allocation21], 16384
    $region181: #{combined_forward.1} parent=1 // pred_fallthru
      _
    // Predicated region
    $region182: #{combined_forward.1} parent=1 // pred_check
      _
    $region183: #{combined_forward.1} parent=1 // pred_check_branch
      %329 = sbr.rel (0) target = $region185
    $region184: #{combined_forward.1} parent=1 // pred_region
      %331 = dma.done [#allocation21], 256
    $region185: #{combined_forward.1} parent=1 // pred_fallthru
      _
    %v332 = vld [vmem:[%s1] sm:$0xff]
    %v333 = vld [vmem:[%s1 + $0x8] sm:$0xff]
    %v334 = vlaneseq
    %v335 = vand.u32 %v334, 127
    %336 = vset.pattern.permute.xlu0 0
    %337 = vperm.xlu0 %336, %v332
    %v338 = vpop.permute.xlu0 %337
    %339 = vset.pattern.permute.xlu0 0
    %340 = vperm.xlu0 %339, %v333
    %v341 = vpop.permute.xlu0 %340
    %vm342 = vcmp.eq.s32.totalorder %v335, %v338
    %vm343 = vcmp.eq.s32.totalorder %v335, %v341
    %v344 = vsel %vm342, 1.0, 0.0
    %v345 = vsel %vm343, 1.0, 0.0
    %v346 = vld [vmem:[%s3] sm:$0xff]
    %v347 = vld [vmem:[%s3 + $0x8] sm:$0xff]
    %v348 = vld [vmem:[%s3 + $0x10] sm:$0xff]
    %v349 = vld [vmem:[%s3 + $0x18] sm:$0xff]
    %v350 = vld [vmem:[%s3 + $0x20] sm:$0xff]
    %v351 = vld [vmem:[%s3 + $0x28] sm:$0xff]
    %v352 = vld [vmem:[%s3 + $0x30] sm:$0x3]
    %vm353 = vcmask 408576
    %v355 = vsel %vm353, %v344, 0
    %v358 = vsel %vm353, %v345, 0
    %vm360 = vcmask 1041408
    %v362 = vsel %vm360, %v352, 0
    %364 = vmatpush.msra.mxu0 0.0
    %365 = vmatpush.msra.mxu0 0.0
    %366 = vmatpush.msra.mxu0 0.0
    %367 = vmatpush.msra.mxu0 0.0
    %368 = vmatpush.msra.mxu0 0.0
    %369 = vmatpush.msra.mxu0 0.0
    %370 = vmatpush.msra.mxu0 0.0
    %371 = vmatpush.msra.mxu0 0.0
    %372 = vmatpush.msra.mxu0 0.0
    %373 = vmatpush.msra.mxu0 %v362
    %374 = vmatpush.msra.mxu0 %v351
    %375 = vmatpush.msra.mxu0 %v350
    %376 = vmatpush.msra.mxu0 %v349
    %377 = vmatpush.msra.mxu0 %v348
    %378 = vmatpush.msra.mxu0 %v347
    %379 = vmatpush.msra.mxu0 %v346
    %380 = vmatmul.f32.gmra.mxu0 %v355
    %v381 = vpop.f32.mrf.mxu0
    %v382 = vadd.f32 0.0, %v381
    %383 = vmatmul.f32.gmra.mxu0 %v358
    %v384 = vpop.f32.mrf.mxu0
    %v385 = vadd.f32 0.0, %v384
    %386 = vdwg.mxu0
    %v387 = vld [vmem:[%s5] sm:$0xff]
    %v388 = vadd.f32 %v382, %v387
    %v389 = vadd.f32 %v385, %v387
    %vm390 = vcmask 261120
    %v391 = vsel %vm390, %v388, 0.0
    %392 = vadd.xlane.f32.xlu0 %v391
    %v393 = vpop.xlane.xlu0 %392
    %v394 = vsel %vm390, %v389, 0.0
    %395 = vadd.xlane.f32.xlu0 %v394
    %v396 = vpop.xlane.xlu0 %395
    %v397 = vrcp.pop 32.0
    %v398 = vmul.f32 32.0, %v397
    %v399 = vsub.f32 1.0, %v398
    %v400 = vmul.f32 %v397, %v399
    %v401 = vadd.f32 %v397, %v400
    %vm402 = vweird.f32 %v397
    %v403 = vsel %vm402, %v397, %v401
    %v404 = vmul.f32 %v393, %v403
    %v405 = vmul.f32 %v396, %v403
    %v406 = vsub.f32 %v388, %v404
    %v407 = vsub.f32 %v389, %v405
    %v408 = vmul.f32 %v406, %v406
    %v409 = vmul.f32 %v407, %v407
    %v410 = vsel %vm390, %v408, 0.0
    %411 = vadd.xlane.f32.xlu0 %v410
    %v412 = vpop.xlane.xlu0 %411
    %v413 = vsel %vm390, %v409, 0.0
    %414 = vadd.xlane.f32.xlu0 %v413
    %v415 = vpop.xlane.xlu0 %414
    %v416 = vmul.f32 %v412, %v403
    %v417 = vmul.f32 %v415, %v403
    %v418 = vadd.f32 %v416, 1e-12
    %v419 = vadd.f32 %v417, 1e-12
    %v420 = vrsqrt.pop %v418
    %v421 = vmul.f32 %v420, %v418
    %v422 = vmul.f32 %v421, %v420
    %v423 = vmul.f32 0.5, %v422
    %v424 = vsub.f32 1.5, %v423
    %v425 = vmul.f32 %v420, %v424
    %vm426 = vweird.f32 %v418
    %vm427 = vweird.f32 %v420
    %vm428 = vmor %vm426, %vm427
    %v429 = vsel %vm428, %v420, %v425
    %v430 = vrsqrt.pop %v419
    %v431 = vmul.f32 %v430, %v419
    %v432 = vmul.f32 %v431, %v430
    %v433 = vmul.f32 0.5, %v432
    %v434 = vsub.f32 1.5, %v433
    %v435 = vmul.f32 %v430, %v434
    %vm436 = vweird.f32 %v419
    %vm437 = vweird.f32 %v430
    %vm438 = vmor %vm436, %vm437
    %v439 = vsel %vm438, %v430, %v435
    %v440 = vmul.f32 %v406, %v429
    %v441 = vmul.f32 %v407, %v439
    %v442 = vld [vmem:[%s7] sm:$0x1]
    %v444 = vperm.slane %v442, 0
    %v446 = vmul.f32 %v440, %v444
    %v447 = vmul.f32 %v441, %v444
    %v448 = vld [vmem:[%s9] sm:$0x1]
    %v450 = vperm.slane %v448, 0
    %v452 = vadd.f32 %v446, %v450
    %v453 = vadd.f32 %v447, %v450
    %v454 = vld [vmem:[#allocation2] sm:$0xff]
    %v455 = vld [vmem:[#allocation2 + $0x8] sm:$0xff]
    %v456 = vld [vmem:[#allocation2 + $0x10] sm:$0xff]
    %v457 = vld [vmem:[#allocation2 + $0x18] sm:$0xff]
    %v459 = vsel %vm390, %v452, 0
    %v462 = vsel %vm390, %v453, 0
    %464 = vmatpush.msra.mxu0 0.0
    %465 = vmatpush.msra.mxu0 0.0
    %466 = vmatpush.msra.mxu0 0.0
    %467 = vmatpush.msra.mxu0 0.0
    %468 = vmatpush.msra.mxu0 0.0
    %469 = vmatpush.msra.mxu0 0.0
    %470 = vmatpush.msra.mxu0 0.0
    %471 = vmatpush.msra.mxu0 0.0
    %472 = vmatpush.msra.mxu0 0.0
    %473 = vmatpush.msra.mxu0 0.0
    %474 = vmatpush.msra.mxu0 0.0
    %475 = vmatpush.msra.mxu0 0.0
    %476 = vmatpush.msra.mxu0 %v457
    %477 = vmatpush.msra.mxu0 %v456
    %478 = vmatpush.msra.mxu0 %v455
    %479 = vmatpush.msra.mxu0 %v454
    %480 = vmatmul.f32.gmra.mxu0 %v459
    %v481 = vpop.f32.mrf.mxu0
    %v482 = vadd.f32 0.0, %v481
    %483 = vmatmul.f32.gmra.mxu0 %v462
    %v484 = vpop.f32.mrf.mxu0
    %v485 = vadd.f32 0.0, %v484
    %486 = vdwg.mxu0
    %v487 = vld [vmem:[#allocation5] sm:$0xff]
    %v488 = vld [vmem:[#allocation5 + $0x8] sm:$0xff]
    %v489 = vld [vmem:[#allocation5 + $0x10] sm:$0xff]
    %v490 = vld [vmem:[#allocation5 + $0x18] sm:$0xff]
    %491 = vmatpush.msra.mxu0 0.0
    %492 = vmatpush.msra.mxu0 0.0
    %493 = vmatpush.msra.mxu0 0.0
    %494 = vmatpush.msra.mxu0 0.0
    %495 = vmatpush.msra.mxu0 0.0
    %496 = vmatpush.msra.mxu0 0.0
    %497 = vmatpush.msra.mxu0 0.0
    %498 = vmatpush.msra.mxu0 0.0
    %499 = vmatpush.msra.mxu0 0.0
    %500 = vmatpush.msra.mxu0 0.0
    %501 = vmatpush.msra.mxu0 0.0
    %502 = vmatpush.msra.mxu0 0.0
    %503 = vmatpush.msra.mxu0 %v490
    %504 = vmatpush.msra.mxu0 %v489
    %505 = vmatpush.msra.mxu0 %v488
    %506 = vmatpush.msra.mxu0 %v487
    %507 = vmatmul.f32.gmra.mxu0 %v459
    %v508 = vpop.f32.mrf.mxu0
    %v509 = vadd.f32 0.0, %v508
    %510 = vmatmul.f32.gmra.mxu0 %v462
    %v511 = vpop.f32.mrf.mxu0
    %v512 = vadd.f32 0.0, %v511
    %513 = vdwg.mxu0
    %v516 = vrot.slane %v482, 5
    %v517 = vrot.slane %v485, 5
    %vm520 = vcmask 1042432
    %v521 = vsel %vm520, 0.0, %v516
    %v522 = vsel %vm520, 0.0, %v517
    %v523 = vld [vmem:[#allocation7] sm:$0xf]
    %v524 = vperm.slane %v523, 0
    %v525 = vmul.f32 %v521, %v524
    %v526 = vmul.f32 %v522, %v524
    %v527 = vadd.f32 %v525, 0.0
    %v528 = vadd.f32 %v526, 0.0
    %v529 = vperm.slane %v523, 1
    %v530 = vmul.f32 %v521, %v529
    %v531 = vmul.f32 %v516, %v529
    %v532 = vmul.f32 %v522, %v529
    %v533 = vmul.f32 %v517, %v529
    %vm538 = vcmask 1046528
    %v539 = vrot.slane %v530, 1
    %v540 = vrot.slane %v531, 1
    %v541 = vsel %vm538, %v539, %v540
    %v542 = vrot.slane %v532, 1
    %v543 = vrot.slane %v533, 1
    %v544 = vsel %vm538, %v542, %v543
    %v547 = vadd.f32 %v527, %v541
    %v548 = vadd.f32 %v528, %v544
    %v549 = vperm.slane %v523, 2
    %v550 = vmul.f32 %v521, %v549
    %v551 = vmul.f32 %v516, %v549
    %v552 = vmul.f32 %v522, %v549
    %v553 = vmul.f32 %v517, %v549
    %vm558 = vcmask 1045504
    %v559 = vrot.slane %v550, 2
    %v560 = vrot.slane %v551, 2
    %v561 = vsel %vm558, %v559, %v560
    %v562 = vrot.slane %v552, 2
    %v563 = vrot.slane %v553, 2
    %v564 = vsel %vm558, %v562, %v563
    %v567 = vadd.f32 %v547, %v561
    %v568 = vadd.f32 %v548, %v564
    %v569 = vperm.slane %v523, 3
    %v570 = vmul.f32 %v521, %v569
    %v571 = vmul.f32 %v516, %v569
    %v572 = vmul.f32 %v522, %v569
    %v573 = vmul.f32 %v517, %v569
    %vm578 = vcmask 1044480
    %v579 = vrot.slane %v570, 3
    %v580 = vrot.slane %v571, 3
    %v581 = vsel %vm578, %v579, %v580
    %v582 = vrot.slane %v572, 3
    %v583 = vrot.slane %v573, 3
    %v584 = vsel %vm578, %v582, %v583
    %v587 = vadd.f32 %v567, %v581
    %v588 = vadd.f32 %v568, %v584
    %v589 = vld [vmem:[%s17] sm:$0x1]
    %v591 = vperm.slane %v589, 0
    %v593 = vadd.f32 %v587, %v591
    %v594 = vadd.f32 %v588, %v591
    %v595 = vsub.f32 0.0, %v593
    %v596 = vsub.f32 0.0, %v594
    %v597 = vmul.f32 %v595, 1.442695
    %v598 = vpow.pop %v597
    %v599 = vmul.f32 %v596, 1.442695
    %v600 = vpow.pop %v599
    %v601 = vadd.f32 %v598, 1.0
    %v602 = vadd.f32 %v600, 1.0
    %v603 = vrcp.pop %v601
    %v604 = vrcp.pop %v602
    %v605 = vmul.f32 %v593, %v603
    %v606 = vmul.f32 %v594, %v604
    %v607 = vld [vmem:[%s19] sm:$0xff]
    %v608 = vld [vmem:[%s19 + $0x8] sm:$0xff]
    %v609 = vld [vmem:[%s19 + $0x10] sm:$0xff]
    %v610 = vld [vmem:[%s19 + $0x18] sm:$0xff]
    %v611 = vld [vmem:[%s19 + $0x20] sm:$0xff]
    %v612 = vld [vmem:[%s19 + $0x28] sm:$0xff]
    %v613 = vld [vmem:[%s19 + $0x30] sm:$0xff]
    %v614 = vld [vmem:[%s19 + $0x38] sm:$0xff]
    %vm615 = vcmask 523264
    %v617 = vsel %vm615, %v605, 0
    %v620 = vsel %vm615, %v606, 0
    %622 = vmatpush.msra.mxu0 0.0
    %623 = vmatpush.msra.mxu0 0.0
    %624 = vmatpush.msra.mxu0 0.0
    %625 = vmatpush.msra.mxu0 0.0
    %626 = vmatpush.msra.mxu0 0.0
    %627 = vmatpush.msra.mxu0 0.0
    %628 = vmatpush.msra.mxu0 0.0
    %629 = vmatpush.msra.mxu0 0.0
    %630 = vmatpush.msra.mxu0 %v614
    %631 = vmatpush.msra.mxu0 %v613
    %632 = vmatpush.msra.mxu0 %v612
    %633 = vmatpush.msra.mxu0 %v611
    %634 = vmatpush.msra.mxu0 %v610
    %635 = vmatpush.msra.mxu0 %v609
    %636 = vmatpush.msra.mxu0 %v608
    %637 = vmatpush.msra.mxu0 %v607
    %638 = vmatmul.f32.gmra.mxu0 %v617
    %v639 = vpop.f32.mrf.mxu0
    %v640 = vadd.f32 0.0, %v639
    %641 = vmatmul.f32.gmra.mxu0 %v620
    %v642 = vpop.f32.mrf.mxu0
    %v643 = vadd.f32 0.0, %v642
    %644 = vdwg.mxu0
    %v645 = vld [vmem:[%s21] sm:$0x1]
    %v647 = vperm.slane %v645, 0
    %v649 = vadd.f32 %v640, %v647
    %v650 = vadd.f32 %v643, %v647
    %v651 = vmax.f32 %v649, 0.0
    %v652 = vmax.f32 %v650, 0.0
    %v653 = vand.u32 2147483647, %v649
    %v654 = vand.u32 2147483647, %v650
    %v655 = vsub.f32 0.0, %v653
    %v656 = vsub.f32 0.0, %v654
    %v657 = vmul.f32 %v655, 1.442695
    %v658 = vpow.pop %v657
    %v659 = vmul.f32 %v656, 1.442695
    %v660 = vpow.pop %v659
    %v661 = vadd.f32 %v658, 1.0
    %v662 = vadd.f32 %v660, 1.0
    %v663 = vlog2.pop %v661
    %v664 = vmul.f32 %v663, 0.6931472
    %v665 = vlog2.pop %v662
    %v666 = vmul.f32 %v665, 0.6931472
    %v667 = vadd.f32 %v651, %v664
    %v668 = vadd.f32 %v652, %v666
    %v669 = vld [vmem:[%s23] sm:$0xff]
    %v670 = vld [vmem:[%s23 + $0x8] sm:$0xff]
    %v671 = vld [vmem:[%s25] sm:$0x1]
    %v674 = vrot.slane %v667, 1
    %v675 = vrot.slane %v667, 2
    %v676 = vrot.slane %v667, 3
    %v677 = vrot.slane %v667, 4
    %v678 = vrot.slane %v667, 5
    %v679 = vrot.slane %v667, 6
    %v680 = vrot.slane %v667, 7
    %v681 = vrot.slane %v668, 1
    %v682 = vrot.slane %v668, 2
    %v683 = vrot.slane %v668, 3
    %v684 = vrot.slane %v668, 4
    %v685 = vrot.slane %v668, 5
    %v686 = vrot.slane %v668, 6
    %v687 = vrot.slane %v668, 7
    %v688 = vperm.slane %v667, 0
    %v689 = vperm.slane %v674, 0
    %v690 = vperm.slane %v675, 0
    %v691 = vperm.slane %v676, 0
    %v692 = vperm.slane %v677, 0
    %v693 = vperm.slane %v678, 0
    %v694 = vperm.slane %v679, 0
    %v695 = vperm.slane %v680, 0
    %v696 = vperm.slane %v668, 0
    %v697 = vperm.slane %v681, 0
    %v698 = vperm.slane %v682, 0
    %v699 = vperm.slane %v683, 0
    %v700 = vperm.slane %v684, 0
    %v701 = vperm.slane %v685, 0
    %v702 = vperm.slane %v686, 0
    %v703 = vperm.slane %v687, 0
    %v720 = vmul.f32 %v688, %v669
    %v721 = vmul.f32 %v688, %v670
    %v722 = vmul.f32 %v689, %v669
    %v723 = vmul.f32 %v689, %v670
    %v724 = vmul.f32 %v690, %v669
    %v725 = vmul.f32 %v690, %v670
    %v726 = vmul.f32 %v691, %v669
    %v727 = vmul.f32 %v691, %v670
    %v728 = vmul.f32 %v692, %v669
    %v729 = vmul.f32 %v692, %v670
    %v730 = vmul.f32 %v693, %v669
    %v731 = vmul.f32 %v693, %v670
    %v732 = vmul.f32 %v694, %v669
    %v733 = vmul.f32 %v694, %v670
    %v734 = vmul.f32 %v695, %v669
    %v735 = vmul.f32 %v695, %v670
    %v736 = vmul.f32 %v696, %v669
    %v737 = vmul.f32 %v696, %v670
    %v738 = vmul.f32 %v697, %v669
    %v739 = vmul.f32 %v697, %v670
    %v740 = vmul.f32 %v698, %v669
    %v741 = vmul.f32 %v698, %v670
    %v742 = vmul.f32 %v699, %v669
    %v743 = vmul.f32 %v699, %v670
    %v744 = vmul.f32 %v700, %v669
    %v745 = vmul.f32 %v700, %v670
    %v746 = vmul.f32 %v701, %v669
    %v747 = vmul.f32 %v701, %v670
    %v748 = vmul.f32 %v702, %v669
    %v749 = vmul.f32 %v702, %v670
    %v750 = vmul.f32 %v703, %v669
    %v751 = vmul.f32 %v703, %v670
    %v752 = vmul.f32 %v720, 1.442695
    %v753 = vpow.pop %v752
    %v754 = vmul.f32 %v721, 1.442695
    %v755 = vpow.pop %v754
    %v756 = vmul.f32 %v722, 1.442695
    %v757 = vpow.pop %v756
    %v758 = vmul.f32 %v723, 1.442695
    %v759 = vpow.pop %v758
    %v760 = vmul.f32 %v724, 1.442695
    %v761 = vpow.pop %v760
    %v762 = vmul.f32 %v725, 1.442695
    %v763 = vpow.pop %v762
    %v764 = vmul.f32 %v726, 1.442695
    %v765 = vpow.pop %v764
    %v766 = vmul.f32 %v727, 1.442695
    %v767 = vpow.pop %v766
    %v768 = vmul.f32 %v728, 1.442695
    %v769 = vpow.pop %v768
    %v770 = vmul.f32 %v729, 1.442695
    %v771 = vpow.pop %v770
    %v772 = vmul.f32 %v730, 1.442695
    %v773 = vpow.pop %v772
    %v774 = vmul.f32 %v731, 1.442695
    %v775 = vpow.pop %v774
    %v776 = vmul.f32 %v732, 1.442695
    %v777 = vpow.pop %v776
    %v778 = vmul.f32 %v733, 1.442695
    %v779 = vpow.pop %v778
    %v780 = vmul.f32 %v734, 1.442695
    %v781 = vpow.pop %v780
    %v782 = vmul.f32 %v735, 1.442695
    %v783 = vpow.pop %v782
    %v784 = vmul.f32 %v736, 1.442695
    %v785 = vpow.pop %v784
    %v786 = vmul.f32 %v737, 1.442695
    %v787 = vpow.pop %v786
    %v788 = vmul.f32 %v738, 1.442695
    %v789 = vpow.pop %v788
    %v790 = vmul.f32 %v739, 1.442695
    %v791 = vpow.pop %v790
    %v792 = vmul.f32 %v740, 1.442695
    %v793 = vpow.pop %v792
    %v794 = vmul.f32 %v741, 1.442695
    %v795 = vpow.pop %v794
    %v796 = vmul.f32 %v742, 1.442695
    %v797 = vpow.pop %v796
    %v798 = vmul.f32 %v743, 1.442695
    %v799 = vpow.pop %v798
    %v800 = vmul.f32 %v744, 1.442695
    %v801 = vpow.pop %v800
    %v802 = vmul.f32 %v745, 1.442695
    %v803 = vpow.pop %v802
    %v804 = vmul.f32 %v746, 1.442695
    %v805 = vpow.pop %v804
    %v806 = vmul.f32 %v747, 1.442695
    %v807 = vpow.pop %v806
    %v808 = vmul.f32 %v748, 1.442695
    %v809 = vpow.pop %v808
    %v810 = vmul.f32 %v749, 1.442695
    %v811 = vpow.pop %v810
    %v812 = vmul.f32 %v750, 1.442695
    %v813 = vpow.pop %v812
    %v814 = vmul.f32 %v751, 1.442695
    %v815 = vpow.pop %v814
    %v816 = vmul.f32 %v667, %v605
    %v817 = vmul.f32 %v668, %v606
    %v820 = vrot.slane %v816, 1
    %v821 = vrot.slane %v816, 2
    %v822 = vrot.slane %v816, 3
    %v823 = vrot.slane %v816, 4
    %v824 = vrot.slane %v816, 5
    %v825 = vrot.slane %v816, 6
    %v826 = vrot.slane %v816, 7
    %v827 = vrot.slane %v817, 1
    %v828 = vrot.slane %v817, 2
    %v829 = vrot.slane %v817, 3
    %v830 = vrot.slane %v817, 4
    %v831 = vrot.slane %v817, 5
    %v832 = vrot.slane %v817, 6
    %v833 = vrot.slane %v817, 7
    %v834 = vperm.slane %v640, 0
    %v835 = vlaneseq
    %v836 = vshrl.u32 %v835, 7
    %v837 = vadd.s32 %v836, 64
    %838 = vset.pattern.permute.xlu0 %v837
    %839 = vperm.xlu0 %838, %v834
    %v840 = vpop.permute.xlu0 %839
    %v841 = vlaneseq
    %v842 = vshrl.u32 %v841, 7
    %v843 = vadd.s32 %v842, 72
    %844 = vset.pattern.permute.xlu0 %v843
    %845 = vperm.xlu0 %844, %v834
    %v846 = vpop.permute.xlu0 %845
    %v847 = vperm.slane %v640, 1
    %v848 = vlaneseq
    %v849 = vshrl.u32 %v848, 7
    %v850 = vadd.s32 %v849, 64
    %851 = vset.pattern.permute.xlu0 %v850
    %852 = vperm.xlu0 %851, %v847
    %v853 = vpop.permute.xlu0 %852
    %v854 = vlaneseq
    %v855 = vshrl.u32 %v854, 7
    %v856 = vadd.s32 %v855, 72
    %857 = vset.pattern.permute.xlu0 %v856
    %858 = vperm.xlu0 %857, %v847
    %v859 = vpop.permute.xlu0 %858
    %v860 = vperm.slane %v640, 2
    %v861 = vlaneseq
    %v862 = vshrl.u32 %v861, 7
    %v863 = vadd.s32 %v862, 64
    %864 = vset.pattern.permute.xlu0 %v863
    %865 = vperm.xlu0 %864, %v860
    %v866 = vpop.permute.xlu0 %865
    %v867 = vlaneseq
    %v868 = vshrl.u32 %v867, 7
    %v869 = vadd.s32 %v868, 72
    %870 = vset.pattern.permute.xlu0 %v869
    %871 = vperm.xlu0 %870, %v860
    %v872 = vpop.permute.xlu0 %871
    %v873 = vperm.slane %v640, 3
    %v874 = vlaneseq
    %v875 = vshrl.u32 %v874, 7
    %v876 = vadd.s32 %v875, 64
    %877 = vset.pattern.permute.xlu0 %v876
    %878 = vperm.xlu0 %877, %v873
    %v879 = vpop.permute.xlu0 %878
    %v880 = vlaneseq
    %v881 = vshrl.u32 %v880, 7
    %v882 = vadd.s32 %v881, 72
    %883 = vset.pattern.permute.xlu0 %v882
    %884 = vperm.xlu0 %883, %v873
    %v885 = vpop.permute.xlu0 %884
    %v886 = vperm.slane %v640, 4
    %v887 = vlaneseq
    %v888 = vshrl.u32 %v887, 7
    %v889 = vadd.s32 %v888, 64
    %890 = vset.pattern.permute.xlu0 %v889
    %891 = vperm.xlu0 %890, %v886
    %v892 = vpop.permute.xlu0 %891
    %v893 = vlaneseq
    %v894 = vshrl.u32 %v893, 7
    %v895 = vadd.s32 %v894, 72
    %896 = vset.pattern.permute.xlu0 %v895
    %897 = vperm.xlu0 %896, %v886
    %v898 = vpop.permute.xlu0 %897
    %v899 = vperm.slane %v640, 5
    %v900 = vlaneseq
    %v901 = vshrl.u32 %v900, 7
    %v902 = vadd.s32 %v901, 64
    %903 = vset.pattern.permute.xlu0 %v902
    %904 = vperm.xlu0 %903, %v899
    %v905 = vpop.permute.xlu0 %904
    %v906 = vlaneseq
    %v907 = vshrl.u32 %v906, 7
    %v908 = vadd.s32 %v907, 72
    %909 = vset.pattern.permute.xlu0 %v908
    %910 = vperm.xlu0 %909, %v899
    %v911 = vpop.permute.xlu0 %910
    %v912 = vperm.slane %v640, 6
    %v913 = vlaneseq
    %v914 = vshrl.u32 %v913, 7
    %v915 = vadd.s32 %v914, 64
    %916 = vset.pattern.permute.xlu0 %v915
    %917 = vperm.xlu0 %916, %v912
    %v918 = vpop.permute.xlu0 %917
    %v919 = vlaneseq
    %v920 = vshrl.u32 %v919, 7
    %v921 = vadd.s32 %v920, 72
    %922 = vset.pattern.permute.xlu0 %v921
    %923 = vperm.xlu0 %922, %v912
    %v924 = vpop.permute.xlu0 %923
    %v925 = vperm.slane %v640, 7
    %v926 = vlaneseq
    %v927 = vshrl.u32 %v926, 7
    %v928 = vadd.s32 %v927, 64
    %929 = vset.pattern.permute.xlu0 %v928
    %930 = vperm.xlu0 %929, %v925
    %v931 = vpop.permute.xlu0 %930
    %v932 = vlaneseq
    %v933 = vshrl.u32 %v932, 7
    %v934 = vadd.s32 %v933, 72
    %935 = vset.pattern.permute.xlu0 %v934
    %936 = vperm.xlu0 %935, %v925
    %v937 = vpop.permute.xlu0 %936
    %v938 = vperm.slane %v643, 0
    %v939 = vlaneseq
    %v940 = vshrl.u32 %v939, 7
    %v941 = vadd.s32 %v940, 64
    %942 = vset.pattern.permute.xlu0 %v941
    %943 = vperm.xlu0 %942, %v938
    %v944 = vpop.permute.xlu0 %943
    %v945 = vlaneseq
    %v946 = vshrl.u32 %v945, 7
    %v947 = vadd.s32 %v946, 72
    %948 = vset.pattern.permute.xlu0 %v947
    %949 = vperm.xlu0 %948, %v938
    %v950 = vpop.permute.xlu0 %949
    %v951 = vperm.slane %v643, 1
    %v952 = vlaneseq
    %v953 = vshrl.u32 %v952, 7
    %v954 = vadd.s32 %v953, 64
    %955 = vset.pattern.permute.xlu0 %v954
    %956 = vperm.xlu0 %955, %v951
    %v957 = vpop.permute.xlu0 %956
    %v958 = vlaneseq
    %v959 = vshrl.u32 %v958, 7
    %v960 = vadd.s32 %v959, 72
    %961 = vset.pattern.permute.xlu0 %v960
    %962 = vperm.xlu0 %961, %v951
    %v963 = vpop.permute.xlu0 %962
    %v964 = vperm.slane %v643, 2
    %v965 = vlaneseq
    %v966 = vshrl.u32 %v965, 7
    %v967 = vadd.s32 %v966, 64
    %968 = vset.pattern.permute.xlu0 %v967
    %969 = vperm.xlu0 %968, %v964
    %v970 = vpop.permute.xlu0 %969
    %v971 = vlaneseq
    %v972 = vshrl.u32 %v971, 7
    %v973 = vadd.s32 %v972, 72
    %974 = vset.pattern.permute.xlu0 %v973
    %975 = vperm.xlu0 %974, %v964
    %v976 = vpop.permute.xlu0 %975
    %v977 = vperm.slane %v643, 3
    %v978 = vlaneseq
    %v979 = vshrl.u32 %v978, 7
    %v980 = vadd.s32 %v979, 64
    %981 = vset.pattern.permute.xlu0 %v980
    %982 = vperm.xlu0 %981, %v977
    %v983 = vpop.permute.xlu0 %982
    %v984 = vlaneseq
    %v985 = vshrl.u32 %v984, 7
    %v986 = vadd.s32 %v985, 72
    %987 = vset.pattern.permute.xlu0 %v986
    %988 = vperm.xlu0 %987, %v977
    %v989 = vpop.permute.xlu0 %988
    %v990 = vperm.slane %v643, 4
    %v991 = vlaneseq
    %v992 = vshrl.u32 %v991, 7
    %v993 = vadd.s32 %v992, 64
    %994 = vset.pattern.permute.xlu0 %v993
    %995 = vperm.xlu0 %994, %v990
    %v996 = vpop.permute.xlu0 %995
    %v997 = vlaneseq
    %v998 = vshrl.u32 %v997, 7
    %v999 = vadd.s32 %v998, 72
    %1000 = vset.pattern.permute.xlu0 %v999
    %1001 = vperm.xlu0 %1000, %v990
    %v1002 = vpop.permute.xlu0 %1001
    %v1003 = vperm.slane %v643, 5
    %v1004 = vlaneseq
    %v1005 = vshrl.u32 %v1004, 7
    %v1006 = vadd.s32 %v1005, 64
    %1007 = vset.pattern.permute.xlu0 %v1006
    %1008 = vperm.xlu0 %1007, %v1003
    %v1009 = vpop.permute.xlu0 %1008
    %v1010 = vlaneseq
    %v1011 = vshrl.u32 %v1010, 7
    %v1012 = vadd.s32 %v1011, 72
    %1013 = vset.pattern.permute.xlu0 %v1012
    %1014 = vperm.xlu0 %1013, %v1003
    %v1015 = vpop.permute.xlu0 %1014
    %v1016 = vperm.slane %v643, 6
    %v1017 = vlaneseq
    %v1018 = vshrl.u32 %v1017, 7
    %v1019 = vadd.s32 %v1018, 64
    %1020 = vset.pattern.permute.xlu0 %v1019
    %1021 = vperm.xlu0 %1020, %v1016
    %v1022 = vpop.permute.xlu0 %1021
    %v1023 = vlaneseq
    %v1024 = vshrl.u32 %v1023, 7
    %v1025 = vadd.s32 %v1024, 72
    %1026 = vset.pattern.permute.xlu0 %v1025
    %1027 = vperm.xlu0 %1026, %v1016
    %v1028 = vpop.permute.xlu0 %1027
    %v1029 = vperm.slane %v643, 7
    %v1030 = vlaneseq
    %v1031 = vshrl.u32 %v1030, 7
    %v1032 = vadd.s32 %v1031, 64
    %1033 = vset.pattern.permute.xlu0 %v1032
    %1034 = vperm.xlu0 %1033, %v1029
    %v1035 = vpop.permute.xlu0 %1034
    %v1036 = vlaneseq
    %v1037 = vshrl.u32 %v1036, 7
    %v1038 = vadd.s32 %v1037, 72
    %1039 = vset.pattern.permute.xlu0 %v1038
    %1040 = vperm.xlu0 %1039, %v1029
    %v1041 = vpop.permute.xlu0 %1040
    %v1042 = vperm.slane %v816, 0
    %v1043 = vperm.slane %v820, 0
    %v1044 = vperm.slane %v821, 0
    %v1045 = vperm.slane %v822, 0
    %v1046 = vperm.slane %v823, 0
    %v1047 = vperm.slane %v824, 0
    %v1048 = vperm.slane %v825, 0
    %v1049 = vperm.slane %v826, 0
    %v1050 = vperm.slane %v817, 0
    %v1051 = vperm.slane %v827, 0
    %v1052 = vperm.slane %v828, 0
    %v1053 = vperm.slane %v829, 0
    %v1054 = vperm.slane %v830, 0
    %v1055 = vperm.slane %v831, 0
    %v1056 = vperm.slane %v832, 0
    %v1057 = vperm.slane %v833, 0
    %v1074 = vmul.f32 %v1042, %v840
    %v1075 = vmul.f32 %v1042, %v846
    %v1076 = vmul.f32 %v1043, %v853
    %v1077 = vmul.f32 %v1043, %v859
    %v1078 = vmul.f32 %v1044, %v866
    %v1079 = vmul.f32 %v1044, %v872
    %v1080 = vmul.f32 %v1045, %v879
    %v1081 = vmul.f32 %v1045, %v885
    %v1082 = vmul.f32 %v1046, %v892
    %v1083 = vmul.f32 %v1046, %v898
    %v1084 = vmul.f32 %v1047, %v905
    %v1085 = vmul.f32 %v1047, %v911
    %v1086 = vmul.f32 %v1048, %v918
    %v1087 = vmul.f32 %v1048, %v924
    %v1088 = vmul.f32 %v1049, %v931
    %v1089 = vmul.f32 %v1049, %v937
    %v1090 = vmul.f32 %v1050, %v944
    %v1091 = vmul.f32 %v1050, %v950
    %v1092 = vmul.f32 %v1051, %v957
    %v1093 = vmul.f32 %v1051, %v963
    %v1094 = vmul.f32 %v1052, %v970
    %v1095 = vmul.f32 %v1052, %v976
    %v1096 = vmul.f32 %v1053, %v983
    %v1097 = vmul.f32 %v1053, %v989
    %v1098 = vmul.f32 %v1054, %v996
    %v1099 = vmul.f32 %v1054, %v1002
    %v1100 = vmul.f32 %v1055, %v1009
    %v1101 = vmul.f32 %v1055, %v1015
    %v1102 = vmul.f32 %v1056, %v1022
    %v1103 = vmul.f32 %v1056, %v1028
    %v1104 = vmul.f32 %v1057, %v1035
    %v1105 = vmul.f32 %v1057, %v1041
    %v1106 = vsub.f32 0.0, %v509
    %v1107 = vsub.f32 0.0, %v512
    %v1108 = vmul.f32 %v1106, 1.442695
    %v1109 = vpow.pop %v1108
    %v1110 = vmul.f32 %v1107, 1.442695
    %v1111 = vpow.pop %v1110
    %v1112 = vadd.f32 %v1109, 1.0
    %v1113 = vadd.f32 %v1111, 1.0
    %v1114 = vrcp.pop %v1112
    %v1115 = vrcp.pop %v1113
    %v1116 = vmul.f32 %v509, %v1114
    %v1117 = vmul.f32 %v512, %v1115
    %v1118 = vmul.f32 %v753, 0.0
    %v1119 = vmul.f32 %v755, 0.0
    %v1120 = vmul.f32 %v785, 0.0
    %v1121 = vmul.f32 %v787, 0.0
    %v1122 = vadd.f32 %v1118, %v1074
    %v1123 = vadd.f32 %v1119, %v1075
    %v1124 = vadd.f32 %v1120, %v1090
    %v1125 = vadd.f32 %v1121, %v1091
    %v1126 = vlaneseq
    %v1127 = vshrl.u32 %v1126, 7
    %v1128 = vadd.s32 %v1127, 80
    %1129 = vset.pattern.permute.xlu0 %v1128
    %1130 = vperm.xlu0 %1129, %v834
    %v1131 = vpop.permute.xlu0 %1130
    %v1132 = vlaneseq
    %v1133 = vshrl.u32 %v1132, 7
    %v1134 = vadd.s32 %v1133, 88
    %1135 = vset.pattern.permute.xlu0 %v1134
    %1136 = vperm.xlu0 %1135, %v834
    %v1137 = vpop.permute.xlu0 %1136
    %v1138 = vlaneseq
    %v1139 = vshrl.u32 %v1138, 7
    %v1140 = vadd.s32 %v1139, 80
    %1141 = vset.pattern.permute.xlu0 %v1140
    %1142 = vperm.xlu0 %1141, %v938
    %v1143 = vpop.permute.xlu0 %1142
    %v1144 = vlaneseq
    %v1145 = vshrl.u32 %v1144, 7
    %v1146 = vadd.s32 %v1145, 88
    %1147 = vset.pattern.permute.xlu0 %v1146
    %1148 = vperm.xlu0 %1147, %v938
    %v1149 = vpop.permute.xlu0 %1148
    %v1150 = vmul.f32 %v1122, %v1131
    %v1151 = vmul.f32 %v1123, %v1137
    %v1152 = vmul.f32 %v1124, %v1143
    %v1153 = vmul.f32 %v1125, %v1149
    %v1154 = vsel %vm615, %v1150, 0.0
    %v1155 = vsel %vm615, %v1151, 0.0
    %v1156 = vadd.f32 %v1154, %v1155
    %v1157 = vrot.slane %v1156, 4
    %v1158 = vadd.f32 %v1156, %v1157
    %v1159 = vrot.slane %v1158, 2
    %v1160 = vadd.f32 %v1158, %v1159
    %v1161 = vrot.slane %v1160, 1
    %v1162 = vadd.f32 %v1160, %v1161
    %v1163 = vsel %vm615, %v1152, 0.0
    %v1164 = vsel %vm615, %v1153, 0.0
    %v1165 = vadd.f32 %v1163, %v1164
    %v1166 = vrot.slane %v1165, 4
    %v1167 = vadd.f32 %v1165, %v1166
    %v1168 = vrot.slane %v1167, 2
    %v1169 = vadd.f32 %v1167, %v1168
    %v1170 = vrot.slane %v1169, 1
    %v1171 = vadd.f32 %v1169, %v1170
    %v1173 = vperm.slane %v671, 0
    %v1175 = vrot.slane %v606, 7
    %vm1176 = vcmask 1041409
    %v1177 = vsel %vm1176, %v1175, %v605
    %v1179 = vmul.f32 %v1173, %v1177
    %v1181 = vrot.slane %v1179, 1
    %v1184 = vadd.f32 %v1162, %v1179
    %v1185 = vadd.f32 %v1171, %v1181
    %v1186 = vmul.f32 %v1184, %v1116
    %v1187 = vmul.f32 %v1185, %v1117
    %v1188 = vmul.f32 %v757, %v1122
    %v1189 = vmul.f32 %v759, %v1123
    %v1190 = vmul.f32 %v789, %v1124
    %v1191 = vmul.f32 %v791, %v1125
    %v1192 = vadd.f32 %v1188, %v1076
    %v1193 = vadd.f32 %v1189, %v1077
    %v1194 = vadd.f32 %v1190, %v1092
    %v1195 = vadd.f32 %v1191, %v1093
    %v1196 = vlaneseq
    %v1197 = vshrl.u32 %v1196, 7
    %v1198 = vadd.s32 %v1197, 80
    %1199 = vset.pattern.permute.xlu0 %v1198
    %1200 = vperm.xlu0 %1199, %v847
    %v1201 = vpop.permute.xlu0 %1200
    %v1202 = vlaneseq
    %v1203 = vshrl.u32 %v1202, 7
    %v1204 = vadd.s32 %v1203, 88
    %1205 = vset.pattern.permute.xlu0 %v1204
    %1206 = vperm.xlu0 %1205, %v847
    %v1207 = vpop.permute.xlu0 %1206
    %v1208 = vlaneseq
    %v1209 = vshrl.u32 %v1208, 7
    %v1210 = vadd.s32 %v1209, 80
    %1211 = vset.pattern.permute.xlu0 %v1210
    %1212 = vperm.xlu0 %1211, %v951
    %v1213 = vpop.permute.xlu0 %1212
    %v1214 = vlaneseq
    %v1215 = vshrl.u32 %v1214, 7
    %v1216 = vadd.s32 %v1215, 88
    %1217 = vset.pattern.permute.xlu0 %v1216
    %1218 = vperm.xlu0 %1217, %v951
    %v1219 = vpop.permute.xlu0 %1218
    %v1220 = vmul.f32 %v1192, %v1201
    %v1221 = vmul.f32 %v1193, %v1207
    %v1222 = vmul.f32 %v1194, %v1213
    %v1223 = vmul.f32 %v1195, %v1219
    %v1224 = vsel %vm615, %v1220, 0.0
    %v1225 = vsel %vm615, %v1221, 0.0
    %v1226 = vadd.f32 %v1224, %v1225
    %v1227 = vrot.slane %v1226, 4
    %v1228 = vadd.f32 %v1226, %v1227
    %v1229 = vrot.slane %v1228, 2
    %v1230 = vadd.f32 %v1228, %v1229
    %v1231 = vrot.slane %v1230, 1
    %v1232 = vadd.f32 %v1230, %v1231
    %v1233 = vsel %vm615, %v1222, 0.0
    %v1234 = vsel %vm615, %v1223, 0.0
    %v1235 = vadd.f32 %v1233, %v1234
    %v1236 = vrot.slane %v1235, 4
    %v1237 = vadd.f32 %v1235, %v1236
    %v1238 = vrot.slane %v1237, 2
    %v1239 = vadd.f32 %v1237, %v1238
    %v1240 = vrot.slane %v1239, 1
    %v1241 = vadd.f32 %v1239, %v1240
    %v1242 = vrot.slane %v605, 1
    %v1243 = vsel %vm1176, %v606, %v1242
    %v1245 = vmul.f32 %v1173, %v1243
    %v1247 = vrot.slane %v1245, 1
    %v1250 = vadd.f32 %v1232, %v1245
    %v1251 = vadd.f32 %v1241, %v1247
    %v1254 = vrot.slane %v1116, 1
    %v1255 = vrot.slane %v1117, 1
    %v1258 = vmul.f32 %v1250, %v1254
    %v1259 = vmul.f32 %v1251, %v1255
    %v1260 = vmul.f32 %v761, %v1192
    %v1261 = vmul.f32 %v763, %v1193
    %v1262 = vmul.f32 %v793, %v1194
    %v1263 = vmul.f32 %v795, %v1195
    %v1264 = vadd.f32 %v1260, %v1078
    %v1265 = vadd.f32 %v1261, %v1079
    %v1266 = vadd.f32 %v1262, %v1094
    %v1267 = vadd.f32 %v1263, %v1095
    %v1268 = vlaneseq
    %v1269 = vshrl.u32 %v1268, 7
    %v1270 = vadd.s32 %v1269, 80
    %1271 = vset.pattern.permute.xlu0 %v1270
    %1272 = vperm.xlu0 %1271, %v860
    %v1273 = vpop.permute.xlu0 %1272
    %v1274 = vlaneseq
    %v1275 = vshrl.u32 %v1274, 7
    %v1276 = vadd.s32 %v1275, 88
    %1277 = vset.pattern.permute.xlu0 %v1276
    %1278 = vperm.xlu0 %1277, %v860
    %v1279 = vpop.permute.xlu0 %1278
    %v1280 = vlaneseq
    %v1281 = vshrl.u32 %v1280, 7
    %v1282 = vadd.s32 %v1281, 80
    %1283 = vset.pattern.permute.xlu0 %v1282
    %1284 = vperm.xlu0 %1283, %v964
    %v1285 = vpop.permute.xlu0 %1284
    %v1286 = vlaneseq
    %v1287 = vshrl.u32 %v1286, 7
    %v1288 = vadd.s32 %v1287, 88
    %1289 = vset.pattern.permute.xlu0 %v1288
    %1290 = vperm.xlu0 %1289, %v964
    %v1291 = vpop.permute.xlu0 %1290
    %v1292 = vmul.f32 %v1264, %v1273
    %v1293 = vmul.f32 %v1265, %v1279
    %v1294 = vmul.f32 %v1266, %v1285
    %v1295 = vmul.f32 %v1267, %v1291
    %v1296 = vsel %vm615, %v1292, 0.0
    %v1297 = vsel %vm615, %v1293, 0.0
    %v1298 = vadd.f32 %v1296, %v1297
    %v1299 = vrot.slane %v1298, 4
    %v1300 = vadd.f32 %v1298, %v1299
    %v1301 = vrot.slane %v1300, 2
    %v1302 = vadd.f32 %v1300, %v1301
    %v1303 = vrot.slane %v1302, 1
    %v1304 = vadd.f32 %v1302, %v1303
    %v1305 = vsel %vm615, %v1294, 0.0
    %v1306 = vsel %vm615, %v1295, 0.0
    %v1307 = vadd.f32 %v1305, %v1306
    %v1308 = vrot.slane %v1307, 4
    %v1309 = vadd.f32 %v1307, %v1308
    %v1310 = vrot.slane %v1309, 2
    %v1311 = vadd.f32 %v1309, %v1310
    %v1312 = vrot.slane %v1311, 1
    %v1313 = vadd.f32 %v1311, %v1312
    %v1314 = vrot.slane %v605, 2
    %v1315 = vrot.slane %v606, 1
    %v1316 = vsel %vm1176, %v1315, %v1314
    %v1318 = vmul.f32 %v1173, %v1316
    %v1320 = vrot.slane %v1318, 1
    %v1323 = vadd.f32 %v1304, %v1318
    %v1324 = vadd.f32 %v1313, %v1320
    %v1325 = vrot.slane %v1116, 2
    %v1326 = vrot.slane %v1117, 2
    %v1329 = vmul.f32 %v1323, %v1325
    %v1330 = vmul.f32 %v1324, %v1326
    %v1331 = vmul.f32 %v765, %v1264
    %v1332 = vmul.f32 %v767, %v1265
    %v1333 = vmul.f32 %v797, %v1266
    %v1334 = vmul.f32 %v799, %v1267
    %v1335 = vadd.f32 %v1331, %v1080
    %v1336 = vadd.f32 %v1332, %v1081
    %v1337 = vadd.f32 %v1333, %v1096
    %v1338 = vadd.f32 %v1334, %v1097
    %v1339 = vlaneseq
    %v1340 = vshrl.u32 %v1339, 7
    %v1341 = vadd.s32 %v1340, 80
    %1342 = vset.pattern.permute.xlu0 %v1341
    %1343 = vperm.xlu0 %1342, %v873
    %v1344 = vpop.permute.xlu0 %1343
    %v1345 = vlaneseq
    %v1346 = vshrl.u32 %v1345, 7
    %v1347 = vadd.s32 %v1346, 88
    %1348 = vset.pattern.permute.xlu0 %v1347
    %1349 = vperm.xlu0 %1348, %v873
    %v1350 = vpop.permute.xlu0 %1349
    %v1351 = vlaneseq
    %v1352 = vshrl.u32 %v1351, 7
    %v1353 = vadd.s32 %v1352, 80
    %1354 = vset.pattern.permute.xlu0 %v1353
    %1355 = vperm.xlu0 %1354, %v977
    %v1356 = vpop.permute.xlu0 %1355
    %v1357 = vlaneseq
    %v1358 = vshrl.u32 %v1357, 7
    %v1359 = vadd.s32 %v1358, 88
    %1360 = vset.pattern.permute.xlu0 %v1359
    %1361 = vperm.xlu0 %1360, %v977
    %v1362 = vpop.permute.xlu0 %1361
    %v1363 = vmul.f32 %v1335, %v1344
    %v1364 = vmul.f32 %v1336, %v1350
    %v1365 = vmul.f32 %v1337, %v1356
    %v1366 = vmul.f32 %v1338, %v1362
    %v1367 = vsel %vm615, %v1363, 0.0
    %v1368 = vsel %vm615, %v1364, 0.0
    %v1369 = vadd.f32 %v1367, %v1368
    %v1370 = vrot.slane %v1369, 4
    %v1371 = vadd.f32 %v1369, %v1370
    %v1372 = vrot.slane %v1371, 2
    %v1373 = vadd.f32 %v1371, %v1372
    %v1374 = vrot.slane %v1373, 1
    %v1375 = vadd.f32 %v1373, %v1374
    %v1376 = vsel %vm615, %v1365, 0.0
    %v1377 = vsel %vm615, %v1366, 0.0
    %v1378 = vadd.f32 %v1376, %v1377
    %v1379 = vrot.slane %v1378, 4
    %v1380 = vadd.f32 %v1378, %v1379
    %v1381 = vrot.slane %v1380, 2
    %v1382 = vadd.f32 %v1380, %v1381
    %v1383 = vrot.slane %v1382, 1
    %v1384 = vadd.f32 %v1382, %v1383
    %v1385 = vrot.slane %v605, 3
    %v1386 = vrot.slane %v606, 2
    %v1387 = vsel %vm1176, %v1386, %v1385
    %v1389 = vmul.f32 %v1173, %v1387
    %v1391 = vrot.slane %v1389, 1
    %v1394 = vadd.f32 %v1375, %v1389
    %v1395 = vadd.f32 %v1384, %v1391
    %v1396 = vrot.slane %v1116, 3
    %v1397 = vrot.slane %v1117, 3
    %v1400 = vmul.f32 %v1394, %v1396
    %v1401 = vmul.f32 %v1395, %v1397
    %v1402 = vmul.f32 %v769, %v1335
    %v1403 = vmul.f32 %v771, %v1336
    %v1404 = vmul.f32 %v801, %v1337
    %v1405 = vmul.f32 %v803, %v1338
    %v1406 = vadd.f32 %v1402, %v1082
    %v1407 = vadd.f32 %v1403, %v1083
    %v1408 = vadd.f32 %v1404, %v1098
    %v1409 = vadd.f32 %v1405, %v1099
    %v1410 = vlaneseq
    %v1411 = vshrl.u32 %v1410, 7
    %v1412 = vadd.s32 %v1411, 80
    %1413 = vset.pattern.permute.xlu0 %v1412
    %1414 = vperm.xlu0 %1413, %v886
    %v1415 = vpop.permute.xlu0 %1414
    %v1416 = vlaneseq
    %v1417 = vshrl.u32 %v1416, 7
    %v1418 = vadd.s32 %v1417, 88
    %1419 = vset.pattern.permute.xlu0 %v1418
    %1420 = vperm.xlu0 %1419, %v886
    %v1421 = vpop.permute.xlu0 %1420
    %v1422 = vlaneseq
    %v1423 = vshrl.u32 %v1422, 7
    %v1424 = vadd.s32 %v1423, 80
    %1425 = vset.pattern.permute.xlu0 %v1424
    %1426 = vperm.xlu0 %1425, %v990
    %v1427 = vpop.permute.xlu0 %1426
    %v1428 = vlaneseq
    %v1429 = vshrl.u32 %v1428, 7
    %v1430 = vadd.s32 %v1429, 88
    %1431 = vset.pattern.permute.xlu0 %v1430
    %1432 = vperm.xlu0 %1431, %v990
    %v1433 = vpop.permute.xlu0 %1432
    %v1434 = vmul.f32 %v1406, %v1415
    %v1435 = vmul.f32 %v1407, %v1421
    %v1436 = vmul.f32 %v1408, %v1427
    %v1437 = vmul.f32 %v1409, %v1433
    %v1438 = vsel %vm615, %v1434, 0.0
    %v1439 = vsel %vm615, %v1435, 0.0
    %v1440 = vadd.f32 %v1438, %v1439
    %v1441 = vrot.slane %v1440, 4
    %v1442 = vadd.f32 %v1440, %v1441
    %v1443 = vrot.slane %v1442, 2
    %v1444 = vadd.f32 %v1442, %v1443
    %v1445 = vrot.slane %v1444, 1
    %v1446 = vadd.f32 %v1444, %v1445
    %v1447 = vsel %vm615, %v1436, 0.0
    %v1448 = vsel %vm615, %v1437, 0.0
    %v1449 = vadd.f32 %v1447, %v1448
    %v1450 = vrot.slane %v1449, 4
    %v1451 = vadd.f32 %v1449, %v1450
    %v1452 = vrot.slane %v1451, 2
    %v1453 = vadd.f32 %v1451, %v1452
    %v1454 = vrot.slane %v1453, 1
    %v1455 = vadd.f32 %v1453, %v1454
    %v1456 = vrot.slane %v605, 4
    %v1457 = vrot.slane %v606, 3
    %v1458 = vsel %vm1176, %v1457, %v1456
    %v1460 = vmul.f32 %v1173, %v1458
    %v1462 = vrot.slane %v1460, 1
    %v1465 = vadd.f32 %v1446, %v1460
    %v1466 = vadd.f32 %v1455, %v1462
    %v1467 = vrot.slane %v1116, 4
    %v1468 = vrot.slane %v1117, 4
    %v1471 = vmul.f32 %v1465, %v1467
    %v1472 = vmul.f32 %v1466, %v1468
    %v1473 = vmul.f32 %v773, %v1406
    %v1474 = vmul.f32 %v775, %v1407
    %v1475 = vmul.f32 %v805, %v1408
    %v1476 = vmul.f32 %v807, %v1409
    %v1477 = vadd.f32 %v1473, %v1084
    %v1478 = vadd.f32 %v1474, %v1085
    %v1479 = vadd.f32 %v1475, %v1100
    %v1480 = vadd.f32 %v1476, %v1101
    %v1481 = vlaneseq
    %v1482 = vshrl.u32 %v1481, 7
    %v1483 = vadd.s32 %v1482, 80
    %1484 = vset.pattern.permute.xlu0 %v1483
    %1485 = vperm.xlu0 %1484, %v899
    %v1486 = vpop.permute.xlu0 %1485
    %v1487 = vlaneseq
    %v1488 = vshrl.u32 %v1487, 7
    %v1489 = vadd.s32 %v1488, 88
    %1490 = vset.pattern.permute.xlu0 %v1489
    %1491 = vperm.xlu0 %1490, %v899
    %v1492 = vpop.permute.xlu0 %1491
    %v1493 = vlaneseq
    %v1494 = vshrl.u32 %v1493, 7
    %v1495 = vadd.s32 %v1494, 80
    %1496 = vset.pattern.permute.xlu0 %v1495
    %1497 = vperm.xlu0 %1496, %v1003
    %v1498 = vpop.permute.xlu0 %1497
    %v1499 = vlaneseq
    %v1500 = vshrl.u32 %v1499, 7
    %v1501 = vadd.s32 %v1500, 88
    %1502 = vset.pattern.permute.xlu0 %v1501
    %1503 = vperm.xlu0 %1502, %v1003
    %v1504 = vpop.permute.xlu0 %1503
    %v1505 = vmul.f32 %v1477, %v1486
    %v1506 = vmul.f32 %v1478, %v1492
    %v1507 = vmul.f32 %v1479, %v1498
    %v1508 = vmul.f32 %v1480, %v1504
    %v1509 = vsel %vm615, %v1505, 0.0
    %v1510 = vsel %vm615, %v1506, 0.0
    %v1511 = vadd.f32 %v1509, %v1510
    %v1512 = vrot.slane %v1511, 4
    %v1513 = vadd.f32 %v1511, %v1512
    %v1514 = vrot.slane %v1513, 2
    %v1515 = vadd.f32 %v1513, %v1514
    %v1516 = vrot.slane %v1515, 1
    %v1517 = vadd.f32 %v1515, %v1516
    %v1518 = vsel %vm615, %v1507, 0.0
    %v1519 = vsel %vm615, %v1508, 0.0
    %v1520 = vadd.f32 %v1518, %v1519
    %v1521 = vrot.slane %v1520, 4
    %v1522 = vadd.f32 %v1520, %v1521
    %v1523 = vrot.slane %v1522, 2
    %v1524 = vadd.f32 %v1522, %v1523
    %v1525 = vrot.slane %v1524, 1
    %v1526 = vadd.f32 %v1524, %v1525
    %v1527 = vrot.slane %v605, 5
    %v1528 = vrot.slane %v606, 4
    %v1529 = vsel %vm1176, %v1528, %v1527
    %v1531 = vmul.f32 %v1173, %v1529
    %v1533 = vrot.slane %v1531, 1
    %v1536 = vadd.f32 %v1517, %v1531
    %v1537 = vadd.f32 %v1526, %v1533
    %v1538 = vrot.slane %v1116, 5
    %v1539 = vrot.slane %v1117, 5
    %v1542 = vmul.f32 %v1536, %v1538
    %v1543 = vmul.f32 %v1537, %v1539
    %v1544 = vmul.f32 %v777, %v1477
    %v1545 = vmul.f32 %v779, %v1478
    %v1546 = vmul.f32 %v809, %v1479
    %v1547 = vmul.f32 %v811, %v1480
    %v1548 = vadd.f32 %v1544, %v1086
    %v1549 = vadd.f32 %v1545, %v1087
    %v1550 = vadd.f32 %v1546, %v1102
    %v1551 = vadd.f32 %v1547, %v1103
    %v1552 = vlaneseq
    %v1553 = vshrl.u32 %v1552, 7
    %v1554 = vadd.s32 %v1553, 80
    %1555 = vset.pattern.permute.xlu0 %v1554
    %1556 = vperm.xlu0 %1555, %v912
    %v1557 = vpop.permute.xlu0 %1556
    %v1558 = vlaneseq
    %v1559 = vshrl.u32 %v1558, 7
    %v1560 = vadd.s32 %v1559, 88
    %1561 = vset.pattern.permute.xlu0 %v1560
    %1562 = vperm.xlu0 %1561, %v912
    %v1563 = vpop.permute.xlu0 %1562
    %v1564 = vlaneseq
    %v1565 = vshrl.u32 %v1564, 7
    %v1566 = vadd.s32 %v1565, 80
    %1567 = vset.pattern.permute.xlu0 %v1566
    %1568 = vperm.xlu0 %1567, %v1016
    %v1569 = vpop.permute.xlu0 %1568
    %v1570 = vlaneseq
    %v1571 = vshrl.u32 %v1570, 7
    %v1572 = vadd.s32 %v1571, 88
    %1573 = vset.pattern.permute.xlu0 %v1572
    %1574 = vperm.xlu0 %1573, %v1016
    %v1575 = vpop.permute.xlu0 %1574
    %v1576 = vmul.f32 %v1548, %v1557
    %v1577 = vmul.f32 %v1549, %v1563
    %v1578 = vmul.f32 %v1550, %v1569
    %v1579 = vmul.f32 %v1551, %v1575
    %v1580 = vsel %vm615, %v1576, 0.0
    %v1581 = vsel %vm615, %v1577, 0.0
    %v1582 = vadd.f32 %v1580, %v1581
    %v1583 = vrot.slane %v1582, 4
    %v1584 = vadd.f32 %v1582, %v1583
    %v1585 = vrot.slane %v1584, 2
    %v1586 = vadd.f32 %v1584, %v1585
    %v1587 = vrot.slane %v1586, 1
    %v1588 = vadd.f32 %v1586, %v1587
    %v1589 = vsel %vm615, %v1578, 0.0
    %v1590 = vsel %vm615, %v1579, 0.0
    %v1591 = vadd.f32 %v1589, %v1590
    %v1592 = vrot.slane %v1591, 4
    %v1593 = vadd.f32 %v1591, %v1592
    %v1594 = vrot.slane %v1593, 2
    %v1595 = vadd.f32 %v1593, %v1594
    %v1596 = vrot.slane %v1595, 1
    %v1597 = vadd.f32 %v1595, %v1596
    %v1598 = vrot.slane %v605, 6
    %v1599 = vrot.slane %v606, 5
    %v1600 = vsel %vm1176, %v1599, %v1598
    %v1602 = vmul.f32 %v1173, %v1600
    %v1604 = vrot.slane %v1602, 1
    %v1607 = vadd.f32 %v1588, %v1602
    %v1608 = vadd.f32 %v1597, %v1604
    %v1609 = vrot.slane %v1116, 6
    %v1610 = vrot.slane %v1117, 6
    %v1613 = vmul.f32 %v1607, %v1609
    %v1614 = vmul.f32 %v1608, %v1610
    %v1615 = vmul.f32 %v781, %v1548
    %v1616 = vmul.f32 %v783, %v1549
    %v1617 = vmul.f32 %v813, %v1550
    %v1618 = vmul.f32 %v815, %v1551
    %v1619 = vadd.f32 %v1615, %v1088
    %v1620 = vadd.f32 %v1616, %v1089
    %v1621 = vadd.f32 %v1617, %v1104
    %v1622 = vadd.f32 %v1618, %v1105
    %v1623 = vlaneseq
    %v1624 = vshrl.u32 %v1623, 7
    %v1625 = vadd.s32 %v1624, 80
    %1626 = vset.pattern.permute.xlu0 %v1625
    %1627 = vperm.xlu0 %1626, %v925
    %v1628 = vpop.permute.xlu0 %1627
    %v1629 = vlaneseq
    %v1630 = vshrl.u32 %v1629, 7
    %v1631 = vadd.s32 %v1630, 88
    %1632 = vset.pattern.permute.xlu0 %v1631
    %1633 = vperm.xlu0 %1632, %v925
    %v1634 = vpop.permute.xlu0 %1633
    %v1635 = vlaneseq
    %v1636 = vshrl.u32 %v1635, 7
    %v1637 = vadd.s32 %v1636, 80
    %1638 = vset.pattern.permute.xlu0 %v1637
    %1639 = vperm.xlu0 %1638, %v1029
    %v1640 = vpop.permute.xlu0 %1639
    %v1641 = vlaneseq
    %v1642 = vshrl.u32 %v1641, 7
    %v1643 = vadd.s32 %v1642, 88
    %1644 = vset.pattern.permute.xlu0 %v1643
    %1645 = vperm.xlu0 %1644, %v1029
    %v1646 = vpop.permute.xlu0 %1645
    %v1647 = vmul.f32 %v1619, %v1628
    %v1648 = vmul.f32 %v1620, %v1634
    %v1649 = vmul.f32 %v1621, %v1640
    %v1650 = vmul.f32 %v1622, %v1646
    %v1651 = vsel %vm615, %v1647, 0.0
    %v1652 = vsel %vm615, %v1648, 0.0
    %v1653 = vadd.f32 %v1651, %v1652
    %v1654 = vrot.slane %v1653, 4
    %v1655 = vadd.f32 %v1653, %v1654
    %v1656 = vrot.slane %v1655, 2
    %v1657 = vadd.f32 %v1655, %v1656
    %v1658 = vrot.slane %v1657, 1
    %v1659 = vadd.f32 %v1657, %v1658
    %v1660 = vsel %vm615, %v1649, 0.0
    %v1661 = vsel %vm615, %v1650, 0.0
    %v1662 = vadd.f32 %v1660, %v1661
    %v1663 = vrot.slane %v1662, 4
    %v1664 = vadd.f32 %v1662, %v1663
    %v1665 = vrot.slane %v1664, 2
    %v1666 = vadd.f32 %v1664, %v1665
    %v1667 = vrot.slane %v1666, 1
    %v1668 = vadd.f32 %v1666, %v1667
    %v1669 = vrot.slane %v605, 7
    %v1670 = vrot.slane %v606, 6
    %v1671 = vsel %vm1176, %v1670, %v1669
    %v1673 = vmul.f32 %v1173, %v1671
    %v1675 = vrot.slane %v1673, 1
    %v1678 = vadd.f32 %v1659, %v1673
    %v1679 = vadd.f32 %v1668, %v1675
    %v1680 = vrot.slane %v1116, 7
    %v1681 = vrot.slane %v1117, 7
    %v1684 = vmul.f32 %v1678, %v1680
    %v1685 = vmul.f32 %v1679, %v1681
    %v1688 = vrot.slane %v1258, 7
    %v1689 = vrot.slane %v1259, 7
    %v1694 = vrot.slane %v1329, 6
    %v1695 = vrot.slane %v1330, 6
    %v1700 = vrot.slane %v1400, 5
    %v1701 = vrot.slane %v1401, 5
    %v1706 = vrot.slane %v1471, 4
    %v1707 = vrot.slane %v1472, 4
    %v1712 = vrot.slane %v1542, 3
    %v1713 = vrot.slane %v1543, 3
    %v1718 = vrot.slane %v1613, 2
    %v1719 = vrot.slane %v1614, 2
    %v1724 = vrot.slane %v1684, 1
    %v1725 = vrot.slane %v1685, 1
    %vm1728 = vcmask 1040384
    %v1729 = vsel %vm1728, %v1186, %v1688
    %v1730 = vsel %vm1728, %v1187, %v1689
    %v1731 = vsel %vm360, %v1729, %v1694
    %v1732 = vsel %vm360, %v1730, %v1695
    %v1733 = vsel %vm520, %v1731, %v1700
    %v1734 = vsel %vm520, %v1732, %v1701
    %vm1735 = vcmask 1043456
    %v1736 = vsel %vm1735, %v1733, %v1706
    %v1737 = vsel %vm1735, %v1734, %v1707
    %v1738 = vsel %vm578, %v1736, %v1712
    %v1739 = vsel %vm578, %v1737, %v1713
    %v1740 = vsel %vm558, %v1738, %v1718
    %v1741 = vsel %vm558, %v1739, %v1719
    %v1742 = vsel %vm538, %v1740, %v1724
    %v1743 = vsel %vm538, %v1741, %v1725
    %v1744 = vld [vmem:[%s27] sm:$0xff]
    %v1745 = vld [vmem:[%s27 + $0x8] sm:$0xff]
    %v1746 = vld [vmem:[%s27 + $0x10] sm:$0xff]
    %v1747 = vld [vmem:[%s27 + $0x18] sm:$0xff]
    %v1748 = vld [vmem:[%s27 + $0x20] sm:$0xff]
    %v1749 = vld [vmem:[%s27 + $0x28] sm:$0xff]
    %v1750 = vld [vmem:[%s27 + $0x30] sm:$0xff]
    %v1751 = vld [vmem:[%s27 + $0x38] sm:$0xff]
    %v1753 = vsel %vm615, %v1742, 0
    %v1756 = vsel %vm615, %v1743, 0
    %1758 = vmatpush.msra.mxu0 0.0
    %1759 = vmatpush.msra.mxu0 0.0
    %1760 = vmatpush.msra.mxu0 0.0
    %1761 = vmatpush.msra.mxu0 0.0
    %1762 = vmatpush.msra.mxu0 0.0
    %1763 = vmatpush.msra.mxu0 0.0
    %1764 = vmatpush.msra.mxu0 0.0
    %1765 = vmatpush.msra.mxu0 0.0
    %1766 = vmatpush.msra.mxu0 %v1751
    %1767 = vmatpush.msra.mxu0 %v1750
    %1768 = vmatpush.msra.mxu0 %v1749
    %1769 = vmatpush.msra.mxu0 %v1748
    %1770 = vmatpush.msra.mxu0 %v1747
    %1771 = vmatpush.msra.mxu0 %v1746
    %1772 = vmatpush.msra.mxu0 %v1745
    %1773 = vmatpush.msra.mxu0 %v1744
    %1774 = vmatmul.f32.gmra.mxu0 %v1753
    %v1775 = vpop.f32.mrf.mxu0
    %v1776 = vadd.f32 0.0, %v1775
    %1777 = vmatmul.f32.gmra.mxu0 %v1756
    %v1778 = vpop.f32.mrf.mxu0
    %v1779 = vadd.f32 0.0, %v1778
    %1780 = vdwg.mxu0
    %v1781 = vsel %vm390, %v1776, 0.0
    %1782 = vadd.xlane.f32.xlu0 %v1781
    %v1783 = vpop.xlane.xlu0 %1782
    %v1784 = vsel %vm390, %v1779, 0.0
    %1785 = vadd.xlane.f32.xlu0 %v1784
    %v1786 = vpop.xlane.xlu0 %1785
    %v1787 = vmul.f32 %v1783, %v403
    %v1788 = vmul.f32 %v1786, %v403
    %v1789 = vsub.f32 %v1776, %v1787
    %v1790 = vsub.f32 %v1779, %v1788
    %v1791 = vmul.f32 %v1789, %v1789
    %v1792 = vmul.f32 %v1790, %v1790
    %v1793 = vsel %vm390, %v1791, 0.0
    %1794 = vadd.xlane.f32.xlu0 %v1793
    %v1795 = vpop.xlane.xlu0 %1794
    %v1796 = vsel %vm390, %v1792, 0.0
    %1797 = vadd.xlane.f32.xlu0 %v1796
    %v1798 = vpop.xlane.xlu0 %1797
    %v1799 = vmul.f32 %v1795, %v403
    %v1800 = vmul.f32 %v1798, %v403
    %v1801 = vadd.f32 %v1799, 1e-12
    %v1802 = vadd.f32 %v1800, 1e-12
    %v1803 = vrsqrt.pop %v1801
    %v1804 = vmul.f32 %v1803, %v1801
    %v1805 = vmul.f32 %v1804, %v1803
    %v1806 = vmul.f32 0.5, %v1805
    %v1807 = vsub.f32 1.5, %v1806
    %v1808 = vmul.f32 %v1803, %v1807
    %vm1809 = vweird.f32 %v1801
    %vm1810 = vweird.f32 %v1803
    %vm1811 = vmor %vm1809, %vm1810
    %v1812 = vsel %vm1811, %v1803, %v1808
    %v1813 = vrsqrt.pop %v1802
    %v1814 = vmul.f32 %v1813, %v1802
    %v1815 = vmul.f32 %v1814, %v1813
    %v1816 = vmul.f32 0.5, %v1815
    %v1817 = vsub.f32 1.5, %v1816
    %v1818 = vmul.f32 %v1813, %v1817
    %vm1819 = vweird.f32 %v1802
    %vm1820 = vweird.f32 %v1813
    %vm1821 = vmor %vm1819, %vm1820
    %v1822 = vsel %vm1821, %v1813, %v1818
    %v1823 = vmul.f32 %v1789, %v1812
    %v1824 = vmul.f32 %v1790, %v1822
    %v1825 = vld [vmem:[%s29] sm:$0x1]
    %v1827 = vperm.slane %v1825, 0
    %v1829 = vmul.f32 %v1823, %v1827
    %v1830 = vmul.f32 %v1824, %v1827
    %v1831 = vld [vmem:[%s31] sm:$0x1]
    %v1833 = vperm.slane %v1831, 0
    %v1835 = vadd.f32 %v1829, %v1833
    %v1836 = vadd.f32 %v1830, %v1833
    %v1837 = vld [vmem:[#allocation8] sm:$0xff]
    %v1838 = vld [vmem:[#allocation8 + $0x8] sm:$0xff]
    %v1839 = vld [vmem:[#allocation8 + $0x10] sm:$0xff]
    %v1840 = vld [vmem:[#allocation8 + $0x18] sm:$0xff]
    %v1841 = vld [vmem:[#allocation10] sm:$0x1]
    %v1843 = vperm.slane %v1841, 0
    %v1846 = vsel %vm390, %v1835, 0
    %v1849 = vsel %vm390, %v1836, 0
    %1851 = vmatpush.msra.mxu0 0.0
    %1852 = vmatpush.msra.mxu0 0.0
    %1853 = vmatpush.msra.mxu0 0.0
    %1854 = vmatpush.msra.mxu0 0.0
    %1855 = vmatpush.msra.mxu0 0.0
    %1856 = vmatpush.msra.mxu0 0.0
    %1857 = vmatpush.msra.mxu0 0.0
    %1858 = vmatpush.msra.mxu0 0.0
    %1859 = vmatpush.msra.mxu0 0.0
    %1860 = vmatpush.msra.mxu0 0.0
    %1861 = vmatpush.msra.mxu0 0.0
    %1862 = vmatpush.msra.mxu0 0.0
    %1863 = vmatpush.msra.mxu0 %v1840
    %1864 = vmatpush.msra.mxu0 %v1839
    %1865 = vmatpush.msra.mxu0 %v1838
    %1866 = vmatpush.msra.mxu0 %v1837
    %1867 = vmatmul.f32.gmra.mxu0 %v1846
    %v1868 = vpop.f32.mrf.mxu0
    %v1869 = vadd.f32 %v1843, %v1868
    %1870 = vmatmul.f32.gmra.mxu0 %v1849
    %v1871 = vpop.f32.mrf.mxu0
    %v1872 = vadd.f32 %v1843, %v1871
    %1873 = vdwg.mxu0
    %v1874 = vmul.f32 %v1869, 0.5
    %v1875 = vmul.f32 %v1872, 0.5
    %v1876 = vmul.f32 %v1869, 0.044715
    %v1877 = vmul.f32 %v1872, 0.044715
    %v1878 = vmul.f32 %v1876, %v1869
    %v1879 = vmul.f32 %v1877, %v1872
    %v1880 = vmul.f32 %v1878, %v1869
    %v1881 = vmul.f32 %v1879, %v1872
    %v1882 = vadd.f32 %v1869, %v1880
    %v1883 = vadd.f32 %v1872, %v1881
    %v1884 = vmul.f32 %v1882, 0.7978846
    %v1885 = vmul.f32 %v1883, 0.7978846
    %v1886 = vtanh.pop %v1884
    %v1887 = vtanh.pop %v1885
    %v1888 = vadd.f32 %v1886, 1.0
    %v1889 = vadd.f32 %v1887, 1.0
    %v1890 = vmul.f32 %v1874, %v1888
    %v1891 = vmul.f32 %v1875, %v1889
    %v1892 = vld [vmem:[%s37] sm:$0xff]
    %v1893 = vld [vmem:[%s37 + $0x8] sm:$0xff]
    %v1894 = vld [vmem:[%s37 + $0x10] sm:$0xff]
    %v1895 = vld [vmem:[%s37 + $0x18] sm:$0xff]
    %v1896 = vld [vmem:[%s37 + $0x20] sm:$0xff]
    %v1897 = vld [vmem:[%s37 + $0x28] sm:$0xff]
    %v1898 = vld [vmem:[%s37 + $0x30] sm:$0xff]
    %v1899 = vld [vmem:[%s37 + $0x38] sm:$0xff]
    %v1900 = vld [vmem:[%s37 + $0x40] sm:$0xff]
    %v1901 = vld [vmem:[%s37 + $0x48] sm:$0xff]
    %v1902 = vld [vmem:[%s37 + $0x50] sm:$0xff]
    %v1903 = vld [vmem:[%s37 + $0x58] sm:$0xff]
    %v1904 = vld [vmem:[%s37 + $0x60] sm:$0xff]
    %v1905 = vld [vmem:[%s37 + $0x68] sm:$0xff]
    %v1906 = vld [vmem:[%s37 + $0x70] sm:$0xff]
    %v1907 = vld [vmem:[%s37 + $0x78] sm:$0xff]
    %v1908 = vld [vmem:[#allocation11] sm:$0x1]
    %v1910 = vperm.slane %v1908, 0
    %1912 = vmatpush.msra.mxu0 %v1907
    %1913 = vmatpush.msra.mxu0 %v1906
    %1914 = vmatpush.msra.mxu0 %v1905
    %1915 = vmatpush.msra.mxu0 %v1904
    %1916 = vmatpush.msra.mxu0 %v1903
    %1917 = vmatpush.msra.mxu0 %v1902
    %1918 = vmatpush.msra.mxu0 %v1901
    %1919 = vmatpush.msra.mxu0 %v1900
    %1920 = vmatpush.msra.mxu0 %v1899
    %1921 = vmatpush.msra.mxu0 %v1898
    %1922 = vmatpush.msra.mxu0 %v1897
    %1923 = vmatpush.msra.mxu0 %v1896
    %1924 = vmatpush.msra.mxu0 %v1895
    %1925 = vmatpush.msra.mxu0 %v1894
    %1926 = vmatpush.msra.mxu0 %v1893
    %1927 = vmatpush.msra.mxu0 %v1892
    %1928 = vmatmul.f32.gmra.mxu0 %v1890
    %v1929 = vpop.f32.mrf.mxu0
    %v1930 = vadd.f32 %v1910, %v1929
    %1931 = vmatmul.f32.gmra.mxu0 %v1891
    %v1932 = vpop.f32.mrf.mxu0
    %v1933 = vadd.f32 %v1910, %v1932
    %1934 = vdwg.mxu0
    %v1935 = vadd.f32 %v1930, %v1835
    %v1936 = vadd.f32 %v1933, %v1836
    %v1937 = vsel %vm390, %v1935, 0.0
    %1938 = vadd.xlane.f32.xlu0 %v1937
    %v1939 = vpop.xlane.xlu0 %1938
    %v1940 = vsel %vm390, %v1936, 0.0
    %1941 = vadd.xlane.f32.xlu0 %v1940
    %v1942 = vpop.xlane.xlu0 %1941
    %v1943 = vmul.f32 %v1939, %v403
    %v1944 = vmul.f32 %v1942, %v403
    %v1945 = vsub.f32 %v1935, %v1943
    %v1946 = vsub.f32 %v1936, %v1944
    %v1947 = vmul.f32 %v1945, %v1945
    %v1948 = vmul.f32 %v1946, %v1946
    %v1949 = vsel %vm390, %v1947, 0.0
    %1950 = vadd.xlane.f32.xlu0 %v1949
    %v1951 = vpop.xlane.xlu0 %1950
    %v1952 = vsel %vm390, %v1948, 0.0
    %1953 = vadd.xlane.f32.xlu0 %v1952
    %v1954 = vpop.xlane.xlu0 %1953
    %v1955 = vmul.f32 %v1951, %v403
    %v1956 = vmul.f32 %v1954, %v403
    %v1957 = vadd.f32 %v1955, 1e-12
    %v1958 = vadd.f32 %v1956, 1e-12
    %v1959 = vrsqrt.pop %v1957
    %v1960 = vmul.f32 %v1959, %v1957
    %v1961 = vmul.f32 %v1960, %v1959
    %v1962 = vmul.f32 0.5, %v1961
    %v1963 = vsub.f32 1.5, %v1962
    %v1964 = vmul.f32 %v1959, %v1963
    %vm1965 = vweird.f32 %v1957
    %vm1966 = vweird.f32 %v1959
    %vm1967 = vmor %vm1965, %vm1966
    %v1968 = vsel %vm1967, %v1959, %v1964
    %v1969 = vrsqrt.pop %v1958
    %v1970 = vmul.f32 %v1969, %v1958
    %v1971 = vmul.f32 %v1970, %v1969
    %v1972 = vmul.f32 0.5, %v1971
    %v1973 = vsub.f32 1.5, %v1972
    %v1974 = vmul.f32 %v1969, %v1973
    %vm1975 = vweird.f32 %v1958
    %vm1976 = vweird.f32 %v1969
    %vm1977 = vmor %vm1975, %vm1976
    %v1978 = vsel %vm1977, %v1969, %v1974
    %v1979 = vmul.f32 %v1945, %v1968
    %v1980 = vmul.f32 %v1946, %v1978
    %v1981 = vld [vmem:[#allocation13] sm:$0x1]
    %v1983 = vperm.slane %v1981, 0
    %v1985 = vmul.f32 %v1979, %v1983
    %v1986 = vmul.f32 %v1980, %v1983
    %v1987 = vld [vmem:[#allocation14] sm:$0x1]
    %v1989 = vperm.slane %v1987, 0
    %v1991 = vadd.f32 %v1985, %v1989
    %v1992 = vadd.f32 %v1986, %v1989
    %v1993 = vld [vmem:[#allocation16] sm:$0xff]
    %v1994 = vld [vmem:[#allocation16 + $0x8] sm:$0xff]
    %v1995 = vld [vmem:[#allocation16 + $0x10] sm:$0xff]
    %v1996 = vld [vmem:[#allocation16 + $0x18] sm:$0xff]
    %v1997 = vld [vmem:[#allocation17] sm:$0x1]
    %v1999 = vperm.slane %v1997, 0
    %v2003 = vrot.slane %v1991, 7
    %v2004 = vrot.slane %v1992, 6
    %v2005 = vsel %vm1176, %v2004, %v2003
    %v2006 = vsel %vm390, %v2005, 0
    %2008 = vmatpush.msra.mxu0 0.0
    %2009 = vmatpush.msra.mxu0 0.0
    %2010 = vmatpush.msra.mxu0 0.0
    %2011 = vmatpush.msra.mxu0 0.0
    %2012 = vmatpush.msra.mxu0 0.0
    %2013 = vmatpush.msra.mxu0 0.0
    %2014 = vmatpush.msra.mxu0 0.0
    %2015 = vmatpush.msra.mxu0 0.0
    %2016 = vmatpush.msra.mxu0 0.0
    %2017 = vmatpush.msra.mxu0 0.0
    %2018 = vmatpush.msra.mxu0 0.0
    %2019 = vmatpush.msra.mxu0 0.0
    %2020 = vmatpush.msra.mxu0 %v1996
    %2021 = vmatpush.msra.mxu0 %v1995
    %2022 = vmatpush.msra.mxu0 %v1994
    %2023 = vmatpush.msra.mxu0 %v1993
    %2024 = vmatmul.f32.gmra.mxu0 %v2006
    %v2025 = vpop.f32.mrf.mxu0
    %v2026 = vadd.f32 %v1999, %v2025
    %2027 = vdwg.mxu0
    %v2028 = vld [vmem:[%s53] sm:$0xff]
    %v2029 = vld [vmem:[%s53 + $0x8] sm:$0xf]
    %v2030 = vld [vmem:[%s55] sm:$0xff]
    %v2031 = vld [vmem:[%s55 + $0x8] sm:$0xff]
    %v2032 = vld [vmem:[%s55 + $0x10] sm:$0xff]
    %v2033 = vld [vmem:[%s55 + $0x18] sm:$0xff]
    %v2034 = vld [vmem:[%s55 + $0x20] sm:$0xf]
    %v2035 = vsub.f32 0.0, %v2026
    %v2036 = vmul.f32 %v2035, 1.442695
    %v2037 = vpow.pop %v2036
    %v2038 = vadd.f32 %v2037, 1.0
    %v2039 = vrcp.pop %v2038
    %v2040 = vmul.f32 %v2026, %v2039
    %v2041 = vld [vmem:[%s49] sm:$0xff]
    %v2042 = vld [vmem:[%s49 + $0x8] sm:$0xff]
    %v2043 = vld [vmem:[%s49 + $0x10] sm:$0xff]
    %v2044 = vld [vmem:[%s49 + $0x18] sm:$0xff]
    %v2045 = vld [vmem:[%s49 + $0x20] sm:$0xff]
    %v2046 = vld [vmem:[%s49 + $0x28] sm:$0xff]
    %v2047 = vld [vmem:[%s49 + $0x30] sm:$0xff]
    %v2048 = vld [vmem:[%s49 + $0x38] sm:$0xff]
    %v2049 = vld [vmem:[%s49 + $0x40] sm:$0xff]
    %v2050 = vld [vmem:[%s49 + $0x48] sm:$0xff]
    %v2051 = vld [vmem:[%s49 + $0x50] sm:$0xff]
    %v2052 = vld [vmem:[%s49 + $0x58] sm:$0xff]
    %v2053 = vld [vmem:[%s49 + $0x60] sm:$0xff]
    %v2054 = vld [vmem:[%s49 + $0x68] sm:$0xff]
    %v2055 = vld [vmem:[%s49 + $0x70] sm:$0xff]
    %v2056 = vld [vmem:[%s49 + $0x78] sm:$0xff]
    %v2057 = vperm.slane %v2028, 0
    %vm2058 = vcmp.ge.f32.partialorder %v2026, %v2057
    %v2059 = vperm.slane %v2028, 1
    %vm2060 = vcmp.lt.f32.partialorder %v2026, %v2059
    %vm2061 = vmand %vm2058, %vm2060
    %v2062 = vsel %vm2061, 1.0, 0.0
    %vm2063 = vcmp.ge.f32.partialorder %v2026, %v2059
    %v2064 = vperm.slane %v2028, 2
    %vm2065 = vcmp.lt.f32.partialorder %v2026, %v2064
    %vm2066 = vmand %vm2063, %vm2065
    %v2067 = vsel %vm2066, 1.0, 0.0
    %vm2068 = vcmp.ge.f32.partialorder %v2026, %v2064
    %v2069 = vperm.slane %v2028, 3
    %vm2070 = vcmp.lt.f32.partialorder %v2026, %v2069
    %vm2071 = vmand %vm2068, %vm2070
    %v2072 = vsel %vm2071, 1.0, 0.0
    %vm2073 = vcmp.ge.f32.partialorder %v2026, %v2069
    %v2074 = vperm.slane %v2028, 4
    %vm2075 = vcmp.lt.f32.partialorder %v2026, %v2074
    %vm2076 = vmand %vm2073, %vm2075
    %v2077 = vsel %vm2076, 1.0, 0.0
    %vm2078 = vcmp.ge.f32.partialorder %v2026, %v2074
    %v2079 = vperm.slane %v2028, 5
    %vm2080 = vcmp.lt.f32.partialorder %v2026, %v2079
    %vm2081 = vmand %vm2078, %vm2080
    %v2082 = vsel %vm2081, 1.0, 0.0
    %vm2083 = vcmp.ge.f32.partialorder %v2026, %v2079
    %v2084 = vperm.slane %v2028, 6
    %vm2085 = vcmp.lt.f32.partialorder %v2026, %v2084
    %vm2086 = vmand %vm2083, %vm2085
    %v2087 = vsel %vm2086, 1.0, 0.0
    %vm2088 = vcmp.ge.f32.partialorder %v2026, %v2084
    %v2089 = vperm.slane %v2028, 7
    %vm2090 = vcmp.lt.f32.partialorder %v2026, %v2089
    %vm2091 = vmand %vm2088, %vm2090
    %v2092 = vsel %vm2091, 1.0, 0.0
    %vm2093 = vcmp.ge.f32.partialorder %v2026, %v2089
    %v2094 = vperm.slane %v2029, 0
    %vm2095 = vcmp.lt.f32.partialorder %v2026, %v2094
    %vm2096 = vmand %vm2093, %vm2095
    %v2097 = vsel %vm2096, 1.0, 0.0
    %vm2098 = vcmp.ge.f32.partialorder %v2026, %v2094
    %v2099 = vperm.slane %v2029, 1
    %vm2100 = vcmp.lt.f32.partialorder %v2026, %v2099
    %vm2101 = vmand %vm2098, %vm2100
    %v2102 = vsel %vm2101, 1.0, 0.0
    %vm2103 = vcmp.ge.f32.partialorder %v2026, %v2099
    %v2104 = vperm.slane %v2029, 2
    %vm2105 = vcmp.lt.f32.partialorder %v2026, %v2104
    %vm2106 = vmand %vm2103, %vm2105
    %v2107 = vsel %vm2106, 1.0, 0.0
    %vm2108 = vcmp.ge.f32.partialorder %v2026, %v2104
    %v2109 = vperm.slane %v2029, 3
    %vm2110 = vcmp.lt.f32.partialorder %v2026, %v2109
    %vm2111 = vmand %vm2108, %vm2110
    %v2112 = vsel %vm2111, 1.0, 0.0
    %v2113 = vsub.f32 %v2026, %v2057
    %v2114 = vperm.slane %v2030, 0
    %v2115 = vmul.f32 %v2113, %v2114
    %v2116 = vmul.f32 %v2115, %v2062
    %v2117 = vsub.f32 %v2064, %v2026
    %v2118 = vperm.slane %v2030, 1
    %v2119 = vmul.f32 %v2117, %v2118
    %v2120 = vmul.f32 %v2119, %v2067
    %v2121 = vadd.f32 %v2116, %v2120
    %v2122 = vsub.f32 %v2026, %v2059
    %v2123 = vmul.f32 %v2122, %v2118
    %v2124 = vmul.f32 %v2123, %v2067
    %v2125 = vsub.f32 %v2069, %v2026
    %v2126 = vperm.slane %v2030, 2
    %v2127 = vmul.f32 %v2125, %v2126
    %v2128 = vmul.f32 %v2127, %v2072
    %v2129 = vadd.f32 %v2124, %v2128
    %v2130 = vsub.f32 %v2026, %v2064
    %v2131 = vmul.f32 %v2130, %v2126
    %v2132 = vmul.f32 %v2131, %v2072
    %v2133 = vsub.f32 %v2074, %v2026
    %v2134 = vperm.slane %v2030, 3
    %v2135 = vmul.f32 %v2133, %v2134
    %v2136 = vmul.f32 %v2135, %v2077
    %v2137 = vadd.f32 %v2132, %v2136
    %v2138 = vsub.f32 %v2026, %v2069
    %v2139 = vmul.f32 %v2138, %v2134
    %v2140 = vmul.f32 %v2139, %v2077
    %v2141 = vsub.f32 %v2079, %v2026
    %v2142 = vperm.slane %v2030, 4
    %v2143 = vmul.f32 %v2141, %v2142
    %v2144 = vmul.f32 %v2143, %v2082
    %v2145 = vadd.f32 %v2140, %v2144
    %v2146 = vsub.f32 %v2026, %v2074
    %v2147 = vmul.f32 %v2146, %v2142
    %v2148 = vmul.f32 %v2147, %v2082
    %v2149 = vsub.f32 %v2084, %v2026
    %v2150 = vperm.slane %v2030, 5
    %v2151 = vmul.f32 %v2149, %v2150
    %v2152 = vmul.f32 %v2151, %v2087
    %v2153 = vadd.f32 %v2148, %v2152
    %v2154 = vsub.f32 %v2026, %v2079
    %v2155 = vmul.f32 %v2154, %v2150
    %v2156 = vmul.f32 %v2155, %v2087
    %v2157 = vsub.f32 %v2089, %v2026
    %v2158 = vperm.slane %v2030, 6
    %v2159 = vmul.f32 %v2157, %v2158
    %v2160 = vmul.f32 %v2159, %v2092
    %v2161 = vadd.f32 %v2156, %v2160
    %v2162 = vsub.f32 %v2026, %v2084
    %v2163 = vmul.f32 %v2162, %v2158
    %v2164 = vmul.f32 %v2163, %v2092
    %v2165 = vsub.f32 %v2094, %v2026
    %v2166 = vperm.slane %v2030, 7
    %v2167 = vmul.f32 %v2165, %v2166
    %v2168 = vmul.f32 %v2167, %v2097
    %v2169 = vadd.f32 %v2164, %v2168
    %v2170 = vsub.f32 %v2026, %v2089
    %v2171 = vmul.f32 %v2170, %v2166
    %v2172 = vmul.f32 %v2171, %v2097
    %v2173 = vsub.f32 %v2099, %v2026
    %v2174 = vperm.slane %v2031, 0
    %v2175 = vmul.f32 %v2173, %v2174
    %v2176 = vmul.f32 %v2175, %v2102
    %v2177 = vadd.f32 %v2172, %v2176
    %v2178 = vsub.f32 %v2026, %v2094
    %v2179 = vmul.f32 %v2178, %v2174
    %v2180 = vmul.f32 %v2179, %v2102
    %v2181 = vsub.f32 %v2104, %v2026
    %v2182 = vperm.slane %v2031, 1
    %v2183 = vmul.f32 %v2181, %v2182
    %v2184 = vmul.f32 %v2183, %v2107
    %v2185 = vadd.f32 %v2180, %v2184
    %v2186 = vsub.f32 %v2026, %v2099
    %v2187 = vmul.f32 %v2186, %v2182
    %v2188 = vmul.f32 %v2187, %v2107
    %v2189 = vsub.f32 %v2109, %v2026
    %v2190 = vperm.slane %v2031, 2
    %v2191 = vmul.f32 %v2189, %v2190
    %v2192 = vmul.f32 %v2191, %v2112
    %v2193 = vadd.f32 %v2188, %v2192
    %v2194 = vperm.slane %v2031, 4
    %v2195 = vmul.f32 %v2113, %v2194
    %v2196 = vmul.f32 %v2195, %v2121
    %v2197 = vperm.slane %v2031, 5
    %v2198 = vmul.f32 %v2125, %v2197
    %v2199 = vmul.f32 %v2198, %v2129
    %v2200 = vadd.f32 %v2196, %v2199
    %v2201 = vmul.f32 %v2122, %v2197
    %v2202 = vmul.f32 %v2201, %v2129
    %v2203 = vperm.slane %v2031, 6
    %v2204 = vmul.f32 %v2133, %v2203
    %v2205 = vmul.f32 %v2204, %v2137
    %v2206 = vadd.f32 %v2202, %v2205
    %v2207 = vmul.f32 %v2130, %v2203
    %v2208 = vmul.f32 %v2207, %v2137
    %v2209 = vperm.slane %v2031, 7
    %v2210 = vmul.f32 %v2141, %v2209
    %v2211 = vmul.f32 %v2210, %v2145
    %v2212 = vadd.f32 %v2208, %v2211
    %v2213 = vmul.f32 %v2138, %v2209
    %v2214 = vmul.f32 %v2213, %v2145
    %v2215 = vperm.slane %v2032, 0
    %v2216 = vmul.f32 %v2149, %v2215
    %v2217 = vmul.f32 %v2216, %v2153
    %v2218 = vadd.f32 %v2214, %v2217
    %v2219 = vmul.f32 %v2146, %v2215
    %v2220 = vmul.f32 %v2219, %v2153
    %v2221 = vperm.slane %v2032, 1
    %v2222 = vmul.f32 %v2157, %v2221
    %v2223 = vmul.f32 %v2222, %v2161
    %v2224 = vadd.f32 %v2220, %v2223
    %v2225 = vmul.f32 %v2154, %v2221
    %v2226 = vmul.f32 %v2225, %v2161
    %v2227 = vperm.slane %v2032, 2
    %v2228 = vmul.f32 %v2165, %v2227
    %v2229 = vmul.f32 %v2228, %v2169
    %v2230 = vadd.f32 %v2226, %v2229
    %v2231 = vmul.f32 %v2162, %v2227
    %v2232 = vmul.f32 %v2231, %v2169
    %v2233 = vperm.slane %v2032, 3
    %v2234 = vmul.f32 %v2173, %v2233
    %v2235 = vmul.f32 %v2234, %v2177
    %v2236 = vadd.f32 %v2232, %v2235
    %v2237 = vmul.f32 %v2170, %v2233
    %v2238 = vmul.f32 %v2237, %v2177
    %v2239 = vperm.slane %v2032, 4
    %v2240 = vmul.f32 %v2181, %v2239
    %v2241 = vmul.f32 %v2240, %v2185
    %v2242 = vadd.f32 %v2238, %v2241
    %v2243 = vmul.f32 %v2178, %v2239
    %v2244 = vmul.f32 %v2243, %v2185
    %v2245 = vperm.slane %v2032, 5
    %v2246 = vmul.f32 %v2189, %v2245
    %v2247 = vmul.f32 %v2246, %v2193
    %v2248 = vadd.f32 %v2244, %v2247
    %v2249 = vperm.slane %v2033, 0
    %v2250 = vmul.f32 %v2113, %v2249
    %v2251 = vmul.f32 %v2250, %v2200
    %v2252 = vperm.slane %v2033, 1
    %v2253 = vmul.f32 %v2133, %v2252
    %v2254 = vmul.f32 %v2253, %v2206
    %v2255 = vadd.f32 %v2251, %v2254
    %v2256 = vmul.f32 %v2122, %v2252
    %v2257 = vmul.f32 %v2256, %v2206
    %v2258 = vperm.slane %v2033, 2
    %v2259 = vmul.f32 %v2141, %v2258
    %v2260 = vmul.f32 %v2259, %v2212
    %v2261 = vadd.f32 %v2257, %v2260
    %v2262 = vmul.f32 %v2130, %v2258
    %v2263 = vmul.f32 %v2262, %v2212
    %v2264 = vperm.slane %v2033, 3
    %v2265 = vmul.f32 %v2149, %v2264
    %v2266 = vmul.f32 %v2265, %v2218
    %v2267 = vadd.f32 %v2263, %v2266
    %v2268 = vmul.f32 %v2138, %v2264
    %v2269 = vmul.f32 %v2268, %v2218
    %v2270 = vperm.slane %v2033, 4
    %v2271 = vmul.f32 %v2157, %v2270
    %v2272 = vmul.f32 %v2271, %v2224
    %v2273 = vadd.f32 %v2269, %v2272
    %v2274 = vmul.f32 %v2146, %v2270
    %v2275 = vmul.f32 %v2274, %v2224
    %v2276 = vperm.slane %v2033, 5
    %v2277 = vmul.f32 %v2165, %v2276
    %v2278 = vmul.f32 %v2277, %v2230
    %v2279 = vadd.f32 %v2275, %v2278
    %v2280 = vmul.f32 %v2154, %v2276
    %v2281 = vmul.f32 %v2280, %v2230
    %v2282 = vperm.slane %v2033, 6
    %v2283 = vmul.f32 %v2173, %v2282
    %v2284 = vmul.f32 %v2283, %v2236
    %v2285 = vadd.f32 %v2281, %v2284
    %v2286 = vmul.f32 %v2162, %v2282
    %v2287 = vmul.f32 %v2286, %v2236
    %v2288 = vperm.slane %v2033, 7
    %v2289 = vmul.f32 %v2181, %v2288
    %v2290 = vmul.f32 %v2289, %v2242
    %v2291 = vadd.f32 %v2287, %v2290
    %v2292 = vmul.f32 %v2170, %v2288
    %v2293 = vmul.f32 %v2292, %v2242
    %v2294 = vperm.slane %v2034, 0
    %v2295 = vmul.f32 %v2189, %v2294
    %v2296 = vmul.f32 %v2295, %v2248
    %v2297 = vadd.f32 %v2293, %v2296
    %v2298 = vld [vmem:[#allocation19] sm:$0xff]
    %v2299 = vld [vmem:[#allocation19 + $0x8] sm:$0xff]
    %v2300 = vld [vmem:[#allocation19 + $0x10] sm:$0xff]
    %v2301 = vld [vmem:[#allocation19 + $0x18] sm:$0xff]
    %v2302 = vld [vmem:[#allocation19 + $0x20] sm:$0xff]
    %v2303 = vld [vmem:[#allocation19 + $0x28] sm:$0xff]
    %v2304 = vld [vmem:[#allocation19 + $0x30] sm:$0xff]
    %v2305 = vld [vmem:[#allocation19 + $0x38] sm:$0xff]
    %v2306 = vld [vmem:[#allocation19 + $0x40] sm:$0xff]
    %v2307 = vld [vmem:[#allocation19 + $0x48] sm:$0xff]
    %v2308 = vld [vmem:[#allocation19 + $0x50] sm:$0xff]
    %v2309 = vld [vmem:[#allocation19 + $0x58] sm:$0xff]
    %v2310 = vld [vmem:[#allocation19 + $0x60] sm:$0xff]
    %v2311 = vld [vmem:[#allocation19 + $0x68] sm:$0xff]
    %v2312 = vld [vmem:[#allocation19 + $0x70] sm:$0xff]
    %v2313 = vld [vmem:[#allocation19 + $0x78] sm:$0xff]
    %v2314 = vld [vmem:[#allocation19 + $0x80] sm:$0xff]
    %v2315 = vld [vmem:[#allocation19 + $0x88] sm:$0xff]
    %v2316 = vld [vmem:[#allocation19 + $0x90] sm:$0xff]
    %v2317 = vld [vmem:[#allocation19 + $0x98] sm:$0xff]
    %v2318 = vld [vmem:[#allocation19 + $0xa0] sm:$0xff]
    %v2319 = vld [vmem:[#allocation19 + $0xa8] sm:$0xff]
    %v2320 = vld [vmem:[#allocation19 + $0xb0] sm:$0xff]
    %v2321 = vld [vmem:[#allocation19 + $0xb8] sm:$0xff]
    %v2322 = vld [vmem:[#allocation19 + $0xc0] sm:$0xff]
    %v2323 = vld [vmem:[#allocation19 + $0xc8] sm:$0xff]
    %v2324 = vld [vmem:[#allocation19 + $0xd0] sm:$0xff]
    %v2325 = vld [vmem:[#allocation19 + $0xd8] sm:$0xff]
    %v2326 = vld [vmem:[#allocation19 + $0xe0] sm:$0xff]
    %v2327 = vld [vmem:[#allocation19 + $0xe8] sm:$0xff]
    %v2328 = vld [vmem:[#allocation19 + $0xf0] sm:$0xff]
    %v2329 = vld [vmem:[#allocation19 + $0xf8] sm:$0xff]
    %v2330 = vld [vmem:[#allocation19 + $0x100] sm:$0xff]
    %v2331 = vld [vmem:[#allocation19 + $0x108] sm:$0xff]
    %v2332 = vld [vmem:[#allocation19 + $0x110] sm:$0xff]
    %v2333 = vld [vmem:[#allocation19 + $0x118] sm:$0xff]
    %v2334 = vld [vmem:[#allocation19 + $0x120] sm:$0xff]
    %v2335 = vld [vmem:[#allocation19 + $0x128] sm:$0xff]
    %v2336 = vld [vmem:[#allocation19 + $0x130] sm:$0xff]
    %v2337 = vld [vmem:[#allocation19 + $0x138] sm:$0xff]
    %v2338 = vld [vmem:[#allocation19 + $0x140] sm:$0xff]
    %v2339 = vld [vmem:[#allocation19 + $0x148] sm:$0xff]
    %v2340 = vld [vmem:[#allocation19 + $0x150] sm:$0xff]
    %v2341 = vld [vmem:[#allocation19 + $0x158] sm:$0xff]
    %v2342 = vld [vmem:[#allocation19 + $0x160] sm:$0xff]
    %v2343 = vld [vmem:[#allocation19 + $0x168] sm:$0xff]
    %v2344 = vld [vmem:[#allocation19 + $0x170] sm:$0xff]
    %v2345 = vld [vmem:[#allocation19 + $0x178] sm:$0xff]
    %v2346 = vld [vmem:[#allocation19 + $0x180] sm:$0xff]
    %v2347 = vld [vmem:[#allocation19 + $0x188] sm:$0xff]
    %v2348 = vld [vmem:[#allocation19 + $0x190] sm:$0xff]
    %v2349 = vld [vmem:[#allocation19 + $0x198] sm:$0xff]
    %v2350 = vld [vmem:[#allocation19 + $0x1a0] sm:$0xff]
    %v2351 = vld [vmem:[#allocation19 + $0x1a8] sm:$0xff]
    %v2352 = vld [vmem:[#allocation19 + $0x1b0] sm:$0xff]
    %v2353 = vld [vmem:[#allocation19 + $0x1b8] sm:$0xff]
    %v2354 = vld [vmem:[#allocation19 + $0x1c0] sm:$0xff]
    %v2355 = vld [vmem:[#allocation19 + $0x1c8] sm:$0xff]
    %v2356 = vld [vmem:[#allocation19 + $0x1d0] sm:$0xff]
    %v2357 = vld [vmem:[#allocation19 + $0x1d8] sm:$0xff]
    %v2358 = vld [vmem:[#allocation19 + $0x1e0] sm:$0xff]
    %v2359 = vld [vmem:[#allocation19 + $0x1e8] sm:$0xff]
    %v2360 = vld [vmem:[#allocation19 + $0x1f0] sm:$0xff]
    %v2361 = vld [vmem:[#allocation19 + $0x1f8] sm:$0xff]
    %v2362 = vld [vmem:[#allocation19 + $0x200] sm:$0xff]
    %v2363 = vld [vmem:[#allocation19 + $0x208] sm:$0xff]
    %v2364 = vld [vmem:[#allocation19 + $0x210] sm:$0xff]
    %v2365 = vld [vmem:[#allocation19 + $0x218] sm:$0xff]
    %v2366 = vld [vmem:[#allocation19 + $0x220] sm:$0xff]
    %v2367 = vld [vmem:[#allocation19 + $0x228] sm:$0xff]
    %v2368 = vld [vmem:[#allocation19 + $0x230] sm:$0xff]
    %v2369 = vld [vmem:[#allocation19 + $0x238] sm:$0xff]
    %v2370 = vld [vmem:[#allocation19 + $0x240] sm:$0xff]
    %v2371 = vld [vmem:[#allocation19 + $0x248] sm:$0xff]
    %v2372 = vld [vmem:[#allocation19 + $0x250] sm:$0xff]
    %v2373 = vld [vmem:[#allocation19 + $0x258] sm:$0xff]
    %v2374 = vld [vmem:[#allocation19 + $0x260] sm:$0xff]
    %v2375 = vld [vmem:[#allocation19 + $0x268] sm:$0xff]
    %v2376 = vld [vmem:[#allocation19 + $0x270] sm:$0xff]
    %v2377 = vld [vmem:[#allocation19 + $0x278] sm:$0xff]
    %v2378 = vld [vmem:[#allocation19 + $0x280] sm:$0xff]
    %v2379 = vld [vmem:[#allocation19 + $0x288] sm:$0xff]
    %v2380 = vld [vmem:[#allocation19 + $0x290] sm:$0xff]
    %v2381 = vld [vmem:[#allocation19 + $0x298] sm:$0xff]
    %v2382 = vld [vmem:[#allocation19 + $0x2a0] sm:$0xff]
    %v2383 = vld [vmem:[#allocation19 + $0x2a8] sm:$0xff]
    %v2384 = vld [vmem:[#allocation19 + $0x2b0] sm:$0xff]
    %v2385 = vld [vmem:[#allocation19 + $0x2b8] sm:$0xff]
    %v2386 = vld [vmem:[#allocation19 + $0x2c0] sm:$0xff]
    %v2387 = vld [vmem:[#allocation19 + $0x2c8] sm:$0xff]
    %v2388 = vld [vmem:[#allocation19 + $0x2d0] sm:$0xff]
    %v2389 = vld [vmem:[#allocation19 + $0x2d8] sm:$0xff]
    %v2390 = vld [vmem:[#allocation19 + $0x2e0] sm:$0xff]
    %v2391 = vld [vmem:[#allocation19 + $0x2e8] sm:$0xff]
    %v2392 = vld [vmem:[#allocation19 + $0x2f0] sm:$0xff]
    %v2393 = vld [vmem:[#allocation19 + $0x2f8] sm:$0xff]
    %v2394 = vld [vmem:[#allocation19 + $0x300] sm:$0xff]
    %v2395 = vld [vmem:[#allocation19 + $0x308] sm:$0xff]
    %v2396 = vld [vmem:[#allocation19 + $0x310] sm:$0xff]
    %v2397 = vld [vmem:[#allocation19 + $0x318] sm:$0xff]
    %v2398 = vld [vmem:[#allocation19 + $0x320] sm:$0xff]
    %v2399 = vld [vmem:[#allocation19 + $0x328] sm:$0xff]
    %v2400 = vld [vmem:[#allocation19 + $0x330] sm:$0xff]
    %v2401 = vld [vmem:[#allocation19 + $0x338] sm:$0xff]
    %v2402 = vld [vmem:[#allocation19 + $0x340] sm:$0xff]
    %v2403 = vld [vmem:[#allocation19 + $0x348] sm:$0xff]
    %v2404 = vld [vmem:[#allocation19 + $0x350] sm:$0xff]
    %v2405 = vld [vmem:[#allocation19 + $0x358] sm:$0xff]
    %v2406 = vld [vmem:[#allocation19 + $0x360] sm:$0xff]
    %v2407 = vld [vmem:[#allocation19 + $0x368] sm:$0xff]
    %v2408 = vld [vmem:[#allocation19 + $0x370] sm:$0xff]
    %v2409 = vld [vmem:[#allocation19 + $0x378] sm:$0xff]
    %v2410 = vld [vmem:[#allocation19 + $0x380] sm:$0xff]
    %v2411 = vld [vmem:[#allocation19 + $0x388] sm:$0xff]
    %v2412 = vld [vmem:[#allocation19 + $0x390] sm:$0xff]
    %v2413 = vld [vmem:[#allocation19 + $0x398] sm:$0xff]
    %v2414 = vld [vmem:[#allocation19 + $0x3a0] sm:$0xff]
    %v2415 = vld [vmem:[#allocation19 + $0x3a8] sm:$0xff]
    %v2416 = vld [vmem:[#allocation19 + $0x3b0] sm:$0xff]
    %v2417 = vld [vmem:[#allocation19 + $0x3b8] sm:$0xff]
    %v2418 = vld [vmem:[#allocation19 + $0x3c0] sm:$0xff]
    %v2419 = vld [vmem:[#allocation19 + $0x3c8] sm:$0xff]
    %v2420 = vld [vmem:[#allocation19 + $0x3d0] sm:$0xff]
    %v2421 = vld [vmem:[#allocation19 + $0x3d8] sm:$0xff]
    %v2422 = vld [vmem:[#allocation19 + $0x3e0] sm:$0xff]
    %v2423 = vld [vmem:[#allocation19 + $0x3e8] sm:$0xff]
    %v2424 = vld [vmem:[#allocation19 + $0x3f0] sm:$0xff]
    %v2425 = vld [vmem:[#allocation19 + $0x3f8] sm:$0xff]
    %2426 = vmatpush.msra.mxu0 %v2313
    %2427 = vmatpush.msra.mxu0 %v2312
    %2428 = vmatpush.msra.mxu0 %v2311
    %2429 = vmatpush.msra.mxu0 %v2310
    %2430 = vmatpush.msra.mxu0 %v2309
    %2431 = vmatpush.msra.mxu0 %v2308
    %2432 = vmatpush.msra.mxu0 %v2307
    %2433 = vmatpush.msra.mxu0 %v2306
    %2434 = vmatpush.msra.mxu0 %v2305
    %2435 = vmatpush.msra.mxu0 %v2304
    %2436 = vmatpush.msra.mxu0 %v2303
    %2437 = vmatpush.msra.mxu0 %v2302
    %2438 = vmatpush.msra.mxu0 %v2301
    %2439 = vmatpush.msra.mxu0 %v2300
    %2440 = vmatpush.msra.mxu0 %v2299
    %2441 = vmatpush.msra.mxu0 %v2298
    %2442 = vmatmul.f32.gmra.mxu0 %v2255
    %v2443 = vpop.f32.mrf.mxu0
    %v2444 = vadd.f32 0.0, %v2443
    %2445 = vdwg.mxu0
    %2446 = vmatpush.msra.mxu0 %v2329
    %2447 = vmatpush.msra.mxu0 %v2328
    %2448 = vmatpush.msra.mxu0 %v2327
    %2449 = vmatpush.msra.mxu0 %v2326
    %2450 = vmatpush.msra.mxu0 %v2325
    %2451 = vmatpush.msra.mxu0 %v2324
    %2452 = vmatpush.msra.mxu0 %v2323
    %2453 = vmatpush.msra.mxu0 %v2322
    %2454 = vmatpush.msra.mxu0 %v2321
    %2455 = vmatpush.msra.mxu0 %v2320
    %2456 = vmatpush.msra.mxu0 %v2319
    %2457 = vmatpush.msra.mxu0 %v2318
    %2458 = vmatpush.msra.mxu0 %v2317
    %2459 = vmatpush.msra.mxu0 %v2316
    %2460 = vmatpush.msra.mxu0 %v2315
    %2461 = vmatpush.msra.mxu0 %v2314
    %2462 = vmatmul.f32.gmra.mxu0 %v2261
    %v2463 = vpop.f32.mrf.mxu0
    %v2464 = vadd.f32 %v2444, %v2463
    %2465 = vdwg.mxu0
    %2466 = vmatpush.msra.mxu0 %v2345
    %2467 = vmatpush.msra.mxu0 %v2344
    %2468 = vmatpush.msra.mxu0 %v2343
    %2469 = vmatpush.msra.mxu0 %v2342
    %2470 = vmatpush.msra.mxu0 %v2341
    %2471 = vmatpush.msra.mxu0 %v2340
    %2472 = vmatpush.msra.mxu0 %v2339
    %2473 = vmatpush.msra.mxu0 %v2338
    %2474 = vmatpush.msra.mxu0 %v2337
    %2475 = vmatpush.msra.mxu0 %v2336
    %2476 = vmatpush.msra.mxu0 %v2335
    %2477 = vmatpush.msra.mxu0 %v2334
    %2478 = vmatpush.msra.mxu0 %v2333
    %2479 = vmatpush.msra.mxu0 %v2332
    %2480 = vmatpush.msra.mxu0 %v2331
    %2481 = vmatpush.msra.mxu0 %v2330
    %2482 = vmatmul.f32.gmra.mxu0 %v2267
    %v2483 = vpop.f32.mrf.mxu0
    %v2484 = vadd.f32 %v2464, %v2483
    %2485 = vdwg.mxu0
    %2486 = vmatpush.msra.mxu0 %v2361
    %2487 = vmatpush.msra.mxu0 %v2360
    %2488 = vmatpush.msra.mxu0 %v2359
    %2489 = vmatpush.msra.mxu0 %v2358
    %2490 = vmatpush.msra.mxu0 %v2357
    %2491 = vmatpush.msra.mxu0 %v2356
    %2492 = vmatpush.msra.mxu0 %v2355
    %2493 = vmatpush.msra.mxu0 %v2354
    %2494 = vmatpush.msra.mxu0 %v2353
    %2495 = vmatpush.msra.mxu0 %v2352
    %2496 = vmatpush.msra.mxu0 %v2351
    %2497 = vmatpush.msra.mxu0 %v2350
    %2498 = vmatpush.msra.mxu0 %v2349
    %2499 = vmatpush.msra.mxu0 %v2348
    %2500 = vmatpush.msra.mxu0 %v2347
    %2501 = vmatpush.msra.mxu0 %v2346
    %2502 = vmatmul.f32.gmra.mxu0 %v2273
    %v2503 = vpop.f32.mrf.mxu0
    %v2504 = vadd.f32 %v2484, %v2503
    %2505 = vdwg.mxu0
    %2506 = vmatpush.msra.mxu0 %v2377
    %2507 = vmatpush.msra.mxu0 %v2376
    %2508 = vmatpush.msra.mxu0 %v2375
    %2509 = vmatpush.msra.mxu0 %v2374
    %2510 = vmatpush.msra.mxu0 %v2373
    %2511 = vmatpush.msra.mxu0 %v2372
    %2512 = vmatpush.msra.mxu0 %v2371
    %2513 = vmatpush.msra.mxu0 %v2370
    %2514 = vmatpush.msra.mxu0 %v2369
    %2515 = vmatpush.msra.mxu0 %v2368
    %2516 = vmatpush.msra.mxu0 %v2367
    %2517 = vmatpush.msra.mxu0 %v2366
    %2518 = vmatpush.msra.mxu0 %v2365
    %2519 = vmatpush.msra.mxu0 %v2364
    %2520 = vmatpush.msra.mxu0 %v2363
    %2521 = vmatpush.msra.mxu0 %v2362
    %2522 = vmatmul.f32.gmra.mxu0 %v2279
    %v2523 = vpop.f32.mrf.mxu0
    %v2524 = vadd.f32 %v2504, %v2523
    %2525 = vdwg.mxu0
    %2526 = vmatpush.msra.mxu0 %v2393
    %2527 = vmatpush.msra.mxu0 %v2392
    %2528 = vmatpush.msra.mxu0 %v2391
    %2529 = vmatpush.msra.mxu0 %v2390
    %2530 = vmatpush.msra.mxu0 %v2389
    %2531 = vmatpush.msra.mxu0 %v2388
    %2532 = vmatpush.msra.mxu0 %v2387
    %2533 = vmatpush.msra.mxu0 %v2386
    %2534 = vmatpush.msra.mxu0 %v2385
    %2535 = vmatpush.msra.mxu0 %v2384
    %2536 = vmatpush.msra.mxu0 %v2383
    %2537 = vmatpush.msra.mxu0 %v2382
    %2538 = vmatpush.msra.mxu0 %v2381
    %2539 = vmatpush.msra.mxu0 %v2380
    %2540 = vmatpush.msra.mxu0 %v2379
    %2541 = vmatpush.msra.mxu0 %v2378
    %2542 = vmatmul.f32.gmra.mxu0 %v2285
    %v2543 = vpop.f32.mrf.mxu0
    %v2544 = vadd.f32 %v2524, %v2543
    %2545 = vdwg.mxu0
    %2546 = vmatpush.msra.mxu0 %v2409
    %2547 = vmatpush.msra.mxu0 %v2408
    %2548 = vmatpush.msra.mxu0 %v2407
    %2549 = vmatpush.msra.mxu0 %v2406
    %2550 = vmatpush.msra.mxu0 %v2405
    %2551 = vmatpush.msra.mxu0 %v2404
    %2552 = vmatpush.msra.mxu0 %v2403
    %2553 = vmatpush.msra.mxu0 %v2402
    %2554 = vmatpush.msra.mxu0 %v2401
    %2555 = vmatpush.msra.mxu0 %v2400
    %2556 = vmatpush.msra.mxu0 %v2399
    %2557 = vmatpush.msra.mxu0 %v2398
    %2558 = vmatpush.msra.mxu0 %v2397
    %2559 = vmatpush.msra.mxu0 %v2396
    %2560 = vmatpush.msra.mxu0 %v2395
    %2561 = vmatpush.msra.mxu0 %v2394
    %2562 = vmatmul.f32.gmra.mxu0 %v2291
    %v2563 = vpop.f32.mrf.mxu0
    %v2564 = vadd.f32 %v2544, %v2563
    %2565 = vdwg.mxu0
    %2566 = vmatpush.msra.mxu0 %v2425
    %2567 = vmatpush.msra.mxu0 %v2424
    %2568 = vmatpush.msra.mxu0 %v2423
    %2569 = vmatpush.msra.mxu0 %v2422
    %2570 = vmatpush.msra.mxu0 %v2421
    %2571 = vmatpush.msra.mxu0 %v2420
    %2572 = vmatpush.msra.mxu0 %v2419
    %2573 = vmatpush.msra.mxu0 %v2418
    %2574 = vmatpush.msra.mxu0 %v2417
    %2575 = vmatpush.msra.mxu0 %v2416
    %2576 = vmatpush.msra.mxu0 %v2415
    %2577 = vmatpush.msra.mxu0 %v2414
    %2578 = vmatpush.msra.mxu0 %v2413
    %2579 = vmatpush.msra.mxu0 %v2412
    %2580 = vmatpush.msra.mxu0 %v2411
    %2581 = vmatpush.msra.mxu0 %v2410
    %2582 = vmatmul.f32.gmra.mxu0 %v2297
    %v2583 = vpop.f32.mrf.mxu0
    %v2584 = vadd.f32 %v2564, %v2583
    %2585 = vdwg.mxu0
    %2586 = vmatpush.msra.mxu0 %v2056
    %2587 = vmatpush.msra.mxu0 %v2055
    %2588 = vmatpush.msra.mxu0 %v2054
    %2589 = vmatpush.msra.mxu0 %v2053
    %2590 = vmatpush.msra.mxu0 %v2052
    %2591 = vmatpush.msra.mxu0 %v2051
    %2592 = vmatpush.msra.mxu0 %v2050
    %2593 = vmatpush.msra.mxu0 %v2049
    %2594 = vmatpush.msra.mxu0 %v2048
    %2595 = vmatpush.msra.mxu0 %v2047
    %2596 = vmatpush.msra.mxu0 %v2046
    %2597 = vmatpush.msra.mxu0 %v2045
    %2598 = vmatpush.msra.mxu0 %v2044
    %2599 = vmatpush.msra.mxu0 %v2043
    %2600 = vmatpush.msra.mxu0 %v2042
    %2601 = vmatpush.msra.mxu0 %v2041
    %2602 = vmatmul.f32.gmra.mxu0 %v2040
    %v2603 = vpop.f32.mrf.mxu0
    %v2604 = vadd.f32 %v2584, %v2603
    %2605 = vdwg.mxu0
    %v2606 = vld [vmem:[#allocation22] sm:$0xff]
    %v2607 = vld [vmem:[#allocation22 + $0x8] sm:$0xf]
    %v2608 = vld [vmem:[%s63] sm:$0xff]
    %v2609 = vld [vmem:[%s63 + $0x8] sm:$0xff]
    %v2610 = vld [vmem:[%s63 + $0x10] sm:$0xff]
    %v2611 = vld [vmem:[%s63 + $0x18] sm:$0xff]
    %v2612 = vld [vmem:[%s63 + $0x20] sm:$0xf]
    %v2613 = vsub.f32 0.0, %v2604
    %v2614 = vmul.f32 %v2613, 1.442695
    %v2615 = vpow.pop %v2614
    %v2616 = vadd.f32 %v2615, 1.0
    %v2617 = vrcp.pop %v2616
    %v2618 = vmul.f32 %v2604, %v2617
    %v2619 = vld [vmem:[%s57] sm:$0xff]
    %v2620 = vld [vmem:[%s57 + $0x8] sm:$0xff]
    %v2621 = vld [vmem:[%s57 + $0x10] sm:$0xff]
    %v2622 = vld [vmem:[%s57 + $0x18] sm:$0xff]
    %v2623 = vld [vmem:[%s57 + $0x20] sm:$0xff]
    %v2624 = vld [vmem:[%s57 + $0x28] sm:$0xff]
    %v2625 = vld [vmem:[%s57 + $0x30] sm:$0xff]
    %v2626 = vld [vmem:[%s57 + $0x38] sm:$0xff]
    %v2627 = vld [vmem:[%s57 + $0x40] sm:$0xff]
    %v2628 = vld [vmem:[%s57 + $0x48] sm:$0xff]
    %v2629 = vld [vmem:[%s57 + $0x50] sm:$0xff]
    %v2630 = vld [vmem:[%s57 + $0x58] sm:$0xff]
    %v2631 = vld [vmem:[%s57 + $0x60] sm:$0xff]
    %v2632 = vld [vmem:[%s57 + $0x68] sm:$0xff]
    %v2633 = vld [vmem:[%s57 + $0x70] sm:$0xff]
    %v2634 = vld [vmem:[%s57 + $0x78] sm:$0xff]
    %v2635 = vperm.slane %v2606, 0
    %vm2636 = vcmp.ge.f32.partialorder %v2604, %v2635
    %v2637 = vperm.slane %v2606, 1
    %vm2638 = vcmp.lt.f32.partialorder %v2604, %v2637
    %vm2639 = vmand %vm2636, %vm2638
    %v2640 = vsel %vm2639, 1.0, 0.0
    %vm2641 = vcmp.ge.f32.partialorder %v2604, %v2637
    %v2642 = vperm.slane %v2606, 2
    %vm2643 = vcmp.lt.f32.partialorder %v2604, %v2642
    %vm2644 = vmand %vm2641, %vm2643
    %v2645 = vsel %vm2644, 1.0, 0.0
    %vm2646 = vcmp.ge.f32.partialorder %v2604, %v2642
    %v2647 = vperm.slane %v2606, 3
    %vm2648 = vcmp.lt.f32.partialorder %v2604, %v2647
    %vm2649 = vmand %vm2646, %vm2648
    %v2650 = vsel %vm2649, 1.0, 0.0
    %vm2651 = vcmp.ge.f32.partialorder %v2604, %v2647
    %v2652 = vperm.slane %v2606, 4
    %vm2653 = vcmp.lt.f32.partialorder %v2604, %v2652
    %vm2654 = vmand %vm2651, %vm2653
    %v2655 = vsel %vm2654, 1.0, 0.0
    %vm2656 = vcmp.ge.f32.partialorder %v2604, %v2652
    %v2657 = vperm.slane %v2606, 5
    %vm2658 = vcmp.lt.f32.partialorder %v2604, %v2657
    %vm2659 = vmand %vm2656, %vm2658
    %v2660 = vsel %vm2659, 1.0, 0.0
    %vm2661 = vcmp.ge.f32.partialorder %v2604, %v2657
    %v2662 = vperm.slane %v2606, 6
    %vm2663 = vcmp.lt.f32.partialorder %v2604, %v2662
    %vm2664 = vmand %vm2661, %vm2663
    %v2665 = vsel %vm2664, 1.0, 0.0
    %vm2666 = vcmp.ge.f32.partialorder %v2604, %v2662
    %v2667 = vperm.slane %v2606, 7
    %vm2668 = vcmp.lt.f32.partialorder %v2604, %v2667
    %vm2669 = vmand %vm2666, %vm2668
    %v2670 = vsel %vm2669, 1.0, 0.0
    %vm2671 = vcmp.ge.f32.partialorder %v2604, %v2667
    %v2672 = vperm.slane %v2607, 0
    %vm2673 = vcmp.lt.f32.partialorder %v2604, %v2672
    %vm2674 = vmand %vm2671, %vm2673
    %v2675 = vsel %vm2674, 1.0, 0.0
    %vm2676 = vcmp.ge.f32.partialorder %v2604, %v2672
    %v2677 = vperm.slane %v2607, 1
    %vm2678 = vcmp.lt.f32.partialorder %v2604, %v2677
    %vm2679 = vmand %vm2676, %vm2678
    %v2680 = vsel %vm2679, 1.0, 0.0
    %vm2681 = vcmp.ge.f32.partialorder %v2604, %v2677
    %v2682 = vperm.slane %v2607, 2
    %vm2683 = vcmp.lt.f32.partialorder %v2604, %v2682
    %vm2684 = vmand %vm2681, %vm2683
    %v2685 = vsel %vm2684, 1.0, 0.0
    %vm2686 = vcmp.ge.f32.partialorder %v2604, %v2682
    %v2687 = vperm.slane %v2607, 3
    %vm2688 = vcmp.lt.f32.partialorder %v2604, %v2687
    %vm2689 = vmand %vm2686, %vm2688
    %v2690 = vsel %vm2689, 1.0, 0.0
    %v2691 = vsub.f32 %v2604, %v2635
    %v2692 = vperm.slane %v2608, 0
    %v2693 = vmul.f32 %v2691, %v2692
    %v2694 = vmul.f32 %v2693, %v2640
    %v2695 = vsub.f32 %v2642, %v2604
    %v2696 = vperm.slane %v2608, 1
    %v2697 = vmul.f32 %v2695, %v2696
    %v2698 = vmul.f32 %v2697, %v2645
    %v2699 = vadd.f32 %v2694, %v2698
    %v2700 = vsub.f32 %v2604, %v2637
    %v2701 = vmul.f32 %v2700, %v2696
    %v2702 = vmul.f32 %v2701, %v2645
    %v2703 = vsub.f32 %v2647, %v2604
    %v2704 = vperm.slane %v2608, 2
    %v2705 = vmul.f32 %v2703, %v2704
    %v2706 = vmul.f32 %v2705, %v2650
    %v2707 = vadd.f32 %v2702, %v2706
    %v2708 = vsub.f32 %v2604, %v2642
    %v2709 = vmul.f32 %v2708, %v2704
    %v2710 = vmul.f32 %v2709, %v2650
    %v2711 = vsub.f32 %v2652, %v2604
    %v2712 = vperm.slane %v2608, 3
    %v2713 = vmul.f32 %v2711, %v2712
    %v2714 = vmul.f32 %v2713, %v2655
    %v2715 = vadd.f32 %v2710, %v2714
    %v2716 = vsub.f32 %v2604, %v2647
    %v2717 = vmul.f32 %v2716, %v2712
    %v2718 = vmul.f32 %v2717, %v2655
    %v2719 = vsub.f32 %v2657, %v2604
    %v2720 = vperm.slane %v2608, 4
    %v2721 = vmul.f32 %v2719, %v2720
    %v2722 = vmul.f32 %v2721, %v2660
    %v2723 = vadd.f32 %v2718, %v2722
    %v2724 = vsub.f32 %v2604, %v2652
    %v2725 = vmul.f32 %v2724, %v2720
    %v2726 = vmul.f32 %v2725, %v2660
    %v2727 = vsub.f32 %v2662, %v2604
    %v2728 = vperm.slane %v2608, 5
    %v2729 = vmul.f32 %v2727, %v2728
    %v2730 = vmul.f32 %v2729, %v2665
    %v2731 = vadd.f32 %v2726, %v2730
    %v2732 = vsub.f32 %v2604, %v2657
    %v2733 = vmul.f32 %v2732, %v2728
    %v2734 = vmul.f32 %v2733, %v2665
    %v2735 = vsub.f32 %v2667, %v2604
    %v2736 = vperm.slane %v2608, 6
    %v2737 = vmul.f32 %v2735, %v2736
    %v2738 = vmul.f32 %v2737, %v2670
    %v2739 = vadd.f32 %v2734, %v2738
    %v2740 = vsub.f32 %v2604, %v2662
    %v2741 = vmul.f32 %v2740, %v2736
    %v2742 = vmul.f32 %v2741, %v2670
    %v2743 = vsub.f32 %v2672, %v2604
    %v2744 = vperm.slane %v2608, 7
    %v2745 = vmul.f32 %v2743, %v2744
    %v2746 = vmul.f32 %v2745, %v2675
    %v2747 = vadd.f32 %v2742, %v2746
    %v2748 = vsub.f32 %v2604, %v2667
    %v2749 = vmul.f32 %v2748, %v2744
    %v2750 = vmul.f32 %v2749, %v2675
    %v2751 = vsub.f32 %v2677, %v2604
    %v2752 = vperm.slane %v2609, 0
    %v2753 = vmul.f32 %v2751, %v2752
    %v2754 = vmul.f32 %v2753, %v2680
    %v2755 = vadd.f32 %v2750, %v2754
    %v2756 = vsub.f32 %v2604, %v2672
    %v2757 = vmul.f32 %v2756, %v2752
    %v2758 = vmul.f32 %v2757, %v2680
    %v2759 = vsub.f32 %v2682, %v2604
    %v2760 = vperm.slane %v2609, 1
    %v2761 = vmul.f32 %v2759, %v2760
    %v2762 = vmul.f32 %v2761, %v2685
    %v2763 = vadd.f32 %v2758, %v2762
    %v2764 = vsub.f32 %v2604, %v2677
    %v2765 = vmul.f32 %v2764, %v2760
    %v2766 = vmul.f32 %v2765, %v2685
    %v2767 = vsub.f32 %v2687, %v2604
    %v2768 = vperm.slane %v2609, 2
    %v2769 = vmul.f32 %v2767, %v2768
    %v2770 = vmul.f32 %v2769, %v2690
    %v2771 = vadd.f32 %v2766, %v2770
    %v2772 = vperm.slane %v2609, 4
    %v2773 = vmul.f32 %v2691, %v2772
    %v2774 = vmul.f32 %v2773, %v2699
    %v2775 = vperm.slane %v2609, 5
    %v2776 = vmul.f32 %v2703, %v2775
    %v2777 = vmul.f32 %v2776, %v2707
    %v2778 = vadd.f32 %v2774, %v2777
    %v2779 = vmul.f32 %v2700, %v2775
    %v2780 = vmul.f32 %v2779, %v2707
    %v2781 = vperm.slane %v2609, 6
    %v2782 = vmul.f32 %v2711, %v2781
    %v2783 = vmul.f32 %v2782, %v2715
    %v2784 = vadd.f32 %v2780, %v2783
    %v2785 = vmul.f32 %v2708, %v2781
    %v2786 = vmul.f32 %v2785, %v2715
    %v2787 = vperm.slane %v2609, 7
    %v2788 = vmul.f32 %v2719, %v2787
    %v2789 = vmul.f32 %v2788, %v2723
    %v2790 = vadd.f32 %v2786, %v2789
    %v2791 = vmul.f32 %v2716, %v2787
    %v2792 = vmul.f32 %v2791, %v2723
    %v2793 = vperm.slane %v2610, 0
    %v2794 = vmul.f32 %v2727, %v2793
    %v2795 = vmul.f32 %v2794, %v2731
    %v2796 = vadd.f32 %v2792, %v2795
    %v2797 = vmul.f32 %v2724, %v2793
    %v2798 = vmul.f32 %v2797, %v2731
    %v2799 = vperm.slane %v2610, 1
    %v2800 = vmul.f32 %v2735, %v2799
    %v2801 = vmul.f32 %v2800, %v2739
    %v2802 = vadd.f32 %v2798, %v2801
    %v2803 = vmul.f32 %v2732, %v2799
    %v2804 = vmul.f32 %v2803, %v2739
    %v2805 = vperm.slane %v2610, 2
    %v2806 = vmul.f32 %v2743, %v2805
    %v2807 = vmul.f32 %v2806, %v2747
    %v2808 = vadd.f32 %v2804, %v2807
    %v2809 = vmul.f32 %v2740, %v2805
    %v2810 = vmul.f32 %v2809, %v2747
    %v2811 = vperm.slane %v2610, 3
    %v2812 = vmul.f32 %v2751, %v2811
    %v2813 = vmul.f32 %v2812, %v2755
    %v2814 = vadd.f32 %v2810, %v2813
    %v2815 = vmul.f32 %v2748, %v2811
    %v2816 = vmul.f32 %v2815, %v2755
    %v2817 = vperm.slane %v2610, 4
    %v2818 = vmul.f32 %v2759, %v2817
    %v2819 = vmul.f32 %v2818, %v2763
    %v2820 = vadd.f32 %v2816, %v2819
    %v2821 = vmul.f32 %v2756, %v2817
    %v2822 = vmul.f32 %v2821, %v2763
    %v2823 = vperm.slane %v2610, 5
    %v2824 = vmul.f32 %v2767, %v2823
    %v2825 = vmul.f32 %v2824, %v2771
    %v2826 = vadd.f32 %v2822, %v2825
    %v2827 = vperm.slane %v2611, 0
    %v2828 = vmul.f32 %v2691, %v2827
    %v2829 = vmul.f32 %v2828, %v2778
    %v2830 = vperm.slane %v2611, 1
    %v2831 = vmul.f32 %v2711, %v2830
    %v2832 = vmul.f32 %v2831, %v2784
    %v2833 = vadd.f32 %v2829, %v2832
    %v2834 = vmul.f32 %v2700, %v2830
    %v2835 = vmul.f32 %v2834, %v2784
    %v2836 = vperm.slane %v2611, 2
    %v2837 = vmul.f32 %v2719, %v2836
    %v2838 = vmul.f32 %v2837, %v2790
    %v2839 = vadd.f32 %v2835, %v2838
    %v2840 = vmul.f32 %v2708, %v2836
    %v2841 = vmul.f32 %v2840, %v2790
    %v2842 = vperm.slane %v2611, 3
    %v2843 = vmul.f32 %v2727, %v2842
    %v2844 = vmul.f32 %v2843, %v2796
    %v2845 = vadd.f32 %v2841, %v2844
    %v2846 = vmul.f32 %v2716, %v2842
    %v2847 = vmul.f32 %v2846, %v2796
    %v2848 = vperm.slane %v2611, 4
    %v2849 = vmul.f32 %v2735, %v2848
    %v2850 = vmul.f32 %v2849, %v2802
    %v2851 = vadd.f32 %v2847, %v2850
    %v2852 = vmul.f32 %v2724, %v2848
    %v2853 = vmul.f32 %v2852, %v2802
    %v2854 = vperm.slane %v2611, 5
    %v2855 = vmul.f32 %v2743, %v2854
    %v2856 = vmul.f32 %v2855, %v2808
    %v2857 = vadd.f32 %v2853, %v2856
    %v2858 = vmul.f32 %v2732, %v2854
    %v2859 = vmul.f32 %v2858, %v2808
    %v2860 = vperm.slane %v2611, 6
    %v2861 = vmul.f32 %v2751, %v2860
    %v2862 = vmul.f32 %v2861, %v2814
    %v2863 = vadd.f32 %v2859, %v2862
    %v2864 = vmul.f32 %v2740, %v2860
    %v2865 = vmul.f32 %v2864, %v2814
    %v2866 = vperm.slane %v2611, 7
    %v2867 = vmul.f32 %v2759, %v2866
    %v2868 = vmul.f32 %v2867, %v2820
    %v2869 = vadd.f32 %v2865, %v2868
    %v2870 = vmul.f32 %v2748, %v2866
    %v2871 = vmul.f32 %v2870, %v2820
    %v2872 = vperm.slane %v2612, 0
    %v2873 = vmul.f32 %v2767, %v2872
    %v2874 = vmul.f32 %v2873, %v2826
    %v2875 = vadd.f32 %v2871, %v2874
    %v2876 = vld [vmem:[#allocation20] sm:$0xff]
    %v2877 = vld [vmem:[#allocation20 + $0x8] sm:$0xff]
    %v2878 = vld [vmem:[#allocation20 + $0x10] sm:$0xff]
    %v2879 = vld [vmem:[#allocation20 + $0x18] sm:$0xff]
    %v2880 = vld [vmem:[#allocation20 + $0x20] sm:$0xff]
    %v2881 = vld [vmem:[#allocation20 + $0x28] sm:$0xff]
    %v2882 = vld [vmem:[#allocation20 + $0x30] sm:$0xff]
    %v2883 = vld [vmem:[#allocation20 + $0x38] sm:$0xff]
    %v2884 = vld [vmem:[#allocation20 + $0x40] sm:$0xff]
    %v2885 = vld [vmem:[#allocation20 + $0x48] sm:$0xff]
    %v2886 = vld [vmem:[#allocation20 + $0x50] sm:$0xff]
    %v2887 = vld [vmem:[#allocation20 + $0x58] sm:$0xff]
    %v2888 = vld [vmem:[#allocation20 + $0x60] sm:$0xff]
    %v2889 = vld [vmem:[#allocation20 + $0x68] sm:$0xff]
    %v2890 = vld [vmem:[#allocation20 + $0x70] sm:$0xff]
    %v2891 = vld [vmem:[#allocation20 + $0x78] sm:$0xff]
    %v2892 = vld [vmem:[#allocation20 + $0x80] sm:$0xff]
    %v2893 = vld [vmem:[#allocation20 + $0x88] sm:$0xff]
    %v2894 = vld [vmem:[#allocation20 + $0x90] sm:$0xff]
    %v2895 = vld [vmem:[#allocation20 + $0x98] sm:$0xff]
    %v2896 = vld [vmem:[#allocation20 + $0xa0] sm:$0xff]
    %v2897 = vld [vmem:[#allocation20 + $0xa8] sm:$0xff]
    %v2898 = vld [vmem:[#allocation20 + $0xb0] sm:$0xff]
    %v2899 = vld [vmem:[#allocation20 + $0xb8] sm:$0xff]
    %v2900 = vld [vmem:[#allocation20 + $0xc0] sm:$0xff]
    %v2901 = vld [vmem:[#allocation20 + $0xc8] sm:$0xff]
    %v2902 = vld [vmem:[#allocation20 + $0xd0] sm:$0xff]
    %v2903 = vld [vmem:[#allocation20 + $0xd8] sm:$0xff]
    %v2904 = vld [vmem:[#allocation20 + $0xe0] sm:$0xff]
    %v2905 = vld [vmem:[#allocation20 + $0xe8] sm:$0xff]
    %v2906 = vld [vmem:[#allocation20 + $0xf0] sm:$0xff]
    %v2907 = vld [vmem:[#allocation20 + $0xf8] sm:$0xff]
    %v2908 = vld [vmem:[#allocation20 + $0x100] sm:$0xff]
    %v2909 = vld [vmem:[#allocation20 + $0x108] sm:$0xff]
    %v2910 = vld [vmem:[#allocation20 + $0x110] sm:$0xff]
    %v2911 = vld [vmem:[#allocation20 + $0x118] sm:$0xff]
    %v2912 = vld [vmem:[#allocation20 + $0x120] sm:$0xff]
    %v2913 = vld [vmem:[#allocation20 + $0x128] sm:$0xff]
    %v2914 = vld [vmem:[#allocation20 + $0x130] sm:$0xff]
    %v2915 = vld [vmem:[#allocation20 + $0x138] sm:$0xff]
    %v2916 = vld [vmem:[#allocation20 + $0x140] sm:$0xff]
    %v2917 = vld [vmem:[#allocation20 + $0x148] sm:$0xff]
    %v2918 = vld [vmem:[#allocation20 + $0x150] sm:$0xff]
    %v2919 = vld [vmem:[#allocation20 + $0x158] sm:$0xff]
    %v2920 = vld [vmem:[#allocation20 + $0x160] sm:$0xff]
    %v2921 = vld [vmem:[#allocation20 + $0x168] sm:$0xff]
    %v2922 = vld [vmem:[#allocation20 + $0x170] sm:$0xff]
    %v2923 = vld [vmem:[#allocation20 + $0x178] sm:$0xff]
    %v2924 = vld [vmem:[#allocation20 + $0x180] sm:$0xff]
    %v2925 = vld [vmem:[#allocation20 + $0x188] sm:$0xff]
    %v2926 = vld [vmem:[#allocation20 + $0x190] sm:$0xff]
    %v2927 = vld [vmem:[#allocation20 + $0x198] sm:$0xff]
    %v2928 = vld [vmem:[#allocation20 + $0x1a0] sm:$0xff]
    %v2929 = vld [vmem:[#allocation20 + $0x1a8] sm:$0xff]
    %v2930 = vld [vmem:[#allocation20 + $0x1b0] sm:$0xff]
    %v2931 = vld [vmem:[#allocation20 + $0x1b8] sm:$0xff]
    %v2932 = vld [vmem:[#allocation20 + $0x1c0] sm:$0xff]
    %v2933 = vld [vmem:[#allocation20 + $0x1c8] sm:$0xff]
    %v2934 = vld [vmem:[#allocation20 + $0x1d0] sm:$0xff]
    %v2935 = vld [vmem:[#allocation20 + $0x1d8] sm:$0xff]
    %v2936 = vld [vmem:[#allocation20 + $0x1e0] sm:$0xff]
    %v2937 = vld [vmem:[#allocation20 + $0x1e8] sm:$0xff]
    %v2938 = vld [vmem:[#allocation20 + $0x1f0] sm:$0xff]
    %v2939 = vld [vmem:[#allocation20 + $0x1f8] sm:$0xff]
    %v2940 = vld [vmem:[#allocation20 + $0x200] sm:$0xff]
    %v2941 = vld [vmem:[#allocation20 + $0x208] sm:$0xff]
    %v2942 = vld [vmem:[#allocation20 + $0x210] sm:$0xff]
    %v2943 = vld [vmem:[#allocation20 + $0x218] sm:$0xff]
    %v2944 = vld [vmem:[#allocation20 + $0x220] sm:$0xff]
    %v2945 = vld [vmem:[#allocation20 + $0x228] sm:$0xff]
    %v2946 = vld [vmem:[#allocation20 + $0x230] sm:$0xff]
    %v2947 = vld [vmem:[#allocation20 + $0x238] sm:$0xff]
    %v2948 = vld [vmem:[#allocation20 + $0x240] sm:$0xff]
    %v2949 = vld [vmem:[#allocation20 + $0x248] sm:$0xff]
    %v2950 = vld [vmem:[#allocation20 + $0x250] sm:$0xff]
    %v2951 = vld [vmem:[#allocation20 + $0x258] sm:$0xff]
    %v2952 = vld [vmem:[#allocation20 + $0x260] sm:$0xff]
    %v2953 = vld [vmem:[#allocation20 + $0x268] sm:$0xff]
    %v2954 = vld [vmem:[#allocation20 + $0x270] sm:$0xff]
    %v2955 = vld [vmem:[#allocation20 + $0x278] sm:$0xff]
    %v2956 = vld [vmem:[#allocation20 + $0x280] sm:$0xff]
    %v2957 = vld [vmem:[#allocation20 + $0x288] sm:$0xff]
    %v2958 = vld [vmem:[#allocation20 + $0x290] sm:$0xff]
    %v2959 = vld [vmem:[#allocation20 + $0x298] sm:$0xff]
    %v2960 = vld [vmem:[#allocation20 + $0x2a0] sm:$0xff]
    %v2961 = vld [vmem:[#allocation20 + $0x2a8] sm:$0xff]
    %v2962 = vld [vmem:[#allocation20 + $0x2b0] sm:$0xff]
    %v2963 = vld [vmem:[#allocation20 + $0x2b8] sm:$0xff]
    %v2964 = vld [vmem:[#allocation20 + $0x2c0] sm:$0xff]
    %v2965 = vld [vmem:[#allocation20 + $0x2c8] sm:$0xff]
    %v2966 = vld [vmem:[#allocation20 + $0x2d0] sm:$0xff]
    %v2967 = vld [vmem:[#allocation20 + $0x2d8] sm:$0xff]
    %v2968 = vld [vmem:[#allocation20 + $0x2e0] sm:$0xff]
    %v2969 = vld [vmem:[#allocation20 + $0x2e8] sm:$0xff]
    %v2970 = vld [vmem:[#allocation20 + $0x2f0] sm:$0xff]
    %v2971 = vld [vmem:[#allocation20 + $0x2f8] sm:$0xff]
    %v2972 = vld [vmem:[#allocation20 + $0x300] sm:$0xff]
    %v2973 = vld [vmem:[#allocation20 + $0x308] sm:$0xff]
    %v2974 = vld [vmem:[#allocation20 + $0x310] sm:$0xff]
    %v2975 = vld [vmem:[#allocation20 + $0x318] sm:$0xff]
    %v2976 = vld [vmem:[#allocation20 + $0x320] sm:$0xff]
    %v2977 = vld [vmem:[#allocation20 + $0x328] sm:$0xff]
    %v2978 = vld [vmem:[#allocation20 + $0x330] sm:$0xff]
    %v2979 = vld [vmem:[#allocation20 + $0x338] sm:$0xff]
    %v2980 = vld [vmem:[#allocation20 + $0x340] sm:$0xff]
    %v2981 = vld [vmem:[#allocation20 + $0x348] sm:$0xff]
    %v2982 = vld [vmem:[#allocation20 + $0x350] sm:$0xff]
    %v2983 = vld [vmem:[#allocation20 + $0x358] sm:$0xff]
    %v2984 = vld [vmem:[#allocation20 + $0x360] sm:$0xff]
    %v2985 = vld [vmem:[#allocation20 + $0x368] sm:$0xff]
    %v2986 = vld [vmem:[#allocation20 + $0x370] sm:$0xff]
    %v2987 = vld [vmem:[#allocation20 + $0x378] sm:$0xff]
    %v2988 = vld [vmem:[#allocation20 + $0x380] sm:$0xff]
    %v2989 = vld [vmem:[#allocation20 + $0x388] sm:$0xff]
    %v2990 = vld [vmem:[#allocation20 + $0x390] sm:$0xff]
    %v2991 = vld [vmem:[#allocation20 + $0x398] sm:$0xff]
    %v2992 = vld [vmem:[#allocation20 + $0x3a0] sm:$0xff]
    %v2993 = vld [vmem:[#allocation20 + $0x3a8] sm:$0xff]
    %v2994 = vld [vmem:[#allocation20 + $0x3b0] sm:$0xff]
    %v2995 = vld [vmem:[#allocation20 + $0x3b8] sm:$0xff]
    %v2996 = vld [vmem:[#allocation20 + $0x3c0] sm:$0xff]
    %v2997 = vld [vmem:[#allocation20 + $0x3c8] sm:$0xff]
    %v2998 = vld [vmem:[#allocation20 + $0x3d0] sm:$0xff]
    %v2999 = vld [vmem:[#allocation20 + $0x3d8] sm:$0xff]
    %v3000 = vld [vmem:[#allocation20 + $0x3e0] sm:$0xff]
    %v3001 = vld [vmem:[#allocation20 + $0x3e8] sm:$0xff]
    %v3002 = vld [vmem:[#allocation20 + $0x3f0] sm:$0xff]
    %v3003 = vld [vmem:[#allocation20 + $0x3f8] sm:$0xff]
    %3004 = vmatpush.msra.mxu0 %v2891
    %3005 = vmatpush.msra.mxu0 %v2890
    %3006 = vmatpush.msra.mxu0 %v2889
    %3007 = vmatpush.msra.mxu0 %v2888
    %3008 = vmatpush.msra.mxu0 %v2887
    %3009 = vmatpush.msra.mxu0 %v2886
    %3010 = vmatpush.msra.mxu0 %v2885
    %3011 = vmatpush.msra.mxu0 %v2884
    %3012 = vmatpush.msra.mxu0 %v2883
    %3013 = vmatpush.msra.mxu0 %v2882
    %3014 = vmatpush.msra.mxu0 %v2881
    %3015 = vmatpush.msra.mxu0 %v2880
    %3016 = vmatpush.msra.mxu0 %v2879
    %3017 = vmatpush.msra.mxu0 %v2878
    %3018 = vmatpush.msra.mxu0 %v2877
    %3019 = vmatpush.msra.mxu0 %v2876
    %3020 = vmatmul.f32.gmra.mxu0 %v2833
    %v3021 = vpop.f32.mrf.mxu0
    %v3022 = vadd.f32 0.0, %v3021
    %3023 = vdwg.mxu0
    %3024 = vmatpush.msra.mxu0 %v2907
    %3025 = vmatpush.msra.mxu0 %v2906
    %3026 = vmatpush.msra.mxu0 %v2905
    %3027 = vmatpush.msra.mxu0 %v2904
    %3028 = vmatpush.msra.mxu0 %v2903
    %3029 = vmatpush.msra.mxu0 %v2902
    %3030 = vmatpush.msra.mxu0 %v2901
    %3031 = vmatpush.msra.mxu0 %v2900
    %3032 = vmatpush.msra.mxu0 %v2899
    %3033 = vmatpush.msra.mxu0 %v2898
    %3034 = vmatpush.msra.mxu0 %v2897
    %3035 = vmatpush.msra.mxu0 %v2896
    %3036 = vmatpush.msra.mxu0 %v2895
    %3037 = vmatpush.msra.mxu0 %v2894
    %3038 = vmatpush.msra.mxu0 %v2893
    %3039 = vmatpush.msra.mxu0 %v2892
    %3040 = vmatmul.f32.gmra.mxu0 %v2839
    %v3041 = vpop.f32.mrf.mxu0
    %v3042 = vadd.f32 %v3022, %v3041
    %3043 = vdwg.mxu0
    %3044 = vmatpush.msra.mxu0 %v2923
    %3045 = vmatpush.msra.mxu0 %v2922
    %3046 = vmatpush.msra.mxu0 %v2921
    %3047 = vmatpush.msra.mxu0 %v2920
    %3048 = vmatpush.msra.mxu0 %v2919
    %3049 = vmatpush.msra.mxu0 %v2918
    %3050 = vmatpush.msra.mxu0 %v2917
    %3051 = vmatpush.msra.mxu0 %v2916
    %3052 = vmatpush.msra.mxu0 %v2915
    %3053 = vmatpush.msra.mxu0 %v2914
    %3054 = vmatpush.msra.mxu0 %v2913
    %3055 = vmatpush.msra.mxu0 %v2912
    %3056 = vmatpush.msra.mxu0 %v2911
    %3057 = vmatpush.msra.mxu0 %v2910
    %3058 = vmatpush.msra.mxu0 %v2909
    %3059 = vmatpush.msra.mxu0 %v2908
    %3060 = vmatmul.f32.gmra.mxu0 %v2845
    %v3061 = vpop.f32.mrf.mxu0
    %v3062 = vadd.f32 %v3042, %v3061
    %3063 = vdwg.mxu0
    %3064 = vmatpush.msra.mxu0 %v2939
    %3065 = vmatpush.msra.mxu0 %v2938
    %3066 = vmatpush.msra.mxu0 %v2937
    %3067 = vmatpush.msra.mxu0 %v2936
    %3068 = vmatpush.msra.mxu0 %v2935
    %3069 = vmatpush.msra.mxu0 %v2934
    %3070 = vmatpush.msra.mxu0 %v2933
    %3071 = vmatpush.msra.mxu0 %v2932
    %3072 = vmatpush.msra.mxu0 %v2931
    %3073 = vmatpush.msra.mxu0 %v2930
    %3074 = vmatpush.msra.mxu0 %v2929
    %3075 = vmatpush.msra.mxu0 %v2928
    %3076 = vmatpush.msra.mxu0 %v2927
    %3077 = vmatpush.msra.mxu0 %v2926
    %3078 = vmatpush.msra.mxu0 %v2925
    %3079 = vmatpush.msra.mxu0 %v2924
    %3080 = vmatmul.f32.gmra.mxu0 %v2851
    %v3081 = vpop.f32.mrf.mxu0
    %v3082 = vadd.f32 %v3062, %v3081
    %3083 = vdwg.mxu0
    %3084 = vmatpush.msra.mxu0 %v2955
    %3085 = vmatpush.msra.mxu0 %v2954
    %3086 = vmatpush.msra.mxu0 %v2953
    %3087 = vmatpush.msra.mxu0 %v2952
    %3088 = vmatpush.msra.mxu0 %v2951
    %3089 = vmatpush.msra.mxu0 %v2950
    %3090 = vmatpush.msra.mxu0 %v2949
    %3091 = vmatpush.msra.mxu0 %v2948
    %3092 = vmatpush.msra.mxu0 %v2947
    %3093 = vmatpush.msra.mxu0 %v2946
    %3094 = vmatpush.msra.mxu0 %v2945
    %3095 = vmatpush.msra.mxu0 %v2944
    %3096 = vmatpush.msra.mxu0 %v2943
    %3097 = vmatpush.msra.mxu0 %v2942
    %3098 = vmatpush.msra.mxu0 %v2941
    %3099 = vmatpush.msra.mxu0 %v2940
    %3100 = vmatmul.f32.gmra.mxu0 %v2857
    %v3101 = vpop.f32.mrf.mxu0
    %v3102 = vadd.f32 %v3082, %v3101
    %3103 = vdwg.mxu0
    %3104 = vmatpush.msra.mxu0 %v2971
    %3105 = vmatpush.msra.mxu0 %v2970
    %3106 = vmatpush.msra.mxu0 %v2969
    %3107 = vmatpush.msra.mxu0 %v2968
    %3108 = vmatpush.msra.mxu0 %v2967
    %3109 = vmatpush.msra.mxu0 %v2966
    %3110 = vmatpush.msra.mxu0 %v2965
    %3111 = vmatpush.msra.mxu0 %v2964
    %3112 = vmatpush.msra.mxu0 %v2963
    %3113 = vmatpush.msra.mxu0 %v2962
    %3114 = vmatpush.msra.mxu0 %v2961
    %3115 = vmatpush.msra.mxu0 %v2960
    %3116 = vmatpush.msra.mxu0 %v2959
    %3117 = vmatpush.msra.mxu0 %v2958
    %3118 = vmatpush.msra.mxu0 %v2957
    %3119 = vmatpush.msra.mxu0 %v2956
    %3120 = vmatmul.f32.gmra.mxu0 %v2863
    %v3121 = vpop.f32.mrf.mxu0
    %v3122 = vadd.f32 %v3102, %v3121
    %3123 = vdwg.mxu0
    %3124 = vmatpush.msra.mxu0 %v2987
    %3125 = vmatpush.msra.mxu0 %v2986
    %3126 = vmatpush.msra.mxu0 %v2985
    %3127 = vmatpush.msra.mxu0 %v2984
    %3128 = vmatpush.msra.mxu0 %v2983
    %3129 = vmatpush.msra.mxu0 %v2982
    %3130 = vmatpush.msra.mxu0 %v2981
    %3131 = vmatpush.msra.mxu0 %v2980
    %3132 = vmatpush.msra.mxu0 %v2979
    %3133 = vmatpush.msra.mxu0 %v2978
    %3134 = vmatpush.msra.mxu0 %v2977
    %3135 = vmatpush.msra.mxu0 %v2976
    %3136 = vmatpush.msra.mxu0 %v2975
    %3137 = vmatpush.msra.mxu0 %v2974
    %3138 = vmatpush.msra.mxu0 %v2973
    %3139 = vmatpush.msra.mxu0 %v2972
    %3140 = vmatmul.f32.gmra.mxu0 %v2869
    %v3141 = vpop.f32.mrf.mxu0
    %v3142 = vadd.f32 %v3122, %v3141
    %3143 = vdwg.mxu0
    %3144 = vmatpush.msra.mxu0 %v3003
    %3145 = vmatpush.msra.mxu0 %v3002
    %3146 = vmatpush.msra.mxu0 %v3001
    %3147 = vmatpush.msra.mxu0 %v3000
    %3148 = vmatpush.msra.mxu0 %v2999
    %3149 = vmatpush.msra.mxu0 %v2998
    %3150 = vmatpush.msra.mxu0 %v2997
    %3151 = vmatpush.msra.mxu0 %v2996
    %3152 = vmatpush.msra.mxu0 %v2995
    %3153 = vmatpush.msra.mxu0 %v2994
    %3154 = vmatpush.msra.mxu0 %v2993
    %3155 = vmatpush.msra.mxu0 %v2992
    %3156 = vmatpush.msra.mxu0 %v2991
    %3157 = vmatpush.msra.mxu0 %v2990
    %3158 = vmatpush.msra.mxu0 %v2989
    %3159 = vmatpush.msra.mxu0 %v2988
    %3160 = vmatmul.f32.gmra.mxu0 %v2875
    %v3161 = vpop.f32.mrf.mxu0
    %v3162 = vadd.f32 %v3142, %v3161
    %3163 = vdwg.mxu0
    %3164 = vmatpush.msra.mxu0 %v2634
    %3165 = vmatpush.msra.mxu0 %v2633
    %3166 = vmatpush.msra.mxu0 %v2632
    %3167 = vmatpush.msra.mxu0 %v2631
    %3168 = vmatpush.msra.mxu0 %v2630
    %3169 = vmatpush.msra.mxu0 %v2629
    %3170 = vmatpush.msra.mxu0 %v2628
    %3171 = vmatpush.msra.mxu0 %v2627
    %3172 = vmatpush.msra.mxu0 %v2626
    %3173 = vmatpush.msra.mxu0 %v2625
    %3174 = vmatpush.msra.mxu0 %v2624
    %3175 = vmatpush.msra.mxu0 %v2623
    %3176 = vmatpush.msra.mxu0 %v2622
    %3177 = vmatpush.msra.mxu0 %v2621
    %3178 = vmatpush.msra.mxu0 %v2620
    %3179 = vmatpush.msra.mxu0 %v2619
    %3180 = vmatmul.f32.gmra.mxu0 %v2618
    %v3181 = vpop.f32.mrf.mxu0
    %v3182 = vadd.f32 %v3162, %v3181
    %3183 = vdwg.mxu0
    %3184 = vst [vmem:[#allocation23] sm:$0x3] %v3182
    %v3185 = vld [vmem:[%s65] sm:$0xff]
    %v3186 = vld [vmem:[%s65 + $0x8] sm:$0xff]
    %v3187 = vld [vmem:[%s65 + $0x10] sm:$0xff]
    %v3188 = vld [vmem:[%s65 + $0x18] sm:$0xff]
    %v3189 = vld [vmem:[%s65 + $0x20] sm:$0xff]
    %v3190 = vld [vmem:[%s65 + $0x28] sm:$0xff]
    %v3191 = vld [vmem:[%s65 + $0x30] sm:$0xff]
    %v3192 = vld [vmem:[%s65 + $0x38] sm:$0xff]
    %v3193 = vld [vmem:[%s65 + $0x40] sm:$0xff]
    %v3194 = vld [vmem:[%s65 + $0x48] sm:$0xff]
    %v3195 = vld [vmem:[%s65 + $0x50] sm:$0xff]
    %v3196 = vld [vmem:[%s65 + $0x58] sm:$0xff]
    %v3197 = vld [vmem:[%s65 + $0x60] sm:$0xff]
    %v3198 = vld [vmem:[%s65 + $0x68] sm:$0xff]
    %v3199 = vld [vmem:[%s65 + $0x70] sm:$0xff]
    %v3200 = vld [vmem:[%s65 + $0x78] sm:$0xff]
    %3201 = vmatpush.msra.mxu0 %v3200
    %3202 = vmatpush.msra.mxu0 %v3199
    %3203 = vmatpush.msra.mxu0 %v3198
    %3204 = vmatpush.msra.mxu0 %v3197
    %3205 = vmatpush.msra.mxu0 %v3196
    %3206 = vmatpush.msra.mxu0 %v3195
    %3207 = vmatpush.msra.mxu0 %v3194
    %3208 = vmatpush.msra.mxu0 %v3193
    %3209 = vmatpush.msra.mxu0 %v3192
    %3210 = vmatpush.msra.mxu0 %v3191
    %3211 = vmatpush.msra.mxu0 %v3190
    %3212 = vmatpush.msra.mxu0 %v3189
    %3213 = vmatpush.msra.mxu0 %v3188
    %3214 = vmatpush.msra.mxu0 %v3187
    %3215 = vmatpush.msra.mxu0 %v3186
    %3216 = vmatpush.msra.mxu0 %v3185
    %3217 = vmatmul.f32.gmra.mxu0 %v3182
    %v3218 = vpop.f32.mrf.mxu0
    %v3219 = vadd.f32 0.0, %v3218
    %3220 = vdwg.mxu0
    %v3221 = vmul.f32 %v3182, %v3182
    %v3222 = vsel %vm360, %v3221, 0.0
    %3223 = vadd.xlane.f32.xlu0 %v3222
    %v3224 = vpop.xlane.xlu0 %3223
    %v3225 = vrsqrt.pop %v3224
    %v3226 = vmul.f32 %v3225, %v3224
    %v3227 = vmul.f32 %v3226, %v3225
    %v3228 = vmul.f32 0.5, %v3227
    %v3229 = vsub.f32 1.5, %v3228
    %v3230 = vmul.f32 %v3225, %v3229
    %v3231 = vmul.f32 %v3224, %v3230
    %vm3232 = vcmp.eq.f32.partialorder %v3224, inf
    %v3233 = vsel %vm3232, %v3224, %v3231
    %vm3234 = vcmp.eq.f32.partialorder %v3224, 0.0
    %v3235 = vand.u32 %v3224, 2147483648
    %v3236 = vsel %vm3234, %v3235, %v3233
    %v3237 = vmul.f32 %v3185, %v3185
    %v3238 = vmul.f32 %v3186, %v3186
    %v3239 = vmul.f32 %v3187, %v3187
    %v3240 = vmul.f32 %v3188, %v3188
    %v3241 = vmul.f32 %v3189, %v3189
    %v3242 = vmul.f32 %v3190, %v3190
    %v3243 = vmul.f32 %v3191, %v3191
    %v3244 = vmul.f32 %v3192, %v3192
    %v3245 = vmul.f32 %v3193, %v3193
    %v3246 = vmul.f32 %v3194, %v3194
    %v3247 = vmul.f32 %v3195, %v3195
    %v3248 = vmul.f32 %v3196, %v3196
    %v3249 = vmul.f32 %v3197, %v3197
    %v3250 = vmul.f32 %v3198, %v3198
    %v3251 = vmul.f32 %v3199, %v3199
    %v3252 = vmul.f32 %v3200, %v3200
    %vm3253 = vcmask 31744
    %v3254 = vsel %vm3253, %v3237, 0.0
    %v3255 = vsel %vm3253, %v3238, 0.0
    %v3256 = vadd.f32 %v3254, %v3255
    %v3257 = vsel %vm3253, %v3239, 0.0
    %v3258 = vadd.f32 %v3256, %v3257
    %v3259 = vsel %vm3253, %v3240, 0.0
    %v3260 = vadd.f32 %v3258, %v3259
    %v3261 = vsel %vm3253, %v3241, 0.0
    %v3262 = vadd.f32 %v3260, %v3261
    %v3263 = vsel %vm3253, %v3242, 0.0
    %v3264 = vadd.f32 %v3262, %v3263
    %v3265 = vsel %vm3253, %v3243, 0.0
    %v3266 = vadd.f32 %v3264, %v3265
    %v3267 = vsel %vm3253, %v3244, 0.0
    %v3268 = vadd.f32 %v3266, %v3267
    %v3269 = vsel %vm3253, %v3245, 0.0
    %v3270 = vadd.f32 %v3268, %v3269
    %v3271 = vsel %vm3253, %v3246, 0.0
    %v3272 = vadd.f32 %v3270, %v3271
    %v3273 = vsel %vm3253, %v3247, 0.0
    %v3274 = vadd.f32 %v3272, %v3273
    %v3275 = vsel %vm3253, %v3248, 0.0
    %v3276 = vadd.f32 %v3274, %v3275
    %v3277 = vsel %vm3253, %v3249, 0.0
    %v3278 = vadd.f32 %v3276, %v3277
    %v3279 = vsel %vm3253, %v3250, 0.0
    %v3280 = vadd.f32 %v3278, %v3279
    %v3281 = vsel %vm3253, %v3251, 0.0
    %v3282 = vadd.f32 %v3280, %v3281
    %v3283 = vsel %vm3253, %v3252, 0.0
    %v3284 = vadd.f32 %v3282, %v3283
    %v3285 = vrot.slane %v3284, 4
    %v3286 = vadd.f32 %v3284, %v3285
    %v3287 = vrot.slane %v3286, 2
    %v3288 = vadd.f32 %v3286, %v3287
    %v3289 = vrot.slane %v3288, 1
    %v3290 = vadd.f32 %v3288, %v3289
    %v3291 = vrsqrt.pop %v3290
    %v3292 = vmul.f32 %v3291, %v3290
    %v3293 = vmul.f32 %v3292, %v3291
    %v3294 = vmul.f32 0.5, %v3293
    %v3295 = vsub.f32 1.5, %v3294
    %v3296 = vmul.f32 %v3291, %v3295
    %v3297 = vmul.f32 %v3290, %v3296
    %vm3298 = vcmp.eq.f32.partialorder %v3290, inf
    %v3299 = vsel %vm3298, %v3290, %v3297
    %vm3300 = vcmp.eq.f32.partialorder %v3290, 0.0
    %v3301 = vand.u32 %v3290, 2147483648
    %v3302 = vsel %vm3300, %v3301, %v3299
    %v3303 = vmul.f32 %v3236, %v3302
    %v3304 = vmax.f32 %v3303, 1e-08
    %v3305 = vrcp.pop %v3304
    %v3306 = vmul.f32 %v3219, %v3305
    %vm3307 = vcmask 25600
    %v3308 = vsel %vm3307, %v3306, -inf
    %3309 = vmax.xlane.f32.xlu0 %v3308
    %v3310 = vpop.xlane.xlu0 %3309
    %v3311 = vcvt.s32.f32 %v335
    %vm3312 = vcmp.eq.f32.partialorder %v3306, %v3310
    %v3313 = vsel %vm3312, %v3311, 4.0
    %v3314 = vsel %vm3307, %v3313, inf
    %3315 = vmin.xlane.f32.xlu0 %v3314
    %v3316 = vpop.xlane.xlu0 %3315
    %v3317 = vcvt.f32.s32.to.zero.pseudo %v3316
    %vm3318 = vcmask 1024
    %3319 = vst.msk [vmem:[%s69] sm:$0x3] %vm3318, %v3317
    // Predicated region
    $region186: #{combined_forward.1} parent=1 // pred_check
      _
    $region187: #{combined_forward.1} parent=1 // pred_check_branch
      %3321 = sbr.rel (0) target = $region189
    $region188: #{combined_forward.1} parent=1 // pred_region
      %3323 = vsyncadd [#allocation4], 0
      %s3325 = sshll.u32 [#allocation23], 4
      %s3326 = int_to_ptr.vmem [resolvable:$true] %s3325
      %s3327 = sshll.u32 %s67, 4
      %s3328 = int_to_ptr.hbm [resolvable:$true] %s3327
      %3330 = dma.vmem_to_hbm [thread:$0]  %s3326, 32, %s3328, [#allocation4]
    $region189: #{combined_forward.1} parent=1 // pred_fallthru
      _
    // Predicated region
    $region190: #{combined_forward.1} parent=1 // pred_check
      _
    $region191: #{combined_forward.1} parent=1 // pred_check_branch
      %3332 = sbr.rel (0) target = $region193
    $region192: #{combined_forward.1} parent=1 // pred_region
      _
    $region193: #{combined_forward.1} parent=1 // pred_fallthru
      _
    // Predicated region
    $region194: #{combined_forward.1} parent=1 // pred_check
      _
    $region195: #{combined_forward.1} parent=1 // pred_check_branch
      %3334 = sbr.rel (0) target = $region197
    $region196: #{combined_forward.1} parent=1 // pred_region
      %3336 = dma.done [#allocation4], 32
    $region197: #{combined_forward.1} parent=1 // pred_fallthru
      _
    // Predicated region
    $region198: #{combined_forward.1} parent=1 // pred_check
      _
    $region199: #{combined_forward.1} parent=1 // pred_check_branch
      %3338 = sbr.rel (0) target = $region201
    $region200: #{combined_forward.1} parent=1 // pred_region
      _
    $region201: #{combined_forward.1} parent=1 // pred_fallthru
      _
    %3339 = vsyncpa [#allocation3], 1
    %3340 = vsyncpa [#allocation6], 1
    %3341 = vsyncpa [#allocation9], 1
    %3342 = vsyncpa [#allocation12], 1
    %3343 = vsyncpa [#allocation15], 1
    %3344 = vsyncpa [#allocation18], 1
    %3345 = vsyncpa [#allocation21], 1
    %3346 = vsyncpa [#allocation4], 1

</llo_original>
